<compile_context>
chip_gen: v7x
topology: tpu7x:2x2x1
jax: 0.10.0
libtpu: 0.0.40
codegen_flags: <defaults>
</compile_context>

<pallas_src>
import jax
import jax.numpy as jnp
from jax import lax
from jax.experimental import pallas as pl
from jax.experimental.pallas import tpu as pltpu

NUM_LAYERS = 2


def _dlstm_kernel(h0_ref, c0_ref, w_ref, b_ref, bfold_ref, out_ref):
    """Single invocation: the whole seq_len recurrence runs in an in-kernel loop.

    h0_ref, c0_ref : [L, B, H]     initial hidden / cell state
    w_ref          : [L, 2H, 4H]   stacked gate weights; layer 0 already has the
                                   output Linear folded in ([[w_out@w_ih0],[w_hh0]])
    b_ref          : [L, 1, 4H]    per-layer gate bias (b_ih + b_hh)
    bfold_ref      : [1, 4H]       b_out @ w_ih0   (added only for steps t > 0)
    out_ref        : [seq_len*B, H] dense output block (time-major rows)
    """
    L, B, H = h0_ref.shape
    seq_len = out_ref.shape[0] // B

    def sigmoid(z):
        # Exact, single EUP op (tanh) instead of exp + reciprocal.
        return 0.5 * jnp.tanh(0.5 * z) + 0.5

    # Hoist loop-invariant bias loads out of the step loop (not CSE'd otherwise).
    bias_v = [b_ref[l] for l in range(L)]      # each [1, 4H]
    bias_fold_v = bfold_ref[...]               # [1, 4H]

    def step(t, carry):
        prev_last, hs, cs = carry              # prev_last: [B, H]; hs/cs: L x [B, H]

        # Layer-0 bias: b0 for t == 0 (x0 = zeros), b0 + b_out@w_ih0 for t > 0.
        step_mask = (t > 0).astype(jnp.float32)
        b0_eff = bias_v[0] + step_mask * bias_fold_v

        inp = prev_last                        # folded: layer 0 consumes last_h_{t-1}
        new_h, new_c = [], []
        for l in range(L):
            bias = b0_eff if l == 0 else bias_v[l]
            # Fused input+hidden matmul: gates = [x, h] @ W_l + b_l (one MXU push).
            xh = jnp.concatenate([inp, hs[l]], axis=-1)          # [B, 2H]
            gates = jnp.dot(xh, w_ref[l],
                            preferred_element_type=jnp.float32) + bias   # [B, 4H]
            # Lane-aligned slices when H % 128 == 0 (gate order i, f, g, o).
            i_g = sigmoid(gates[:, 0 * H:1 * H])
            f_g = sigmoid(gates[:, 1 * H:2 * H])
            g_g = jnp.tanh(gates[:, 2 * H:3 * H])
            o_g = sigmoid(gates[:, 3 * H:4 * H])
            c_n = f_g * cs[l] + i_g * g_g
            h_n = o_g * jnp.tanh(c_n)
            new_h.append(h_n)
            new_c.append(c_n)
            inp = h_n                                            # feed next layer

        last = inp                                               # top-layer hidden [B, H]
        # Dense 128-lane row store into the VMEM-resident output block.
        out_ref[pl.ds(t * B, B), :] = last.astype(out_ref.dtype)
        return last, tuple(new_h), tuple(new_c)

    prev0 = jnp.zeros((B, H), jnp.float32)     # matches x0 = zeros in the module
    h_init = tuple(h0_ref[l] for l in range(L))
    c_init = tuple(c0_ref[l] for l in range(L))

    # Unroll policy: full unroll only for short decodes at small H; otherwise a
    # bounded unroll so live gate vregs (L * B * 4H / 1024 per in-flight iter)
    # stay well under the 64-vreg budget.
    if seq_len <= 32 and H <= 256:
        unroll = seq_len
    elif H <= 1024:
        unroll = min(4, seq_len)
    else:
        unroll = min(2, seq_len)

    lax.fori_loop(0, seq_len, step, (prev0, h_init, c_init), unroll=unroll)


def dlstm_forward(seq_len, h0, c0, w_ih, w_hh, b, w_out, b_out):
    """Runs the dLSTM decoder for `seq_len` steps.

    h0, c0:   [L, B, H]
    w_ih:     [L, input_size, 4H]   (PyTorch weight_ih, transposed)
    w_hh:     [L, H, 4H]            (PyTorch weight_hh, transposed)
    b:        [L, 1, 4H]            (b_ih + b_hh)
    w_out:    [H, input_size]       (PyTorch Linear weight, transposed)
    b_out:    [1, input_size]
    Returns:  [seq_len, B, H]  (B == 1 in the original module).
    """
    L, B, H = h0.shape
    in_size = w_ih.shape[1]
    assert L == NUM_LAYERS
    assert w_ih.shape == (L, in_size, 4 * H) and w_hh.shape == (L, H, 4 * H)
    assert b.shape == (L, 1, 4 * H)
    assert w_out.shape == (H, in_size) and b_out.shape == (1, in_size)
    # The module feeds the hidden->input Linear output (and an all-zero x0 of
    # width hidden) back into layer 0, so input_size == hidden_size is required.
    assert in_size == H, "dLSTM requires input_size == hidden_size"

    # Fold the output Linear into layer 0:
    #   x_t @ w_ih0 = last_h_{t-1} @ (w_out @ w_ih0) + b_out @ w_ih0   (t > 0)
    w0_x = jnp.dot(w_out, w_ih[0], preferred_element_type=jnp.float32)   # [H, 4H]
    bias_fold = jnp.dot(b_out, w_ih[0], preferred_element_type=jnp.float32)  # [1, 4H]
    w0 = jnp.concatenate([w0_x, w_hh[0]], axis=0)                         # [2H, 4H]
    w_rest = [jnp.concatenate([w_ih[l], w_hh[l]], axis=0) for l in range(1, L)]
    w = jnp.stack([w0] + w_rest)                                          # [L, 2H, 4H]

    # TODO(synk): for the module's real H=2048, stream bf16 weight panels from
    # HBM (memory_space=pl.ANY + double-buffered make_async_copy) instead of
    # pinning f32 weights in VMEM.

    vmem = lambda: pl.BlockSpec(memory_space=pltpu.MemorySpace.VMEM)
    out2d = pl.pallas_call(
        _dlstm_kernel,
        out_shape=jax.ShapeDtypeStruct((seq_len * B, H), jnp.float32),
        in_specs=[vmem() for _ in range(5)],
        out_specs=vmem(),
    )(h0, c0, w, b, bias_fold)
    return out2d.reshape(seq_len, B, H)


def dlstm_reference(seq_len, h0, c0, w_ih, w_hh, b, w_out, b_out):
    """Pure-JAX reference mirroring the PyTorch forward (unfolded)."""
    L, B, H = h0.shape
    x = jnp.zeros((B, w_out.shape[1]), jnp.float32)
    h = [h0[l] for l in range(L)]
    c = [c0[l] for l in range(L)]
    outs = []
    for _ in range(seq_len):
        inp = x
        for l in range(L):
            gates = inp @ w_ih[l] + h[l] @ w_hh[l] + b[l]
            i_g = jax.nn.sigmoid(gates[:, 0 * H:1 * H])
            f_g = jax.nn.sigmoid(gates[:, 1 * H:2 * H])
            g_g = jnp.tanh(gates[:, 2 * H:3 * H])
            o_g = jax.nn.sigmoid(gates[:, 3 * H:4 * H])
            c[l] = f_g * c[l] + i_g * g_g
            h[l] = o_g * jnp.tanh(c[l])
            inp = h[l]
        outs.append(inp)
        x = inp @ w_out + b_out
    return jnp.stack(outs)


if __name__ == "__main__":
    # Small shapes consistent with the module (original uses hidden=input=2048,
    # batch=1). hidden=128 keeps gate slices and the output rows lane-aligned.
    seq_len = 8
    batch = 1                 # dLSTM's init_hidden has batch dim 1
    hidden = 128
    input_size = 128          # module requires input_size == hidden_size
    L = NUM_LAYERS

    key = jax.random.PRNGKey(0)
    ks = jax.random.split(key, 7)

    # Deterministic synthetic parameters (PyTorch LSTMCell shapes, pre-transposed).
    w_ih = 0.1 * jax.random.normal(ks[0], (L, input_size, 4 * hidden), jnp.float32)
    w_hh = 0.1 * jax.random.normal(ks[1], (L, hidden, 4 * hidden), jnp.float32)
    b = 0.1 * jax.random.normal(ks[2], (L, 1, 4 * hidden), jnp.float32)   # b_ih + b_hh
    w_out = 0.1 * jax.random.normal(ks[3], (hidden, input_size), jnp.float32)
    b_out = 0.1 * jax.random.normal(ks[4], (1, input_size), jnp.float32)

    h0 = jax.random.normal(ks[5], (L, batch, hidden), jnp.float32)
    c0 = jax.random.normal(ks[6], (L, batch, hidden), jnp.float32)

    out = dlstm_forward(seq_len, h0, c0, w_ih, w_hh, b, w_out, b_out)
    out = jax.block_until_ready(out)

    ref = dlstm_reference(seq_len, h0, c0, w_ih, w_hh, b, w_out, b_out)
    assert out.shape == (seq_len, batch, hidden)
    # Exact tanh-based sigmoid (no approx reciprocal) -> tight tolerance; only
    # f32 associativity differences from the folded layer-0 weights remain.
    assert jnp.allclose(out, ref, atol=1e-3, rtol=1e-3), "mismatch vs reference"

    print("KERNEL_OK")
</pallas_src>

<mosaic_0001>
module attributes {stable_mosaic.version = 11 : i64} {
  func.func @_dlstm_kernel(%arg0: memref<2x1x128xf32, #tpu.memory_space<vmem>>, %arg1: memref<2x1x128xf32, #tpu.memory_space<vmem>>, %arg2: memref<2x256x512xf32, #tpu.memory_space<vmem>>, %arg3: memref<2x1x512xf32, #tpu.memory_space<vmem>>, %arg4: memref<1x512xf32, #tpu.memory_space<vmem>>, %arg5: memref<8x128xf32, #tpu.memory_space<vmem>>) attributes {dimension_semantics = [], scalar_prefetch = 0 : i64, scratch_operands = 0 : i64, tpu.core_type = #tpu.core_type<tc>} {
    %c0 = arith.constant 0 : index
    %c0_0 = arith.constant 0 : index
    %c0_1 = arith.constant 0 : index
    %0 = vector.load %arg3[%c0, %c0_0, %c0_1] : memref<2x1x512xf32, #tpu.memory_space<vmem>>, vector<1x1x512xf32>
    %1 = vector.shape_cast %0 : vector<1x1x512xf32> to vector<1x512xf32>
    %c1 = arith.constant 1 : index
    %c0_2 = arith.constant 0 : index
    %c0_3 = arith.constant 0 : index
    %2 = vector.load %arg3[%c1, %c0_2, %c0_3] : memref<2x1x512xf32, #tpu.memory_space<vmem>>, vector<1x1x512xf32>
    %3 = vector.shape_cast %2 : vector<1x1x512xf32> to vector<1x512xf32>
    %c0_4 = arith.constant 0 : index
    %c0_5 = arith.constant 0 : index
    %4 = vector.load %arg4[%c0_4, %c0_5] : memref<1x512xf32, #tpu.memory_space<vmem>>, vector<1x512xf32>
    %cst = arith.constant 0.000000e+00 : f32
    %5 = vector.broadcast %cst : f32 to vector<1x128xf32>
    %c0_6 = arith.constant 0 : index
    %c0_7 = arith.constant 0 : index
    %c0_8 = arith.constant 0 : index
    %6 = vector.load %arg0[%c0_6, %c0_7, %c0_8] : memref<2x1x128xf32, #tpu.memory_space<vmem>>, vector<1x1x128xf32>
    %7 = vector.shape_cast %6 : vector<1x1x128xf32> to vector<1x128xf32>
    %c1_9 = arith.constant 1 : index
    %c0_10 = arith.constant 0 : index
    %c0_11 = arith.constant 0 : index
    %8 = vector.load %arg0[%c1_9, %c0_10, %c0_11] : memref<2x1x128xf32, #tpu.memory_space<vmem>>, vector<1x1x128xf32>
    %9 = vector.shape_cast %8 : vector<1x1x128xf32> to vector<1x128xf32>
    %c0_12 = arith.constant 0 : index
    %c0_13 = arith.constant 0 : index
    %c0_14 = arith.constant 0 : index
    %10 = vector.load %arg1[%c0_12, %c0_13, %c0_14] : memref<2x1x128xf32, #tpu.memory_space<vmem>>, vector<1x1x128xf32>
    %11 = vector.shape_cast %10 : vector<1x1x128xf32> to vector<1x128xf32>
    %c1_15 = arith.constant 1 : index
    %c0_16 = arith.constant 0 : index
    %c0_17 = arith.constant 0 : index
    %12 = vector.load %arg1[%c1_15, %c0_16, %c0_17] : memref<2x1x128xf32, #tpu.memory_space<vmem>>, vector<1x1x128xf32>
    %13 = vector.shape_cast %12 : vector<1x1x128xf32> to vector<1x128xf32>
    %c0_i32 = arith.constant 0 : i32
    %c0_i32_18 = arith.constant 0 : i32
    %14 = arith.cmpi sgt, %c0_i32, %c0_i32_18 : i32
    %15 = arith.extui %14 : i1 to i32
    %16 = arith.sitofp %15 : i32 to f32
    %17 = vector.broadcast %16 : f32 to vector<1x512xf32>
    %18 = arith.mulf %17, %4 : vector<1x512xf32>
    %19 = arith.addf %1, %18 : vector<1x512xf32>
    %20 = tpu.concatenate %5, %7 in 1 : vector<1x128xf32>, vector<1x128xf32> -> vector<1x256xf32>
    %c0_19 = arith.constant 0 : index
    %c0_20 = arith.constant 0 : index
    %c0_21 = arith.constant 0 : index
    %21 = vector.load %arg2[%c0_19, %c0_20, %c0_21] : memref<2x256x512xf32, #tpu.memory_space<vmem>>, vector<1x256x512xf32>
    %22 = vector.shape_cast %21 : vector<1x256x512xf32> to vector<256x512xf32>
    %cst_22 = arith.constant dense<0.000000e+00> : vector<1x512xf32>
    %23 = tpu.matmul %20, %22, %cst_22 {dimension_numbers = #tpu.dot_dimension_numbers<[1], [0], [0], [1], [0, 0, 1, 1], [], []>} : vector<1x256xf32>, vector<256x512xf32>, vector<1x512xf32> -> vector<1x512xf32>
    %24 = arith.addf %23, %19 : vector<1x512xf32>
    %25 = vector.extract_strided_slice %24 {offsets = [0, 0], sizes = [1, 128], strides = [1, 1]} : vector<1x512xf32> to vector<1x128xf32>
    %cst_23 = arith.constant 5.000000e-01 : f32
    %26 = vector.broadcast %cst_23 : f32 to vector<1x128xf32>
    %27 = arith.mulf %26, %25 : vector<1x128xf32>
    %28 = math.tanh %27 : vector<1x128xf32>
    %cst_24 = arith.constant 5.000000e-01 : f32
    %29 = vector.broadcast %cst_24 : f32 to vector<1x128xf32>
    %30 = arith.mulf %29, %28 : vector<1x128xf32>
    %cst_25 = arith.constant 5.000000e-01 : f32
    %31 = vector.broadcast %cst_25 : f32 to vector<1x128xf32>
    %32 = arith.addf %30, %31 : vector<1x128xf32>
    %33 = vector.extract_strided_slice %24 {offsets = [0, 128], sizes = [1, 128], strides = [1, 1]} : vector<1x512xf32> to vector<1x128xf32>
    %cst_26 = arith.constant 5.000000e-01 : f32
    %34 = vector.broadcast %cst_26 : f32 to vector<1x128xf32>
    %35 = arith.mulf %34, %33 : vector<1x128xf32>
    %36 = math.tanh %35 : vector<1x128xf32>
    %cst_27 = arith.constant 5.000000e-01 : f32
    %37 = vector.broadcast %cst_27 : f32 to vector<1x128xf32>
    %38 = arith.mulf %37, %36 : vector<1x128xf32>
    %cst_28 = arith.constant 5.000000e-01 : f32
    %39 = vector.broadcast %cst_28 : f32 to vector<1x128xf32>
    %40 = arith.addf %38, %39 : vector<1x128xf32>
    %41 = vector.extract_strided_slice %24 {offsets = [0, 256], sizes = [1, 128], strides = [1, 1]} : vector<1x512xf32> to vector<1x128xf32>
    %42 = math.tanh %41 : vector<1x128xf32>
    %43 = vector.extract_strided_slice %24 {offsets = [0, 384], sizes = [1, 128], strides = [1, 1]} : vector<1x512xf32> to vector<1x128xf32>
    %cst_29 = arith.constant 5.000000e-01 : f32
    %44 = vector.broadcast %cst_29 : f32 to vector<1x128xf32>
    %45 = arith.mulf %44, %43 : vector<1x128xf32>
    %46 = math.tanh %45 : vector<1x128xf32>
    %cst_30 = arith.constant 5.000000e-01 : f32
    %47 = vector.broadcast %cst_30 : f32 to vector<1x128xf32>
    %48 = arith.mulf %47, %46 : vector<1x128xf32>
    %cst_31 = arith.constant 5.000000e-01 : f32
    %49 = vector.broadcast %cst_31 : f32 to vector<1x128xf32>
    %50 = arith.addf %48, %49 : vector<1x128xf32>
    %51 = arith.mulf %40, %11 : vector<1x128xf32>
    %52 = arith.mulf %32, %42 : vector<1x128xf32>
    %53 = arith.addf %51, %52 : vector<1x128xf32>
    %54 = math.tanh %53 : vector<1x128xf32>
    %55 = arith.mulf %50, %54 : vector<1x128xf32>
    %56 = tpu.concatenate %55, %9 in 1 : vector<1x128xf32>, vector<1x128xf32> -> vector<1x256xf32>
    %c1_32 = arith.constant 1 : index
    %c0_33 = arith.constant 0 : index
    %c0_34 = arith.constant 0 : index
    %57 = vector.load %arg2[%c1_32, %c0_33, %c0_34] : memref<2x256x512xf32, #tpu.memory_space<vmem>>, vector<1x256x512xf32>
    %58 = vector.shape_cast %57 : vector<1x256x512xf32> to vector<256x512xf32>
    %cst_35 = arith.constant dense<0.000000e+00> : vector<1x512xf32>
    %59 = tpu.matmul %56, %58, %cst_35 {dimension_numbers = #tpu.dot_dimension_numbers<[1], [0], [0], [1], [0, 0, 1, 1], [], []>} : vector<1x256xf32>, vector<256x512xf32>, vector<1x512xf32> -> vector<1x512xf32>
    %60 = arith.addf %59, %3 : vector<1x512xf32>
    %61 = vector.extract_strided_slice %60 {offsets = [0, 0], sizes = [1, 128], strides = [1, 1]} : vector<1x512xf32> to vector<1x128xf32>
    %cst_36 = arith.constant 5.000000e-01 : f32
    %62 = vector.broadcast %cst_36 : f32 to vector<1x128xf32>
    %63 = arith.mulf %62, %61 : vector<1x128xf32>
    %64 = math.tanh %63 : vector<1x128xf32>
    %cst_37 = arith.constant 5.000000e-01 : f32
    %65 = vector.broadcast %cst_37 : f32 to vector<1x128xf32>
    %66 = arith.mulf %65, %64 : vector<1x128xf32>
    %cst_38 = arith.constant 5.000000e-01 : f32
    %67 = vector.broadcast %cst_38 : f32 to vector<1x128xf32>
    %68 = arith.addf %66, %67 : vector<1x128xf32>
    %69 = vector.extract_strided_slice %60 {offsets = [0, 128], sizes = [1, 128], strides = [1, 1]} : vector<1x512xf32> to vector<1x128xf32>
    %cst_39 = arith.constant 5.000000e-01 : f32
    %70 = vector.broadcast %cst_39 : f32 to vector<1x128xf32>
    %71 = arith.mulf %70, %69 : vector<1x128xf32>
    %72 = math.tanh %71 : vector<1x128xf32>
    %cst_40 = arith.constant 5.000000e-01 : f32
    %73 = vector.broadcast %cst_40 : f32 to vector<1x128xf32>
    %74 = arith.mulf %73, %72 : vector<1x128xf32>
    %cst_41 = arith.constant 5.000000e-01 : f32
    %75 = vector.broadcast %cst_41 : f32 to vector<1x128xf32>
    %76 = arith.addf %74, %75 : vector<1x128xf32>
    %77 = vector.extract_strided_slice %60 {offsets = [0, 256], sizes = [1, 128], strides = [1, 1]} : vector<1x512xf32> to vector<1x128xf32>
    %78 = math.tanh %77 : vector<1x128xf32>
    %79 = vector.extract_strided_slice %60 {offsets = [0, 384], sizes = [1, 128], strides = [1, 1]} : vector<1x512xf32> to vector<1x128xf32>
    %cst_42 = arith.constant 5.000000e-01 : f32
    %80 = vector.broadcast %cst_42 : f32 to vector<1x128xf32>
    %81 = arith.mulf %80, %79 : vector<1x128xf32>
    %82 = math.tanh %81 : vector<1x128xf32>
    %cst_43 = arith.constant 5.000000e-01 : f32
    %83 = vector.broadcast %cst_43 : f32 to vector<1x128xf32>
    %84 = arith.mulf %83, %82 : vector<1x128xf32>
    %cst_44 = arith.constant 5.000000e-01 : f32
    %85 = vector.broadcast %cst_44 : f32 to vector<1x128xf32>
    %86 = arith.addf %84, %85 : vector<1x128xf32>
    %87 = arith.mulf %76, %13 : vector<1x128xf32>
    %88 = arith.mulf %68, %78 : vector<1x128xf32>
    %89 = arith.addf %87, %88 : vector<1x128xf32>
    %90 = math.tanh %89 : vector<1x128xf32>
    %91 = arith.mulf %86, %90 : vector<1x128xf32>
    %c1_i32 = arith.constant 1 : i32
    %92 = arith.muli %c0_i32, %c1_i32 : i32
    %93 = arith.index_cast %92 : i32 to index
    %c0_45 = arith.constant 0 : index
    %94 = vector.load %arg5[%93, %c0_45] : memref<8x128xf32, #tpu.memory_space<vmem>>, vector<1x128xf32>
    tpu.vector_store %arg5[%93, %c0_45], %91 {strides = array<i32>} : memref<8x128xf32, #tpu.memory_space<vmem>>, vector<1x128xf32>,
    %c1_i32_46 = arith.constant 1 : i32
    %c0_i32_47 = arith.constant 0 : i32
    %95 = arith.cmpi sgt, %c1_i32_46, %c0_i32_47 : i32
    %96 = arith.extui %95 : i1 to i32
    %97 = arith.sitofp %96 : i32 to f32
    %98 = vector.broadcast %97 : f32 to vector<1x512xf32>
    %99 = arith.mulf %98, %4 : vector<1x512xf32>
    %100 = arith.addf %1, %99 : vector<1x512xf32>
    %101 = tpu.concatenate %91, %55 in 1 : vector<1x128xf32>, vector<1x128xf32> -> vector<1x256xf32>
    %c0_48 = arith.constant 0 : index
    %c0_49 = arith.constant 0 : index
    %c0_50 = arith.constant 0 : index
    %102 = vector.load %arg2[%c0_48, %c0_49, %c0_50] : memref<2x256x512xf32, #tpu.memory_space<vmem>>, vector<1x256x512xf32>
    %103 = vector.shape_cast %102 : vector<1x256x512xf32> to vector<256x512xf32>
    %cst_51 = arith.constant dense<0.000000e+00> : vector<1x512xf32>
    %104 = tpu.matmul %101, %103, %cst_51 {dimension_numbers = #tpu.dot_dimension_numbers<[1], [0], [0], [1], [0, 0, 1, 1], [], []>} : vector<1x256xf32>, vector<256x512xf32>, vector<1x512xf32> -> vector<1x512xf32>
    %105 = arith.addf %104, %100 : vector<1x512xf32>
    %106 = vector.extract_strided_slice %105 {offsets = [0, 0], sizes = [1, 128], strides = [1, 1]} : vector<1x512xf32> to vector<1x128xf32>
    %cst_52 = arith.constant 5.000000e-01 : f32
    %107 = vector.broadcast %cst_52 : f32 to vector<1x128xf32>
    %108 = arith.mulf %107, %106 : vector<1x128xf32>
    %109 = math.tanh %108 : vector<1x128xf32>
    %cst_53 = arith.constant 5.000000e-01 : f32
    %110 = vector.broadcast %cst_53 : f32 to vector<1x128xf32>
    %111 = arith.mulf %110, %109 : vector<1x128xf32>
    %cst_54 = arith.constant 5.000000e-01 : f32
    %112 = vector.broadcast %cst_54 : f32 to vector<1x128xf32>
    %113 = arith.addf %111, %112 : vector<1x128xf32>
    %114 = vector.extract_strided_slice %105 {offsets = [0, 128], sizes = [1, 128], strides = [1, 1]} : vector<1x512xf32> to vector<1x128xf32>
    %cst_55 = arith.constant 5.000000e-01 : f32
    %115 = vector.broadcast %cst_55 : f32 to vector<1x128xf32>
    %116 = arith.mulf %115, %114 : vector<1x128xf32>
    %117 = math.tanh %116 : vector<1x128xf32>
    %cst_56 = arith.constant 5.000000e-01 : f32
    %118 = vector.broadcast %cst_56 : f32 to vector<1x128xf32>
    %119 = arith.mulf %118, %117 : vector<1x128xf32>
    %cst_57 = arith.constant 5.000000e-01 : f32
    %120 = vector.broadcast %cst_57 : f32 to vector<1x128xf32>
    %121 = arith.addf %119, %120 : vector<1x128xf32>
    %122 = vector.extract_strided_slice %105 {offsets = [0, 256], sizes = [1, 128], strides = [1, 1]} : vector<1x512xf32> to vector<1x128xf32>
    %123 = math.tanh %122 : vector<1x128xf32>
    %124 = vector.extract_strided_slice %105 {offsets = [0, 384], sizes = [1, 128], strides = [1, 1]} : vector<1x512xf32> to vector<1x128xf32>
    %cst_58 = arith.constant 5.000000e-01 : f32
    %125 = vector.broadcast %cst_58 : f32 to vector<1x128xf32>
    %126 = arith.mulf %125, %124 : vector<1x128xf32>
    %127 = math.tanh %126 : vector<1x128xf32>
    %cst_59 = arith.constant 5.000000e-01 : f32
    %128 = vector.broadcast %cst_59 : f32 to vector<1x128xf32>
    %129 = arith.mulf %128, %127 : vector<1x128xf32>
    %cst_60 = arith.constant 5.000000e-01 : f32
    %130 = vector.broadcast %cst_60 : f32 to vector<1x128xf32>
    %131 = arith.addf %129, %130 : vector<1x128xf32>
    %132 = arith.mulf %121, %53 : vector<1x128xf32>
    %133 = arith.mulf %113, %123 : vector<1x128xf32>
    %134 = arith.addf %132, %133 : vector<1x128xf32>
    %135 = math.tanh %134 : vector<1x128xf32>
    %136 = arith.mulf %131, %135 : vector<1x128xf32>
    %137 = tpu.concatenate %136, %91 in 1 : vector<1x128xf32>, vector<1x128xf32> -> vector<1x256xf32>
    %c1_61 = arith.constant 1 : index
    %c0_62 = arith.constant 0 : index
    %c0_63 = arith.constant 0 : index
    %138 = vector.load %arg2[%c1_61, %c0_62, %c0_63] : memref<2x256x512xf32, #tpu.memory_space<vmem>>, vector<1x256x512xf32>
    %139 = vector.shape_cast %138 : vector<1x256x512xf32> to vector<256x512xf32>
    %cst_64 = arith.constant dense<0.000000e+00> : vector<1x512xf32>
    %140 = tpu.matmul %137, %139, %cst_64 {dimension_numbers = #tpu.dot_dimension_numbers<[1], [0], [0], [1], [0, 0, 1, 1], [], []>} : vector<1x256xf32>, vector<256x512xf32>, vector<1x512xf32> -> vector<1x512xf32>
    %141 = arith.addf %140, %3 : vector<1x512xf32>
    %142 = vector.extract_strided_slice %141 {offsets = [0, 0], sizes = [1, 128], strides = [1, 1]} : vector<1x512xf32> to vector<1x128xf32>
    %cst_65 = arith.constant 5.000000e-01 : f32
    %143 = vector.broadcast %cst_65 : f32 to vector<1x128xf32>
    %144 = arith.mulf %143, %142 : vector<1x128xf32>
    %145 = math.tanh %144 : vector<1x128xf32>
    %cst_66 = arith.constant 5.000000e-01 : f32
    %146 = vector.broadcast %cst_66 : f32 to vector<1x128xf32>
    %147 = arith.mulf %146, %145 : vector<1x128xf32>
    %cst_67 = arith.constant 5.000000e-01 : f32
    %148 = vector.broadcast %cst_67 : f32 to vector<1x128xf32>
    %149 = arith.addf %147, %148 : vector<1x128xf32>
    %150 = vector.extract_strided_slice %141 {offsets = [0, 128], sizes = [1, 128], strides = [1, 1]} : vector<1x512xf32> to vector<1x128xf32>
    %cst_68 = arith.constant 5.000000e-01 : f32
    %151 = vector.broadcast %cst_68 : f32 to vector<1x128xf32>
    %152 = arith.mulf %151, %150 : vector<1x128xf32>
    %153 = math.tanh %152 : vector<1x128xf32>
    %cst_69 = arith.constant 5.000000e-01 : f32
    %154 = vector.broadcast %cst_69 : f32 to vector<1x128xf32>
    %155 = arith.mulf %154, %153 : vector<1x128xf32>
    %cst_70 = arith.constant 5.000000e-01 : f32
    %156 = vector.broadcast %cst_70 : f32 to vector<1x128xf32>
    %157 = arith.addf %155, %156 : vector<1x128xf32>
    %158 = vector.extract_strided_slice %141 {offsets = [0, 256], sizes = [1, 128], strides = [1, 1]} : vector<1x512xf32> to vector<1x128xf32>
    %159 = math.tanh %158 : vector<1x128xf32>
    %160 = vector.extract_strided_slice %141 {offsets = [0, 384], sizes = [1, 128], strides = [1, 1]} : vector<1x512xf32> to vector<1x128xf32>
    %cst_71 = arith.constant 5.000000e-01 : f32
    %161 = vector.broadcast %cst_71 : f32 to vector<1x128xf32>
    %162 = arith.mulf %161, %160 : vector<1x128xf32>
    %163 = math.tanh %162 : vector<1x128xf32>
    %cst_72 = arith.constant 5.000000e-01 : f32
    %164 = vector.broadcast %cst_72 : f32 to vector<1x128xf32>
    %165 = arith.mulf %164, %163 : vector<1x128xf32>
    %cst_73 = arith.constant 5.000000e-01 : f32
    %166 = vector.broadcast %cst_73 : f32 to vector<1x128xf32>
    %167 = arith.addf %165, %166 : vector<1x128xf32>
    %168 = arith.mulf %157, %89 : vector<1x128xf32>
    %169 = arith.mulf %149, %159 : vector<1x128xf32>
    %170 = arith.addf %168, %169 : vector<1x128xf32>
    %171 = math.tanh %170 : vector<1x128xf32>
    %172 = arith.mulf %167, %171 : vector<1x128xf32>
    %c1_i32_74 = arith.constant 1 : i32
    %173 = arith.muli %c1_i32_46, %c1_i32_74 : i32
    %174 = arith.index_cast %173 : i32 to index
    %c0_75 = arith.constant 0 : index
    %175 = vector.load %arg5[%174, %c0_75] : memref<8x128xf32, #tpu.memory_space<vmem>>, vector<1x128xf32>
    tpu.vector_store %arg5[%174, %c0_75], %172 {strides = array<i32>} : memref<8x128xf32, #tpu.memory_space<vmem>>, vector<1x128xf32>,
    %c2_i32 = arith.constant 2 : i32
    %c0_i32_76 = arith.constant 0 : i32
    %176 = arith.cmpi sgt, %c2_i32, %c0_i32_76 : i32
    %177 = arith.extui %176 : i1 to i32
    %178 = arith.sitofp %177 : i32 to f32
    %179 = vector.broadcast %178 : f32 to vector<1x512xf32>
    %180 = arith.mulf %179, %4 : vector<1x512xf32>
    %181 = arith.addf %1, %180 : vector<1x512xf32>
    %182 = tpu.concatenate %172, %136 in 1 : vector<1x128xf32>, vector<1x128xf32> -> vector<1x256xf32>
    %c0_77 = arith.constant 0 : index
    %c0_78 = arith.constant 0 : index
    %c0_79 = arith.constant 0 : index
    %183 = vector.load %arg2[%c0_77, %c0_78, %c0_79] : memref<2x256x512xf32, #tpu.memory_space<vmem>>, vector<1x256x512xf32>
    %184 = vector.shape_cast %183 : vector<1x256x512xf32> to vector<256x512xf32>
    %cst_80 = arith.constant dense<0.000000e+00> : vector<1x512xf32>
    %185 = tpu.matmul %182, %184, %cst_80 {dimension_numbers = #tpu.dot_dimension_numbers<[1], [0], [0], [1], [0, 0, 1, 1], [], []>} : vector<1x256xf32>, vector<256x512xf32>, vector<1x512xf32> -> vector<1x512xf32>
    %186 = arith.addf %185, %181 : vector<1x512xf32>
    %187 = vector.extract_strided_slice %186 {offsets = [0, 0], sizes = [1, 128], strides = [1, 1]} : vector<1x512xf32> to vector<1x128xf32>
    %cst_81 = arith.constant 5.000000e-01 : f32
    %188 = vector.broadcast %cst_81 : f32 to vector<1x128xf32>
    %189 = arith.mulf %188, %187 : vector<1x128xf32>
    %190 = math.tanh %189 : vector<1x128xf32>
    %cst_82 = arith.constant 5.000000e-01 : f32
    %191 = vector.broadcast %cst_82 : f32 to vector<1x128xf32>
    %192 = arith.mulf %191, %190 : vector<1x128xf32>
    %cst_83 = arith.constant 5.000000e-01 : f32
    %193 = vector.broadcast %cst_83 : f32 to vector<1x128xf32>
    %194 = arith.addf %192, %193 : vector<1x128xf32>
    %195 = vector.extract_strided_slice %186 {offsets = [0, 128], sizes = [1, 128], strides = [1, 1]} : vector<1x512xf32> to vector<1x128xf32>
    %cst_84 = arith.constant 5.000000e-01 : f32
    %196 = vector.broadcast %cst_84 : f32 to vector<1x128xf32>
    %197 = arith.mulf %196, %195 : vector<1x128xf32>
    %198 = math.tanh %197 : vector<1x128xf32>
    %cst_85 = arith.constant 5.000000e-01 : f32
    %199 = vector.broadcast %cst_85 : f32 to vector<1x128xf32>
    %200 = arith.mulf %199, %198 : vector<1x128xf32>
    %cst_86 = arith.constant 5.000000e-01 : f32
    %201 = vector.broadcast %cst_86 : f32 to vector<1x128xf32>
    %202 = arith.addf %200, %201 : vector<1x128xf32>
    %203 = vector.extract_strided_slice %186 {offsets = [0, 256], sizes = [1, 128], strides = [1, 1]} : vector<1x512xf32> to vector<1x128xf32>
    %204 = math.tanh %203 : vector<1x128xf32>
    %205 = vector.extract_strided_slice %186 {offsets = [0, 384], sizes = [1, 128], strides = [1, 1]} : vector<1x512xf32> to vector<1x128xf32>
    %cst_87 = arith.constant 5.000000e-01 : f32
    %206 = vector.broadcast %cst_87 : f32 to vector<1x128xf32>
    %207 = arith.mulf %206, %205 : vector<1x128xf32>
    %208 = math.tanh %207 : vector<1x128xf32>
    %cst_88 = arith.constant 5.000000e-01 : f32
    %209 = vector.broadcast %cst_88 : f32 to vector<1x128xf32>
    %210 = arith.mulf %209, %208 : vector<1x128xf32>
    %cst_89 = arith.constant 5.000000e-01 : f32
    %211 = vector.broadcast %cst_89 : f32 to vector<1x128xf32>
    %212 = arith.addf %210, %211 : vector<1x128xf32>
    %213 = arith.mulf %202, %134 : vector<1x128xf32>
    %214 = arith.mulf %194, %204 : vector<1x128xf32>
    %215 = arith.addf %213, %214 : vector<1x128xf32>
    %216 = math.tanh %215 : vector<1x128xf32>
    %217 = arith.mulf %212, %216 : vector<1x128xf32>
    %218 = tpu.concatenate %217, %172 in 1 : vector<1x128xf32>, vector<1x128xf32> -> vector<1x256xf32>
    %c1_90 = arith.constant 1 : index
    %c0_91 = arith.constant 0 : index
    %c0_92 = arith.constant 0 : index
    %219 = vector.load %arg2[%c1_90, %c0_91, %c0_92] : memref<2x256x512xf32, #tpu.memory_space<vmem>>, vector<1x256x512xf32>
    %220 = vector.shape_cast %219 : vector<1x256x512xf32> to vector<256x512xf32>
    %cst_93 = arith.constant dense<0.000000e+00> : vector<1x512xf32>
    %221 = tpu.matmul %218, %220, %cst_93 {dimension_numbers = #tpu.dot_dimension_numbers<[1], [0], [0], [1], [0, 0, 1, 1], [], []>} : vector<1x256xf32>, vector<256x512xf32>, vector<1x512xf32> -> vector<1x512xf32>
    %222 = arith.addf %221, %3 : vector<1x512xf32>
    %223 = vector.extract_strided_slice %222 {offsets = [0, 0], sizes = [1, 128], strides = [1, 1]} : vector<1x512xf32> to vector<1x128xf32>
    %cst_94 = arith.constant 5.000000e-01 : f32
    %224 = vector.broadcast %cst_94 : f32 to vector<1x128xf32>
    %225 = arith.mulf %224, %223 : vector<1x128xf32>
    %226 = math.tanh %225 : vector<1x128xf32>
    %cst_95 = arith.constant 5.000000e-01 : f32
    %227 = vector.broadcast %cst_95 : f32 to vector<1x128xf32>
    %228 = arith.mulf %227, %226 : vector<1x128xf32>
    %cst_96 = arith.constant 5.000000e-01 : f32
    %229 = vector.broadcast %cst_96 : f32 to vector<1x128xf32>
    %230 = arith.addf %228, %229 : vector<1x128xf32>
    %231 = vector.extract_strided_slice %222 {offsets = [0, 128], sizes = [1, 128], strides = [1, 1]} : vector<1x512xf32> to vector<1x128xf32>
    %cst_97 = arith.constant 5.000000e-01 : f32
    %232 = vector.broadcast %cst_97 : f32 to vector<1x128xf32>
    %233 = arith.mulf %232, %231 : vector<1x128xf32>
    %234 = math.tanh %233 : vector<1x128xf32>
    %cst_98 = arith.constant 5.000000e-01 : f32
    %235 = vector.broadcast %cst_98 : f32 to vector<1x128xf32>
    %236 = arith.mulf %235, %234 : vector<1x128xf32>
    %cst_99 = arith.constant 5.000000e-01 : f32
    %237 = vector.broadcast %cst_99 : f32 to vector<1x128xf32>
    %238 = arith.addf %236, %237 : vector<1x128xf32>
    %239 = vector.extract_strided_slice %222 {offsets = [0, 256], sizes = [1, 128], strides = [1, 1]} : vector<1x512xf32> to vector<1x128xf32>
    %240 = math.tanh %239 : vector<1x128xf32>
    %241 = vector.extract_strided_slice %222 {offsets = [0, 384], sizes = [1, 128], strides = [1, 1]} : vector<1x512xf32> to vector<1x128xf32>
    %cst_100 = arith.constant 5.000000e-01 : f32
    %242 = vector.broadcast %cst_100 : f32 to vector<1x128xf32>
    %243 = arith.mulf %242, %241 : vector<1x128xf32>
    %244 = math.tanh %243 : vector<1x128xf32>
    %cst_101 = arith.constant 5.000000e-01 : f32
    %245 = vector.broadcast %cst_101 : f32 to vector<1x128xf32>
    %246 = arith.mulf %245, %244 : vector<1x128xf32>
    %cst_102 = arith.constant 5.000000e-01 : f32
    %247 = vector.broadcast %cst_102 : f32 to vector<1x128xf32>
    %248 = arith.addf %246, %247 : vector<1x128xf32>
    %249 = arith.mulf %238, %170 : vector<1x128xf32>
    %250 = arith.mulf %230, %240 : vector<1x128xf32>
    %251 = arith.addf %249, %250 : vector<1x128xf32>
    %252 = math.tanh %251 : vector<1x128xf32>
    %253 = arith.mulf %248, %252 : vector<1x128xf32>
    %c1_i32_103 = arith.constant 1 : i32
    %254 = arith.muli %c2_i32, %c1_i32_103 : i32
    %255 = arith.index_cast %254 : i32 to index
    %c0_104 = arith.constant 0 : index
    %256 = vector.load %arg5[%255, %c0_104] : memref<8x128xf32, #tpu.memory_space<vmem>>, vector<1x128xf32>
    tpu.vector_store %arg5[%255, %c0_104], %253 {strides = array<i32>} : memref<8x128xf32, #tpu.memory_space<vmem>>, vector<1x128xf32>,
    %c3_i32 = arith.constant 3 : i32
    %c0_i32_105 = arith.constant 0 : i32
    %257 = arith.cmpi sgt, %c3_i32, %c0_i32_105 : i32
    %258 = arith.extui %257 : i1 to i32
    %259 = arith.sitofp %258 : i32 to f32
    %260 = vector.broadcast %259 : f32 to vector<1x512xf32>
    %261 = arith.mulf %260, %4 : vector<1x512xf32>
    %262 = arith.addf %1, %261 : vector<1x512xf32>
    %263 = tpu.concatenate %253, %217 in 1 : vector<1x128xf32>, vector<1x128xf32> -> vector<1x256xf32>
    %c0_106 = arith.constant 0 : index
    %c0_107 = arith.constant 0 : index
    %c0_108 = arith.constant 0 : index
    %264 = vector.load %arg2[%c0_106, %c0_107, %c0_108] : memref<2x256x512xf32, #tpu.memory_space<vmem>>, vector<1x256x512xf32>
    %265 = vector.shape_cast %264 : vector<1x256x512xf32> to vector<256x512xf32>
    %cst_109 = arith.constant dense<0.000000e+00> : vector<1x512xf32>
    %266 = tpu.matmul %263, %265, %cst_109 {dimension_numbers = #tpu.dot_dimension_numbers<[1], [0], [0], [1], [0, 0, 1, 1], [], []>} : vector<1x256xf32>, vector<256x512xf32>, vector<1x512xf32> -> vector<1x512xf32>
    %267 = arith.addf %266, %262 : vector<1x512xf32>
    %268 = vector.extract_strided_slice %267 {offsets = [0, 0], sizes = [1, 128], strides = [1, 1]} : vector<1x512xf32> to vector<1x128xf32>
    %cst_110 = arith.constant 5.000000e-01 : f32
    %269 = vector.broadcast %cst_110 : f32 to vector<1x128xf32>
    %270 = arith.mulf %269, %268 : vector<1x128xf32>
    %271 = math.tanh %270 : vector<1x128xf32>
    %cst_111 = arith.constant 5.000000e-01 : f32
    %272 = vector.broadcast %cst_111 : f32 to vector<1x128xf32>
    %273 = arith.mulf %272, %271 : vector<1x128xf32>
    %cst_112 = arith.constant 5.000000e-01 : f32
    %274 = vector.broadcast %cst_112 : f32 to vector<1x128xf32>
    %275 = arith.addf %273, %274 : vector<1x128xf32>
    %276 = vector.extract_strided_slice %267 {offsets = [0, 128], sizes = [1, 128], strides = [1, 1]} : vector<1x512xf32> to vector<1x128xf32>
    %cst_113 = arith.constant 5.000000e-01 : f32
    %277 = vector.broadcast %cst_113 : f32 to vector<1x128xf32>
    %278 = arith.mulf %277, %276 : vector<1x128xf32>
    %279 = math.tanh %278 : vector<1x128xf32>
    %cst_114 = arith.constant 5.000000e-01 : f32
    %280 = vector.broadcast %cst_114 : f32 to vector<1x128xf32>
    %281 = arith.mulf %280, %279 : vector<1x128xf32>
    %cst_115 = arith.constant 5.000000e-01 : f32
    %282 = vector.broadcast %cst_115 : f32 to vector<1x128xf32>
    %283 = arith.addf %281, %282 : vector<1x128xf32>
    %284 = vector.extract_strided_slice %267 {offsets = [0, 256], sizes = [1, 128], strides = [1, 1]} : vector<1x512xf32> to vector<1x128xf32>
    %285 = math.tanh %284 : vector<1x128xf32>
    %286 = vector.extract_strided_slice %267 {offsets = [0, 384], sizes = [1, 128], strides = [1, 1]} : vector<1x512xf32> to vector<1x128xf32>
    %cst_116 = arith.constant 5.000000e-01 : f32
    %287 = vector.broadcast %cst_116 : f32 to vector<1x128xf32>
    %288 = arith.mulf %287, %286 : vector<1x128xf32>
    %289 = math.tanh %288 : vector<1x128xf32>
    %cst_117 = arith.constant 5.000000e-01 : f32
    %290 = vector.broadcast %cst_117 : f32 to vector<1x128xf32>
    %291 = arith.mulf %290, %289 : vector<1x128xf32>
    %cst_118 = arith.constant 5.000000e-01 : f32
    %292 = vector.broadcast %cst_118 : f32 to vector<1x128xf32>
    %293 = arith.addf %291, %292 : vector<1x128xf32>
    %294 = arith.mulf %283, %215 : vector<1x128xf32>
    %295 = arith.mulf %275, %285 : vector<1x128xf32>
    %296 = arith.addf %294, %295 : vector<1x128xf32>
    %297 = math.tanh %296 : vector<1x128xf32>
    %298 = arith.mulf %293, %297 : vector<1x128xf32>
    %299 = tpu.concatenate %298, %253 in 1 : vector<1x128xf32>, vector<1x128xf32> -> vector<1x256xf32>
    %c1_119 = arith.constant 1 : index
    %c0_120 = arith.constant 0 : index
    %c0_121 = arith.constant 0 : index
    %300 = vector.load %arg2[%c1_119, %c0_120, %c0_121] : memref<2x256x512xf32, #tpu.memory_space<vmem>>, vector<1x256x512xf32>
    %301 = vector.shape_cast %300 : vector<1x256x512xf32> to vector<256x512xf32>
    %cst_122 = arith.constant dense<0.000000e+00> : vector<1x512xf32>
    %302 = tpu.matmul %299, %301, %cst_122 {dimension_numbers = #tpu.dot_dimension_numbers<[1], [0], [0], [1], [0, 0, 1, 1], [], []>} : vector<1x256xf32>, vector<256x512xf32>, vector<1x512xf32> -> vector<1x512xf32>
    %303 = arith.addf %302, %3 : vector<1x512xf32>
    %304 = vector.extract_strided_slice %303 {offsets = [0, 0], sizes = [1, 128], strides = [1, 1]} : vector<1x512xf32> to vector<1x128xf32>
    %cst_123 = arith.constant 5.000000e-01 : f32
    %305 = vector.broadcast %cst_123 : f32 to vector<1x128xf32>
    %306 = arith.mulf %305, %304 : vector<1x128xf32>
    %307 = math.tanh %306 : vector<1x128xf32>
    %cst_124 = arith.constant 5.000000e-01 : f32
    %308 = vector.broadcast %cst_124 : f32 to vector<1x128xf32>
    %309 = arith.mulf %308, %307 : vector<1x128xf32>
    %cst_125 = arith.constant 5.000000e-01 : f32
    %310 = vector.broadcast %cst_125 : f32 to vector<1x128xf32>
    %311 = arith.addf %309, %310 : vector<1x128xf32>
    %312 = vector.extract_strided_slice %303 {offsets = [0, 128], sizes = [1, 128], strides = [1, 1]} : vector<1x512xf32> to vector<1x128xf32>
    %cst_126 = arith.constant 5.000000e-01 : f32
    %313 = vector.broadcast %cst_126 : f32 to vector<1x128xf32>
    %314 = arith.mulf %313, %312 : vector<1x128xf32>
    %315 = math.tanh %314 : vector<1x128xf32>
    %cst_127 = arith.constant 5.000000e-01 : f32
    %316 = vector.broadcast %cst_127 : f32 to vector<1x128xf32>
    %317 = arith.mulf %316, %315 : vector<1x128xf32>
    %cst_128 = arith.constant 5.000000e-01 : f32
    %318 = vector.broadcast %cst_128 : f32 to vector<1x128xf32>
    %319 = arith.addf %317, %318 : vector<1x128xf32>
    %320 = vector.extract_strided_slice %303 {offsets = [0, 256], sizes = [1, 128], strides = [1, 1]} : vector<1x512xf32> to vector<1x128xf32>
    %321 = math.tanh %320 : vector<1x128xf32>
    %322 = vector.extract_strided_slice %303 {offsets = [0, 384], sizes = [1, 128], strides = [1, 1]} : vector<1x512xf32> to vector<1x128xf32>
    %cst_129 = arith.constant 5.000000e-01 : f32
    %323 = vector.broadcast %cst_129 : f32 to vector<1x128xf32>
    %324 = arith.mulf %323, %322 : vector<1x128xf32>
    %325 = math.tanh %324 : vector<1x128xf32>
    %cst_130 = arith.constant 5.000000e-01 : f32
    %326 = vector.broadcast %cst_130 : f32 to vector<1x128xf32>
    %327 = arith.mulf %326, %325 : vector<1x128xf32>
    %cst_131 = arith.constant 5.000000e-01 : f32
    %328 = vector.broadcast %cst_131 : f32 to vector<1x128xf32>
    %329 = arith.addf %327, %328 : vector<1x128xf32>
    %330 = arith.mulf %319, %251 : vector<1x128xf32>
    %331 = arith.mulf %311, %321 : vector<1x128xf32>
    %332 = arith.addf %330, %331 : vector<1x128xf32>
    %333 = math.tanh %332 : vector<1x128xf32>
    %334 = arith.mulf %329, %333 : vector<1x128xf32>
    %c1_i32_132 = arith.constant 1 : i32
    %335 = arith.muli %c3_i32, %c1_i32_132 : i32
    %336 = arith.index_cast %335 : i32 to index
    %c0_133 = arith.constant 0 : index
    %337 = vector.load %arg5[%336, %c0_133] : memref<8x128xf32, #tpu.memory_space<vmem>>, vector<1x128xf32>
    tpu.vector_store %arg5[%336, %c0_133], %334 {strides = array<i32>} : memref<8x128xf32, #tpu.memory_space<vmem>>, vector<1x128xf32>,
    %c4_i32 = arith.constant 4 : i32
    %c0_i32_134 = arith.constant 0 : i32
    %338 = arith.cmpi sgt, %c4_i32, %c0_i32_134 : i32
    %339 = arith.extui %338 : i1 to i32
    %340 = arith.sitofp %339 : i32 to f32
    %341 = vector.broadcast %340 : f32 to vector<1x512xf32>
    %342 = arith.mulf %341, %4 : vector<1x512xf32>
    %343 = arith.addf %1, %342 : vector<1x512xf32>
    %344 = tpu.concatenate %334, %298 in 1 : vector<1x128xf32>, vector<1x128xf32> -> vector<1x256xf32>
    %c0_135 = arith.constant 0 : index
    %c0_136 = arith.constant 0 : index
    %c0_137 = arith.constant 0 : index
    %345 = vector.load %arg2[%c0_135, %c0_136, %c0_137] : memref<2x256x512xf32, #tpu.memory_space<vmem>>, vector<1x256x512xf32>
    %346 = vector.shape_cast %345 : vector<1x256x512xf32> to vector<256x512xf32>
    %cst_138 = arith.constant dense<0.000000e+00> : vector<1x512xf32>
    %347 = tpu.matmul %344, %346, %cst_138 {dimension_numbers = #tpu.dot_dimension_numbers<[1], [0], [0], [1], [0, 0, 1, 1], [], []>} : vector<1x256xf32>, vector<256x512xf32>, vector<1x512xf32> -> vector<1x512xf32>
    %348 = arith.addf %347, %343 : vector<1x512xf32>
    %349 = vector.extract_strided_slice %348 {offsets = [0, 0], sizes = [1, 128], strides = [1, 1]} : vector<1x512xf32> to vector<1x128xf32>
    %cst_139 = arith.constant 5.000000e-01 : f32
    %350 = vector.broadcast %cst_139 : f32 to vector<1x128xf32>
    %351 = arith.mulf %350, %349 : vector<1x128xf32>
    %352 = math.tanh %351 : vector<1x128xf32>
    %cst_140 = arith.constant 5.000000e-01 : f32
    %353 = vector.broadcast %cst_140 : f32 to vector<1x128xf32>
    %354 = arith.mulf %353, %352 : vector<1x128xf32>
    %cst_141 = arith.constant 5.000000e-01 : f32
    %355 = vector.broadcast %cst_141 : f32 to vector<1x128xf32>
    %356 = arith.addf %354, %355 : vector<1x128xf32>
    %357 = vector.extract_strided_slice %348 {offsets = [0, 128], sizes = [1, 128], strides = [1, 1]} : vector<1x512xf32> to vector<1x128xf32>
    %cst_142 = arith.constant 5.000000e-01 : f32
    %358 = vector.broadcast %cst_142 : f32 to vector<1x128xf32>
    %359 = arith.mulf %358, %357 : vector<1x128xf32>
    %360 = math.tanh %359 : vector<1x128xf32>
    %cst_143 = arith.constant 5.000000e-01 : f32
    %361 = vector.broadcast %cst_143 : f32 to vector<1x128xf32>
    %362 = arith.mulf %361, %360 : vector<1x128xf32>
    %cst_144 = arith.constant 5.000000e-01 : f32
    %363 = vector.broadcast %cst_144 : f32 to vector<1x128xf32>
    %364 = arith.addf %362, %363 : vector<1x128xf32>
    %365 = vector.extract_strided_slice %348 {offsets = [0, 256], sizes = [1, 128], strides = [1, 1]} : vector<1x512xf32> to vector<1x128xf32>
    %366 = math.tanh %365 : vector<1x128xf32>
    %367 = vector.extract_strided_slice %348 {offsets = [0, 384], sizes = [1, 128], strides = [1, 1]} : vector<1x512xf32> to vector<1x128xf32>
    %cst_145 = arith.constant 5.000000e-01 : f32
    %368 = vector.broadcast %cst_145 : f32 to vector<1x128xf32>
    %369 = arith.mulf %368, %367 : vector<1x128xf32>
    %370 = math.tanh %369 : vector<1x128xf32>
    %cst_146 = arith.constant 5.000000e-01 : f32
    %371 = vector.broadcast %cst_146 : f32 to vector<1x128xf32>
    %372 = arith.mulf %371, %370 : vector<1x128xf32>
    %cst_147 = arith.constant 5.000000e-01 : f32
    %373 = vector.broadcast %cst_147 : f32 to vector<1x128xf32>
    %374 = arith.addf %372, %373 : vector<1x128xf32>
    %375 = arith.mulf %364, %296 : vector<1x128xf32>
    %376 = arith.mulf %356, %366 : vector<1x128xf32>
    %377 = arith.addf %375, %376 : vector<1x128xf32>
    %378 = math.tanh %377 : vector<1x128xf32>
    %379 = arith.mulf %374, %378 : vector<1x128xf32>
    %380 = tpu.concatenate %379, %334 in 1 : vector<1x128xf32>, vector<1x128xf32> -> vector<1x256xf32>
    %c1_148 = arith.constant 1 : index
    %c0_149 = arith.constant 0 : index
    %c0_150 = arith.constant 0 : index
    %381 = vector.load %arg2[%c1_148, %c0_149, %c0_150] : memref<2x256x512xf32, #tpu.memory_space<vmem>>, vector<1x256x512xf32>
    %382 = vector.shape_cast %381 : vector<1x256x512xf32> to vector<256x512xf32>
    %cst_151 = arith.constant dense<0.000000e+00> : vector<1x512xf32>
    %383 = tpu.matmul %380, %382, %cst_151 {dimension_numbers = #tpu.dot_dimension_numbers<[1], [0], [0], [1], [0, 0, 1, 1], [], []>} : vector<1x256xf32>, vector<256x512xf32>, vector<1x512xf32> -> vector<1x512xf32>
    %384 = arith.addf %383, %3 : vector<1x512xf32>
    %385 = vector.extract_strided_slice %384 {offsets = [0, 0], sizes = [1, 128], strides = [1, 1]} : vector<1x512xf32> to vector<1x128xf32>
    %cst_152 = arith.constant 5.000000e-01 : f32
    %386 = vector.broadcast %cst_152 : f32 to vector<1x128xf32>
    %387 = arith.mulf %386, %385 : vector<1x128xf32>
    %388 = math.tanh %387 : vector<1x128xf32>
    %cst_153 = arith.constant 5.000000e-01 : f32
    %389 = vector.broadcast %cst_153 : f32 to vector<1x128xf32>
    %390 = arith.mulf %389, %388 : vector<1x128xf32>
    %cst_154 = arith.constant 5.000000e-01 : f32
    %391 = vector.broadcast %cst_154 : f32 to vector<1x128xf32>
    %392 = arith.addf %390, %391 : vector<1x128xf32>
    %393 = vector.extract_strided_slice %384 {offsets = [0, 128], sizes = [1, 128], strides = [1, 1]} : vector<1x512xf32> to vector<1x128xf32>
    %cst_155 = arith.constant 5.000000e-01 : f32
    %394 = vector.broadcast %cst_155 : f32 to vector<1x128xf32>
    %395 = arith.mulf %394, %393 : vector<1x128xf32>
    %396 = math.tanh %395 : vector<1x128xf32>
    %cst_156 = arith.constant 5.000000e-01 : f32
    %397 = vector.broadcast %cst_156 : f32 to vector<1x128xf32>
    %398 = arith.mulf %397, %396 : vector<1x128xf32>
    %cst_157 = arith.constant 5.000000e-01 : f32
    %399 = vector.broadcast %cst_157 : f32 to vector<1x128xf32>
    %400 = arith.addf %398, %399 : vector<1x128xf32>
    %401 = vector.extract_strided_slice %384 {offsets = [0, 256], sizes = [1, 128], strides = [1, 1]} : vector<1x512xf32> to vector<1x128xf32>
    %402 = math.tanh %401 : vector<1x128xf32>
    %403 = vector.extract_strided_slice %384 {offsets = [0, 384], sizes = [1, 128], strides = [1, 1]} : vector<1x512xf32> to vector<1x128xf32>
    %cst_158 = arith.constant 5.000000e-01 : f32
    %404 = vector.broadcast %cst_158 : f32 to vector<1x128xf32>
    %405 = arith.mulf %404, %403 : vector<1x128xf32>
    %406 = math.tanh %405 : vector<1x128xf32>
    %cst_159 = arith.constant 5.000000e-01 : f32
    %407 = vector.broadcast %cst_159 : f32 to vector<1x128xf32>
    %408 = arith.mulf %407, %406 : vector<1x128xf32>
    %cst_160 = arith.constant 5.000000e-01 : f32
    %409 = vector.broadcast %cst_160 : f32 to vector<1x128xf32>
    %410 = arith.addf %408, %409 : vector<1x128xf32>
    %411 = arith.mulf %400, %332 : vector<1x128xf32>
    %412 = arith.mulf %392, %402 : vector<1x128xf32>
    %413 = arith.addf %411, %412 : vector<1x128xf32>
    %414 = math.tanh %413 : vector<1x128xf32>
    %415 = arith.mulf %410, %414 : vector<1x128xf32>
    %c1_i32_161 = arith.constant 1 : i32
    %416 = arith.muli %c4_i32, %c1_i32_161 : i32
    %417 = arith.index_cast %416 : i32 to index
    %c0_162 = arith.constant 0 : index
    %418 = vector.load %arg5[%417, %c0_162] : memref<8x128xf32, #tpu.memory_space<vmem>>, vector<1x128xf32>
    tpu.vector_store %arg5[%417, %c0_162], %415 {strides = array<i32>} : memref<8x128xf32, #tpu.memory_space<vmem>>, vector<1x128xf32>,
    %c5_i32 = arith.constant 5 : i32
    %c0_i32_163 = arith.constant 0 : i32
    %419 = arith.cmpi sgt, %c5_i32, %c0_i32_163 : i32
    %420 = arith.extui %419 : i1 to i32
    %421 = arith.sitofp %420 : i32 to f32
    %422 = vector.broadcast %421 : f32 to vector<1x512xf32>
    %423 = arith.mulf %422, %4 : vector<1x512xf32>
    %424 = arith.addf %1, %423 : vector<1x512xf32>
    %425 = tpu.concatenate %415, %379 in 1 : vector<1x128xf32>, vector<1x128xf32> -> vector<1x256xf32>
    %c0_164 = arith.constant 0 : index
    %c0_165 = arith.constant 0 : index
    %c0_166 = arith.constant 0 : index
    %426 = vector.load %arg2[%c0_164, %c0_165, %c0_166] : memref<2x256x512xf32, #tpu.memory_space<vmem>>, vector<1x256x512xf32>
    %427 = vector.shape_cast %426 : vector<1x256x512xf32> to vector<256x512xf32>
    %cst_167 = arith.constant dense<0.000000e+00> : vector<1x512xf32>
    %428 = tpu.matmul %425, %427, %cst_167 {dimension_numbers = #tpu.dot_dimension_numbers<[1], [0], [0], [1], [0, 0, 1, 1], [], []>} : vector<1x256xf32>, vector<256x512xf32>, vector<1x512xf32> -> vector<1x512xf32>
    %429 = arith.addf %428, %424 : vector<1x512xf32>
    %430 = vector.extract_strided_slice %429 {offsets = [0, 0], sizes = [1, 128], strides = [1, 1]} : vector<1x512xf32> to vector<1x128xf32>
    %cst_168 = arith.constant 5.000000e-01 : f32
    %431 = vector.broadcast %cst_168 : f32 to vector<1x128xf32>
    %432 = arith.mulf %431, %430 : vector<1x128xf32>
    %433 = math.tanh %432 : vector<1x128xf32>
    %cst_169 = arith.constant 5.000000e-01 : f32
    %434 = vector.broadcast %cst_169 : f32 to vector<1x128xf32>
    %435 = arith.mulf %434, %433 : vector<1x128xf32>
    %cst_170 = arith.constant 5.000000e-01 : f32
    %436 = vector.broadcast %cst_170 : f32 to vector<1x128xf32>
    %437 = arith.addf %435, %436 : vector<1x128xf32>
    %438 = vector.extract_strided_slice %429 {offsets = [0, 128], sizes = [1, 128], strides = [1, 1]} : vector<1x512xf32> to vector<1x128xf32>
    %cst_171 = arith.constant 5.000000e-01 : f32
    %439 = vector.broadcast %cst_171 : f32 to vector<1x128xf32>
    %440 = arith.mulf %439, %438 : vector<1x128xf32>
    %441 = math.tanh %440 : vector<1x128xf32>
    %cst_172 = arith.constant 5.000000e-01 : f32
    %442 = vector.broadcast %cst_172 : f32 to vector<1x128xf32>
    %443 = arith.mulf %442, %441 : vector<1x128xf32>
    %cst_173 = arith.constant 5.000000e-01 : f32
    %444 = vector.broadcast %cst_173 : f32 to vector<1x128xf32>
    %445 = arith.addf %443, %444 : vector<1x128xf32>
    %446 = vector.extract_strided_slice %429 {offsets = [0, 256], sizes = [1, 128], strides = [1, 1]} : vector<1x512xf32> to vector<1x128xf32>
    %447 = math.tanh %446 : vector<1x128xf32>
    %448 = vector.extract_strided_slice %429 {offsets = [0, 384], sizes = [1, 128], strides = [1, 1]} : vector<1x512xf32> to vector<1x128xf32>
    %cst_174 = arith.constant 5.000000e-01 : f32
    %449 = vector.broadcast %cst_174 : f32 to vector<1x128xf32>
    %450 = arith.mulf %449, %448 : vector<1x128xf32>
    %451 = math.tanh %450 : vector<1x128xf32>
    %cst_175 = arith.constant 5.000000e-01 : f32
    %452 = vector.broadcast %cst_175 : f32 to vector<1x128xf32>
    %453 = arith.mulf %452, %451 : vector<1x128xf32>
    %cst_176 = arith.constant 5.000000e-01 : f32
    %454 = vector.broadcast %cst_176 : f32 to vector<1x128xf32>
    %455 = arith.addf %453, %454 : vector<1x128xf32>
    %456 = arith.mulf %445, %377 : vector<1x128xf32>
    %457 = arith.mulf %437, %447 : vector<1x128xf32>
    %458 = arith.addf %456, %457 : vector<1x128xf32>
    %459 = math.tanh %458 : vector<1x128xf32>
    %460 = arith.mulf %455, %459 : vector<1x128xf32>
    %461 = tpu.concatenate %460, %415 in 1 : vector<1x128xf32>, vector<1x128xf32> -> vector<1x256xf32>
    %c1_177 = arith.constant 1 : index
    %c0_178 = arith.constant 0 : index
    %c0_179 = arith.constant 0 : index
    %462 = vector.load %arg2[%c1_177, %c0_178, %c0_179] : memref<2x256x512xf32, #tpu.memory_space<vmem>>, vector<1x256x512xf32>
    %463 = vector.shape_cast %462 : vector<1x256x512xf32> to vector<256x512xf32>
    %cst_180 = arith.constant dense<0.000000e+00> : vector<1x512xf32>
    %464 = tpu.matmul %461, %463, %cst_180 {dimension_numbers = #tpu.dot_dimension_numbers<[1], [0], [0], [1], [0, 0, 1, 1], [], []>} : vector<1x256xf32>, vector<256x512xf32>, vector<1x512xf32> -> vector<1x512xf32>
    %465 = arith.addf %464, %3 : vector<1x512xf32>
    %466 = vector.extract_strided_slice %465 {offsets = [0, 0], sizes = [1, 128], strides = [1, 1]} : vector<1x512xf32> to vector<1x128xf32>
    %cst_181 = arith.constant 5.000000e-01 : f32
    %467 = vector.broadcast %cst_181 : f32 to vector<1x128xf32>
    %468 = arith.mulf %467, %466 : vector<1x128xf32>
    %469 = math.tanh %468 : vector<1x128xf32>
    %cst_182 = arith.constant 5.000000e-01 : f32
    %470 = vector.broadcast %cst_182 : f32 to vector<1x128xf32>
    %471 = arith.mulf %470, %469 : vector<1x128xf32>
    %cst_183 = arith.constant 5.000000e-01 : f32
    %472 = vector.broadcast %cst_183 : f32 to vector<1x128xf32>
    %473 = arith.addf %471, %472 : vector<1x128xf32>
    %474 = vector.extract_strided_slice %465 {offsets = [0, 128], sizes = [1, 128], strides = [1, 1]} : vector<1x512xf32> to vector<1x128xf32>
    %cst_184 = arith.constant 5.000000e-01 : f32
    %475 = vector.broadcast %cst_184 : f32 to vector<1x128xf32>
    %476 = arith.mulf %475, %474 : vector<1x128xf32>
    %477 = math.tanh %476 : vector<1x128xf32>
    %cst_185 = arith.constant 5.000000e-01 : f32
    %478 = vector.broadcast %cst_185 : f32 to vector<1x128xf32>
    %479 = arith.mulf %478, %477 : vector<1x128xf32>
    %cst_186 = arith.constant 5.000000e-01 : f32
    %480 = vector.broadcast %cst_186 : f32 to vector<1x128xf32>
    %481 = arith.addf %479, %480 : vector<1x128xf32>
    %482 = vector.extract_strided_slice %465 {offsets = [0, 256], sizes = [1, 128], strides = [1, 1]} : vector<1x512xf32> to vector<1x128xf32>
    %483 = math.tanh %482 : vector<1x128xf32>
    %484 = vector.extract_strided_slice %465 {offsets = [0, 384], sizes = [1, 128], strides = [1, 1]} : vector<1x512xf32> to vector<1x128xf32>
    %cst_187 = arith.constant 5.000000e-01 : f32
    %485 = vector.broadcast %cst_187 : f32 to vector<1x128xf32>
    %486 = arith.mulf %485, %484 : vector<1x128xf32>
    %487 = math.tanh %486 : vector<1x128xf32>
    %cst_188 = arith.constant 5.000000e-01 : f32
    %488 = vector.broadcast %cst_188 : f32 to vector<1x128xf32>
    %489 = arith.mulf %488, %487 : vector<1x128xf32>
    %cst_189 = arith.constant 5.000000e-01 : f32
    %490 = vector.broadcast %cst_189 : f32 to vector<1x128xf32>
    %491 = arith.addf %489, %490 : vector<1x128xf32>
    %492 = arith.mulf %481, %413 : vector<1x128xf32>
    %493 = arith.mulf %473, %483 : vector<1x128xf32>
    %494 = arith.addf %492, %493 : vector<1x128xf32>
    %495 = math.tanh %494 : vector<1x128xf32>
    %496 = arith.mulf %491, %495 : vector<1x128xf32>
    %c1_i32_190 = arith.constant 1 : i32
    %497 = arith.muli %c5_i32, %c1_i32_190 : i32
    %498 = arith.index_cast %497 : i32 to index
    %c0_191 = arith.constant 0 : index
    %499 = vector.load %arg5[%498, %c0_191] : memref<8x128xf32, #tpu.memory_space<vmem>>, vector<1x128xf32>
    tpu.vector_store %arg5[%498, %c0_191], %496 {strides = array<i32>} : memref<8x128xf32, #tpu.memory_space<vmem>>, vector<1x128xf32>,
    %c6_i32 = arith.constant 6 : i32
    %c0_i32_192 = arith.constant 0 : i32
    %500 = arith.cmpi sgt, %c6_i32, %c0_i32_192 : i32
    %501 = arith.extui %500 : i1 to i32
    %502 = arith.sitofp %501 : i32 to f32
    %503 = vector.broadcast %502 : f32 to vector<1x512xf32>
    %504 = arith.mulf %503, %4 : vector<1x512xf32>
    %505 = arith.addf %1, %504 : vector<1x512xf32>
    %506 = tpu.concatenate %496, %460 in 1 : vector<1x128xf32>, vector<1x128xf32> -> vector<1x256xf32>
    %c0_193 = arith.constant 0 : index
    %c0_194 = arith.constant 0 : index
    %c0_195 = arith.constant 0 : index
    %507 = vector.load %arg2[%c0_193, %c0_194, %c0_195] : memref<2x256x512xf32, #tpu.memory_space<vmem>>, vector<1x256x512xf32>
    %508 = vector.shape_cast %507 : vector<1x256x512xf32> to vector<256x512xf32>
    %cst_196 = arith.constant dense<0.000000e+00> : vector<1x512xf32>
    %509 = tpu.matmul %506, %508, %cst_196 {dimension_numbers = #tpu.dot_dimension_numbers<[1], [0], [0], [1], [0, 0, 1, 1], [], []>} : vector<1x256xf32>, vector<256x512xf32>, vector<1x512xf32> -> vector<1x512xf32>
    %510 = arith.addf %509, %505 : vector<1x512xf32>
    %511 = vector.extract_strided_slice %510 {offsets = [0, 0], sizes = [1, 128], strides = [1, 1]} : vector<1x512xf32> to vector<1x128xf32>
    %cst_197 = arith.constant 5.000000e-01 : f32
    %512 = vector.broadcast %cst_197 : f32 to vector<1x128xf32>
    %513 = arith.mulf %512, %511 : vector<1x128xf32>
    %514 = math.tanh %513 : vector<1x128xf32>
    %cst_198 = arith.constant 5.000000e-01 : f32
    %515 = vector.broadcast %cst_198 : f32 to vector<1x128xf32>
    %516 = arith.mulf %515, %514 : vector<1x128xf32>
    %cst_199 = arith.constant 5.000000e-01 : f32
    %517 = vector.broadcast %cst_199 : f32 to vector<1x128xf32>
    %518 = arith.addf %516, %517 : vector<1x128xf32>
    %519 = vector.extract_strided_slice %510 {offsets = [0, 128], sizes = [1, 128], strides = [1, 1]} : vector<1x512xf32> to vector<1x128xf32>
    %cst_200 = arith.constant 5.000000e-01 : f32
    %520 = vector.broadcast %cst_200 : f32 to vector<1x128xf32>
    %521 = arith.mulf %520, %519 : vector<1x128xf32>
    %522 = math.tanh %521 : vector<1x128xf32>
    %cst_201 = arith.constant 5.000000e-01 : f32
    %523 = vector.broadcast %cst_201 : f32 to vector<1x128xf32>
    %524 = arith.mulf %523, %522 : vector<1x128xf32>
    %cst_202 = arith.constant 5.000000e-01 : f32
    %525 = vector.broadcast %cst_202 : f32 to vector<1x128xf32>
    %526 = arith.addf %524, %525 : vector<1x128xf32>
    %527 = vector.extract_strided_slice %510 {offsets = [0, 256], sizes = [1, 128], strides = [1, 1]} : vector<1x512xf32> to vector<1x128xf32>
    %528 = math.tanh %527 : vector<1x128xf32>
    %529 = vector.extract_strided_slice %510 {offsets = [0, 384], sizes = [1, 128], strides = [1, 1]} : vector<1x512xf32> to vector<1x128xf32>
    %cst_203 = arith.constant 5.000000e-01 : f32
    %530 = vector.broadcast %cst_203 : f32 to vector<1x128xf32>
    %531 = arith.mulf %530, %529 : vector<1x128xf32>
    %532 = math.tanh %531 : vector<1x128xf32>
    %cst_204 = arith.constant 5.000000e-01 : f32
    %533 = vector.broadcast %cst_204 : f32 to vector<1x128xf32>
    %534 = arith.mulf %533, %532 : vector<1x128xf32>
    %cst_205 = arith.constant 5.000000e-01 : f32
    %535 = vector.broadcast %cst_205 : f32 to vector<1x128xf32>
    %536 = arith.addf %534, %535 : vector<1x128xf32>
    %537 = arith.mulf %526, %458 : vector<1x128xf32>
    %538 = arith.mulf %518, %528 : vector<1x128xf32>
    %539 = arith.addf %537, %538 : vector<1x128xf32>
    %540 = math.tanh %539 : vector<1x128xf32>
    %541 = arith.mulf %536, %540 : vector<1x128xf32>
    %542 = tpu.concatenate %541, %496 in 1 : vector<1x128xf32>, vector<1x128xf32> -> vector<1x256xf32>
    %c1_206 = arith.constant 1 : index
    %c0_207 = arith.constant 0 : index
    %c0_208 = arith.constant 0 : index
    %543 = vector.load %arg2[%c1_206, %c0_207, %c0_208] : memref<2x256x512xf32, #tpu.memory_space<vmem>>, vector<1x256x512xf32>
    %544 = vector.shape_cast %543 : vector<1x256x512xf32> to vector<256x512xf32>
    %cst_209 = arith.constant dense<0.000000e+00> : vector<1x512xf32>
    %545 = tpu.matmul %542, %544, %cst_209 {dimension_numbers = #tpu.dot_dimension_numbers<[1], [0], [0], [1], [0, 0, 1, 1], [], []>} : vector<1x256xf32>, vector<256x512xf32>, vector<1x512xf32> -> vector<1x512xf32>
    %546 = arith.addf %545, %3 : vector<1x512xf32>
    %547 = vector.extract_strided_slice %546 {offsets = [0, 0], sizes = [1, 128], strides = [1, 1]} : vector<1x512xf32> to vector<1x128xf32>
    %cst_210 = arith.constant 5.000000e-01 : f32
    %548 = vector.broadcast %cst_210 : f32 to vector<1x128xf32>
    %549 = arith.mulf %548, %547 : vector<1x128xf32>
    %550 = math.tanh %549 : vector<1x128xf32>
    %cst_211 = arith.constant 5.000000e-01 : f32
    %551 = vector.broadcast %cst_211 : f32 to vector<1x128xf32>
    %552 = arith.mulf %551, %550 : vector<1x128xf32>
    %cst_212 = arith.constant 5.000000e-01 : f32
    %553 = vector.broadcast %cst_212 : f32 to vector<1x128xf32>
    %554 = arith.addf %552, %553 : vector<1x128xf32>
    %555 = vector.extract_strided_slice %546 {offsets = [0, 128], sizes = [1, 128], strides = [1, 1]} : vector<1x512xf32> to vector<1x128xf32>
    %cst_213 = arith.constant 5.000000e-01 : f32
    %556 = vector.broadcast %cst_213 : f32 to vector<1x128xf32>
    %557 = arith.mulf %556, %555 : vector<1x128xf32>
    %558 = math.tanh %557 : vector<1x128xf32>
    %cst_214 = arith.constant 5.000000e-01 : f32
    %559 = vector.broadcast %cst_214 : f32 to vector<1x128xf32>
    %560 = arith.mulf %559, %558 : vector<1x128xf32>
    %cst_215 = arith.constant 5.000000e-01 : f32
    %561 = vector.broadcast %cst_215 : f32 to vector<1x128xf32>
    %562 = arith.addf %560, %561 : vector<1x128xf32>
    %563 = vector.extract_strided_slice %546 {offsets = [0, 256], sizes = [1, 128], strides = [1, 1]} : vector<1x512xf32> to vector<1x128xf32>
    %564 = math.tanh %563 : vector<1x128xf32>
    %565 = vector.extract_strided_slice %546 {offsets = [0, 384], sizes = [1, 128], strides = [1, 1]} : vector<1x512xf32> to vector<1x128xf32>
    %cst_216 = arith.constant 5.000000e-01 : f32
    %566 = vector.broadcast %cst_216 : f32 to vector<1x128xf32>
    %567 = arith.mulf %566, %565 : vector<1x128xf32>
    %568 = math.tanh %567 : vector<1x128xf32>
    %cst_217 = arith.constant 5.000000e-01 : f32
    %569 = vector.broadcast %cst_217 : f32 to vector<1x128xf32>
    %570 = arith.mulf %569, %568 : vector<1x128xf32>
    %cst_218 = arith.constant 5.000000e-01 : f32
    %571 = vector.broadcast %cst_218 : f32 to vector<1x128xf32>
    %572 = arith.addf %570, %571 : vector<1x128xf32>
    %573 = arith.mulf %562, %494 : vector<1x128xf32>
    %574 = arith.mulf %554, %564 : vector<1x128xf32>
    %575 = arith.addf %573, %574 : vector<1x128xf32>
    %576 = math.tanh %575 : vector<1x128xf32>
    %577 = arith.mulf %572, %576 : vector<1x128xf32>
    %c1_i32_219 = arith.constant 1 : i32
    %578 = arith.muli %c6_i32, %c1_i32_219 : i32
    %579 = arith.index_cast %578 : i32 to index
    %c0_220 = arith.constant 0 : index
    %580 = vector.load %arg5[%579, %c0_220] : memref<8x128xf32, #tpu.memory_space<vmem>>, vector<1x128xf32>
    tpu.vector_store %arg5[%579, %c0_220], %577 {strides = array<i32>} : memref<8x128xf32, #tpu.memory_space<vmem>>, vector<1x128xf32>,
    %c7_i32 = arith.constant 7 : i32
    %c0_i32_221 = arith.constant 0 : i32
    %581 = arith.cmpi sgt, %c7_i32, %c0_i32_221 : i32
    %582 = arith.extui %581 : i1 to i32
    %583 = arith.sitofp %582 : i32 to f32
    %584 = vector.broadcast %583 : f32 to vector<1x512xf32>
    %585 = arith.mulf %584, %4 : vector<1x512xf32>
    %586 = arith.addf %1, %585 : vector<1x512xf32>
    %587 = tpu.concatenate %577, %541 in 1 : vector<1x128xf32>, vector<1x128xf32> -> vector<1x256xf32>
    %c0_222 = arith.constant 0 : index
    %c0_223 = arith.constant 0 : index
    %c0_224 = arith.constant 0 : index
    %588 = vector.load %arg2[%c0_222, %c0_223, %c0_224] : memref<2x256x512xf32, #tpu.memory_space<vmem>>, vector<1x256x512xf32>
    %589 = vector.shape_cast %588 : vector<1x256x512xf32> to vector<256x512xf32>
    %cst_225 = arith.constant dense<0.000000e+00> : vector<1x512xf32>
    %590 = tpu.matmul %587, %589, %cst_225 {dimension_numbers = #tpu.dot_dimension_numbers<[1], [0], [0], [1], [0, 0, 1, 1], [], []>} : vector<1x256xf32>, vector<256x512xf32>, vector<1x512xf32> -> vector<1x512xf32>
    %591 = arith.addf %590, %586 : vector<1x512xf32>
    %592 = vector.extract_strided_slice %591 {offsets = [0, 0], sizes = [1, 128], strides = [1, 1]} : vector<1x512xf32> to vector<1x128xf32>
    %cst_226 = arith.constant 5.000000e-01 : f32
    %593 = vector.broadcast %cst_226 : f32 to vector<1x128xf32>
    %594 = arith.mulf %593, %592 : vector<1x128xf32>
    %595 = math.tanh %594 : vector<1x128xf32>
    %cst_227 = arith.constant 5.000000e-01 : f32
    %596 = vector.broadcast %cst_227 : f32 to vector<1x128xf32>
    %597 = arith.mulf %596, %595 : vector<1x128xf32>
    %cst_228 = arith.constant 5.000000e-01 : f32
    %598 = vector.broadcast %cst_228 : f32 to vector<1x128xf32>
    %599 = arith.addf %597, %598 : vector<1x128xf32>
    %600 = vector.extract_strided_slice %591 {offsets = [0, 128], sizes = [1, 128], strides = [1, 1]} : vector<1x512xf32> to vector<1x128xf32>
    %cst_229 = arith.constant 5.000000e-01 : f32
    %601 = vector.broadcast %cst_229 : f32 to vector<1x128xf32>
    %602 = arith.mulf %601, %600 : vector<1x128xf32>
    %603 = math.tanh %602 : vector<1x128xf32>
    %cst_230 = arith.constant 5.000000e-01 : f32
    %604 = vector.broadcast %cst_230 : f32 to vector<1x128xf32>
    %605 = arith.mulf %604, %603 : vector<1x128xf32>
    %cst_231 = arith.constant 5.000000e-01 : f32
    %606 = vector.broadcast %cst_231 : f32 to vector<1x128xf32>
    %607 = arith.addf %605, %606 : vector<1x128xf32>
    %608 = vector.extract_strided_slice %591 {offsets = [0, 256], sizes = [1, 128], strides = [1, 1]} : vector<1x512xf32> to vector<1x128xf32>
    %609 = math.tanh %608 : vector<1x128xf32>
    %610 = vector.extract_strided_slice %591 {offsets = [0, 384], sizes = [1, 128], strides = [1, 1]} : vector<1x512xf32> to vector<1x128xf32>
    %cst_232 = arith.constant 5.000000e-01 : f32
    %611 = vector.broadcast %cst_232 : f32 to vector<1x128xf32>
    %612 = arith.mulf %611, %610 : vector<1x128xf32>
    %613 = math.tanh %612 : vector<1x128xf32>
    %cst_233 = arith.constant 5.000000e-01 : f32
    %614 = vector.broadcast %cst_233 : f32 to vector<1x128xf32>
    %615 = arith.mulf %614, %613 : vector<1x128xf32>
    %cst_234 = arith.constant 5.000000e-01 : f32
    %616 = vector.broadcast %cst_234 : f32 to vector<1x128xf32>
    %617 = arith.addf %615, %616 : vector<1x128xf32>
    %618 = arith.mulf %607, %539 : vector<1x128xf32>
    %619 = arith.mulf %599, %609 : vector<1x128xf32>
    %620 = arith.addf %618, %619 : vector<1x128xf32>
    %621 = math.tanh %620 : vector<1x128xf32>
    %622 = arith.mulf %617, %621 : vector<1x128xf32>
    %623 = tpu.concatenate %622, %577 in 1 : vector<1x128xf32>, vector<1x128xf32> -> vector<1x256xf32>
    %c1_235 = arith.constant 1 : index
    %c0_236 = arith.constant 0 : index
    %c0_237 = arith.constant 0 : index
    %624 = vector.load %arg2[%c1_235, %c0_236, %c0_237] : memref<2x256x512xf32, #tpu.memory_space<vmem>>, vector<1x256x512xf32>
    %625 = vector.shape_cast %624 : vector<1x256x512xf32> to vector<256x512xf32>
    %cst_238 = arith.constant dense<0.000000e+00> : vector<1x512xf32>
    %626 = tpu.matmul %623, %625, %cst_238 {dimension_numbers = #tpu.dot_dimension_numbers<[1], [0], [0], [1], [0, 0, 1, 1], [], []>} : vector<1x256xf32>, vector<256x512xf32>, vector<1x512xf32> -> vector<1x512xf32>
    %627 = arith.addf %626, %3 : vector<1x512xf32>
    %628 = vector.extract_strided_slice %627 {offsets = [0, 0], sizes = [1, 128], strides = [1, 1]} : vector<1x512xf32> to vector<1x128xf32>
    %cst_239 = arith.constant 5.000000e-01 : f32
    %629 = vector.broadcast %cst_239 : f32 to vector<1x128xf32>
    %630 = arith.mulf %629, %628 : vector<1x128xf32>
    %631 = math.tanh %630 : vector<1x128xf32>
    %cst_240 = arith.constant 5.000000e-01 : f32
    %632 = vector.broadcast %cst_240 : f32 to vector<1x128xf32>
    %633 = arith.mulf %632, %631 : vector<1x128xf32>
    %cst_241 = arith.constant 5.000000e-01 : f32
    %634 = vector.broadcast %cst_241 : f32 to vector<1x128xf32>
    %635 = arith.addf %633, %634 : vector<1x128xf32>
    %636 = vector.extract_strided_slice %627 {offsets = [0, 128], sizes = [1, 128], strides = [1, 1]} : vector<1x512xf32> to vector<1x128xf32>
    %cst_242 = arith.constant 5.000000e-01 : f32
    %637 = vector.broadcast %cst_242 : f32 to vector<1x128xf32>
    %638 = arith.mulf %637, %636 : vector<1x128xf32>
    %639 = math.tanh %638 : vector<1x128xf32>
    %cst_243 = arith.constant 5.000000e-01 : f32
    %640 = vector.broadcast %cst_243 : f32 to vector<1x128xf32>
    %641 = arith.mulf %640, %639 : vector<1x128xf32>
    %cst_244 = arith.constant 5.000000e-01 : f32
    %642 = vector.broadcast %cst_244 : f32 to vector<1x128xf32>
    %643 = arith.addf %641, %642 : vector<1x128xf32>
    %644 = vector.extract_strided_slice %627 {offsets = [0, 256], sizes = [1, 128], strides = [1, 1]} : vector<1x512xf32> to vector<1x128xf32>
    %645 = math.tanh %644 : vector<1x128xf32>
    %646 = vector.extract_strided_slice %627 {offsets = [0, 384], sizes = [1, 128], strides = [1, 1]} : vector<1x512xf32> to vector<1x128xf32>
    %cst_245 = arith.constant 5.000000e-01 : f32
    %647 = vector.broadcast %cst_245 : f32 to vector<1x128xf32>
    %648 = arith.mulf %647, %646 : vector<1x128xf32>
    %649 = math.tanh %648 : vector<1x128xf32>
    %cst_246 = arith.constant 5.000000e-01 : f32
    %650 = vector.broadcast %cst_246 : f32 to vector<1x128xf32>
    %651 = arith.mulf %650, %649 : vector<1x128xf32>
    %cst_247 = arith.constant 5.000000e-01 : f32
    %652 = vector.broadcast %cst_247 : f32 to vector<1x128xf32>
    %653 = arith.addf %651, %652 : vector<1x128xf32>
    %654 = arith.mulf %643, %575 : vector<1x128xf32>
    %655 = arith.mulf %635, %645 : vector<1x128xf32>
    %656 = arith.addf %654, %655 : vector<1x128xf32>
    %657 = math.tanh %656 : vector<1x128xf32>
    %658 = arith.mulf %653, %657 : vector<1x128xf32>
    %c1_i32_248 = arith.constant 1 : i32
    %659 = arith.muli %c7_i32, %c1_i32_248 : i32
    %660 = arith.index_cast %659 : i32 to index
    %c0_249 = arith.constant 0 : index
    %661 = vector.load %arg5[%660, %c0_249] : memref<8x128xf32, #tpu.memory_space<vmem>>, vector<1x128xf32>
    tpu.vector_store %arg5[%660, %c0_249], %658 {strides = array<i32>} : memref<8x128xf32, #tpu.memory_space<vmem>>, vector<1x128xf32>,
    %c8_i32 = arith.constant 8 : i32
    return
  }
}

</mosaic_0001>

<llo_original>
// kernel: tpu_custom_call.1
$region0: #{tpu_custom_call.1}
  #allocation0 [shape = 'u32[]', space=smem, size = 0x4, offset = 0x4, fixed_abs, tag = 'smem constant byte address 0x4 - core index']
  #allocation1 [shape = 'u32[144,128]{1,0:T(1,128)}', space=vmem, size = 0x12000, scoped, tag = 'internal scratch']
  %s0 = inlined_call_operand.hbm [shape: f32[2,1,128], index: 0, kind: input, shape index: {}]
  %s1 = inlined_call_operand.vmem [shape: f32[2,1,128], index: 1, kind: input, shape index: {}]
  %s2 = inlined_call_operand.hbm [shape: f32[2,256,512], index: 2, kind: input, shape index: {}]
  %s3 = inlined_call_operand.vmem [shape: f32[2,1,512], index: 3, kind: input, shape index: {}]
  %s4 = inlined_call_operand.vmem [shape: f32[1,512], index: 4, kind: input, shape index: {}]
  %s5 = inlined_call_operand.hbm [shape: f32[8,128], index: 5, kind: output, shape index: {}]
  %s6 = sld [smem:[#allocation0]]
  $region38: #{tpu_custom_call.1} parent=0
    _
  %s8 = ssub.s32 1, %s6
  %s9 = scalar_select 0, %s8, %s6
  $region1: #{tpu_custom_call.1} parent=0
    #allocation2 [shape = 'u8[1024]{0}', space=vmem, size = 0x400, scoped, tag = 'input window, operand 0, single buffered']
    #allocation3 [shape = 's32[1]{0}', space=sflag, size = 0x4, scoped, tag = 'scoped memory for tpu_custom_call.1']
    #allocation4 [shape = 's32[1]{0}', space=sflag, size = 0x4, scoped, tag = 'scoped memory for tpu_custom_call.1']
    #allocation5 [shape = 'u8[1048576]{0}', space=vmem, size = 0x100000, scoped, tag = 'input window, operand 2, single buffered']
    #allocation6 [shape = 's32[1]{0}', space=sflag, size = 0x4, scoped, tag = 'scoped memory for tpu_custom_call.1']
    #allocation7 [shape = 'u8[4096]{0}', space=vmem, size = 0x1000, scoped, tag = 'output window, operand 0, single buffered']
    %10 = vsyncpa [#allocation3], 0
    %11 = vsyncpa [#allocation6], 0
    %12 = vsyncpa [#allocation4], 0
    // Predicated region
    $region2: #{tpu_custom_call.1} parent=1 // pred_check
      _
    $region3: #{tpu_custom_call.1} parent=1 // pred_check_branch
      %14 = sbr.rel (0) target = $region5
    $region4: #{tpu_custom_call.1} parent=1 // pred_region
      %s16 = ssub.s32 32, 32
      %17 = vsyncadd [#allocation3], %s16
      %s18 = sshll.u32 [#allocation2], 4
      %s19 = int_to_ptr.vmem [resolvable:$true] %s18
      %24 = dma.hbm_to_vmem [thread:$0]  %s0, 32, %s19, [#allocation3], 16, 16, 1
    $region5: #{tpu_custom_call.1} parent=1 // pred_fallthru
      _
    // Predicated region
    $region6: #{tpu_custom_call.1} parent=1 // pred_check
      _
    $region7: #{tpu_custom_call.1} parent=1 // pred_check_branch
      %26 = sbr.rel (0) target = $region9
    $region8: #{tpu_custom_call.1} parent=1 // pred_region
      _
    $region9: #{tpu_custom_call.1} parent=1 // pred_fallthru
      _
    // Predicated region
    $region10: #{tpu_custom_call.1} parent=1 // pred_check
      _
    $region11: #{tpu_custom_call.1} parent=1 // pred_check_branch
      %28 = sbr.rel (0) target = $region13
    $region12: #{tpu_custom_call.1} parent=1 // pred_region
      %s30 = ssub.s32 32768, 32768
      %31 = vsyncadd [#allocation6], %s30
      %s32 = sshll.u32 [#allocation5], 4
      %s33 = int_to_ptr.vmem [resolvable:$true] %s32
      %38 = dma.hbm_to_vmem [thread:$0]  %s2, 32768, %s33, [#allocation6], 512, 512, 32
    $region13: #{tpu_custom_call.1} parent=1 // pred_fallthru
      _
    // Predicated region
    $region14: #{tpu_custom_call.1} parent=1 // pred_check
      _
    $region15: #{tpu_custom_call.1} parent=1 // pred_check_branch
      %40 = sbr.rel (0) target = $region17
    $region16: #{tpu_custom_call.1} parent=1 // pred_region
      _
    $region17: #{tpu_custom_call.1} parent=1 // pred_fallthru
      _
    // Predicated region
    $region18: #{tpu_custom_call.1} parent=1 // pred_check
      _
    $region19: #{tpu_custom_call.1} parent=1 // pred_check_branch
      %42 = sbr.rel (0) target = $region21
    $region20: #{tpu_custom_call.1} parent=1 // pred_region
      _
    $region21: #{tpu_custom_call.1} parent=1 // pred_fallthru
      _
    // Predicated region
    $region22: #{tpu_custom_call.1} parent=1 // pred_check
      _
    $region23: #{tpu_custom_call.1} parent=1 // pred_check_branch
      %44 = sbr.rel (0) target = $region25
    $region24: #{tpu_custom_call.1} parent=1 // pred_region
      %45 = dma.done [#allocation3], 32
    $region25: #{tpu_custom_call.1} parent=1 // pred_fallthru
      _
    // Predicated region
    $region26: #{tpu_custom_call.1} parent=1 // pred_check
      _
    $region27: #{tpu_custom_call.1} parent=1 // pred_check_branch
      %47 = sbr.rel (0) target = $region29
    $region28: #{tpu_custom_call.1} parent=1 // pred_region
      %48 = dma.done [#allocation6], 32768
    $region29: #{tpu_custom_call.1} parent=1 // pred_fallthru
      _
    %v49 = vld [vmem:[%s3] sm:$0xf]
    %s50 = scalar_lea.vmem %s3, 4
    %v51 = vld [vmem:[%s50] sm:$0xf]
    %v52 = vld [vmem:[%s4] sm:$0xf]
    %v53 = vld [vmem:[#allocation2] sm:$0x1]
    %s54 = scalar_lea.vmem [#allocation2], 1
    %v55 = vld [vmem:[%s54] sm:$0x1]
    %v56 = vld [vmem:[%s1] sm:$0x1]
    %s57 = scalar_lea.vmem %s1, 1
    %v58 = vld [vmem:[%s57] sm:$0x1]
    %v59 = vmul.f32 %v52, 0.0
    %v60 = vadd.f32 %v49, %v59
    %v61 = vld [vmem:[#allocation5] sm:$0xff]
    %v62 = vld [vmem:[#allocation5 + $0x8] sm:$0xff]
    %v63 = vld [vmem:[#allocation5 + $0x10] sm:$0xff]
    %v64 = vld [vmem:[#allocation5 + $0x18] sm:$0xff]
    %v65 = vld [vmem:[#allocation5 + $0x20] sm:$0xff]
    %v66 = vld [vmem:[#allocation5 + $0x28] sm:$0xff]
    %v67 = vld [vmem:[#allocation5 + $0x30] sm:$0xff]
    %v68 = vld [vmem:[#allocation5 + $0x38] sm:$0xff]
    %v69 = vld [vmem:[#allocation5 + $0x40] sm:$0xff]
    %v70 = vld [vmem:[#allocation5 + $0x48] sm:$0xff]
    %v71 = vld [vmem:[#allocation5 + $0x50] sm:$0xff]
    %v72 = vld [vmem:[#allocation5 + $0x58] sm:$0xff]
    %v73 = vld [vmem:[#allocation5 + $0x60] sm:$0xff]
    %v74 = vld [vmem:[#allocation5 + $0x68] sm:$0xff]
    %v75 = vld [vmem:[#allocation5 + $0x70] sm:$0xff]
    %v76 = vld [vmem:[#allocation5 + $0x78] sm:$0xff]
    %v77 = vld [vmem:[#allocation5 + $0x80] sm:$0xff]
    %v78 = vld [vmem:[#allocation5 + $0x88] sm:$0xff]
    %v79 = vld [vmem:[#allocation5 + $0x90] sm:$0xff]
    %v80 = vld [vmem:[#allocation5 + $0x98] sm:$0xff]
    %v81 = vld [vmem:[#allocation5 + $0xa0] sm:$0xff]
    %v82 = vld [vmem:[#allocation5 + $0xa8] sm:$0xff]
    %v83 = vld [vmem:[#allocation5 + $0xb0] sm:$0xff]
    %v84 = vld [vmem:[#allocation5 + $0xb8] sm:$0xff]
    %v85 = vld [vmem:[#allocation5 + $0xc0] sm:$0xff]
    %v86 = vld [vmem:[#allocation5 + $0xc8] sm:$0xff]
    %v87 = vld [vmem:[#allocation5 + $0xd0] sm:$0xff]
    %v88 = vld [vmem:[#allocation5 + $0xd8] sm:$0xff]
    %v89 = vld [vmem:[#allocation5 + $0xe0] sm:$0xff]
    %v90 = vld [vmem:[#allocation5 + $0xe8] sm:$0xff]
    %v91 = vld [vmem:[#allocation5 + $0xf0] sm:$0xff]
    %v92 = vld [vmem:[#allocation5 + $0xf8] sm:$0xff]
    %v93 = vld [vmem:[#allocation5 + $0x100] sm:$0xff]
    %v94 = vld [vmem:[#allocation5 + $0x108] sm:$0xff]
    %v95 = vld [vmem:[#allocation5 + $0x110] sm:$0xff]
    %v96 = vld [vmem:[#allocation5 + $0x118] sm:$0xff]
    %v97 = vld [vmem:[#allocation5 + $0x120] sm:$0xff]
    %v98 = vld [vmem:[#allocation5 + $0x128] sm:$0xff]
    %v99 = vld [vmem:[#allocation5 + $0x130] sm:$0xff]
    %v100 = vld [vmem:[#allocation5 + $0x138] sm:$0xff]
    %v101 = vld [vmem:[#allocation5 + $0x140] sm:$0xff]
    %v102 = vld [vmem:[#allocation5 + $0x148] sm:$0xff]
    %v103 = vld [vmem:[#allocation5 + $0x150] sm:$0xff]
    %v104 = vld [vmem:[#allocation5 + $0x158] sm:$0xff]
    %v105 = vld [vmem:[#allocation5 + $0x160] sm:$0xff]
    %v106 = vld [vmem:[#allocation5 + $0x168] sm:$0xff]
    %v107 = vld [vmem:[#allocation5 + $0x170] sm:$0xff]
    %v108 = vld [vmem:[#allocation5 + $0x178] sm:$0xff]
    %v109 = vld [vmem:[#allocation5 + $0x180] sm:$0xff]
    %v110 = vld [vmem:[#allocation5 + $0x188] sm:$0xff]
    %v111 = vld [vmem:[#allocation5 + $0x190] sm:$0xff]
    %v112 = vld [vmem:[#allocation5 + $0x198] sm:$0xff]
    %v113 = vld [vmem:[#allocation5 + $0x1a0] sm:$0xff]
    %v114 = vld [vmem:[#allocation5 + $0x1a8] sm:$0xff]
    %v115 = vld [vmem:[#allocation5 + $0x1b0] sm:$0xff]
    %v116 = vld [vmem:[#allocation5 + $0x1b8] sm:$0xff]
    %v117 = vld [vmem:[#allocation5 + $0x1c0] sm:$0xff]
    %v118 = vld [vmem:[#allocation5 + $0x1c8] sm:$0xff]
    %v119 = vld [vmem:[#allocation5 + $0x1d0] sm:$0xff]
    %v120 = vld [vmem:[#allocation5 + $0x1d8] sm:$0xff]
    %v121 = vld [vmem:[#allocation5 + $0x1e0] sm:$0xff]
    %v122 = vld [vmem:[#allocation5 + $0x1e8] sm:$0xff]
    %v123 = vld [vmem:[#allocation5 + $0x1f0] sm:$0xff]
    %v124 = vld [vmem:[#allocation5 + $0x1f8] sm:$0xff]
    %v125 = vld [vmem:[#allocation5 + $0x200] sm:$0xff]
    %v126 = vld [vmem:[#allocation5 + $0x208] sm:$0xff]
    %v127 = vld [vmem:[#allocation5 + $0x210] sm:$0xff]
    %v128 = vld [vmem:[#allocation5 + $0x218] sm:$0xff]
    %v129 = vld [vmem:[#allocation5 + $0x220] sm:$0xff]
    %v130 = vld [vmem:[#allocation5 + $0x228] sm:$0xff]
    %v131 = vld [vmem:[#allocation5 + $0x230] sm:$0xff]
    %v132 = vld [vmem:[#allocation5 + $0x238] sm:$0xff]
    %v133 = vld [vmem:[#allocation5 + $0x240] sm:$0xff]
    %v134 = vld [vmem:[#allocation5 + $0x248] sm:$0xff]
    %v135 = vld [vmem:[#allocation5 + $0x250] sm:$0xff]
    %v136 = vld [vmem:[#allocation5 + $0x258] sm:$0xff]
    %v137 = vld [vmem:[#allocation5 + $0x260] sm:$0xff]
    %v138 = vld [vmem:[#allocation5 + $0x268] sm:$0xff]
    %v139 = vld [vmem:[#allocation5 + $0x270] sm:$0xff]
    %v140 = vld [vmem:[#allocation5 + $0x278] sm:$0xff]
    %v141 = vld [vmem:[#allocation5 + $0x280] sm:$0xff]
    %v142 = vld [vmem:[#allocation5 + $0x288] sm:$0xff]
    %v143 = vld [vmem:[#allocation5 + $0x290] sm:$0xff]
    %v144 = vld [vmem:[#allocation5 + $0x298] sm:$0xff]
    %v145 = vld [vmem:[#allocation5 + $0x2a0] sm:$0xff]
    %v146 = vld [vmem:[#allocation5 + $0x2a8] sm:$0xff]
    %v147 = vld [vmem:[#allocation5 + $0x2b0] sm:$0xff]
    %v148 = vld [vmem:[#allocation5 + $0x2b8] sm:$0xff]
    %v149 = vld [vmem:[#allocation5 + $0x2c0] sm:$0xff]
    %v150 = vld [vmem:[#allocation5 + $0x2c8] sm:$0xff]
    %v151 = vld [vmem:[#allocation5 + $0x2d0] sm:$0xff]
    %v152 = vld [vmem:[#allocation5 + $0x2d8] sm:$0xff]
    %v153 = vld [vmem:[#allocation5 + $0x2e0] sm:$0xff]
    %v154 = vld [vmem:[#allocation5 + $0x2e8] sm:$0xff]
    %v155 = vld [vmem:[#allocation5 + $0x2f0] sm:$0xff]
    %v156 = vld [vmem:[#allocation5 + $0x2f8] sm:$0xff]
    %v157 = vld [vmem:[#allocation5 + $0x300] sm:$0xff]
    %v158 = vld [vmem:[#allocation5 + $0x308] sm:$0xff]
    %v159 = vld [vmem:[#allocation5 + $0x310] sm:$0xff]
    %v160 = vld [vmem:[#allocation5 + $0x318] sm:$0xff]
    %v161 = vld [vmem:[#allocation5 + $0x320] sm:$0xff]
    %v162 = vld [vmem:[#allocation5 + $0x328] sm:$0xff]
    %v163 = vld [vmem:[#allocation5 + $0x330] sm:$0xff]
    %v164 = vld [vmem:[#allocation5 + $0x338] sm:$0xff]
    %v165 = vld [vmem:[#allocation5 + $0x340] sm:$0xff]
    %v166 = vld [vmem:[#allocation5 + $0x348] sm:$0xff]
    %v167 = vld [vmem:[#allocation5 + $0x350] sm:$0xff]
    %v168 = vld [vmem:[#allocation5 + $0x358] sm:$0xff]
    %v169 = vld [vmem:[#allocation5 + $0x360] sm:$0xff]
    %v170 = vld [vmem:[#allocation5 + $0x368] sm:$0xff]
    %v171 = vld [vmem:[#allocation5 + $0x370] sm:$0xff]
    %v172 = vld [vmem:[#allocation5 + $0x378] sm:$0xff]
    %v173 = vld [vmem:[#allocation5 + $0x380] sm:$0xff]
    %v174 = vld [vmem:[#allocation5 + $0x388] sm:$0xff]
    %v175 = vld [vmem:[#allocation5 + $0x390] sm:$0xff]
    %v176 = vld [vmem:[#allocation5 + $0x398] sm:$0xff]
    %v177 = vld [vmem:[#allocation5 + $0x3a0] sm:$0xff]
    %v178 = vld [vmem:[#allocation5 + $0x3a8] sm:$0xff]
    %v179 = vld [vmem:[#allocation5 + $0x3b0] sm:$0xff]
    %v180 = vld [vmem:[#allocation5 + $0x3b8] sm:$0xff]
    %v181 = vld [vmem:[#allocation5 + $0x3c0] sm:$0xff]
    %v182 = vld [vmem:[#allocation5 + $0x3c8] sm:$0xff]
    %v183 = vld [vmem:[#allocation5 + $0x3d0] sm:$0xff]
    %v184 = vld [vmem:[#allocation5 + $0x3d8] sm:$0xff]
    %v185 = vld [vmem:[#allocation5 + $0x3e0] sm:$0xff]
    %v186 = vld [vmem:[#allocation5 + $0x3e8] sm:$0xff]
    %v187 = vld [vmem:[#allocation5 + $0x3f0] sm:$0xff]
    %v188 = vld [vmem:[#allocation5 + $0x3f8] sm:$0xff]
    %v190 = vlaneseq
    %v191 = vshrl.u32 %v190, 7
    %v192 = vsub.s32 0, %v191
    %v193 = vrot.slane %v60, %v192
    %v194 = vlaneseq
    %v195 = vshrl.u32 %v194, 7
    %v196 = vsub.s32 1, %v195
    %v197 = vrot.slane %v60, %v196
    %v198 = vlaneseq
    %v199 = vshrl.u32 %v198, 7
    %v200 = vsub.s32 2, %v199
    %v201 = vrot.slane %v60, %v200
    %v202 = vlaneseq
    %v203 = vshrl.u32 %v202, 7
    %v204 = vsub.s32 3, %v203
    %v205 = vrot.slane %v60, %v204
    %210 = vmatprep.subr.mxu0 %v62
    %211 = vmatpush1.msra.mxu0 %v61
    %212 = vmatprep.subr.mxu0 %v66
    %213 = vmatpush1.msra.mxu0 %v65
    %214 = vmatprep.subr.mxu0 %v70
    %215 = vmatpush1.msra.mxu0 %v69
    %216 = vmatprep.subr.mxu0 %v74
    %217 = vmatpush1.msra.mxu0 %v73
    %218 = vmatprep.subr.mxu0 %v78
    %219 = vmatpush1.msra.mxu0 %v77
    %220 = vmatprep.subr.mxu0 %v82
    %221 = vmatpush1.msra.mxu0 %v81
    %222 = vmatprep.subr.mxu0 %v86
    %223 = vmatpush1.msra.mxu0 %v85
    %224 = vmatprep.subr.mxu0 %v90
    %225 = vmatpush1.msra.mxu0 %v89
    %226 = vmatprep.subr.mxu0 %v94
    %227 = vmatpush1.msra.mxu0 %v93
    %228 = vmatprep.subr.mxu0 %v98
    %229 = vmatpush1.msra.mxu0 %v97
    %230 = vmatprep.subr.mxu0 %v102
    %231 = vmatpush1.msra.mxu0 %v101
    %232 = vmatprep.subr.mxu0 %v106
    %233 = vmatpush1.msra.mxu0 %v105
    %234 = vmatprep.subr.mxu0 %v110
    %235 = vmatpush1.msra.mxu0 %v109
    %236 = vmatprep.subr.mxu0 %v114
    %237 = vmatpush1.msra.mxu0 %v113
    %238 = vmatprep.subr.mxu0 %v118
    %239 = vmatpush1.msra.mxu0 %v117
    %240 = vmatprep.subr.mxu0 %v122
    %241 = vmatpush1.msra.mxu0 %v121
    %242 = vmatprep.subr.mxu0 %v126
    %243 = vmatpush1.msra.mxu0 %v125
    %244 = vmatprep.subr.mxu0 %v130
    %245 = vmatpush1.msra.mxu0 %v129
    %246 = vmatprep.subr.mxu0 %v134
    %247 = vmatpush1.msra.mxu0 %v133
    %248 = vmatprep.subr.mxu0 %v138
    %249 = vmatpush1.msra.mxu0 %v137
    %250 = vmatprep.subr.mxu0 %v142
    %251 = vmatpush1.msra.mxu0 %v141
    %252 = vmatprep.subr.mxu0 %v146
    %253 = vmatpush1.msra.mxu0 %v145
    %254 = vmatprep.subr.mxu0 %v150
    %255 = vmatpush1.msra.mxu0 %v149
    %256 = vmatprep.subr.mxu0 %v154
    %257 = vmatpush1.msra.mxu0 %v153
    %258 = vmatprep.subr.mxu0 %v158
    %259 = vmatpush1.msra.mxu0 %v157
    %260 = vmatprep.subr.mxu0 %v162
    %261 = vmatpush1.msra.mxu0 %v161
    %262 = vmatprep.subr.mxu0 %v166
    %263 = vmatpush1.msra.mxu0 %v165
    %264 = vmatprep.subr.mxu0 %v170
    %265 = vmatpush1.msra.mxu0 %v169
    %266 = vmatprep.subr.mxu0 %v174
    %267 = vmatpush1.msra.mxu0 %v173
    %268 = vmatprep.subr.mxu0 %v178
    %269 = vmatpush1.msra.mxu0 %v177
    %270 = vmatprep.subr.mxu0 %v182
    %271 = vmatpush1.msra.mxu0 %v181
    %272 = vmatprep.subr.mxu0 %v186
    %273 = vmatpush1.msra.mxu0 %v185
    %274 = vmatprep.mubr.f32.mxu0 %v53
    %275 = vmatmul.mubr.f32.gmra.mrb[0].mxu0 0.0
    %v276 = vpop.f32.mrb[0].mxu0
    %v277 = vadd.f32 %v193, %v276
    %v278 = vpop.f32.mrb[0].mxu0
    %v279 = vadd.f32 %v197, %v278
    %280 = vdwg.mxu0
    %281 = vmatprep.subr.mxu0 %v64
    %282 = vmatpush1.msra.mxu0 %v63
    %283 = vmatprep.subr.mxu0 %v68
    %284 = vmatpush1.msra.mxu0 %v67
    %285 = vmatprep.subr.mxu0 %v72
    %286 = vmatpush1.msra.mxu0 %v71
    %287 = vmatprep.subr.mxu0 %v76
    %288 = vmatpush1.msra.mxu0 %v75
    %289 = vmatprep.subr.mxu0 %v80
    %290 = vmatpush1.msra.mxu0 %v79
    %291 = vmatprep.subr.mxu0 %v84
    %292 = vmatpush1.msra.mxu0 %v83
    %293 = vmatprep.subr.mxu0 %v88
    %294 = vmatpush1.msra.mxu0 %v87
    %295 = vmatprep.subr.mxu0 %v92
    %296 = vmatpush1.msra.mxu0 %v91
    %297 = vmatprep.subr.mxu0 %v96
    %298 = vmatpush1.msra.mxu0 %v95
    %299 = vmatprep.subr.mxu0 %v100
    %300 = vmatpush1.msra.mxu0 %v99
    %301 = vmatprep.subr.mxu0 %v104
    %302 = vmatpush1.msra.mxu0 %v103
    %303 = vmatprep.subr.mxu0 %v108
    %304 = vmatpush1.msra.mxu0 %v107
    %305 = vmatprep.subr.mxu0 %v112
    %306 = vmatpush1.msra.mxu0 %v111
    %307 = vmatprep.subr.mxu0 %v116
    %308 = vmatpush1.msra.mxu0 %v115
    %309 = vmatprep.subr.mxu0 %v120
    %310 = vmatpush1.msra.mxu0 %v119
    %311 = vmatprep.subr.mxu0 %v124
    %312 = vmatpush1.msra.mxu0 %v123
    %313 = vmatprep.subr.mxu0 %v128
    %314 = vmatpush1.msra.mxu0 %v127
    %315 = vmatprep.subr.mxu0 %v132
    %316 = vmatpush1.msra.mxu0 %v131
    %317 = vmatprep.subr.mxu0 %v136
    %318 = vmatpush1.msra.mxu0 %v135
    %319 = vmatprep.subr.mxu0 %v140
    %320 = vmatpush1.msra.mxu0 %v139
    %321 = vmatprep.subr.mxu0 %v144
    %322 = vmatpush1.msra.mxu0 %v143
    %323 = vmatprep.subr.mxu0 %v148
    %324 = vmatpush1.msra.mxu0 %v147
    %325 = vmatprep.subr.mxu0 %v152
    %326 = vmatpush1.msra.mxu0 %v151
    %327 = vmatprep.subr.mxu0 %v156
    %328 = vmatpush1.msra.mxu0 %v155
    %329 = vmatprep.subr.mxu0 %v160
    %330 = vmatpush1.msra.mxu0 %v159
    %331 = vmatprep.subr.mxu0 %v164
    %332 = vmatpush1.msra.mxu0 %v163
    %333 = vmatprep.subr.mxu0 %v168
    %334 = vmatpush1.msra.mxu0 %v167
    %335 = vmatprep.subr.mxu0 %v172
    %336 = vmatpush1.msra.mxu0 %v171
    %337 = vmatprep.subr.mxu0 %v176
    %338 = vmatpush1.msra.mxu0 %v175
    %339 = vmatprep.subr.mxu0 %v180
    %340 = vmatpush1.msra.mxu0 %v179
    %341 = vmatprep.subr.mxu0 %v184
    %342 = vmatpush1.msra.mxu0 %v183
    %343 = vmatprep.subr.mxu0 %v188
    %344 = vmatpush1.msra.mxu0 %v187
    %345 = vmatprep.mubr.f32.mxu0 %v53
    %346 = vmatmul.mubr.f32.gmra.mrb[0].mxu0 0.0
    %v347 = vpop.f32.mrb[0].mxu0
    %v348 = vadd.f32 %v201, %v347
    %v349 = vpop.f32.mrb[0].mxu0
    %v350 = vadd.f32 %v205, %v349
    %351 = vdwg.mxu0
    %v352 = vmul.f32 %v277, 0.5
    %v353 = vtanh.pop %v352
    %v354 = vmul.f32 %v353, 0.5
    %v355 = vadd.f32 %v354, 0.5
    %v356 = vmul.f32 %v279, 0.5
    %v357 = vtanh.pop %v356
    %v358 = vmul.f32 %v357, 0.5
    %v359 = vadd.f32 %v358, 0.5
    %v360 = vtanh.pop %v348
    %v361 = vmul.f32 %v350, 0.5
    %v362 = vtanh.pop %v361
    %v363 = vmul.f32 %v362, 0.5
    %v364 = vadd.f32 %v363, 0.5
    %v365 = vmul.f32 %v359, %v56
    %v366 = vmul.f32 %v355, %v360
    %v367 = vadd.f32 %v365, %v366
    %v368 = vtanh.pop %v367
    %v369 = vmul.f32 %v364, %v368
    %s370 = scalar_lea.vmem [#allocation5], 1024
    %v371 = vld [vmem:[%s370] sm:$0xff]
    %v372 = vld [vmem:[%s370 + $0x8] sm:$0xff]
    %v373 = vld [vmem:[%s370 + $0x10] sm:$0xff]
    %v374 = vld [vmem:[%s370 + $0x18] sm:$0xff]
    %v375 = vld [vmem:[%s370 + $0x20] sm:$0xff]
    %v376 = vld [vmem:[%s370 + $0x28] sm:$0xff]
    %v377 = vld [vmem:[%s370 + $0x30] sm:$0xff]
    %v378 = vld [vmem:[%s370 + $0x38] sm:$0xff]
    %v379 = vld [vmem:[%s370 + $0x40] sm:$0xff]
    %v380 = vld [vmem:[%s370 + $0x48] sm:$0xff]
    %v381 = vld [vmem:[%s370 + $0x50] sm:$0xff]
    %v382 = vld [vmem:[%s370 + $0x58] sm:$0xff]
    %v383 = vld [vmem:[%s370 + $0x60] sm:$0xff]
    %v384 = vld [vmem:[%s370 + $0x68] sm:$0xff]
    %v385 = vld [vmem:[%s370 + $0x70] sm:$0xff]
    %v386 = vld [vmem:[%s370 + $0x78] sm:$0xff]
    %v387 = vld [vmem:[%s370 + $0x80] sm:$0xff]
    %v388 = vld [vmem:[%s370 + $0x88] sm:$0xff]
    %v389 = vld [vmem:[%s370 + $0x90] sm:$0xff]
    %v390 = vld [vmem:[%s370 + $0x98] sm:$0xff]
    %v391 = vld [vmem:[%s370 + $0xa0] sm:$0xff]
    %v392 = vld [vmem:[%s370 + $0xa8] sm:$0xff]
    %v393 = vld [vmem:[%s370 + $0xb0] sm:$0xff]
    %v394 = vld [vmem:[%s370 + $0xb8] sm:$0xff]
    %v395 = vld [vmem:[%s370 + $0xc0] sm:$0xff]
    %v396 = vld [vmem:[%s370 + $0xc8] sm:$0xff]
    %v397 = vld [vmem:[%s370 + $0xd0] sm:$0xff]
    %v398 = vld [vmem:[%s370 + $0xd8] sm:$0xff]
    %v399 = vld [vmem:[%s370 + $0xe0] sm:$0xff]
    %v400 = vld [vmem:[%s370 + $0xe8] sm:$0xff]
    %v401 = vld [vmem:[%s370 + $0xf0] sm:$0xff]
    %v402 = vld [vmem:[%s370 + $0xf8] sm:$0xff]
    %v403 = vld [vmem:[%s370 + $0x100] sm:$0xff]
    %v404 = vld [vmem:[%s370 + $0x108] sm:$0xff]
    %v405 = vld [vmem:[%s370 + $0x110] sm:$0xff]
    %v406 = vld [vmem:[%s370 + $0x118] sm:$0xff]
    %v407 = vld [vmem:[%s370 + $0x120] sm:$0xff]
    %v408 = vld [vmem:[%s370 + $0x128] sm:$0xff]
    %v409 = vld [vmem:[%s370 + $0x130] sm:$0xff]
    %v410 = vld [vmem:[%s370 + $0x138] sm:$0xff]
    %v411 = vld [vmem:[%s370 + $0x140] sm:$0xff]
    %v412 = vld [vmem:[%s370 + $0x148] sm:$0xff]
    %v413 = vld [vmem:[%s370 + $0x150] sm:$0xff]
    %v414 = vld [vmem:[%s370 + $0x158] sm:$0xff]
    %v415 = vld [vmem:[%s370 + $0x160] sm:$0xff]
    %v416 = vld [vmem:[%s370 + $0x168] sm:$0xff]
    %v417 = vld [vmem:[%s370 + $0x170] sm:$0xff]
    %v418 = vld [vmem:[%s370 + $0x178] sm:$0xff]
    %v419 = vld [vmem:[%s370 + $0x180] sm:$0xff]
    %v420 = vld [vmem:[%s370 + $0x188] sm:$0xff]
    %v421 = vld [vmem:[%s370 + $0x190] sm:$0xff]
    %v422 = vld [vmem:[%s370 + $0x198] sm:$0xff]
    %v423 = vld [vmem:[%s370 + $0x1a0] sm:$0xff]
    %v424 = vld [vmem:[%s370 + $0x1a8] sm:$0xff]
    %v425 = vld [vmem:[%s370 + $0x1b0] sm:$0xff]
    %v426 = vld [vmem:[%s370 + $0x1b8] sm:$0xff]
    %v427 = vld [vmem:[%s370 + $0x1c0] sm:$0xff]
    %v428 = vld [vmem:[%s370 + $0x1c8] sm:$0xff]
    %v429 = vld [vmem:[%s370 + $0x1d0] sm:$0xff]
    %v430 = vld [vmem:[%s370 + $0x1d8] sm:$0xff]
    %v431 = vld [vmem:[%s370 + $0x1e0] sm:$0xff]
    %v432 = vld [vmem:[%s370 + $0x1e8] sm:$0xff]
    %v433 = vld [vmem:[%s370 + $0x1f0] sm:$0xff]
    %v434 = vld [vmem:[%s370 + $0x1f8] sm:$0xff]
    %v435 = vld [vmem:[%s370 + $0x200] sm:$0xff]
    %v436 = vld [vmem:[%s370 + $0x208] sm:$0xff]
    %v437 = vld [vmem:[%s370 + $0x210] sm:$0xff]
    %v438 = vld [vmem:[%s370 + $0x218] sm:$0xff]
    %v439 = vld [vmem:[%s370 + $0x220] sm:$0xff]
    %v440 = vld [vmem:[%s370 + $0x228] sm:$0xff]
    %v441 = vld [vmem:[%s370 + $0x230] sm:$0xff]
    %v442 = vld [vmem:[%s370 + $0x238] sm:$0xff]
    %v443 = vld [vmem:[%s370 + $0x240] sm:$0xff]
    %v444 = vld [vmem:[%s370 + $0x248] sm:$0xff]
    %v445 = vld [vmem:[%s370 + $0x250] sm:$0xff]
    %v446 = vld [vmem:[%s370 + $0x258] sm:$0xff]
    %v447 = vld [vmem:[%s370 + $0x260] sm:$0xff]
    %v448 = vld [vmem:[%s370 + $0x268] sm:$0xff]
    %v449 = vld [vmem:[%s370 + $0x270] sm:$0xff]
    %v450 = vld [vmem:[%s370 + $0x278] sm:$0xff]
    %v451 = vld [vmem:[%s370 + $0x280] sm:$0xff]
    %v452 = vld [vmem:[%s370 + $0x288] sm:$0xff]
    %v453 = vld [vmem:[%s370 + $0x290] sm:$0xff]
    %v454 = vld [vmem:[%s370 + $0x298] sm:$0xff]
    %v455 = vld [vmem:[%s370 + $0x2a0] sm:$0xff]
    %v456 = vld [vmem:[%s370 + $0x2a8] sm:$0xff]
    %v457 = vld [vmem:[%s370 + $0x2b0] sm:$0xff]
    %v458 = vld [vmem:[%s370 + $0x2b8] sm:$0xff]
    %v459 = vld [vmem:[%s370 + $0x2c0] sm:$0xff]
    %v460 = vld [vmem:[%s370 + $0x2c8] sm:$0xff]
    %v461 = vld [vmem:[%s370 + $0x2d0] sm:$0xff]
    %v462 = vld [vmem:[%s370 + $0x2d8] sm:$0xff]
    %v463 = vld [vmem:[%s370 + $0x2e0] sm:$0xff]
    %v464 = vld [vmem:[%s370 + $0x2e8] sm:$0xff]
    %v465 = vld [vmem:[%s370 + $0x2f0] sm:$0xff]
    %v466 = vld [vmem:[%s370 + $0x2f8] sm:$0xff]
    %v467 = vld [vmem:[%s370 + $0x300] sm:$0xff]
    %v468 = vld [vmem:[%s370 + $0x308] sm:$0xff]
    %v469 = vld [vmem:[%s370 + $0x310] sm:$0xff]
    %v470 = vld [vmem:[%s370 + $0x318] sm:$0xff]
    %v471 = vld [vmem:[%s370 + $0x320] sm:$0xff]
    %v472 = vld [vmem:[%s370 + $0x328] sm:$0xff]
    %v473 = vld [vmem:[%s370 + $0x330] sm:$0xff]
    %v474 = vld [vmem:[%s370 + $0x338] sm:$0xff]
    %v475 = vld [vmem:[%s370 + $0x340] sm:$0xff]
    %v476 = vld [vmem:[%s370 + $0x348] sm:$0xff]
    %v477 = vld [vmem:[%s370 + $0x350] sm:$0xff]
    %v478 = vld [vmem:[%s370 + $0x358] sm:$0xff]
    %v479 = vld [vmem:[%s370 + $0x360] sm:$0xff]
    %v480 = vld [vmem:[%s370 + $0x368] sm:$0xff]
    %v481 = vld [vmem:[%s370 + $0x370] sm:$0xff]
    %v482 = vld [vmem:[%s370 + $0x378] sm:$0xff]
    %v483 = vld [vmem:[%s370 + $0x380] sm:$0xff]
    %v484 = vld [vmem:[%s370 + $0x388] sm:$0xff]
    %v485 = vld [vmem:[%s370 + $0x390] sm:$0xff]
    %v486 = vld [vmem:[%s370 + $0x398] sm:$0xff]
    %v487 = vld [vmem:[%s370 + $0x3a0] sm:$0xff]
    %v488 = vld [vmem:[%s370 + $0x3a8] sm:$0xff]
    %v489 = vld [vmem:[%s370 + $0x3b0] sm:$0xff]
    %v490 = vld [vmem:[%s370 + $0x3b8] sm:$0xff]
    %v491 = vld [vmem:[%s370 + $0x3c0] sm:$0xff]
    %v492 = vld [vmem:[%s370 + $0x3c8] sm:$0xff]
    %v493 = vld [vmem:[%s370 + $0x3d0] sm:$0xff]
    %v494 = vld [vmem:[%s370 + $0x3d8] sm:$0xff]
    %v495 = vld [vmem:[%s370 + $0x3e0] sm:$0xff]
    %v496 = vld [vmem:[%s370 + $0x3e8] sm:$0xff]
    %v497 = vld [vmem:[%s370 + $0x3f0] sm:$0xff]
    %v498 = vld [vmem:[%s370 + $0x3f8] sm:$0xff]
    %v500 = vlaneseq
    %v501 = vshrl.u32 %v500, 7
    %v502 = vsub.s32 0, %v501
    %v503 = vrot.slane %v51, %v502
    %v504 = vlaneseq
    %v505 = vshrl.u32 %v504, 7
    %v506 = vsub.s32 1, %v505
    %v507 = vrot.slane %v51, %v506
    %v508 = vlaneseq
    %v509 = vshrl.u32 %v508, 7
    %v510 = vsub.s32 2, %v509
    %v511 = vrot.slane %v51, %v510
    %v512 = vlaneseq
    %v513 = vshrl.u32 %v512, 7
    %v514 = vsub.s32 3, %v513
    %v515 = vrot.slane %v51, %v514
    %520 = vmatprep.subr.mxu0 %v372
    %521 = vmatpush1.msra.mxu0 %v371
    %522 = vmatprep.subr.mxu0 %v376
    %523 = vmatpush1.msra.mxu0 %v375
    %524 = vmatprep.subr.mxu0 %v380
    %525 = vmatpush1.msra.mxu0 %v379
    %526 = vmatprep.subr.mxu0 %v384
    %527 = vmatpush1.msra.mxu0 %v383
    %528 = vmatprep.subr.mxu0 %v388
    %529 = vmatpush1.msra.mxu0 %v387
    %530 = vmatprep.subr.mxu0 %v392
    %531 = vmatpush1.msra.mxu0 %v391
    %532 = vmatprep.subr.mxu0 %v396
    %533 = vmatpush1.msra.mxu0 %v395
    %534 = vmatprep.subr.mxu0 %v400
    %535 = vmatpush1.msra.mxu0 %v399
    %536 = vmatprep.subr.mxu0 %v404
    %537 = vmatpush1.msra.mxu0 %v403
    %538 = vmatprep.subr.mxu0 %v408
    %539 = vmatpush1.msra.mxu0 %v407
    %540 = vmatprep.subr.mxu0 %v412
    %541 = vmatpush1.msra.mxu0 %v411
    %542 = vmatprep.subr.mxu0 %v416
    %543 = vmatpush1.msra.mxu0 %v415
    %544 = vmatprep.subr.mxu0 %v420
    %545 = vmatpush1.msra.mxu0 %v419
    %546 = vmatprep.subr.mxu0 %v424
    %547 = vmatpush1.msra.mxu0 %v423
    %548 = vmatprep.subr.mxu0 %v428
    %549 = vmatpush1.msra.mxu0 %v427
    %550 = vmatprep.subr.mxu0 %v432
    %551 = vmatpush1.msra.mxu0 %v431
    %552 = vmatprep.subr.mxu0 %v436
    %553 = vmatpush1.msra.mxu0 %v435
    %554 = vmatprep.subr.mxu0 %v440
    %555 = vmatpush1.msra.mxu0 %v439
    %556 = vmatprep.subr.mxu0 %v444
    %557 = vmatpush1.msra.mxu0 %v443
    %558 = vmatprep.subr.mxu0 %v448
    %559 = vmatpush1.msra.mxu0 %v447
    %560 = vmatprep.subr.mxu0 %v452
    %561 = vmatpush1.msra.mxu0 %v451
    %562 = vmatprep.subr.mxu0 %v456
    %563 = vmatpush1.msra.mxu0 %v455
    %564 = vmatprep.subr.mxu0 %v460
    %565 = vmatpush1.msra.mxu0 %v459
    %566 = vmatprep.subr.mxu0 %v464
    %567 = vmatpush1.msra.mxu0 %v463
    %568 = vmatprep.subr.mxu0 %v468
    %569 = vmatpush1.msra.mxu0 %v467
    %570 = vmatprep.subr.mxu0 %v472
    %571 = vmatpush1.msra.mxu0 %v471
    %572 = vmatprep.subr.mxu0 %v476
    %573 = vmatpush1.msra.mxu0 %v475
    %574 = vmatprep.subr.mxu0 %v480
    %575 = vmatpush1.msra.mxu0 %v479
    %576 = vmatprep.subr.mxu0 %v484
    %577 = vmatpush1.msra.mxu0 %v483
    %578 = vmatprep.subr.mxu0 %v488
    %579 = vmatpush1.msra.mxu0 %v487
    %580 = vmatprep.subr.mxu0 %v492
    %581 = vmatpush1.msra.mxu0 %v491
    %582 = vmatprep.subr.mxu0 %v496
    %583 = vmatpush1.msra.mxu0 %v495
    %584 = vmatprep.mubr.f32.mxu0 %v55
    %585 = vmatmul.mubr.f32.gmra.mrb[0].mxu0 %v369
    %v586 = vpop.f32.mrb[0].mxu0
    %v587 = vadd.f32 %v503, %v586
    %v588 = vpop.f32.mrb[0].mxu0
    %v589 = vadd.f32 %v507, %v588
    %590 = vdwg.mxu0
    %591 = vmatprep.subr.mxu0 %v374
    %592 = vmatpush1.msra.mxu0 %v373
    %593 = vmatprep.subr.mxu0 %v378
    %594 = vmatpush1.msra.mxu0 %v377
    %595 = vmatprep.subr.mxu0 %v382
    %596 = vmatpush1.msra.mxu0 %v381
    %597 = vmatprep.subr.mxu0 %v386
    %598 = vmatpush1.msra.mxu0 %v385
    %599 = vmatprep.subr.mxu0 %v390
    %600 = vmatpush1.msra.mxu0 %v389
    %601 = vmatprep.subr.mxu0 %v394
    %602 = vmatpush1.msra.mxu0 %v393
    %603 = vmatprep.subr.mxu0 %v398
    %604 = vmatpush1.msra.mxu0 %v397
    %605 = vmatprep.subr.mxu0 %v402
    %606 = vmatpush1.msra.mxu0 %v401
    %607 = vmatprep.subr.mxu0 %v406
    %608 = vmatpush1.msra.mxu0 %v405
    %609 = vmatprep.subr.mxu0 %v410
    %610 = vmatpush1.msra.mxu0 %v409
    %611 = vmatprep.subr.mxu0 %v414
    %612 = vmatpush1.msra.mxu0 %v413
    %613 = vmatprep.subr.mxu0 %v418
    %614 = vmatpush1.msra.mxu0 %v417
    %615 = vmatprep.subr.mxu0 %v422
    %616 = vmatpush1.msra.mxu0 %v421
    %617 = vmatprep.subr.mxu0 %v426
    %618 = vmatpush1.msra.mxu0 %v425
    %619 = vmatprep.subr.mxu0 %v430
    %620 = vmatpush1.msra.mxu0 %v429
    %621 = vmatprep.subr.mxu0 %v434
    %622 = vmatpush1.msra.mxu0 %v433
    %623 = vmatprep.subr.mxu0 %v438
    %624 = vmatpush1.msra.mxu0 %v437
    %625 = vmatprep.subr.mxu0 %v442
    %626 = vmatpush1.msra.mxu0 %v441
    %627 = vmatprep.subr.mxu0 %v446
    %628 = vmatpush1.msra.mxu0 %v445
    %629 = vmatprep.subr.mxu0 %v450
    %630 = vmatpush1.msra.mxu0 %v449
    %631 = vmatprep.subr.mxu0 %v454
    %632 = vmatpush1.msra.mxu0 %v453
    %633 = vmatprep.subr.mxu0 %v458
    %634 = vmatpush1.msra.mxu0 %v457
    %635 = vmatprep.subr.mxu0 %v462
    %636 = vmatpush1.msra.mxu0 %v461
    %637 = vmatprep.subr.mxu0 %v466
    %638 = vmatpush1.msra.mxu0 %v465
    %639 = vmatprep.subr.mxu0 %v470
    %640 = vmatpush1.msra.mxu0 %v469
    %641 = vmatprep.subr.mxu0 %v474
    %642 = vmatpush1.msra.mxu0 %v473
    %643 = vmatprep.subr.mxu0 %v478
    %644 = vmatpush1.msra.mxu0 %v477
    %645 = vmatprep.subr.mxu0 %v482
    %646 = vmatpush1.msra.mxu0 %v481
    %647 = vmatprep.subr.mxu0 %v486
    %648 = vmatpush1.msra.mxu0 %v485
    %649 = vmatprep.subr.mxu0 %v490
    %650 = vmatpush1.msra.mxu0 %v489
    %651 = vmatprep.subr.mxu0 %v494
    %652 = vmatpush1.msra.mxu0 %v493
    %653 = vmatprep.subr.mxu0 %v498
    %654 = vmatpush1.msra.mxu0 %v497
    %655 = vmatprep.mubr.f32.mxu0 %v55
    %656 = vmatmul.mubr.f32.gmra.mrb[0].mxu0 %v369
    %v657 = vpop.f32.mrb[0].mxu0
    %v658 = vadd.f32 %v511, %v657
    %v659 = vpop.f32.mrb[0].mxu0
    %v660 = vadd.f32 %v515, %v659
    %661 = vdwg.mxu0
    %v662 = vmul.f32 %v587, 0.5
    %v663 = vtanh.pop %v662
    %v664 = vmul.f32 %v663, 0.5
    %v665 = vadd.f32 %v664, 0.5
    %v666 = vmul.f32 %v589, 0.5
    %v667 = vtanh.pop %v666
    %v668 = vmul.f32 %v667, 0.5
    %v669 = vadd.f32 %v668, 0.5
    %v670 = vtanh.pop %v658
    %v671 = vmul.f32 %v660, 0.5
    %v672 = vtanh.pop %v671
    %v673 = vmul.f32 %v672, 0.5
    %v674 = vadd.f32 %v673, 0.5
    %v675 = vmul.f32 %v669, %v58
    %v676 = vmul.f32 %v665, %v670
    %v677 = vadd.f32 %v675, %v676
    %v678 = vtanh.pop %v677
    %v679 = vmul.f32 %v674, %v678
    %680 = vst [vmem:[#allocation7] sm:$0x1] %v679
    %v681 = vadd.f32 %v49, %v52
    %v682 = vld [vmem:[#allocation5] sm:$0xff]
    %v683 = vld [vmem:[#allocation5 + $0x8] sm:$0xff]
    %v684 = vld [vmem:[#allocation5 + $0x10] sm:$0xff]
    %v685 = vld [vmem:[#allocation5 + $0x18] sm:$0xff]
    %v686 = vld [vmem:[#allocation5 + $0x20] sm:$0xff]
    %v687 = vld [vmem:[#allocation5 + $0x28] sm:$0xff]
    %v688 = vld [vmem:[#allocation5 + $0x30] sm:$0xff]
    %v689 = vld [vmem:[#allocation5 + $0x38] sm:$0xff]
    %v690 = vld [vmem:[#allocation5 + $0x40] sm:$0xff]
    %v691 = vld [vmem:[#allocation5 + $0x48] sm:$0xff]
    %v692 = vld [vmem:[#allocation5 + $0x50] sm:$0xff]
    %v693 = vld [vmem:[#allocation5 + $0x58] sm:$0xff]
    %v694 = vld [vmem:[#allocation5 + $0x60] sm:$0xff]
    %v695 = vld [vmem:[#allocation5 + $0x68] sm:$0xff]
    %v696 = vld [vmem:[#allocation5 + $0x70] sm:$0xff]
    %v697 = vld [vmem:[#allocation5 + $0x78] sm:$0xff]
    %v698 = vld [vmem:[#allocation5 + $0x80] sm:$0xff]
    %v699 = vld [vmem:[#allocation5 + $0x88] sm:$0xff]
    %v700 = vld [vmem:[#allocation5 + $0x90] sm:$0xff]
    %v701 = vld [vmem:[#allocation5 + $0x98] sm:$0xff]
    %v702 = vld [vmem:[#allocation5 + $0xa0] sm:$0xff]
    %v703 = vld [vmem:[#allocation5 + $0xa8] sm:$0xff]
    %v704 = vld [vmem:[#allocation5 + $0xb0] sm:$0xff]
    %v705 = vld [vmem:[#allocation5 + $0xb8] sm:$0xff]
    %v706 = vld [vmem:[#allocation5 + $0xc0] sm:$0xff]
    %v707 = vld [vmem:[#allocation5 + $0xc8] sm:$0xff]
    %v708 = vld [vmem:[#allocation5 + $0xd0] sm:$0xff]
    %v709 = vld [vmem:[#allocation5 + $0xd8] sm:$0xff]
    %v710 = vld [vmem:[#allocation5 + $0xe0] sm:$0xff]
    %v711 = vld [vmem:[#allocation5 + $0xe8] sm:$0xff]
    %v712 = vld [vmem:[#allocation5 + $0xf0] sm:$0xff]
    %v713 = vld [vmem:[#allocation5 + $0xf8] sm:$0xff]
    %v714 = vld [vmem:[#allocation5 + $0x100] sm:$0xff]
    %v715 = vld [vmem:[#allocation5 + $0x108] sm:$0xff]
    %v716 = vld [vmem:[#allocation5 + $0x110] sm:$0xff]
    %v717 = vld [vmem:[#allocation5 + $0x118] sm:$0xff]
    %v718 = vld [vmem:[#allocation5 + $0x120] sm:$0xff]
    %v719 = vld [vmem:[#allocation5 + $0x128] sm:$0xff]
    %v720 = vld [vmem:[#allocation5 + $0x130] sm:$0xff]
    %v721 = vld [vmem:[#allocation5 + $0x138] sm:$0xff]
    %v722 = vld [vmem:[#allocation5 + $0x140] sm:$0xff]
    %v723 = vld [vmem:[#allocation5 + $0x148] sm:$0xff]
    %v724 = vld [vmem:[#allocation5 + $0x150] sm:$0xff]
    %v725 = vld [vmem:[#allocation5 + $0x158] sm:$0xff]
    %v726 = vld [vmem:[#allocation5 + $0x160] sm:$0xff]
    %v727 = vld [vmem:[#allocation5 + $0x168] sm:$0xff]
    %v728 = vld [vmem:[#allocation5 + $0x170] sm:$0xff]
    %v729 = vld [vmem:[#allocation5 + $0x178] sm:$0xff]
    %v730 = vld [vmem:[#allocation5 + $0x180] sm:$0xff]
    %v731 = vld [vmem:[#allocation5 + $0x188] sm:$0xff]
    %v732 = vld [vmem:[#allocation5 + $0x190] sm:$0xff]
    %v733 = vld [vmem:[#allocation5 + $0x198] sm:$0xff]
    %v734 = vld [vmem:[#allocation5 + $0x1a0] sm:$0xff]
    %v735 = vld [vmem:[#allocation5 + $0x1a8] sm:$0xff]
    %v736 = vld [vmem:[#allocation5 + $0x1b0] sm:$0xff]
    %v737 = vld [vmem:[#allocation5 + $0x1b8] sm:$0xff]
    %v738 = vld [vmem:[#allocation5 + $0x1c0] sm:$0xff]
    %v739 = vld [vmem:[#allocation5 + $0x1c8] sm:$0xff]
    %v740 = vld [vmem:[#allocation5 + $0x1d0] sm:$0xff]
    %v741 = vld [vmem:[#allocation5 + $0x1d8] sm:$0xff]
    %v742 = vld [vmem:[#allocation5 + $0x1e0] sm:$0xff]
    %v743 = vld [vmem:[#allocation5 + $0x1e8] sm:$0xff]
    %v744 = vld [vmem:[#allocation5 + $0x1f0] sm:$0xff]
    %v745 = vld [vmem:[#allocation5 + $0x1f8] sm:$0xff]
    %v746 = vld [vmem:[#allocation5 + $0x200] sm:$0xff]
    %v747 = vld [vmem:[#allocation5 + $0x208] sm:$0xff]
    %v748 = vld [vmem:[#allocation5 + $0x210] sm:$0xff]
    %v749 = vld [vmem:[#allocation5 + $0x218] sm:$0xff]
    %v750 = vld [vmem:[#allocation5 + $0x220] sm:$0xff]
    %v751 = vld [vmem:[#allocation5 + $0x228] sm:$0xff]
    %v752 = vld [vmem:[#allocation5 + $0x230] sm:$0xff]
    %v753 = vld [vmem:[#allocation5 + $0x238] sm:$0xff]
    %v754 = vld [vmem:[#allocation5 + $0x240] sm:$0xff]
    %v755 = vld [vmem:[#allocation5 + $0x248] sm:$0xff]
    %v756 = vld [vmem:[#allocation5 + $0x250] sm:$0xff]
    %v757 = vld [vmem:[#allocation5 + $0x258] sm:$0xff]
    %v758 = vld [vmem:[#allocation5 + $0x260] sm:$0xff]
    %v759 = vld [vmem:[#allocation5 + $0x268] sm:$0xff]
    %v760 = vld [vmem:[#allocation5 + $0x270] sm:$0xff]
    %v761 = vld [vmem:[#allocation5 + $0x278] sm:$0xff]
    %v762 = vld [vmem:[#allocation5 + $0x280] sm:$0xff]
    %v763 = vld [vmem:[#allocation5 + $0x288] sm:$0xff]
    %v764 = vld [vmem:[#allocation5 + $0x290] sm:$0xff]
    %v765 = vld [vmem:[#allocation5 + $0x298] sm:$0xff]
    %v766 = vld [vmem:[#allocation5 + $0x2a0] sm:$0xff]
    %v767 = vld [vmem:[#allocation5 + $0x2a8] sm:$0xff]
    %v768 = vld [vmem:[#allocation5 + $0x2b0] sm:$0xff]
    %v769 = vld [vmem:[#allocation5 + $0x2b8] sm:$0xff]
    %v770 = vld [vmem:[#allocation5 + $0x2c0] sm:$0xff]
    %v771 = vld [vmem:[#allocation5 + $0x2c8] sm:$0xff]
    %v772 = vld [vmem:[#allocation5 + $0x2d0] sm:$0xff]
    %v773 = vld [vmem:[#allocation5 + $0x2d8] sm:$0xff]
    %v774 = vld [vmem:[#allocation5 + $0x2e0] sm:$0xff]
    %v775 = vld [vmem:[#allocation5 + $0x2e8] sm:$0xff]
    %v776 = vld [vmem:[#allocation5 + $0x2f0] sm:$0xff]
    %v777 = vld [vmem:[#allocation5 + $0x2f8] sm:$0xff]
    %v778 = vld [vmem:[#allocation5 + $0x300] sm:$0xff]
    %v779 = vld [vmem:[#allocation5 + $0x308] sm:$0xff]
    %v780 = vld [vmem:[#allocation5 + $0x310] sm:$0xff]
    %v781 = vld [vmem:[#allocation5 + $0x318] sm:$0xff]
    %v782 = vld [vmem:[#allocation5 + $0x320] sm:$0xff]
    %v783 = vld [vmem:[#allocation5 + $0x328] sm:$0xff]
    %v784 = vld [vmem:[#allocation5 + $0x330] sm:$0xff]
    %v785 = vld [vmem:[#allocation5 + $0x338] sm:$0xff]
    %v786 = vld [vmem:[#allocation5 + $0x340] sm:$0xff]
    %v787 = vld [vmem:[#allocation5 + $0x348] sm:$0xff]
    %v788 = vld [vmem:[#allocation5 + $0x350] sm:$0xff]
    %v789 = vld [vmem:[#allocation5 + $0x358] sm:$0xff]
    %v790 = vld [vmem:[#allocation5 + $0x360] sm:$0xff]
    %v791 = vld [vmem:[#allocation5 + $0x368] sm:$0xff]
    %v792 = vld [vmem:[#allocation5 + $0x370] sm:$0xff]
    %v793 = vld [vmem:[#allocation5 + $0x378] sm:$0xff]
    %v794 = vld [vmem:[#allocation5 + $0x380] sm:$0xff]
    %v795 = vld [vmem:[#allocation5 + $0x388] sm:$0xff]
    %v796 = vld [vmem:[#allocation5 + $0x390] sm:$0xff]
    %v797 = vld [vmem:[#allocation5 + $0x398] sm:$0xff]
    %v798 = vld [vmem:[#allocation5 + $0x3a0] sm:$0xff]
    %v799 = vld [vmem:[#allocation5 + $0x3a8] sm:$0xff]
    %v800 = vld [vmem:[#allocation5 + $0x3b0] sm:$0xff]
    %v801 = vld [vmem:[#allocation5 + $0x3b8] sm:$0xff]
    %v802 = vld [vmem:[#allocation5 + $0x3c0] sm:$0xff]
    %v803 = vld [vmem:[#allocation5 + $0x3c8] sm:$0xff]
    %v804 = vld [vmem:[#allocation5 + $0x3d0] sm:$0xff]
    %v805 = vld [vmem:[#allocation5 + $0x3d8] sm:$0xff]
    %v806 = vld [vmem:[#allocation5 + $0x3e0] sm:$0xff]
    %v807 = vld [vmem:[#allocation5 + $0x3e8] sm:$0xff]
    %v808 = vld [vmem:[#allocation5 + $0x3f0] sm:$0xff]
    %v809 = vld [vmem:[#allocation5 + $0x3f8] sm:$0xff]
    %v811 = vlaneseq
    %v812 = vshrl.u32 %v811, 7
    %v813 = vsub.s32 0, %v812
    %v814 = vrot.slane %v681, %v813
    %v815 = vlaneseq
    %v816 = vshrl.u32 %v815, 7
    %v817 = vsub.s32 1, %v816
    %v818 = vrot.slane %v681, %v817
    %v819 = vlaneseq
    %v820 = vshrl.u32 %v819, 7
    %v821 = vsub.s32 2, %v820
    %v822 = vrot.slane %v681, %v821
    %v823 = vlaneseq
    %v824 = vshrl.u32 %v823, 7
    %v825 = vsub.s32 3, %v824
    %v826 = vrot.slane %v681, %v825
    %831 = vmatprep.subr.mxu0 %v683
    %832 = vmatpush1.msra.mxu0 %v682
    %833 = vmatprep.subr.mxu0 %v687
    %834 = vmatpush1.msra.mxu0 %v686
    %835 = vmatprep.subr.mxu0 %v691
    %836 = vmatpush1.msra.mxu0 %v690
    %837 = vmatprep.subr.mxu0 %v695
    %838 = vmatpush1.msra.mxu0 %v694
    %839 = vmatprep.subr.mxu0 %v699
    %840 = vmatpush1.msra.mxu0 %v698
    %841 = vmatprep.subr.mxu0 %v703
    %842 = vmatpush1.msra.mxu0 %v702
    %843 = vmatprep.subr.mxu0 %v707
    %844 = vmatpush1.msra.mxu0 %v706
    %845 = vmatprep.subr.mxu0 %v711
    %846 = vmatpush1.msra.mxu0 %v710
    %847 = vmatprep.subr.mxu0 %v715
    %848 = vmatpush1.msra.mxu0 %v714
    %849 = vmatprep.subr.mxu0 %v719
    %850 = vmatpush1.msra.mxu0 %v718
    %851 = vmatprep.subr.mxu0 %v723
    %852 = vmatpush1.msra.mxu0 %v722
    %853 = vmatprep.subr.mxu0 %v727
    %854 = vmatpush1.msra.mxu0 %v726
    %855 = vmatprep.subr.mxu0 %v731
    %856 = vmatpush1.msra.mxu0 %v730
    %857 = vmatprep.subr.mxu0 %v735
    %858 = vmatpush1.msra.mxu0 %v734
    %859 = vmatprep.subr.mxu0 %v739
    %860 = vmatpush1.msra.mxu0 %v738
    %861 = vmatprep.subr.mxu0 %v743
    %862 = vmatpush1.msra.mxu0 %v742
    %863 = vmatprep.subr.mxu0 %v747
    %864 = vmatpush1.msra.mxu0 %v746
    %865 = vmatprep.subr.mxu0 %v751
    %866 = vmatpush1.msra.mxu0 %v750
    %867 = vmatprep.subr.mxu0 %v755
    %868 = vmatpush1.msra.mxu0 %v754
    %869 = vmatprep.subr.mxu0 %v759
    %870 = vmatpush1.msra.mxu0 %v758
    %871 = vmatprep.subr.mxu0 %v763
    %872 = vmatpush1.msra.mxu0 %v762
    %873 = vmatprep.subr.mxu0 %v767
    %874 = vmatpush1.msra.mxu0 %v766
    %875 = vmatprep.subr.mxu0 %v771
    %876 = vmatpush1.msra.mxu0 %v770
    %877 = vmatprep.subr.mxu0 %v775
    %878 = vmatpush1.msra.mxu0 %v774
    %879 = vmatprep.subr.mxu0 %v779
    %880 = vmatpush1.msra.mxu0 %v778
    %881 = vmatprep.subr.mxu0 %v783
    %882 = vmatpush1.msra.mxu0 %v782
    %883 = vmatprep.subr.mxu0 %v787
    %884 = vmatpush1.msra.mxu0 %v786
    %885 = vmatprep.subr.mxu0 %v791
    %886 = vmatpush1.msra.mxu0 %v790
    %887 = vmatprep.subr.mxu0 %v795
    %888 = vmatpush1.msra.mxu0 %v794
    %889 = vmatprep.subr.mxu0 %v799
    %890 = vmatpush1.msra.mxu0 %v798
    %891 = vmatprep.subr.mxu0 %v803
    %892 = vmatpush1.msra.mxu0 %v802
    %893 = vmatprep.subr.mxu0 %v807
    %894 = vmatpush1.msra.mxu0 %v806
    %895 = vmatprep.mubr.f32.mxu0 %v369
    %896 = vmatmul.mubr.f32.gmra.mrb[0].mxu0 %v679
    %v897 = vpop.f32.mrb[0].mxu0
    %v898 = vadd.f32 %v814, %v897
    %v899 = vpop.f32.mrb[0].mxu0
    %v900 = vadd.f32 %v818, %v899
    %901 = vdwg.mxu0
    %902 = vmatprep.subr.mxu0 %v685
    %903 = vmatpush1.msra.mxu0 %v684
    %904 = vmatprep.subr.mxu0 %v689
    %905 = vmatpush1.msra.mxu0 %v688
    %906 = vmatprep.subr.mxu0 %v693
    %907 = vmatpush1.msra.mxu0 %v692
    %908 = vmatprep.subr.mxu0 %v697
    %909 = vmatpush1.msra.mxu0 %v696
    %910 = vmatprep.subr.mxu0 %v701
    %911 = vmatpush1.msra.mxu0 %v700
    %912 = vmatprep.subr.mxu0 %v705
    %913 = vmatpush1.msra.mxu0 %v704
    %914 = vmatprep.subr.mxu0 %v709
    %915 = vmatpush1.msra.mxu0 %v708
    %916 = vmatprep.subr.mxu0 %v713
    %917 = vmatpush1.msra.mxu0 %v712
    %918 = vmatprep.subr.mxu0 %v717
    %919 = vmatpush1.msra.mxu0 %v716
    %920 = vmatprep.subr.mxu0 %v721
    %921 = vmatpush1.msra.mxu0 %v720
    %922 = vmatprep.subr.mxu0 %v725
    %923 = vmatpush1.msra.mxu0 %v724
    %924 = vmatprep.subr.mxu0 %v729
    %925 = vmatpush1.msra.mxu0 %v728
    %926 = vmatprep.subr.mxu0 %v733
    %927 = vmatpush1.msra.mxu0 %v732
    %928 = vmatprep.subr.mxu0 %v737
    %929 = vmatpush1.msra.mxu0 %v736
    %930 = vmatprep.subr.mxu0 %v741
    %931 = vmatpush1.msra.mxu0 %v740
    %932 = vmatprep.subr.mxu0 %v745
    %933 = vmatpush1.msra.mxu0 %v744
    %934 = vmatprep.subr.mxu0 %v749
    %935 = vmatpush1.msra.mxu0 %v748
    %936 = vmatprep.subr.mxu0 %v753
    %937 = vmatpush1.msra.mxu0 %v752
    %938 = vmatprep.subr.mxu0 %v757
    %939 = vmatpush1.msra.mxu0 %v756
    %940 = vmatprep.subr.mxu0 %v761
    %941 = vmatpush1.msra.mxu0 %v760
    %942 = vmatprep.subr.mxu0 %v765
    %943 = vmatpush1.msra.mxu0 %v764
    %944 = vmatprep.subr.mxu0 %v769
    %945 = vmatpush1.msra.mxu0 %v768
    %946 = vmatprep.subr.mxu0 %v773
    %947 = vmatpush1.msra.mxu0 %v772
    %948 = vmatprep.subr.mxu0 %v777
    %949 = vmatpush1.msra.mxu0 %v776
    %950 = vmatprep.subr.mxu0 %v781
    %951 = vmatpush1.msra.mxu0 %v780
    %952 = vmatprep.subr.mxu0 %v785
    %953 = vmatpush1.msra.mxu0 %v784
    %954 = vmatprep.subr.mxu0 %v789
    %955 = vmatpush1.msra.mxu0 %v788
    %956 = vmatprep.subr.mxu0 %v793
    %957 = vmatpush1.msra.mxu0 %v792
    %958 = vmatprep.subr.mxu0 %v797
    %959 = vmatpush1.msra.mxu0 %v796
    %960 = vmatprep.subr.mxu0 %v801
    %961 = vmatpush1.msra.mxu0 %v800
    %962 = vmatprep.subr.mxu0 %v805
    %963 = vmatpush1.msra.mxu0 %v804
    %964 = vmatprep.subr.mxu0 %v809
    %965 = vmatpush1.msra.mxu0 %v808
    %966 = vmatprep.mubr.f32.mxu0 %v369
    %967 = vmatmul.mubr.f32.gmra.mrb[0].mxu0 %v679
    %v968 = vpop.f32.mrb[0].mxu0
    %v969 = vadd.f32 %v822, %v968
    %v970 = vpop.f32.mrb[0].mxu0
    %v971 = vadd.f32 %v826, %v970
    %972 = vdwg.mxu0
    %v973 = vmul.f32 %v898, 0.5
    %v974 = vtanh.pop %v973
    %v975 = vmul.f32 %v974, 0.5
    %v976 = vadd.f32 %v975, 0.5
    %v977 = vmul.f32 %v900, 0.5
    %v978 = vtanh.pop %v977
    %v979 = vmul.f32 %v978, 0.5
    %v980 = vadd.f32 %v979, 0.5
    %v981 = vtanh.pop %v969
    %v982 = vmul.f32 %v971, 0.5
    %v983 = vtanh.pop %v982
    %v984 = vmul.f32 %v983, 0.5
    %v985 = vadd.f32 %v984, 0.5
    %v986 = vmul.f32 %v980, %v367
    %v987 = vmul.f32 %v976, %v981
    %v988 = vadd.f32 %v986, %v987
    %v989 = vtanh.pop %v988
    %v990 = vmul.f32 %v985, %v989
    %v991 = vld [vmem:[%s370] sm:$0xff]
    %v992 = vld [vmem:[%s370 + $0x8] sm:$0xff]
    %v993 = vld [vmem:[%s370 + $0x10] sm:$0xff]
    %v994 = vld [vmem:[%s370 + $0x18] sm:$0xff]
    %v995 = vld [vmem:[%s370 + $0x20] sm:$0xff]
    %v996 = vld [vmem:[%s370 + $0x28] sm:$0xff]
    %v997 = vld [vmem:[%s370 + $0x30] sm:$0xff]
    %v998 = vld [vmem:[%s370 + $0x38] sm:$0xff]
    %v999 = vld [vmem:[%s370 + $0x40] sm:$0xff]
    %v1000 = vld [vmem:[%s370 + $0x48] sm:$0xff]
    %v1001 = vld [vmem:[%s370 + $0x50] sm:$0xff]
    %v1002 = vld [vmem:[%s370 + $0x58] sm:$0xff]
    %v1003 = vld [vmem:[%s370 + $0x60] sm:$0xff]
    %v1004 = vld [vmem:[%s370 + $0x68] sm:$0xff]
    %v1005 = vld [vmem:[%s370 + $0x70] sm:$0xff]
    %v1006 = vld [vmem:[%s370 + $0x78] sm:$0xff]
    %v1007 = vld [vmem:[%s370 + $0x80] sm:$0xff]
    %v1008 = vld [vmem:[%s370 + $0x88] sm:$0xff]
    %v1009 = vld [vmem:[%s370 + $0x90] sm:$0xff]
    %v1010 = vld [vmem:[%s370 + $0x98] sm:$0xff]
    %v1011 = vld [vmem:[%s370 + $0xa0] sm:$0xff]
    %v1012 = vld [vmem:[%s370 + $0xa8] sm:$0xff]
    %v1013 = vld [vmem:[%s370 + $0xb0] sm:$0xff]
    %v1014 = vld [vmem:[%s370 + $0xb8] sm:$0xff]
    %v1015 = vld [vmem:[%s370 + $0xc0] sm:$0xff]
    %v1016 = vld [vmem:[%s370 + $0xc8] sm:$0xff]
    %v1017 = vld [vmem:[%s370 + $0xd0] sm:$0xff]
    %v1018 = vld [vmem:[%s370 + $0xd8] sm:$0xff]
    %v1019 = vld [vmem:[%s370 + $0xe0] sm:$0xff]
    %v1020 = vld [vmem:[%s370 + $0xe8] sm:$0xff]
    %v1021 = vld [vmem:[%s370 + $0xf0] sm:$0xff]
    %v1022 = vld [vmem:[%s370 + $0xf8] sm:$0xff]
    %v1023 = vld [vmem:[%s370 + $0x100] sm:$0xff]
    %v1024 = vld [vmem:[%s370 + $0x108] sm:$0xff]
    %v1025 = vld [vmem:[%s370 + $0x110] sm:$0xff]
    %v1026 = vld [vmem:[%s370 + $0x118] sm:$0xff]
    %v1027 = vld [vmem:[%s370 + $0x120] sm:$0xff]
    %v1028 = vld [vmem:[%s370 + $0x128] sm:$0xff]
    %v1029 = vld [vmem:[%s370 + $0x130] sm:$0xff]
    %v1030 = vld [vmem:[%s370 + $0x138] sm:$0xff]
    %v1031 = vld [vmem:[%s370 + $0x140] sm:$0xff]
    %v1032 = vld [vmem:[%s370 + $0x148] sm:$0xff]
    %v1033 = vld [vmem:[%s370 + $0x150] sm:$0xff]
    %v1034 = vld [vmem:[%s370 + $0x158] sm:$0xff]
    %v1035 = vld [vmem:[%s370 + $0x160] sm:$0xff]
    %v1036 = vld [vmem:[%s370 + $0x168] sm:$0xff]
    %v1037 = vld [vmem:[%s370 + $0x170] sm:$0xff]
    %v1038 = vld [vmem:[%s370 + $0x178] sm:$0xff]
    %v1039 = vld [vmem:[%s370 + $0x180] sm:$0xff]
    %v1040 = vld [vmem:[%s370 + $0x188] sm:$0xff]
    %v1041 = vld [vmem:[%s370 + $0x190] sm:$0xff]
    %v1042 = vld [vmem:[%s370 + $0x198] sm:$0xff]
    %v1043 = vld [vmem:[%s370 + $0x1a0] sm:$0xff]
    %v1044 = vld [vmem:[%s370 + $0x1a8] sm:$0xff]
    %v1045 = vld [vmem:[%s370 + $0x1b0] sm:$0xff]
    %v1046 = vld [vmem:[%s370 + $0x1b8] sm:$0xff]
    %v1047 = vld [vmem:[%s370 + $0x1c0] sm:$0xff]
    %v1048 = vld [vmem:[%s370 + $0x1c8] sm:$0xff]
    %v1049 = vld [vmem:[%s370 + $0x1d0] sm:$0xff]
    %v1050 = vld [vmem:[%s370 + $0x1d8] sm:$0xff]
    %v1051 = vld [vmem:[%s370 + $0x1e0] sm:$0xff]
    %v1052 = vld [vmem:[%s370 + $0x1e8] sm:$0xff]
    %v1053 = vld [vmem:[%s370 + $0x1f0] sm:$0xff]
    %v1054 = vld [vmem:[%s370 + $0x1f8] sm:$0xff]
    %v1055 = vld [vmem:[%s370 + $0x200] sm:$0xff]
    %v1056 = vld [vmem:[%s370 + $0x208] sm:$0xff]
    %v1057 = vld [vmem:[%s370 + $0x210] sm:$0xff]
    %v1058 = vld [vmem:[%s370 + $0x218] sm:$0xff]
    %v1059 = vld [vmem:[%s370 + $0x220] sm:$0xff]
    %v1060 = vld [vmem:[%s370 + $0x228] sm:$0xff]
    %v1061 = vld [vmem:[%s370 + $0x230] sm:$0xff]
    %v1062 = vld [vmem:[%s370 + $0x238] sm:$0xff]
    %v1063 = vld [vmem:[%s370 + $0x240] sm:$0xff]
    %v1064 = vld [vmem:[%s370 + $0x248] sm:$0xff]
    %v1065 = vld [vmem:[%s370 + $0x250] sm:$0xff]
    %v1066 = vld [vmem:[%s370 + $0x258] sm:$0xff]
    %v1067 = vld [vmem:[%s370 + $0x260] sm:$0xff]
    %v1068 = vld [vmem:[%s370 + $0x268] sm:$0xff]
    %v1069 = vld [vmem:[%s370 + $0x270] sm:$0xff]
    %v1070 = vld [vmem:[%s370 + $0x278] sm:$0xff]
    %v1071 = vld [vmem:[%s370 + $0x280] sm:$0xff]
    %v1072 = vld [vmem:[%s370 + $0x288] sm:$0xff]
    %v1073 = vld [vmem:[%s370 + $0x290] sm:$0xff]
    %v1074 = vld [vmem:[%s370 + $0x298] sm:$0xff]
    %v1075 = vld [vmem:[%s370 + $0x2a0] sm:$0xff]
    %v1076 = vld [vmem:[%s370 + $0x2a8] sm:$0xff]
    %v1077 = vld [vmem:[%s370 + $0x2b0] sm:$0xff]
    %v1078 = vld [vmem:[%s370 + $0x2b8] sm:$0xff]
    %v1079 = vld [vmem:[%s370 + $0x2c0] sm:$0xff]
    %v1080 = vld [vmem:[%s370 + $0x2c8] sm:$0xff]
    %v1081 = vld [vmem:[%s370 + $0x2d0] sm:$0xff]
    %v1082 = vld [vmem:[%s370 + $0x2d8] sm:$0xff]
    %v1083 = vld [vmem:[%s370 + $0x2e0] sm:$0xff]
    %v1084 = vld [vmem:[%s370 + $0x2e8] sm:$0xff]
    %v1085 = vld [vmem:[%s370 + $0x2f0] sm:$0xff]
    %v1086 = vld [vmem:[%s370 + $0x2f8] sm:$0xff]
    %v1087 = vld [vmem:[%s370 + $0x300] sm:$0xff]
    %v1088 = vld [vmem:[%s370 + $0x308] sm:$0xff]
    %v1089 = vld [vmem:[%s370 + $0x310] sm:$0xff]
    %v1090 = vld [vmem:[%s370 + $0x318] sm:$0xff]
    %v1091 = vld [vmem:[%s370 + $0x320] sm:$0xff]
    %v1092 = vld [vmem:[%s370 + $0x328] sm:$0xff]
    %v1093 = vld [vmem:[%s370 + $0x330] sm:$0xff]
    %v1094 = vld [vmem:[%s370 + $0x338] sm:$0xff]
    %v1095 = vld [vmem:[%s370 + $0x340] sm:$0xff]
    %v1096 = vld [vmem:[%s370 + $0x348] sm:$0xff]
    %v1097 = vld [vmem:[%s370 + $0x350] sm:$0xff]
    %v1098 = vld [vmem:[%s370 + $0x358] sm:$0xff]
    %v1099 = vld [vmem:[%s370 + $0x360] sm:$0xff]
    %v1100 = vld [vmem:[%s370 + $0x368] sm:$0xff]
    %v1101 = vld [vmem:[%s370 + $0x370] sm:$0xff]
    %v1102 = vld [vmem:[%s370 + $0x378] sm:$0xff]
    %v1103 = vld [vmem:[%s370 + $0x380] sm:$0xff]
    %v1104 = vld [vmem:[%s370 + $0x388] sm:$0xff]
    %v1105 = vld [vmem:[%s370 + $0x390] sm:$0xff]
    %v1106 = vld [vmem:[%s370 + $0x398] sm:$0xff]
    %v1107 = vld [vmem:[%s370 + $0x3a0] sm:$0xff]
    %v1108 = vld [vmem:[%s370 + $0x3a8] sm:$0xff]
    %v1109 = vld [vmem:[%s370 + $0x3b0] sm:$0xff]
    %v1110 = vld [vmem:[%s370 + $0x3b8] sm:$0xff]
    %v1111 = vld [vmem:[%s370 + $0x3c0] sm:$0xff]
    %v1112 = vld [vmem:[%s370 + $0x3c8] sm:$0xff]
    %v1113 = vld [vmem:[%s370 + $0x3d0] sm:$0xff]
    %v1114 = vld [vmem:[%s370 + $0x3d8] sm:$0xff]
    %v1115 = vld [vmem:[%s370 + $0x3e0] sm:$0xff]
    %v1116 = vld [vmem:[%s370 + $0x3e8] sm:$0xff]
    %v1117 = vld [vmem:[%s370 + $0x3f0] sm:$0xff]
    %v1118 = vld [vmem:[%s370 + $0x3f8] sm:$0xff]
    %1119 = vmatprep.subr.mxu0 %v992
    %1120 = vmatpush1.msra.mxu0 %v991
    %1121 = vmatprep.subr.mxu0 %v996
    %1122 = vmatpush1.msra.mxu0 %v995
    %1123 = vmatprep.subr.mxu0 %v1000
    %1124 = vmatpush1.msra.mxu0 %v999
    %1125 = vmatprep.subr.mxu0 %v1004
    %1126 = vmatpush1.msra.mxu0 %v1003
    %1127 = vmatprep.subr.mxu0 %v1008
    %1128 = vmatpush1.msra.mxu0 %v1007
    %1129 = vmatprep.subr.mxu0 %v1012
    %1130 = vmatpush1.msra.mxu0 %v1011
    %1131 = vmatprep.subr.mxu0 %v1016
    %1132 = vmatpush1.msra.mxu0 %v1015
    %1133 = vmatprep.subr.mxu0 %v1020
    %1134 = vmatpush1.msra.mxu0 %v1019
    %1135 = vmatprep.subr.mxu0 %v1024
    %1136 = vmatpush1.msra.mxu0 %v1023
    %1137 = vmatprep.subr.mxu0 %v1028
    %1138 = vmatpush1.msra.mxu0 %v1027
    %1139 = vmatprep.subr.mxu0 %v1032
    %1140 = vmatpush1.msra.mxu0 %v1031
    %1141 = vmatprep.subr.mxu0 %v1036
    %1142 = vmatpush1.msra.mxu0 %v1035
    %1143 = vmatprep.subr.mxu0 %v1040
    %1144 = vmatpush1.msra.mxu0 %v1039
    %1145 = vmatprep.subr.mxu0 %v1044
    %1146 = vmatpush1.msra.mxu0 %v1043
    %1147 = vmatprep.subr.mxu0 %v1048
    %1148 = vmatpush1.msra.mxu0 %v1047
    %1149 = vmatprep.subr.mxu0 %v1052
    %1150 = vmatpush1.msra.mxu0 %v1051
    %1151 = vmatprep.subr.mxu0 %v1056
    %1152 = vmatpush1.msra.mxu0 %v1055
    %1153 = vmatprep.subr.mxu0 %v1060
    %1154 = vmatpush1.msra.mxu0 %v1059
    %1155 = vmatprep.subr.mxu0 %v1064
    %1156 = vmatpush1.msra.mxu0 %v1063
    %1157 = vmatprep.subr.mxu0 %v1068
    %1158 = vmatpush1.msra.mxu0 %v1067
    %1159 = vmatprep.subr.mxu0 %v1072
    %1160 = vmatpush1.msra.mxu0 %v1071
    %1161 = vmatprep.subr.mxu0 %v1076
    %1162 = vmatpush1.msra.mxu0 %v1075
    %1163 = vmatprep.subr.mxu0 %v1080
    %1164 = vmatpush1.msra.mxu0 %v1079
    %1165 = vmatprep.subr.mxu0 %v1084
    %1166 = vmatpush1.msra.mxu0 %v1083
    %1167 = vmatprep.subr.mxu0 %v1088
    %1168 = vmatpush1.msra.mxu0 %v1087
    %1169 = vmatprep.subr.mxu0 %v1092
    %1170 = vmatpush1.msra.mxu0 %v1091
    %1171 = vmatprep.subr.mxu0 %v1096
    %1172 = vmatpush1.msra.mxu0 %v1095
    %1173 = vmatprep.subr.mxu0 %v1100
    %1174 = vmatpush1.msra.mxu0 %v1099
    %1175 = vmatprep.subr.mxu0 %v1104
    %1176 = vmatpush1.msra.mxu0 %v1103
    %1177 = vmatprep.subr.mxu0 %v1108
    %1178 = vmatpush1.msra.mxu0 %v1107
    %1179 = vmatprep.subr.mxu0 %v1112
    %1180 = vmatpush1.msra.mxu0 %v1111
    %1181 = vmatprep.subr.mxu0 %v1116
    %1182 = vmatpush1.msra.mxu0 %v1115
    %1183 = vmatprep.mubr.f32.mxu0 %v679
    %1184 = vmatmul.mubr.f32.gmra.mrb[0].mxu0 %v990
    %v1185 = vpop.f32.mrb[0].mxu0
    %v1186 = vadd.f32 %v503, %v1185
    %v1187 = vpop.f32.mrb[0].mxu0
    %v1188 = vadd.f32 %v507, %v1187
    %1189 = vdwg.mxu0
    %1190 = vmatprep.subr.mxu0 %v994
    %1191 = vmatpush1.msra.mxu0 %v993
    %1192 = vmatprep.subr.mxu0 %v998
    %1193 = vmatpush1.msra.mxu0 %v997
    %1194 = vmatprep.subr.mxu0 %v1002
    %1195 = vmatpush1.msra.mxu0 %v1001
    %1196 = vmatprep.subr.mxu0 %v1006
    %1197 = vmatpush1.msra.mxu0 %v1005
    %1198 = vmatprep.subr.mxu0 %v1010
    %1199 = vmatpush1.msra.mxu0 %v1009
    %1200 = vmatprep.subr.mxu0 %v1014
    %1201 = vmatpush1.msra.mxu0 %v1013
    %1202 = vmatprep.subr.mxu0 %v1018
    %1203 = vmatpush1.msra.mxu0 %v1017
    %1204 = vmatprep.subr.mxu0 %v1022
    %1205 = vmatpush1.msra.mxu0 %v1021
    %1206 = vmatprep.subr.mxu0 %v1026
    %1207 = vmatpush1.msra.mxu0 %v1025
    %1208 = vmatprep.subr.mxu0 %v1030
    %1209 = vmatpush1.msra.mxu0 %v1029
    %1210 = vmatprep.subr.mxu0 %v1034
    %1211 = vmatpush1.msra.mxu0 %v1033
    %1212 = vmatprep.subr.mxu0 %v1038
    %1213 = vmatpush1.msra.mxu0 %v1037
    %1214 = vmatprep.subr.mxu0 %v1042
    %1215 = vmatpush1.msra.mxu0 %v1041
    %1216 = vmatprep.subr.mxu0 %v1046
    %1217 = vmatpush1.msra.mxu0 %v1045
    %1218 = vmatprep.subr.mxu0 %v1050
    %1219 = vmatpush1.msra.mxu0 %v1049
    %1220 = vmatprep.subr.mxu0 %v1054
    %1221 = vmatpush1.msra.mxu0 %v1053
    %1222 = vmatprep.subr.mxu0 %v1058
    %1223 = vmatpush1.msra.mxu0 %v1057
    %1224 = vmatprep.subr.mxu0 %v1062
    %1225 = vmatpush1.msra.mxu0 %v1061
    %1226 = vmatprep.subr.mxu0 %v1066
    %1227 = vmatpush1.msra.mxu0 %v1065
    %1228 = vmatprep.subr.mxu0 %v1070
    %1229 = vmatpush1.msra.mxu0 %v1069
    %1230 = vmatprep.subr.mxu0 %v1074
    %1231 = vmatpush1.msra.mxu0 %v1073
    %1232 = vmatprep.subr.mxu0 %v1078
    %1233 = vmatpush1.msra.mxu0 %v1077
    %1234 = vmatprep.subr.mxu0 %v1082
    %1235 = vmatpush1.msra.mxu0 %v1081
    %1236 = vmatprep.subr.mxu0 %v1086
    %1237 = vmatpush1.msra.mxu0 %v1085
    %1238 = vmatprep.subr.mxu0 %v1090
    %1239 = vmatpush1.msra.mxu0 %v1089
    %1240 = vmatprep.subr.mxu0 %v1094
    %1241 = vmatpush1.msra.mxu0 %v1093
    %1242 = vmatprep.subr.mxu0 %v1098
    %1243 = vmatpush1.msra.mxu0 %v1097
    %1244 = vmatprep.subr.mxu0 %v1102
    %1245 = vmatpush1.msra.mxu0 %v1101
    %1246 = vmatprep.subr.mxu0 %v1106
    %1247 = vmatpush1.msra.mxu0 %v1105
    %1248 = vmatprep.subr.mxu0 %v1110
    %1249 = vmatpush1.msra.mxu0 %v1109
    %1250 = vmatprep.subr.mxu0 %v1114
    %1251 = vmatpush1.msra.mxu0 %v1113
    %1252 = vmatprep.subr.mxu0 %v1118
    %1253 = vmatpush1.msra.mxu0 %v1117
    %1254 = vmatprep.mubr.f32.mxu0 %v679
    %1255 = vmatmul.mubr.f32.gmra.mrb[0].mxu0 %v990
    %v1256 = vpop.f32.mrb[0].mxu0
    %v1257 = vadd.f32 %v511, %v1256
    %v1258 = vpop.f32.mrb[0].mxu0
    %v1259 = vadd.f32 %v515, %v1258
    %1260 = vdwg.mxu0
    %v1261 = vmul.f32 %v1186, 0.5
    %v1262 = vtanh.pop %v1261
    %v1263 = vmul.f32 %v1262, 0.5
    %v1264 = vadd.f32 %v1263, 0.5
    %v1265 = vmul.f32 %v1188, 0.5
    %v1266 = vtanh.pop %v1265
    %v1267 = vmul.f32 %v1266, 0.5
    %v1268 = vadd.f32 %v1267, 0.5
    %v1269 = vtanh.pop %v1257
    %v1270 = vmul.f32 %v1259, 0.5
    %v1271 = vtanh.pop %v1270
    %v1272 = vmul.f32 %v1271, 0.5
    %v1273 = vadd.f32 %v1272, 0.5
    %v1274 = vmul.f32 %v1268, %v677
    %v1275 = vmul.f32 %v1264, %v1269
    %v1276 = vadd.f32 %v1274, %v1275
    %v1277 = vtanh.pop %v1276
    %v1278 = vmul.f32 %v1273, %v1277
    %1279 = vst [vmem:[#allocation7 + $0x1] sm:$0x1] %v1278
    %v1280 = vld [vmem:[#allocation5] sm:$0xff]
    %v1281 = vld [vmem:[#allocation5 + $0x8] sm:$0xff]
    %v1282 = vld [vmem:[#allocation5 + $0x10] sm:$0xff]
    %v1283 = vld [vmem:[#allocation5 + $0x18] sm:$0xff]
    %v1284 = vld [vmem:[#allocation5 + $0x20] sm:$0xff]
    %v1285 = vld [vmem:[#allocation5 + $0x28] sm:$0xff]
    %v1286 = vld [vmem:[#allocation5 + $0x30] sm:$0xff]
    %v1287 = vld [vmem:[#allocation5 + $0x38] sm:$0xff]
    %v1288 = vld [vmem:[#allocation5 + $0x40] sm:$0xff]
    %v1289 = vld [vmem:[#allocation5 + $0x48] sm:$0xff]
    %v1290 = vld [vmem:[#allocation5 + $0x50] sm:$0xff]
    %v1291 = vld [vmem:[#allocation5 + $0x58] sm:$0xff]
    %v1292 = vld [vmem:[#allocation5 + $0x60] sm:$0xff]
    %v1293 = vld [vmem:[#allocation5 + $0x68] sm:$0xff]
    %v1294 = vld [vmem:[#allocation5 + $0x70] sm:$0xff]
    %v1295 = vld [vmem:[#allocation5 + $0x78] sm:$0xff]
    %v1296 = vld [vmem:[#allocation5 + $0x80] sm:$0xff]
    %v1297 = vld [vmem:[#allocation5 + $0x88] sm:$0xff]
    %v1298 = vld [vmem:[#allocation5 + $0x90] sm:$0xff]
    %v1299 = vld [vmem:[#allocation5 + $0x98] sm:$0xff]
    %v1300 = vld [vmem:[#allocation5 + $0xa0] sm:$0xff]
    %v1301 = vld [vmem:[#allocation5 + $0xa8] sm:$0xff]
    %v1302 = vld [vmem:[#allocation5 + $0xb0] sm:$0xff]
    %v1303 = vld [vmem:[#allocation5 + $0xb8] sm:$0xff]
    %v1304 = vld [vmem:[#allocation5 + $0xc0] sm:$0xff]
    %v1305 = vld [vmem:[#allocation5 + $0xc8] sm:$0xff]
    %v1306 = vld [vmem:[#allocation5 + $0xd0] sm:$0xff]
    %v1307 = vld [vmem:[#allocation5 + $0xd8] sm:$0xff]
    %v1308 = vld [vmem:[#allocation5 + $0xe0] sm:$0xff]
    %v1309 = vld [vmem:[#allocation5 + $0xe8] sm:$0xff]
    %v1310 = vld [vmem:[#allocation5 + $0xf0] sm:$0xff]
    %v1311 = vld [vmem:[#allocation5 + $0xf8] sm:$0xff]
    %v1312 = vld [vmem:[#allocation5 + $0x100] sm:$0xff]
    %v1313 = vld [vmem:[#allocation5 + $0x108] sm:$0xff]
    %v1314 = vld [vmem:[#allocation5 + $0x110] sm:$0xff]
    %v1315 = vld [vmem:[#allocation5 + $0x118] sm:$0xff]
    %v1316 = vld [vmem:[#allocation5 + $0x120] sm:$0xff]
    %v1317 = vld [vmem:[#allocation5 + $0x128] sm:$0xff]
    %v1318 = vld [vmem:[#allocation5 + $0x130] sm:$0xff]
    %v1319 = vld [vmem:[#allocation5 + $0x138] sm:$0xff]
    %v1320 = vld [vmem:[#allocation5 + $0x140] sm:$0xff]
    %v1321 = vld [vmem:[#allocation5 + $0x148] sm:$0xff]
    %v1322 = vld [vmem:[#allocation5 + $0x150] sm:$0xff]
    %v1323 = vld [vmem:[#allocation5 + $0x158] sm:$0xff]
    %v1324 = vld [vmem:[#allocation5 + $0x160] sm:$0xff]
    %v1325 = vld [vmem:[#allocation5 + $0x168] sm:$0xff]
    %v1326 = vld [vmem:[#allocation5 + $0x170] sm:$0xff]
    %v1327 = vld [vmem:[#allocation5 + $0x178] sm:$0xff]
    %v1328 = vld [vmem:[#allocation5 + $0x180] sm:$0xff]
    %v1329 = vld [vmem:[#allocation5 + $0x188] sm:$0xff]
    %v1330 = vld [vmem:[#allocation5 + $0x190] sm:$0xff]
    %v1331 = vld [vmem:[#allocation5 + $0x198] sm:$0xff]
    %v1332 = vld [vmem:[#allocation5 + $0x1a0] sm:$0xff]
    %v1333 = vld [vmem:[#allocation5 + $0x1a8] sm:$0xff]
    %v1334 = vld [vmem:[#allocation5 + $0x1b0] sm:$0xff]
    %v1335 = vld [vmem:[#allocation5 + $0x1b8] sm:$0xff]
    %v1336 = vld [vmem:[#allocation5 + $0x1c0] sm:$0xff]
    %v1337 = vld [vmem:[#allocation5 + $0x1c8] sm:$0xff]
    %v1338 = vld [vmem:[#allocation5 + $0x1d0] sm:$0xff]
    %v1339 = vld [vmem:[#allocation5 + $0x1d8] sm:$0xff]
    %v1340 = vld [vmem:[#allocation5 + $0x1e0] sm:$0xff]
    %v1341 = vld [vmem:[#allocation5 + $0x1e8] sm:$0xff]
    %v1342 = vld [vmem:[#allocation5 + $0x1f0] sm:$0xff]
    %v1343 = vld [vmem:[#allocation5 + $0x1f8] sm:$0xff]
    %v1344 = vld [vmem:[#allocation5 + $0x200] sm:$0xff]
    %v1345 = vld [vmem:[#allocation5 + $0x208] sm:$0xff]
    %v1346 = vld [vmem:[#allocation5 + $0x210] sm:$0xff]
    %v1347 = vld [vmem:[#allocation5 + $0x218] sm:$0xff]
    %v1348 = vld [vmem:[#allocation5 + $0x220] sm:$0xff]
    %v1349 = vld [vmem:[#allocation5 + $0x228] sm:$0xff]
    %v1350 = vld [vmem:[#allocation5 + $0x230] sm:$0xff]
    %v1351 = vld [vmem:[#allocation5 + $0x238] sm:$0xff]
    %v1352 = vld [vmem:[#allocation5 + $0x240] sm:$0xff]
    %v1353 = vld [vmem:[#allocation5 + $0x248] sm:$0xff]
    %v1354 = vld [vmem:[#allocation5 + $0x250] sm:$0xff]
    %v1355 = vld [vmem:[#allocation5 + $0x258] sm:$0xff]
    %v1356 = vld [vmem:[#allocation5 + $0x260] sm:$0xff]
    %v1357 = vld [vmem:[#allocation5 + $0x268] sm:$0xff]
    %v1358 = vld [vmem:[#allocation5 + $0x270] sm:$0xff]
    %v1359 = vld [vmem:[#allocation5 + $0x278] sm:$0xff]
    %v1360 = vld [vmem:[#allocation5 + $0x280] sm:$0xff]
    %v1361 = vld [vmem:[#allocation5 + $0x288] sm:$0xff]
    %v1362 = vld [vmem:[#allocation5 + $0x290] sm:$0xff]
    %v1363 = vld [vmem:[#allocation5 + $0x298] sm:$0xff]
    %v1364 = vld [vmem:[#allocation5 + $0x2a0] sm:$0xff]
    %v1365 = vld [vmem:[#allocation5 + $0x2a8] sm:$0xff]
    %v1366 = vld [vmem:[#allocation5 + $0x2b0] sm:$0xff]
    %v1367 = vld [vmem:[#allocation5 + $0x2b8] sm:$0xff]
    %v1368 = vld [vmem:[#allocation5 + $0x2c0] sm:$0xff]
    %v1369 = vld [vmem:[#allocation5 + $0x2c8] sm:$0xff]
    %v1370 = vld [vmem:[#allocation5 + $0x2d0] sm:$0xff]
    %v1371 = vld [vmem:[#allocation5 + $0x2d8] sm:$0xff]
    %v1372 = vld [vmem:[#allocation5 + $0x2e0] sm:$0xff]
    %v1373 = vld [vmem:[#allocation5 + $0x2e8] sm:$0xff]
    %v1374 = vld [vmem:[#allocation5 + $0x2f0] sm:$0xff]
    %v1375 = vld [vmem:[#allocation5 + $0x2f8] sm:$0xff]
    %v1376 = vld [vmem:[#allocation5 + $0x300] sm:$0xff]
    %v1377 = vld [vmem:[#allocation5 + $0x308] sm:$0xff]
    %v1378 = vld [vmem:[#allocation5 + $0x310] sm:$0xff]
    %v1379 = vld [vmem:[#allocation5 + $0x318] sm:$0xff]
    %v1380 = vld [vmem:[#allocation5 + $0x320] sm:$0xff]
    %v1381 = vld [vmem:[#allocation5 + $0x328] sm:$0xff]
    %v1382 = vld [vmem:[#allocation5 + $0x330] sm:$0xff]
    %v1383 = vld [vmem:[#allocation5 + $0x338] sm:$0xff]
    %v1384 = vld [vmem:[#allocation5 + $0x340] sm:$0xff]
    %v1385 = vld [vmem:[#allocation5 + $0x348] sm:$0xff]
    %v1386 = vld [vmem:[#allocation5 + $0x350] sm:$0xff]
    %v1387 = vld [vmem:[#allocation5 + $0x358] sm:$0xff]
    %v1388 = vld [vmem:[#allocation5 + $0x360] sm:$0xff]
    %v1389 = vld [vmem:[#allocation5 + $0x368] sm:$0xff]
    %v1390 = vld [vmem:[#allocation5 + $0x370] sm:$0xff]
    %v1391 = vld [vmem:[#allocation5 + $0x378] sm:$0xff]
    %v1392 = vld [vmem:[#allocation5 + $0x380] sm:$0xff]
    %v1393 = vld [vmem:[#allocation5 + $0x388] sm:$0xff]
    %v1394 = vld [vmem:[#allocation5 + $0x390] sm:$0xff]
    %v1395 = vld [vmem:[#allocation5 + $0x398] sm:$0xff]
    %v1396 = vld [vmem:[#allocation5 + $0x3a0] sm:$0xff]
    %v1397 = vld [vmem:[#allocation5 + $0x3a8] sm:$0xff]
    %v1398 = vld [vmem:[#allocation5 + $0x3b0] sm:$0xff]
    %v1399 = vld [vmem:[#allocation5 + $0x3b8] sm:$0xff]
    %v1400 = vld [vmem:[#allocation5 + $0x3c0] sm:$0xff]
    %v1401 = vld [vmem:[#allocation5 + $0x3c8] sm:$0xff]
    %v1402 = vld [vmem:[#allocation5 + $0x3d0] sm:$0xff]
    %v1403 = vld [vmem:[#allocation5 + $0x3d8] sm:$0xff]
    %v1404 = vld [vmem:[#allocation5 + $0x3e0] sm:$0xff]
    %v1405 = vld [vmem:[#allocation5 + $0x3e8] sm:$0xff]
    %v1406 = vld [vmem:[#allocation5 + $0x3f0] sm:$0xff]
    %v1407 = vld [vmem:[#allocation5 + $0x3f8] sm:$0xff]
    %1408 = vmatprep.subr.mxu0 %v1281
    %1409 = vmatpush1.msra.mxu0 %v1280
    %1410 = vmatprep.subr.mxu0 %v1285
    %1411 = vmatpush1.msra.mxu0 %v1284
    %1412 = vmatprep.subr.mxu0 %v1289
    %1413 = vmatpush1.msra.mxu0 %v1288
    %1414 = vmatprep.subr.mxu0 %v1293
    %1415 = vmatpush1.msra.mxu0 %v1292
    %1416 = vmatprep.subr.mxu0 %v1297
    %1417 = vmatpush1.msra.mxu0 %v1296
    %1418 = vmatprep.subr.mxu0 %v1301
    %1419 = vmatpush1.msra.mxu0 %v1300
    %1420 = vmatprep.subr.mxu0 %v1305
    %1421 = vmatpush1.msra.mxu0 %v1304
    %1422 = vmatprep.subr.mxu0 %v1309
    %1423 = vmatpush1.msra.mxu0 %v1308
    %1424 = vmatprep.subr.mxu0 %v1313
    %1425 = vmatpush1.msra.mxu0 %v1312
    %1426 = vmatprep.subr.mxu0 %v1317
    %1427 = vmatpush1.msra.mxu0 %v1316
    %1428 = vmatprep.subr.mxu0 %v1321
    %1429 = vmatpush1.msra.mxu0 %v1320
    %1430 = vmatprep.subr.mxu0 %v1325
    %1431 = vmatpush1.msra.mxu0 %v1324
    %1432 = vmatprep.subr.mxu0 %v1329
    %1433 = vmatpush1.msra.mxu0 %v1328
    %1434 = vmatprep.subr.mxu0 %v1333
    %1435 = vmatpush1.msra.mxu0 %v1332
    %1436 = vmatprep.subr.mxu0 %v1337
    %1437 = vmatpush1.msra.mxu0 %v1336
    %1438 = vmatprep.subr.mxu0 %v1341
    %1439 = vmatpush1.msra.mxu0 %v1340
    %1440 = vmatprep.subr.mxu0 %v1345
    %1441 = vmatpush1.msra.mxu0 %v1344
    %1442 = vmatprep.subr.mxu0 %v1349
    %1443 = vmatpush1.msra.mxu0 %v1348
    %1444 = vmatprep.subr.mxu0 %v1353
    %1445 = vmatpush1.msra.mxu0 %v1352
    %1446 = vmatprep.subr.mxu0 %v1357
    %1447 = vmatpush1.msra.mxu0 %v1356
    %1448 = vmatprep.subr.mxu0 %v1361
    %1449 = vmatpush1.msra.mxu0 %v1360
    %1450 = vmatprep.subr.mxu0 %v1365
    %1451 = vmatpush1.msra.mxu0 %v1364
    %1452 = vmatprep.subr.mxu0 %v1369
    %1453 = vmatpush1.msra.mxu0 %v1368
    %1454 = vmatprep.subr.mxu0 %v1373
    %1455 = vmatpush1.msra.mxu0 %v1372
    %1456 = vmatprep.subr.mxu0 %v1377
    %1457 = vmatpush1.msra.mxu0 %v1376
    %1458 = vmatprep.subr.mxu0 %v1381
    %1459 = vmatpush1.msra.mxu0 %v1380
    %1460 = vmatprep.subr.mxu0 %v1385
    %1461 = vmatpush1.msra.mxu0 %v1384
    %1462 = vmatprep.subr.mxu0 %v1389
    %1463 = vmatpush1.msra.mxu0 %v1388
    %1464 = vmatprep.subr.mxu0 %v1393
    %1465 = vmatpush1.msra.mxu0 %v1392
    %1466 = vmatprep.subr.mxu0 %v1397
    %1467 = vmatpush1.msra.mxu0 %v1396
    %1468 = vmatprep.subr.mxu0 %v1401
    %1469 = vmatpush1.msra.mxu0 %v1400
    %1470 = vmatprep.subr.mxu0 %v1405
    %1471 = vmatpush1.msra.mxu0 %v1404
    %1472 = vmatprep.mubr.f32.mxu0 %v990
    %1473 = vmatmul.mubr.f32.gmra.mrb[0].mxu0 %v1278
    %v1474 = vpop.f32.mrb[0].mxu0
    %v1475 = vadd.f32 %v814, %v1474
    %v1476 = vpop.f32.mrb[0].mxu0
    %v1477 = vadd.f32 %v818, %v1476
    %1478 = vdwg.mxu0
    %1479 = vmatprep.subr.mxu0 %v1283
    %1480 = vmatpush1.msra.mxu0 %v1282
    %1481 = vmatprep.subr.mxu0 %v1287
    %1482 = vmatpush1.msra.mxu0 %v1286
    %1483 = vmatprep.subr.mxu0 %v1291
    %1484 = vmatpush1.msra.mxu0 %v1290
    %1485 = vmatprep.subr.mxu0 %v1295
    %1486 = vmatpush1.msra.mxu0 %v1294
    %1487 = vmatprep.subr.mxu0 %v1299
    %1488 = vmatpush1.msra.mxu0 %v1298
    %1489 = vmatprep.subr.mxu0 %v1303
    %1490 = vmatpush1.msra.mxu0 %v1302
    %1491 = vmatprep.subr.mxu0 %v1307
    %1492 = vmatpush1.msra.mxu0 %v1306
    %1493 = vmatprep.subr.mxu0 %v1311
    %1494 = vmatpush1.msra.mxu0 %v1310
    %1495 = vmatprep.subr.mxu0 %v1315
    %1496 = vmatpush1.msra.mxu0 %v1314
    %1497 = vmatprep.subr.mxu0 %v1319
    %1498 = vmatpush1.msra.mxu0 %v1318
    %1499 = vmatprep.subr.mxu0 %v1323
    %1500 = vmatpush1.msra.mxu0 %v1322
    %1501 = vmatprep.subr.mxu0 %v1327
    %1502 = vmatpush1.msra.mxu0 %v1326
    %1503 = vmatprep.subr.mxu0 %v1331
    %1504 = vmatpush1.msra.mxu0 %v1330
    %1505 = vmatprep.subr.mxu0 %v1335
    %1506 = vmatpush1.msra.mxu0 %v1334
    %1507 = vmatprep.subr.mxu0 %v1339
    %1508 = vmatpush1.msra.mxu0 %v1338
    %1509 = vmatprep.subr.mxu0 %v1343
    %1510 = vmatpush1.msra.mxu0 %v1342
    %1511 = vmatprep.subr.mxu0 %v1347
    %1512 = vmatpush1.msra.mxu0 %v1346
    %1513 = vmatprep.subr.mxu0 %v1351
    %1514 = vmatpush1.msra.mxu0 %v1350
    %1515 = vmatprep.subr.mxu0 %v1355
    %1516 = vmatpush1.msra.mxu0 %v1354
    %1517 = vmatprep.subr.mxu0 %v1359
    %1518 = vmatpush1.msra.mxu0 %v1358
    %1519 = vmatprep.subr.mxu0 %v1363
    %1520 = vmatpush1.msra.mxu0 %v1362
    %1521 = vmatprep.subr.mxu0 %v1367
    %1522 = vmatpush1.msra.mxu0 %v1366
    %1523 = vmatprep.subr.mxu0 %v1371
    %1524 = vmatpush1.msra.mxu0 %v1370
    %1525 = vmatprep.subr.mxu0 %v1375
    %1526 = vmatpush1.msra.mxu0 %v1374
    %1527 = vmatprep.subr.mxu0 %v1379
    %1528 = vmatpush1.msra.mxu0 %v1378
    %1529 = vmatprep.subr.mxu0 %v1383
    %1530 = vmatpush1.msra.mxu0 %v1382
    %1531 = vmatprep.subr.mxu0 %v1387
    %1532 = vmatpush1.msra.mxu0 %v1386
    %1533 = vmatprep.subr.mxu0 %v1391
    %1534 = vmatpush1.msra.mxu0 %v1390
    %1535 = vmatprep.subr.mxu0 %v1395
    %1536 = vmatpush1.msra.mxu0 %v1394
    %1537 = vmatprep.subr.mxu0 %v1399
    %1538 = vmatpush1.msra.mxu0 %v1398
    %1539 = vmatprep.subr.mxu0 %v1403
    %1540 = vmatpush1.msra.mxu0 %v1402
    %1541 = vmatprep.subr.mxu0 %v1407
    %1542 = vmatpush1.msra.mxu0 %v1406
    %1543 = vmatprep.mubr.f32.mxu0 %v990
    %1544 = vmatmul.mubr.f32.gmra.mrb[0].mxu0 %v1278
    %v1545 = vpop.f32.mrb[0].mxu0
    %v1546 = vadd.f32 %v822, %v1545
    %v1547 = vpop.f32.mrb[0].mxu0
    %v1548 = vadd.f32 %v826, %v1547
    %1549 = vdwg.mxu0
    %v1550 = vmul.f32 %v1475, 0.5
    %v1551 = vtanh.pop %v1550
    %v1552 = vmul.f32 %v1551, 0.5
    %v1553 = vadd.f32 %v1552, 0.5
    %v1554 = vmul.f32 %v1477, 0.5
    %v1555 = vtanh.pop %v1554
    %v1556 = vmul.f32 %v1555, 0.5
    %v1557 = vadd.f32 %v1556, 0.5
    %v1558 = vtanh.pop %v1546
    %v1559 = vmul.f32 %v1548, 0.5
    %v1560 = vtanh.pop %v1559
    %v1561 = vmul.f32 %v1560, 0.5
    %v1562 = vadd.f32 %v1561, 0.5
    %v1563 = vmul.f32 %v1557, %v988
    %v1564 = vmul.f32 %v1553, %v1558
    %v1565 = vadd.f32 %v1563, %v1564
    %v1566 = vtanh.pop %v1565
    %v1567 = vmul.f32 %v1562, %v1566
    %v1568 = vld [vmem:[%s370] sm:$0xff]
    %v1569 = vld [vmem:[%s370 + $0x8] sm:$0xff]
    %v1570 = vld [vmem:[%s370 + $0x10] sm:$0xff]
    %v1571 = vld [vmem:[%s370 + $0x18] sm:$0xff]
    %v1572 = vld [vmem:[%s370 + $0x20] sm:$0xff]
    %v1573 = vld [vmem:[%s370 + $0x28] sm:$0xff]
    %v1574 = vld [vmem:[%s370 + $0x30] sm:$0xff]
    %v1575 = vld [vmem:[%s370 + $0x38] sm:$0xff]
    %v1576 = vld [vmem:[%s370 + $0x40] sm:$0xff]
    %v1577 = vld [vmem:[%s370 + $0x48] sm:$0xff]
    %v1578 = vld [vmem:[%s370 + $0x50] sm:$0xff]
    %v1579 = vld [vmem:[%s370 + $0x58] sm:$0xff]
    %v1580 = vld [vmem:[%s370 + $0x60] sm:$0xff]
    %v1581 = vld [vmem:[%s370 + $0x68] sm:$0xff]
    %v1582 = vld [vmem:[%s370 + $0x70] sm:$0xff]
    %v1583 = vld [vmem:[%s370 + $0x78] sm:$0xff]
    %v1584 = vld [vmem:[%s370 + $0x80] sm:$0xff]
    %v1585 = vld [vmem:[%s370 + $0x88] sm:$0xff]
    %v1586 = vld [vmem:[%s370 + $0x90] sm:$0xff]
    %v1587 = vld [vmem:[%s370 + $0x98] sm:$0xff]
    %v1588 = vld [vmem:[%s370 + $0xa0] sm:$0xff]
    %v1589 = vld [vmem:[%s370 + $0xa8] sm:$0xff]
    %v1590 = vld [vmem:[%s370 + $0xb0] sm:$0xff]
    %v1591 = vld [vmem:[%s370 + $0xb8] sm:$0xff]
    %v1592 = vld [vmem:[%s370 + $0xc0] sm:$0xff]
    %v1593 = vld [vmem:[%s370 + $0xc8] sm:$0xff]
    %v1594 = vld [vmem:[%s370 + $0xd0] sm:$0xff]
    %v1595 = vld [vmem:[%s370 + $0xd8] sm:$0xff]
    %v1596 = vld [vmem:[%s370 + $0xe0] sm:$0xff]
    %v1597 = vld [vmem:[%s370 + $0xe8] sm:$0xff]
    %v1598 = vld [vmem:[%s370 + $0xf0] sm:$0xff]
    %v1599 = vld [vmem:[%s370 + $0xf8] sm:$0xff]
    %v1600 = vld [vmem:[%s370 + $0x100] sm:$0xff]
    %v1601 = vld [vmem:[%s370 + $0x108] sm:$0xff]
    %v1602 = vld [vmem:[%s370 + $0x110] sm:$0xff]
    %v1603 = vld [vmem:[%s370 + $0x118] sm:$0xff]
    %v1604 = vld [vmem:[%s370 + $0x120] sm:$0xff]
    %v1605 = vld [vmem:[%s370 + $0x128] sm:$0xff]
    %v1606 = vld [vmem:[%s370 + $0x130] sm:$0xff]
    %v1607 = vld [vmem:[%s370 + $0x138] sm:$0xff]
    %v1608 = vld [vmem:[%s370 + $0x140] sm:$0xff]
    %v1609 = vld [vmem:[%s370 + $0x148] sm:$0xff]
    %v1610 = vld [vmem:[%s370 + $0x150] sm:$0xff]
    %v1611 = vld [vmem:[%s370 + $0x158] sm:$0xff]
    %v1612 = vld [vmem:[%s370 + $0x160] sm:$0xff]
    %v1613 = vld [vmem:[%s370 + $0x168] sm:$0xff]
    %v1614 = vld [vmem:[%s370 + $0x170] sm:$0xff]
    %v1615 = vld [vmem:[%s370 + $0x178] sm:$0xff]
    %v1616 = vld [vmem:[%s370 + $0x180] sm:$0xff]
    %v1617 = vld [vmem:[%s370 + $0x188] sm:$0xff]
    %v1618 = vld [vmem:[%s370 + $0x190] sm:$0xff]
    %v1619 = vld [vmem:[%s370 + $0x198] sm:$0xff]
    %v1620 = vld [vmem:[%s370 + $0x1a0] sm:$0xff]
    %v1621 = vld [vmem:[%s370 + $0x1a8] sm:$0xff]
    %v1622 = vld [vmem:[%s370 + $0x1b0] sm:$0xff]
    %v1623 = vld [vmem:[%s370 + $0x1b8] sm:$0xff]
    %v1624 = vld [vmem:[%s370 + $0x1c0] sm:$0xff]
    %v1625 = vld [vmem:[%s370 + $0x1c8] sm:$0xff]
    %v1626 = vld [vmem:[%s370 + $0x1d0] sm:$0xff]
    %v1627 = vld [vmem:[%s370 + $0x1d8] sm:$0xff]
    %v1628 = vld [vmem:[%s370 + $0x1e0] sm:$0xff]
    %v1629 = vld [vmem:[%s370 + $0x1e8] sm:$0xff]
    %v1630 = vld [vmem:[%s370 + $0x1f0] sm:$0xff]
    %v1631 = vld [vmem:[%s370 + $0x1f8] sm:$0xff]
    %v1632 = vld [vmem:[%s370 + $0x200] sm:$0xff]
    %v1633 = vld [vmem:[%s370 + $0x208] sm:$0xff]
    %v1634 = vld [vmem:[%s370 + $0x210] sm:$0xff]
    %v1635 = vld [vmem:[%s370 + $0x218] sm:$0xff]
    %v1636 = vld [vmem:[%s370 + $0x220] sm:$0xff]
    %v1637 = vld [vmem:[%s370 + $0x228] sm:$0xff]
    %v1638 = vld [vmem:[%s370 + $0x230] sm:$0xff]
    %v1639 = vld [vmem:[%s370 + $0x238] sm:$0xff]
    %v1640 = vld [vmem:[%s370 + $0x240] sm:$0xff]
    %v1641 = vld [vmem:[%s370 + $0x248] sm:$0xff]
    %v1642 = vld [vmem:[%s370 + $0x250] sm:$0xff]
    %v1643 = vld [vmem:[%s370 + $0x258] sm:$0xff]
    %v1644 = vld [vmem:[%s370 + $0x260] sm:$0xff]
    %v1645 = vld [vmem:[%s370 + $0x268] sm:$0xff]
    %v1646 = vld [vmem:[%s370 + $0x270] sm:$0xff]
    %v1647 = vld [vmem:[%s370 + $0x278] sm:$0xff]
    %v1648 = vld [vmem:[%s370 + $0x280] sm:$0xff]
    %v1649 = vld [vmem:[%s370 + $0x288] sm:$0xff]
    %v1650 = vld [vmem:[%s370 + $0x290] sm:$0xff]
    %v1651 = vld [vmem:[%s370 + $0x298] sm:$0xff]
    %v1652 = vld [vmem:[%s370 + $0x2a0] sm:$0xff]
    %v1653 = vld [vmem:[%s370 + $0x2a8] sm:$0xff]
    %v1654 = vld [vmem:[%s370 + $0x2b0] sm:$0xff]
    %v1655 = vld [vmem:[%s370 + $0x2b8] sm:$0xff]
    %v1656 = vld [vmem:[%s370 + $0x2c0] sm:$0xff]
    %v1657 = vld [vmem:[%s370 + $0x2c8] sm:$0xff]
    %v1658 = vld [vmem:[%s370 + $0x2d0] sm:$0xff]
    %v1659 = vld [vmem:[%s370 + $0x2d8] sm:$0xff]
    %v1660 = vld [vmem:[%s370 + $0x2e0] sm:$0xff]
    %v1661 = vld [vmem:[%s370 + $0x2e8] sm:$0xff]
    %v1662 = vld [vmem:[%s370 + $0x2f0] sm:$0xff]
    %v1663 = vld [vmem:[%s370 + $0x2f8] sm:$0xff]
    %v1664 = vld [vmem:[%s370 + $0x300] sm:$0xff]
    %v1665 = vld [vmem:[%s370 + $0x308] sm:$0xff]
    %v1666 = vld [vmem:[%s370 + $0x310] sm:$0xff]
    %v1667 = vld [vmem:[%s370 + $0x318] sm:$0xff]
    %v1668 = vld [vmem:[%s370 + $0x320] sm:$0xff]
    %v1669 = vld [vmem:[%s370 + $0x328] sm:$0xff]
    %v1670 = vld [vmem:[%s370 + $0x330] sm:$0xff]
    %v1671 = vld [vmem:[%s370 + $0x338] sm:$0xff]
    %v1672 = vld [vmem:[%s370 + $0x340] sm:$0xff]
    %v1673 = vld [vmem:[%s370 + $0x348] sm:$0xff]
    %v1674 = vld [vmem:[%s370 + $0x350] sm:$0xff]
    %v1675 = vld [vmem:[%s370 + $0x358] sm:$0xff]
    %v1676 = vld [vmem:[%s370 + $0x360] sm:$0xff]
    %v1677 = vld [vmem:[%s370 + $0x368] sm:$0xff]
    %v1678 = vld [vmem:[%s370 + $0x370] sm:$0xff]
    %v1679 = vld [vmem:[%s370 + $0x378] sm:$0xff]
    %v1680 = vld [vmem:[%s370 + $0x380] sm:$0xff]
    %v1681 = vld [vmem:[%s370 + $0x388] sm:$0xff]
    %v1682 = vld [vmem:[%s370 + $0x390] sm:$0xff]
    %v1683 = vld [vmem:[%s370 + $0x398] sm:$0xff]
    %v1684 = vld [vmem:[%s370 + $0x3a0] sm:$0xff]
    %v1685 = vld [vmem:[%s370 + $0x3a8] sm:$0xff]
    %v1686 = vld [vmem:[%s370 + $0x3b0] sm:$0xff]
    %v1687 = vld [vmem:[%s370 + $0x3b8] sm:$0xff]
    %v1688 = vld [vmem:[%s370 + $0x3c0] sm:$0xff]
    %v1689 = vld [vmem:[%s370 + $0x3c8] sm:$0xff]
    %v1690 = vld [vmem:[%s370 + $0x3d0] sm:$0xff]
    %v1691 = vld [vmem:[%s370 + $0x3d8] sm:$0xff]
    %v1692 = vld [vmem:[%s370 + $0x3e0] sm:$0xff]
    %v1693 = vld [vmem:[%s370 + $0x3e8] sm:$0xff]
    %v1694 = vld [vmem:[%s370 + $0x3f0] sm:$0xff]
    %v1695 = vld [vmem:[%s370 + $0x3f8] sm:$0xff]
    %1696 = vmatprep.subr.mxu0 %v1569
    %1697 = vmatpush1.msra.mxu0 %v1568
    %1698 = vmatprep.subr.mxu0 %v1573
    %1699 = vmatpush1.msra.mxu0 %v1572
    %1700 = vmatprep.subr.mxu0 %v1577
    %1701 = vmatpush1.msra.mxu0 %v1576
    %1702 = vmatprep.subr.mxu0 %v1581
    %1703 = vmatpush1.msra.mxu0 %v1580
    %1704 = vmatprep.subr.mxu0 %v1585
    %1705 = vmatpush1.msra.mxu0 %v1584
    %1706 = vmatprep.subr.mxu0 %v1589
    %1707 = vmatpush1.msra.mxu0 %v1588
    %1708 = vmatprep.subr.mxu0 %v1593
    %1709 = vmatpush1.msra.mxu0 %v1592
    %1710 = vmatprep.subr.mxu0 %v1597
    %1711 = vmatpush1.msra.mxu0 %v1596
    %1712 = vmatprep.subr.mxu0 %v1601
    %1713 = vmatpush1.msra.mxu0 %v1600
    %1714 = vmatprep.subr.mxu0 %v1605
    %1715 = vmatpush1.msra.mxu0 %v1604
    %1716 = vmatprep.subr.mxu0 %v1609
    %1717 = vmatpush1.msra.mxu0 %v1608
    %1718 = vmatprep.subr.mxu0 %v1613
    %1719 = vmatpush1.msra.mxu0 %v1612
    %1720 = vmatprep.subr.mxu0 %v1617
    %1721 = vmatpush1.msra.mxu0 %v1616
    %1722 = vmatprep.subr.mxu0 %v1621
    %1723 = vmatpush1.msra.mxu0 %v1620
    %1724 = vmatprep.subr.mxu0 %v1625
    %1725 = vmatpush1.msra.mxu0 %v1624
    %1726 = vmatprep.subr.mxu0 %v1629
    %1727 = vmatpush1.msra.mxu0 %v1628
    %1728 = vmatprep.subr.mxu0 %v1633
    %1729 = vmatpush1.msra.mxu0 %v1632
    %1730 = vmatprep.subr.mxu0 %v1637
    %1731 = vmatpush1.msra.mxu0 %v1636
    %1732 = vmatprep.subr.mxu0 %v1641
    %1733 = vmatpush1.msra.mxu0 %v1640
    %1734 = vmatprep.subr.mxu0 %v1645
    %1735 = vmatpush1.msra.mxu0 %v1644
    %1736 = vmatprep.subr.mxu0 %v1649
    %1737 = vmatpush1.msra.mxu0 %v1648
    %1738 = vmatprep.subr.mxu0 %v1653
    %1739 = vmatpush1.msra.mxu0 %v1652
    %1740 = vmatprep.subr.mxu0 %v1657
    %1741 = vmatpush1.msra.mxu0 %v1656
    %1742 = vmatprep.subr.mxu0 %v1661
    %1743 = vmatpush1.msra.mxu0 %v1660
    %1744 = vmatprep.subr.mxu0 %v1665
    %1745 = vmatpush1.msra.mxu0 %v1664
    %1746 = vmatprep.subr.mxu0 %v1669
    %1747 = vmatpush1.msra.mxu0 %v1668
    %1748 = vmatprep.subr.mxu0 %v1673
    %1749 = vmatpush1.msra.mxu0 %v1672
    %1750 = vmatprep.subr.mxu0 %v1677
    %1751 = vmatpush1.msra.mxu0 %v1676
    %1752 = vmatprep.subr.mxu0 %v1681
    %1753 = vmatpush1.msra.mxu0 %v1680
    %1754 = vmatprep.subr.mxu0 %v1685
    %1755 = vmatpush1.msra.mxu0 %v1684
    %1756 = vmatprep.subr.mxu0 %v1689
    %1757 = vmatpush1.msra.mxu0 %v1688
    %1758 = vmatprep.subr.mxu0 %v1693
    %1759 = vmatpush1.msra.mxu0 %v1692
    %1760 = vmatprep.mubr.f32.mxu0 %v1278
    %1761 = vmatmul.mubr.f32.gmra.mrb[0].mxu0 %v1567
    %v1762 = vpop.f32.mrb[0].mxu0
    %v1763 = vadd.f32 %v503, %v1762
    %v1764 = vpop.f32.mrb[0].mxu0
    %v1765 = vadd.f32 %v507, %v1764
    %1766 = vdwg.mxu0
    %1767 = vmatprep.subr.mxu0 %v1571
    %1768 = vmatpush1.msra.mxu0 %v1570
    %1769 = vmatprep.subr.mxu0 %v1575
    %1770 = vmatpush1.msra.mxu0 %v1574
    %1771 = vmatprep.subr.mxu0 %v1579
    %1772 = vmatpush1.msra.mxu0 %v1578
    %1773 = vmatprep.subr.mxu0 %v1583
    %1774 = vmatpush1.msra.mxu0 %v1582
    %1775 = vmatprep.subr.mxu0 %v1587
    %1776 = vmatpush1.msra.mxu0 %v1586
    %1777 = vmatprep.subr.mxu0 %v1591
    %1778 = vmatpush1.msra.mxu0 %v1590
    %1779 = vmatprep.subr.mxu0 %v1595
    %1780 = vmatpush1.msra.mxu0 %v1594
    %1781 = vmatprep.subr.mxu0 %v1599
    %1782 = vmatpush1.msra.mxu0 %v1598
    %1783 = vmatprep.subr.mxu0 %v1603
    %1784 = vmatpush1.msra.mxu0 %v1602
    %1785 = vmatprep.subr.mxu0 %v1607
    %1786 = vmatpush1.msra.mxu0 %v1606
    %1787 = vmatprep.subr.mxu0 %v1611
    %1788 = vmatpush1.msra.mxu0 %v1610
    %1789 = vmatprep.subr.mxu0 %v1615
    %1790 = vmatpush1.msra.mxu0 %v1614
    %1791 = vmatprep.subr.mxu0 %v1619
    %1792 = vmatpush1.msra.mxu0 %v1618
    %1793 = vmatprep.subr.mxu0 %v1623
    %1794 = vmatpush1.msra.mxu0 %v1622
    %1795 = vmatprep.subr.mxu0 %v1627
    %1796 = vmatpush1.msra.mxu0 %v1626
    %1797 = vmatprep.subr.mxu0 %v1631
    %1798 = vmatpush1.msra.mxu0 %v1630
    %1799 = vmatprep.subr.mxu0 %v1635
    %1800 = vmatpush1.msra.mxu0 %v1634
    %1801 = vmatprep.subr.mxu0 %v1639
    %1802 = vmatpush1.msra.mxu0 %v1638
    %1803 = vmatprep.subr.mxu0 %v1643
    %1804 = vmatpush1.msra.mxu0 %v1642
    %1805 = vmatprep.subr.mxu0 %v1647
    %1806 = vmatpush1.msra.mxu0 %v1646
    %1807 = vmatprep.subr.mxu0 %v1651
    %1808 = vmatpush1.msra.mxu0 %v1650
    %1809 = vmatprep.subr.mxu0 %v1655
    %1810 = vmatpush1.msra.mxu0 %v1654
    %1811 = vmatprep.subr.mxu0 %v1659
    %1812 = vmatpush1.msra.mxu0 %v1658
    %1813 = vmatprep.subr.mxu0 %v1663
    %1814 = vmatpush1.msra.mxu0 %v1662
    %1815 = vmatprep.subr.mxu0 %v1667
    %1816 = vmatpush1.msra.mxu0 %v1666
    %1817 = vmatprep.subr.mxu0 %v1671
    %1818 = vmatpush1.msra.mxu0 %v1670
    %1819 = vmatprep.subr.mxu0 %v1675
    %1820 = vmatpush1.msra.mxu0 %v1674
    %1821 = vmatprep.subr.mxu0 %v1679
    %1822 = vmatpush1.msra.mxu0 %v1678
    %1823 = vmatprep.subr.mxu0 %v1683
    %1824 = vmatpush1.msra.mxu0 %v1682
    %1825 = vmatprep.subr.mxu0 %v1687
    %1826 = vmatpush1.msra.mxu0 %v1686
    %1827 = vmatprep.subr.mxu0 %v1691
    %1828 = vmatpush1.msra.mxu0 %v1690
    %1829 = vmatprep.subr.mxu0 %v1695
    %1830 = vmatpush1.msra.mxu0 %v1694
    %1831 = vmatprep.mubr.f32.mxu0 %v1278
    %1832 = vmatmul.mubr.f32.gmra.mrb[0].mxu0 %v1567
    %v1833 = vpop.f32.mrb[0].mxu0
    %v1834 = vadd.f32 %v511, %v1833
    %v1835 = vpop.f32.mrb[0].mxu0
    %v1836 = vadd.f32 %v515, %v1835
    %1837 = vdwg.mxu0
    %v1838 = vmul.f32 %v1763, 0.5
    %v1839 = vtanh.pop %v1838
    %v1840 = vmul.f32 %v1839, 0.5
    %v1841 = vadd.f32 %v1840, 0.5
    %v1842 = vmul.f32 %v1765, 0.5
    %v1843 = vtanh.pop %v1842
    %v1844 = vmul.f32 %v1843, 0.5
    %v1845 = vadd.f32 %v1844, 0.5
    %v1846 = vtanh.pop %v1834
    %v1847 = vmul.f32 %v1836, 0.5
    %v1848 = vtanh.pop %v1847
    %v1849 = vmul.f32 %v1848, 0.5
    %v1850 = vadd.f32 %v1849, 0.5
    %v1851 = vmul.f32 %v1845, %v1276
    %v1852 = vmul.f32 %v1841, %v1846
    %v1853 = vadd.f32 %v1851, %v1852
    %v1854 = vtanh.pop %v1853
    %v1855 = vmul.f32 %v1850, %v1854
    %1856 = vst [vmem:[#allocation7 + $0x2] sm:$0x1] %v1855
    %v1857 = vld [vmem:[#allocation5] sm:$0xff]
    %v1858 = vld [vmem:[#allocation5 + $0x8] sm:$0xff]
    %v1859 = vld [vmem:[#allocation5 + $0x10] sm:$0xff]
    %v1860 = vld [vmem:[#allocation5 + $0x18] sm:$0xff]
    %v1861 = vld [vmem:[#allocation5 + $0x20] sm:$0xff]
    %v1862 = vld [vmem:[#allocation5 + $0x28] sm:$0xff]
    %v1863 = vld [vmem:[#allocation5 + $0x30] sm:$0xff]
    %v1864 = vld [vmem:[#allocation5 + $0x38] sm:$0xff]
    %v1865 = vld [vmem:[#allocation5 + $0x40] sm:$0xff]
    %v1866 = vld [vmem:[#allocation5 + $0x48] sm:$0xff]
    %v1867 = vld [vmem:[#allocation5 + $0x50] sm:$0xff]
    %v1868 = vld [vmem:[#allocation5 + $0x58] sm:$0xff]
    %v1869 = vld [vmem:[#allocation5 + $0x60] sm:$0xff]
    %v1870 = vld [vmem:[#allocation5 + $0x68] sm:$0xff]
    %v1871 = vld [vmem:[#allocation5 + $0x70] sm:$0xff]
    %v1872 = vld [vmem:[#allocation5 + $0x78] sm:$0xff]
    %v1873 = vld [vmem:[#allocation5 + $0x80] sm:$0xff]
    %v1874 = vld [vmem:[#allocation5 + $0x88] sm:$0xff]
    %v1875 = vld [vmem:[#allocation5 + $0x90] sm:$0xff]
    %v1876 = vld [vmem:[#allocation5 + $0x98] sm:$0xff]
    %v1877 = vld [vmem:[#allocation5 + $0xa0] sm:$0xff]
    %v1878 = vld [vmem:[#allocation5 + $0xa8] sm:$0xff]
    %v1879 = vld [vmem:[#allocation5 + $0xb0] sm:$0xff]
    %v1880 = vld [vmem:[#allocation5 + $0xb8] sm:$0xff]
    %v1881 = vld [vmem:[#allocation5 + $0xc0] sm:$0xff]
    %v1882 = vld [vmem:[#allocation5 + $0xc8] sm:$0xff]
    %v1883 = vld [vmem:[#allocation5 + $0xd0] sm:$0xff]
    %v1884 = vld [vmem:[#allocation5 + $0xd8] sm:$0xff]
    %v1885 = vld [vmem:[#allocation5 + $0xe0] sm:$0xff]
    %v1886 = vld [vmem:[#allocation5 + $0xe8] sm:$0xff]
    %v1887 = vld [vmem:[#allocation5 + $0xf0] sm:$0xff]
    %v1888 = vld [vmem:[#allocation5 + $0xf8] sm:$0xff]
    %v1889 = vld [vmem:[#allocation5 + $0x100] sm:$0xff]
    %v1890 = vld [vmem:[#allocation5 + $0x108] sm:$0xff]
    %v1891 = vld [vmem:[#allocation5 + $0x110] sm:$0xff]
    %v1892 = vld [vmem:[#allocation5 + $0x118] sm:$0xff]
    %v1893 = vld [vmem:[#allocation5 + $0x120] sm:$0xff]
    %v1894 = vld [vmem:[#allocation5 + $0x128] sm:$0xff]
    %v1895 = vld [vmem:[#allocation5 + $0x130] sm:$0xff]
    %v1896 = vld [vmem:[#allocation5 + $0x138] sm:$0xff]
    %v1897 = vld [vmem:[#allocation5 + $0x140] sm:$0xff]
    %v1898 = vld [vmem:[#allocation5 + $0x148] sm:$0xff]
    %v1899 = vld [vmem:[#allocation5 + $0x150] sm:$0xff]
    %v1900 = vld [vmem:[#allocation5 + $0x158] sm:$0xff]
    %v1901 = vld [vmem:[#allocation5 + $0x160] sm:$0xff]
    %v1902 = vld [vmem:[#allocation5 + $0x168] sm:$0xff]
    %v1903 = vld [vmem:[#allocation5 + $0x170] sm:$0xff]
    %v1904 = vld [vmem:[#allocation5 + $0x178] sm:$0xff]
    %v1905 = vld [vmem:[#allocation5 + $0x180] sm:$0xff]
    %v1906 = vld [vmem:[#allocation5 + $0x188] sm:$0xff]
    %v1907 = vld [vmem:[#allocation5 + $0x190] sm:$0xff]
    %v1908 = vld [vmem:[#allocation5 + $0x198] sm:$0xff]
    %v1909 = vld [vmem:[#allocation5 + $0x1a0] sm:$0xff]
    %v1910 = vld [vmem:[#allocation5 + $0x1a8] sm:$0xff]
    %v1911 = vld [vmem:[#allocation5 + $0x1b0] sm:$0xff]
    %v1912 = vld [vmem:[#allocation5 + $0x1b8] sm:$0xff]
    %v1913 = vld [vmem:[#allocation5 + $0x1c0] sm:$0xff]
    %v1914 = vld [vmem:[#allocation5 + $0x1c8] sm:$0xff]
    %v1915 = vld [vmem:[#allocation5 + $0x1d0] sm:$0xff]
    %v1916 = vld [vmem:[#allocation5 + $0x1d8] sm:$0xff]
    %v1917 = vld [vmem:[#allocation5 + $0x1e0] sm:$0xff]
    %v1918 = vld [vmem:[#allocation5 + $0x1e8] sm:$0xff]
    %v1919 = vld [vmem:[#allocation5 + $0x1f0] sm:$0xff]
    %v1920 = vld [vmem:[#allocation5 + $0x1f8] sm:$0xff]
    %v1921 = vld [vmem:[#allocation5 + $0x200] sm:$0xff]
    %v1922 = vld [vmem:[#allocation5 + $0x208] sm:$0xff]
    %v1923 = vld [vmem:[#allocation5 + $0x210] sm:$0xff]
    %v1924 = vld [vmem:[#allocation5 + $0x218] sm:$0xff]
    %v1925 = vld [vmem:[#allocation5 + $0x220] sm:$0xff]
    %v1926 = vld [vmem:[#allocation5 + $0x228] sm:$0xff]
    %v1927 = vld [vmem:[#allocation5 + $0x230] sm:$0xff]
    %v1928 = vld [vmem:[#allocation5 + $0x238] sm:$0xff]
    %v1929 = vld [vmem:[#allocation5 + $0x240] sm:$0xff]
    %v1930 = vld [vmem:[#allocation5 + $0x248] sm:$0xff]
    %v1931 = vld [vmem:[#allocation5 + $0x250] sm:$0xff]
    %v1932 = vld [vmem:[#allocation5 + $0x258] sm:$0xff]
    %v1933 = vld [vmem:[#allocation5 + $0x260] sm:$0xff]
    %v1934 = vld [vmem:[#allocation5 + $0x268] sm:$0xff]
    %v1935 = vld [vmem:[#allocation5 + $0x270] sm:$0xff]
    %v1936 = vld [vmem:[#allocation5 + $0x278] sm:$0xff]
    %v1937 = vld [vmem:[#allocation5 + $0x280] sm:$0xff]
    %v1938 = vld [vmem:[#allocation5 + $0x288] sm:$0xff]
    %v1939 = vld [vmem:[#allocation5 + $0x290] sm:$0xff]
    %v1940 = vld [vmem:[#allocation5 + $0x298] sm:$0xff]
    %v1941 = vld [vmem:[#allocation5 + $0x2a0] sm:$0xff]
    %v1942 = vld [vmem:[#allocation5 + $0x2a8] sm:$0xff]
    %v1943 = vld [vmem:[#allocation5 + $0x2b0] sm:$0xff]
    %v1944 = vld [vmem:[#allocation5 + $0x2b8] sm:$0xff]
    %v1945 = vld [vmem:[#allocation5 + $0x2c0] sm:$0xff]
    %v1946 = vld [vmem:[#allocation5 + $0x2c8] sm:$0xff]
    %v1947 = vld [vmem:[#allocation5 + $0x2d0] sm:$0xff]
    %v1948 = vld [vmem:[#allocation5 + $0x2d8] sm:$0xff]
    %v1949 = vld [vmem:[#allocation5 + $0x2e0] sm:$0xff]
    %v1950 = vld [vmem:[#allocation5 + $0x2e8] sm:$0xff]
    %v1951 = vld [vmem:[#allocation5 + $0x2f0] sm:$0xff]
    %v1952 = vld [vmem:[#allocation5 + $0x2f8] sm:$0xff]
    %v1953 = vld [vmem:[#allocation5 + $0x300] sm:$0xff]
    %v1954 = vld [vmem:[#allocation5 + $0x308] sm:$0xff]
    %v1955 = vld [vmem:[#allocation5 + $0x310] sm:$0xff]
    %v1956 = vld [vmem:[#allocation5 + $0x318] sm:$0xff]
    %v1957 = vld [vmem:[#allocation5 + $0x320] sm:$0xff]
    %v1958 = vld [vmem:[#allocation5 + $0x328] sm:$0xff]
    %v1959 = vld [vmem:[#allocation5 + $0x330] sm:$0xff]
    %v1960 = vld [vmem:[#allocation5 + $0x338] sm:$0xff]
    %v1961 = vld [vmem:[#allocation5 + $0x340] sm:$0xff]
    %v1962 = vld [vmem:[#allocation5 + $0x348] sm:$0xff]
    %v1963 = vld [vmem:[#allocation5 + $0x350] sm:$0xff]
    %v1964 = vld [vmem:[#allocation5 + $0x358] sm:$0xff]
    %v1965 = vld [vmem:[#allocation5 + $0x360] sm:$0xff]
    %v1966 = vld [vmem:[#allocation5 + $0x368] sm:$0xff]
    %v1967 = vld [vmem:[#allocation5 + $0x370] sm:$0xff]
    %v1968 = vld [vmem:[#allocation5 + $0x378] sm:$0xff]
    %v1969 = vld [vmem:[#allocation5 + $0x380] sm:$0xff]
    %v1970 = vld [vmem:[#allocation5 + $0x388] sm:$0xff]
    %v1971 = vld [vmem:[#allocation5 + $0x390] sm:$0xff]
    %v1972 = vld [vmem:[#allocation5 + $0x398] sm:$0xff]
    %v1973 = vld [vmem:[#allocation5 + $0x3a0] sm:$0xff]
    %v1974 = vld [vmem:[#allocation5 + $0x3a8] sm:$0xff]
    %v1975 = vld [vmem:[#allocation5 + $0x3b0] sm:$0xff]
    %v1976 = vld [vmem:[#allocation5 + $0x3b8] sm:$0xff]
    %v1977 = vld [vmem:[#allocation5 + $0x3c0] sm:$0xff]
    %v1978 = vld [vmem:[#allocation5 + $0x3c8] sm:$0xff]
    %v1979 = vld [vmem:[#allocation5 + $0x3d0] sm:$0xff]
    %v1980 = vld [vmem:[#allocation5 + $0x3d8] sm:$0xff]
    %v1981 = vld [vmem:[#allocation5 + $0x3e0] sm:$0xff]
    %v1982 = vld [vmem:[#allocation5 + $0x3e8] sm:$0xff]
    %v1983 = vld [vmem:[#allocation5 + $0x3f0] sm:$0xff]
    %v1984 = vld [vmem:[#allocation5 + $0x3f8] sm:$0xff]
    %1985 = vmatprep.subr.mxu0 %v1858
    %1986 = vmatpush1.msra.mxu0 %v1857
    %1987 = vmatprep.subr.mxu0 %v1862
    %1988 = vmatpush1.msra.mxu0 %v1861
    %1989 = vmatprep.subr.mxu0 %v1866
    %1990 = vmatpush1.msra.mxu0 %v1865
    %1991 = vmatprep.subr.mxu0 %v1870
    %1992 = vmatpush1.msra.mxu0 %v1869
    %1993 = vmatprep.subr.mxu0 %v1874
    %1994 = vmatpush1.msra.mxu0 %v1873
    %1995 = vmatprep.subr.mxu0 %v1878
    %1996 = vmatpush1.msra.mxu0 %v1877
    %1997 = vmatprep.subr.mxu0 %v1882
    %1998 = vmatpush1.msra.mxu0 %v1881
    %1999 = vmatprep.subr.mxu0 %v1886
    %2000 = vmatpush1.msra.mxu0 %v1885
    %2001 = vmatprep.subr.mxu0 %v1890
    %2002 = vmatpush1.msra.mxu0 %v1889
    %2003 = vmatprep.subr.mxu0 %v1894
    %2004 = vmatpush1.msra.mxu0 %v1893
    %2005 = vmatprep.subr.mxu0 %v1898
    %2006 = vmatpush1.msra.mxu0 %v1897
    %2007 = vmatprep.subr.mxu0 %v1902
    %2008 = vmatpush1.msra.mxu0 %v1901
    %2009 = vmatprep.subr.mxu0 %v1906
    %2010 = vmatpush1.msra.mxu0 %v1905
    %2011 = vmatprep.subr.mxu0 %v1910
    %2012 = vmatpush1.msra.mxu0 %v1909
    %2013 = vmatprep.subr.mxu0 %v1914
    %2014 = vmatpush1.msra.mxu0 %v1913
    %2015 = vmatprep.subr.mxu0 %v1918
    %2016 = vmatpush1.msra.mxu0 %v1917
    %2017 = vmatprep.subr.mxu0 %v1922
    %2018 = vmatpush1.msra.mxu0 %v1921
    %2019 = vmatprep.subr.mxu0 %v1926
    %2020 = vmatpush1.msra.mxu0 %v1925
    %2021 = vmatprep.subr.mxu0 %v1930
    %2022 = vmatpush1.msra.mxu0 %v1929
    %2023 = vmatprep.subr.mxu0 %v1934
    %2024 = vmatpush1.msra.mxu0 %v1933
    %2025 = vmatprep.subr.mxu0 %v1938
    %2026 = vmatpush1.msra.mxu0 %v1937
    %2027 = vmatprep.subr.mxu0 %v1942
    %2028 = vmatpush1.msra.mxu0 %v1941
    %2029 = vmatprep.subr.mxu0 %v1946
    %2030 = vmatpush1.msra.mxu0 %v1945
    %2031 = vmatprep.subr.mxu0 %v1950
    %2032 = vmatpush1.msra.mxu0 %v1949
    %2033 = vmatprep.subr.mxu0 %v1954
    %2034 = vmatpush1.msra.mxu0 %v1953
    %2035 = vmatprep.subr.mxu0 %v1958
    %2036 = vmatpush1.msra.mxu0 %v1957
    %2037 = vmatprep.subr.mxu0 %v1962
    %2038 = vmatpush1.msra.mxu0 %v1961
    %2039 = vmatprep.subr.mxu0 %v1966
    %2040 = vmatpush1.msra.mxu0 %v1965
    %2041 = vmatprep.subr.mxu0 %v1970
    %2042 = vmatpush1.msra.mxu0 %v1969
    %2043 = vmatprep.subr.mxu0 %v1974
    %2044 = vmatpush1.msra.mxu0 %v1973
    %2045 = vmatprep.subr.mxu0 %v1978
    %2046 = vmatpush1.msra.mxu0 %v1977
    %2047 = vmatprep.subr.mxu0 %v1982
    %2048 = vmatpush1.msra.mxu0 %v1981
    %2049 = vmatprep.mubr.f32.mxu0 %v1567
    %2050 = vmatmul.mubr.f32.gmra.mrb[0].mxu0 %v1855
    %v2051 = vpop.f32.mrb[0].mxu0
    %v2052 = vadd.f32 %v814, %v2051
    %v2053 = vpop.f32.mrb[0].mxu0
    %v2054 = vadd.f32 %v818, %v2053
    %2055 = vdwg.mxu0
    %2056 = vmatprep.subr.mxu0 %v1860
    %2057 = vmatpush1.msra.mxu0 %v1859
    %2058 = vmatprep.subr.mxu0 %v1864
    %2059 = vmatpush1.msra.mxu0 %v1863
    %2060 = vmatprep.subr.mxu0 %v1868
    %2061 = vmatpush1.msra.mxu0 %v1867
    %2062 = vmatprep.subr.mxu0 %v1872
    %2063 = vmatpush1.msra.mxu0 %v1871
    %2064 = vmatprep.subr.mxu0 %v1876
    %2065 = vmatpush1.msra.mxu0 %v1875
    %2066 = vmatprep.subr.mxu0 %v1880
    %2067 = vmatpush1.msra.mxu0 %v1879
    %2068 = vmatprep.subr.mxu0 %v1884
    %2069 = vmatpush1.msra.mxu0 %v1883
    %2070 = vmatprep.subr.mxu0 %v1888
    %2071 = vmatpush1.msra.mxu0 %v1887
    %2072 = vmatprep.subr.mxu0 %v1892
    %2073 = vmatpush1.msra.mxu0 %v1891
    %2074 = vmatprep.subr.mxu0 %v1896
    %2075 = vmatpush1.msra.mxu0 %v1895
    %2076 = vmatprep.subr.mxu0 %v1900
    %2077 = vmatpush1.msra.mxu0 %v1899
    %2078 = vmatprep.subr.mxu0 %v1904
    %2079 = vmatpush1.msra.mxu0 %v1903
    %2080 = vmatprep.subr.mxu0 %v1908
    %2081 = vmatpush1.msra.mxu0 %v1907
    %2082 = vmatprep.subr.mxu0 %v1912
    %2083 = vmatpush1.msra.mxu0 %v1911
    %2084 = vmatprep.subr.mxu0 %v1916
    %2085 = vmatpush1.msra.mxu0 %v1915
    %2086 = vmatprep.subr.mxu0 %v1920
    %2087 = vmatpush1.msra.mxu0 %v1919
    %2088 = vmatprep.subr.mxu0 %v1924
    %2089 = vmatpush1.msra.mxu0 %v1923
    %2090 = vmatprep.subr.mxu0 %v1928
    %2091 = vmatpush1.msra.mxu0 %v1927
    %2092 = vmatprep.subr.mxu0 %v1932
    %2093 = vmatpush1.msra.mxu0 %v1931
    %2094 = vmatprep.subr.mxu0 %v1936
    %2095 = vmatpush1.msra.mxu0 %v1935
    %2096 = vmatprep.subr.mxu0 %v1940
    %2097 = vmatpush1.msra.mxu0 %v1939
    %2098 = vmatprep.subr.mxu0 %v1944
    %2099 = vmatpush1.msra.mxu0 %v1943
    %2100 = vmatprep.subr.mxu0 %v1948
    %2101 = vmatpush1.msra.mxu0 %v1947
    %2102 = vmatprep.subr.mxu0 %v1952
    %2103 = vmatpush1.msra.mxu0 %v1951
    %2104 = vmatprep.subr.mxu0 %v1956
    %2105 = vmatpush1.msra.mxu0 %v1955
    %2106 = vmatprep.subr.mxu0 %v1960
    %2107 = vmatpush1.msra.mxu0 %v1959
    %2108 = vmatprep.subr.mxu0 %v1964
    %2109 = vmatpush1.msra.mxu0 %v1963
    %2110 = vmatprep.subr.mxu0 %v1968
    %2111 = vmatpush1.msra.mxu0 %v1967
    %2112 = vmatprep.subr.mxu0 %v1972
    %2113 = vmatpush1.msra.mxu0 %v1971
    %2114 = vmatprep.subr.mxu0 %v1976
    %2115 = vmatpush1.msra.mxu0 %v1975
    %2116 = vmatprep.subr.mxu0 %v1980
    %2117 = vmatpush1.msra.mxu0 %v1979
    %2118 = vmatprep.subr.mxu0 %v1984
    %2119 = vmatpush1.msra.mxu0 %v1983
    %2120 = vmatprep.mubr.f32.mxu0 %v1567
    %2121 = vmatmul.mubr.f32.gmra.mrb[0].mxu0 %v1855
    %v2122 = vpop.f32.mrb[0].mxu0
    %v2123 = vadd.f32 %v822, %v2122
    %v2124 = vpop.f32.mrb[0].mxu0
    %v2125 = vadd.f32 %v826, %v2124
    %2126 = vdwg.mxu0
    %v2127 = vmul.f32 %v2052, 0.5
    %v2128 = vtanh.pop %v2127
    %v2129 = vmul.f32 %v2128, 0.5
    %v2130 = vadd.f32 %v2129, 0.5
    %v2131 = vmul.f32 %v2054, 0.5
    %v2132 = vtanh.pop %v2131
    %v2133 = vmul.f32 %v2132, 0.5
    %v2134 = vadd.f32 %v2133, 0.5
    %v2135 = vtanh.pop %v2123
    %v2136 = vmul.f32 %v2125, 0.5
    %v2137 = vtanh.pop %v2136
    %v2138 = vmul.f32 %v2137, 0.5
    %v2139 = vadd.f32 %v2138, 0.5
    %v2140 = vmul.f32 %v2134, %v1565
    %v2141 = vmul.f32 %v2130, %v2135
    %v2142 = vadd.f32 %v2140, %v2141
    %v2143 = vtanh.pop %v2142
    %v2144 = vmul.f32 %v2139, %v2143
    %v2145 = vld [vmem:[%s370] sm:$0xff]
    %v2146 = vld [vmem:[%s370 + $0x8] sm:$0xff]
    %v2147 = vld [vmem:[%s370 + $0x10] sm:$0xff]
    %v2148 = vld [vmem:[%s370 + $0x18] sm:$0xff]
    %v2149 = vld [vmem:[%s370 + $0x20] sm:$0xff]
    %v2150 = vld [vmem:[%s370 + $0x28] sm:$0xff]
    %v2151 = vld [vmem:[%s370 + $0x30] sm:$0xff]
    %v2152 = vld [vmem:[%s370 + $0x38] sm:$0xff]
    %v2153 = vld [vmem:[%s370 + $0x40] sm:$0xff]
    %v2154 = vld [vmem:[%s370 + $0x48] sm:$0xff]
    %v2155 = vld [vmem:[%s370 + $0x50] sm:$0xff]
    %v2156 = vld [vmem:[%s370 + $0x58] sm:$0xff]
    %v2157 = vld [vmem:[%s370 + $0x60] sm:$0xff]
    %v2158 = vld [vmem:[%s370 + $0x68] sm:$0xff]
    %v2159 = vld [vmem:[%s370 + $0x70] sm:$0xff]
    %v2160 = vld [vmem:[%s370 + $0x78] sm:$0xff]
    %v2161 = vld [vmem:[%s370 + $0x80] sm:$0xff]
    %v2162 = vld [vmem:[%s370 + $0x88] sm:$0xff]
    %v2163 = vld [vmem:[%s370 + $0x90] sm:$0xff]
    %v2164 = vld [vmem:[%s370 + $0x98] sm:$0xff]
    %v2165 = vld [vmem:[%s370 + $0xa0] sm:$0xff]
    %v2166 = vld [vmem:[%s370 + $0xa8] sm:$0xff]
    %v2167 = vld [vmem:[%s370 + $0xb0] sm:$0xff]
    %v2168 = vld [vmem:[%s370 + $0xb8] sm:$0xff]
    %v2169 = vld [vmem:[%s370 + $0xc0] sm:$0xff]
    %v2170 = vld [vmem:[%s370 + $0xc8] sm:$0xff]
    %v2171 = vld [vmem:[%s370 + $0xd0] sm:$0xff]
    %v2172 = vld [vmem:[%s370 + $0xd8] sm:$0xff]
    %v2173 = vld [vmem:[%s370 + $0xe0] sm:$0xff]
    %v2174 = vld [vmem:[%s370 + $0xe8] sm:$0xff]
    %v2175 = vld [vmem:[%s370 + $0xf0] sm:$0xff]
    %v2176 = vld [vmem:[%s370 + $0xf8] sm:$0xff]
    %v2177 = vld [vmem:[%s370 + $0x100] sm:$0xff]
    %v2178 = vld [vmem:[%s370 + $0x108] sm:$0xff]
    %v2179 = vld [vmem:[%s370 + $0x110] sm:$0xff]
    %v2180 = vld [vmem:[%s370 + $0x118] sm:$0xff]
    %v2181 = vld [vmem:[%s370 + $0x120] sm:$0xff]
    %v2182 = vld [vmem:[%s370 + $0x128] sm:$0xff]
    %v2183 = vld [vmem:[%s370 + $0x130] sm:$0xff]
    %v2184 = vld [vmem:[%s370 + $0x138] sm:$0xff]
    %v2185 = vld [vmem:[%s370 + $0x140] sm:$0xff]
    %v2186 = vld [vmem:[%s370 + $0x148] sm:$0xff]
    %v2187 = vld [vmem:[%s370 + $0x150] sm:$0xff]
    %v2188 = vld [vmem:[%s370 + $0x158] sm:$0xff]
    %v2189 = vld [vmem:[%s370 + $0x160] sm:$0xff]
    %v2190 = vld [vmem:[%s370 + $0x168] sm:$0xff]
    %v2191 = vld [vmem:[%s370 + $0x170] sm:$0xff]
    %v2192 = vld [vmem:[%s370 + $0x178] sm:$0xff]
    %v2193 = vld [vmem:[%s370 + $0x180] sm:$0xff]
    %v2194 = vld [vmem:[%s370 + $0x188] sm:$0xff]
    %v2195 = vld [vmem:[%s370 + $0x190] sm:$0xff]
    %v2196 = vld [vmem:[%s370 + $0x198] sm:$0xff]
    %v2197 = vld [vmem:[%s370 + $0x1a0] sm:$0xff]
    %v2198 = vld [vmem:[%s370 + $0x1a8] sm:$0xff]
    %v2199 = vld [vmem:[%s370 + $0x1b0] sm:$0xff]
    %v2200 = vld [vmem:[%s370 + $0x1b8] sm:$0xff]
    %v2201 = vld [vmem:[%s370 + $0x1c0] sm:$0xff]
    %v2202 = vld [vmem:[%s370 + $0x1c8] sm:$0xff]
    %v2203 = vld [vmem:[%s370 + $0x1d0] sm:$0xff]
    %v2204 = vld [vmem:[%s370 + $0x1d8] sm:$0xff]
    %v2205 = vld [vmem:[%s370 + $0x1e0] sm:$0xff]
    %v2206 = vld [vmem:[%s370 + $0x1e8] sm:$0xff]
    %v2207 = vld [vmem:[%s370 + $0x1f0] sm:$0xff]
    %v2208 = vld [vmem:[%s370 + $0x1f8] sm:$0xff]
    %v2209 = vld [vmem:[%s370 + $0x200] sm:$0xff]
    %v2210 = vld [vmem:[%s370 + $0x208] sm:$0xff]
    %v2211 = vld [vmem:[%s370 + $0x210] sm:$0xff]
    %v2212 = vld [vmem:[%s370 + $0x218] sm:$0xff]
    %v2213 = vld [vmem:[%s370 + $0x220] sm:$0xff]
    %v2214 = vld [vmem:[%s370 + $0x228] sm:$0xff]
    %v2215 = vld [vmem:[%s370 + $0x230] sm:$0xff]
    %v2216 = vld [vmem:[%s370 + $0x238] sm:$0xff]
    %v2217 = vld [vmem:[%s370 + $0x240] sm:$0xff]
    %v2218 = vld [vmem:[%s370 + $0x248] sm:$0xff]
    %v2219 = vld [vmem:[%s370 + $0x250] sm:$0xff]
    %v2220 = vld [vmem:[%s370 + $0x258] sm:$0xff]
    %v2221 = vld [vmem:[%s370 + $0x260] sm:$0xff]
    %v2222 = vld [vmem:[%s370 + $0x268] sm:$0xff]
    %v2223 = vld [vmem:[%s370 + $0x270] sm:$0xff]
    %v2224 = vld [vmem:[%s370 + $0x278] sm:$0xff]
    %v2225 = vld [vmem:[%s370 + $0x280] sm:$0xff]
    %v2226 = vld [vmem:[%s370 + $0x288] sm:$0xff]
    %v2227 = vld [vmem:[%s370 + $0x290] sm:$0xff]
    %v2228 = vld [vmem:[%s370 + $0x298] sm:$0xff]
    %v2229 = vld [vmem:[%s370 + $0x2a0] sm:$0xff]
    %v2230 = vld [vmem:[%s370 + $0x2a8] sm:$0xff]
    %v2231 = vld [vmem:[%s370 + $0x2b0] sm:$0xff]
    %v2232 = vld [vmem:[%s370 + $0x2b8] sm:$0xff]
    %v2233 = vld [vmem:[%s370 + $0x2c0] sm:$0xff]
    %v2234 = vld [vmem:[%s370 + $0x2c8] sm:$0xff]
    %v2235 = vld [vmem:[%s370 + $0x2d0] sm:$0xff]
    %v2236 = vld [vmem:[%s370 + $0x2d8] sm:$0xff]
    %v2237 = vld [vmem:[%s370 + $0x2e0] sm:$0xff]
    %v2238 = vld [vmem:[%s370 + $0x2e8] sm:$0xff]
    %v2239 = vld [vmem:[%s370 + $0x2f0] sm:$0xff]
    %v2240 = vld [vmem:[%s370 + $0x2f8] sm:$0xff]
    %v2241 = vld [vmem:[%s370 + $0x300] sm:$0xff]
    %v2242 = vld [vmem:[%s370 + $0x308] sm:$0xff]
    %v2243 = vld [vmem:[%s370 + $0x310] sm:$0xff]
    %v2244 = vld [vmem:[%s370 + $0x318] sm:$0xff]
    %v2245 = vld [vmem:[%s370 + $0x320] sm:$0xff]
    %v2246 = vld [vmem:[%s370 + $0x328] sm:$0xff]
    %v2247 = vld [vmem:[%s370 + $0x330] sm:$0xff]
    %v2248 = vld [vmem:[%s370 + $0x338] sm:$0xff]
    %v2249 = vld [vmem:[%s370 + $0x340] sm:$0xff]
    %v2250 = vld [vmem:[%s370 + $0x348] sm:$0xff]
    %v2251 = vld [vmem:[%s370 + $0x350] sm:$0xff]
    %v2252 = vld [vmem:[%s370 + $0x358] sm:$0xff]
    %v2253 = vld [vmem:[%s370 + $0x360] sm:$0xff]
    %v2254 = vld [vmem:[%s370 + $0x368] sm:$0xff]
    %v2255 = vld [vmem:[%s370 + $0x370] sm:$0xff]
    %v2256 = vld [vmem:[%s370 + $0x378] sm:$0xff]
    %v2257 = vld [vmem:[%s370 + $0x380] sm:$0xff]
    %v2258 = vld [vmem:[%s370 + $0x388] sm:$0xff]
    %v2259 = vld [vmem:[%s370 + $0x390] sm:$0xff]
    %v2260 = vld [vmem:[%s370 + $0x398] sm:$0xff]
    %v2261 = vld [vmem:[%s370 + $0x3a0] sm:$0xff]
    %v2262 = vld [vmem:[%s370 + $0x3a8] sm:$0xff]
    %v2263 = vld [vmem:[%s370 + $0x3b0] sm:$0xff]
    %v2264 = vld [vmem:[%s370 + $0x3b8] sm:$0xff]
    %v2265 = vld [vmem:[%s370 + $0x3c0] sm:$0xff]
    %v2266 = vld [vmem:[%s370 + $0x3c8] sm:$0xff]
    %v2267 = vld [vmem:[%s370 + $0x3d0] sm:$0xff]
    %v2268 = vld [vmem:[%s370 + $0x3d8] sm:$0xff]
    %v2269 = vld [vmem:[%s370 + $0x3e0] sm:$0xff]
    %v2270 = vld [vmem:[%s370 + $0x3e8] sm:$0xff]
    %v2271 = vld [vmem:[%s370 + $0x3f0] sm:$0xff]
    %v2272 = vld [vmem:[%s370 + $0x3f8] sm:$0xff]
    %2273 = vmatprep.subr.mxu0 %v2146
    %2274 = vmatpush1.msra.mxu0 %v2145
    %2275 = vmatprep.subr.mxu0 %v2150
    %2276 = vmatpush1.msra.mxu0 %v2149
    %2277 = vmatprep.subr.mxu0 %v2154
    %2278 = vmatpush1.msra.mxu0 %v2153
    %2279 = vmatprep.subr.mxu0 %v2158
    %2280 = vmatpush1.msra.mxu0 %v2157
    %2281 = vmatprep.subr.mxu0 %v2162
    %2282 = vmatpush1.msra.mxu0 %v2161
    %2283 = vmatprep.subr.mxu0 %v2166
    %2284 = vmatpush1.msra.mxu0 %v2165
    %2285 = vmatprep.subr.mxu0 %v2170
    %2286 = vmatpush1.msra.mxu0 %v2169
    %2287 = vmatprep.subr.mxu0 %v2174
    %2288 = vmatpush1.msra.mxu0 %v2173
    %2289 = vmatprep.subr.mxu0 %v2178
    %2290 = vmatpush1.msra.mxu0 %v2177
    %2291 = vmatprep.subr.mxu0 %v2182
    %2292 = vmatpush1.msra.mxu0 %v2181
    %2293 = vmatprep.subr.mxu0 %v2186
    %2294 = vmatpush1.msra.mxu0 %v2185
    %2295 = vmatprep.subr.mxu0 %v2190
    %2296 = vmatpush1.msra.mxu0 %v2189
    %2297 = vmatprep.subr.mxu0 %v2194
    %2298 = vmatpush1.msra.mxu0 %v2193
    %2299 = vmatprep.subr.mxu0 %v2198
    %2300 = vmatpush1.msra.mxu0 %v2197
    %2301 = vmatprep.subr.mxu0 %v2202
    %2302 = vmatpush1.msra.mxu0 %v2201
    %2303 = vmatprep.subr.mxu0 %v2206
    %2304 = vmatpush1.msra.mxu0 %v2205
    %2305 = vmatprep.subr.mxu0 %v2210
    %2306 = vmatpush1.msra.mxu0 %v2209
    %2307 = vmatprep.subr.mxu0 %v2214
    %2308 = vmatpush1.msra.mxu0 %v2213
    %2309 = vmatprep.subr.mxu0 %v2218
    %2310 = vmatpush1.msra.mxu0 %v2217
    %2311 = vmatprep.subr.mxu0 %v2222
    %2312 = vmatpush1.msra.mxu0 %v2221
    %2313 = vmatprep.subr.mxu0 %v2226
    %2314 = vmatpush1.msra.mxu0 %v2225
    %2315 = vmatprep.subr.mxu0 %v2230
    %2316 = vmatpush1.msra.mxu0 %v2229
    %2317 = vmatprep.subr.mxu0 %v2234
    %2318 = vmatpush1.msra.mxu0 %v2233
    %2319 = vmatprep.subr.mxu0 %v2238
    %2320 = vmatpush1.msra.mxu0 %v2237
    %2321 = vmatprep.subr.mxu0 %v2242
    %2322 = vmatpush1.msra.mxu0 %v2241
    %2323 = vmatprep.subr.mxu0 %v2246
    %2324 = vmatpush1.msra.mxu0 %v2245
    %2325 = vmatprep.subr.mxu0 %v2250
    %2326 = vmatpush1.msra.mxu0 %v2249
    %2327 = vmatprep.subr.mxu0 %v2254
    %2328 = vmatpush1.msra.mxu0 %v2253
    %2329 = vmatprep.subr.mxu0 %v2258
    %2330 = vmatpush1.msra.mxu0 %v2257
    %2331 = vmatprep.subr.mxu0 %v2262
    %2332 = vmatpush1.msra.mxu0 %v2261
    %2333 = vmatprep.subr.mxu0 %v2266
    %2334 = vmatpush1.msra.mxu0 %v2265
    %2335 = vmatprep.subr.mxu0 %v2270
    %2336 = vmatpush1.msra.mxu0 %v2269
    %2337 = vmatprep.mubr.f32.mxu0 %v1855
    %2338 = vmatmul.mubr.f32.gmra.mrb[0].mxu0 %v2144
    %v2339 = vpop.f32.mrb[0].mxu0
    %v2340 = vadd.f32 %v503, %v2339
    %v2341 = vpop.f32.mrb[0].mxu0
    %v2342 = vadd.f32 %v507, %v2341
    %2343 = vdwg.mxu0
    %2344 = vmatprep.subr.mxu0 %v2148
    %2345 = vmatpush1.msra.mxu0 %v2147
    %2346 = vmatprep.subr.mxu0 %v2152
    %2347 = vmatpush1.msra.mxu0 %v2151
    %2348 = vmatprep.subr.mxu0 %v2156
    %2349 = vmatpush1.msra.mxu0 %v2155
    %2350 = vmatprep.subr.mxu0 %v2160
    %2351 = vmatpush1.msra.mxu0 %v2159
    %2352 = vmatprep.subr.mxu0 %v2164
    %2353 = vmatpush1.msra.mxu0 %v2163
    %2354 = vmatprep.subr.mxu0 %v2168
    %2355 = vmatpush1.msra.mxu0 %v2167
    %2356 = vmatprep.subr.mxu0 %v2172
    %2357 = vmatpush1.msra.mxu0 %v2171
    %2358 = vmatprep.subr.mxu0 %v2176
    %2359 = vmatpush1.msra.mxu0 %v2175
    %2360 = vmatprep.subr.mxu0 %v2180
    %2361 = vmatpush1.msra.mxu0 %v2179
    %2362 = vmatprep.subr.mxu0 %v2184
    %2363 = vmatpush1.msra.mxu0 %v2183
    %2364 = vmatprep.subr.mxu0 %v2188
    %2365 = vmatpush1.msra.mxu0 %v2187
    %2366 = vmatprep.subr.mxu0 %v2192
    %2367 = vmatpush1.msra.mxu0 %v2191
    %2368 = vmatprep.subr.mxu0 %v2196
    %2369 = vmatpush1.msra.mxu0 %v2195
    %2370 = vmatprep.subr.mxu0 %v2200
    %2371 = vmatpush1.msra.mxu0 %v2199
    %2372 = vmatprep.subr.mxu0 %v2204
    %2373 = vmatpush1.msra.mxu0 %v2203
    %2374 = vmatprep.subr.mxu0 %v2208
    %2375 = vmatpush1.msra.mxu0 %v2207
    %2376 = vmatprep.subr.mxu0 %v2212
    %2377 = vmatpush1.msra.mxu0 %v2211
    %2378 = vmatprep.subr.mxu0 %v2216
    %2379 = vmatpush1.msra.mxu0 %v2215
    %2380 = vmatprep.subr.mxu0 %v2220
    %2381 = vmatpush1.msra.mxu0 %v2219
    %2382 = vmatprep.subr.mxu0 %v2224
    %2383 = vmatpush1.msra.mxu0 %v2223
    %2384 = vmatprep.subr.mxu0 %v2228
    %2385 = vmatpush1.msra.mxu0 %v2227
    %2386 = vmatprep.subr.mxu0 %v2232
    %2387 = vmatpush1.msra.mxu0 %v2231
    %2388 = vmatprep.subr.mxu0 %v2236
    %2389 = vmatpush1.msra.mxu0 %v2235
    %2390 = vmatprep.subr.mxu0 %v2240
    %2391 = vmatpush1.msra.mxu0 %v2239
    %2392 = vmatprep.subr.mxu0 %v2244
    %2393 = vmatpush1.msra.mxu0 %v2243
    %2394 = vmatprep.subr.mxu0 %v2248
    %2395 = vmatpush1.msra.mxu0 %v2247
    %2396 = vmatprep.subr.mxu0 %v2252
    %2397 = vmatpush1.msra.mxu0 %v2251
    %2398 = vmatprep.subr.mxu0 %v2256
    %2399 = vmatpush1.msra.mxu0 %v2255
    %2400 = vmatprep.subr.mxu0 %v2260
    %2401 = vmatpush1.msra.mxu0 %v2259
    %2402 = vmatprep.subr.mxu0 %v2264
    %2403 = vmatpush1.msra.mxu0 %v2263
    %2404 = vmatprep.subr.mxu0 %v2268
    %2405 = vmatpush1.msra.mxu0 %v2267
    %2406 = vmatprep.subr.mxu0 %v2272
    %2407 = vmatpush1.msra.mxu0 %v2271
    %2408 = vmatprep.mubr.f32.mxu0 %v1855
    %2409 = vmatmul.mubr.f32.gmra.mrb[0].mxu0 %v2144
    %v2410 = vpop.f32.mrb[0].mxu0
    %v2411 = vadd.f32 %v511, %v2410
    %v2412 = vpop.f32.mrb[0].mxu0
    %v2413 = vadd.f32 %v515, %v2412
    %2414 = vdwg.mxu0
    %v2415 = vmul.f32 %v2340, 0.5
    %v2416 = vtanh.pop %v2415
    %v2417 = vmul.f32 %v2416, 0.5
    %v2418 = vadd.f32 %v2417, 0.5
    %v2419 = vmul.f32 %v2342, 0.5
    %v2420 = vtanh.pop %v2419
    %v2421 = vmul.f32 %v2420, 0.5
    %v2422 = vadd.f32 %v2421, 0.5
    %v2423 = vtanh.pop %v2411
    %v2424 = vmul.f32 %v2413, 0.5
    %v2425 = vtanh.pop %v2424
    %v2426 = vmul.f32 %v2425, 0.5
    %v2427 = vadd.f32 %v2426, 0.5
    %v2428 = vmul.f32 %v2422, %v1853
    %v2429 = vmul.f32 %v2418, %v2423
    %v2430 = vadd.f32 %v2428, %v2429
    %v2431 = vtanh.pop %v2430
    %v2432 = vmul.f32 %v2427, %v2431
    %2433 = vst [vmem:[#allocation7 + $0x3] sm:$0x1] %v2432
    %v2434 = vld [vmem:[#allocation5] sm:$0xff]
    %v2435 = vld [vmem:[#allocation5 + $0x8] sm:$0xff]
    %v2436 = vld [vmem:[#allocation5 + $0x10] sm:$0xff]
    %v2437 = vld [vmem:[#allocation5 + $0x18] sm:$0xff]
    %v2438 = vld [vmem:[#allocation5 + $0x20] sm:$0xff]
    %v2439 = vld [vmem:[#allocation5 + $0x28] sm:$0xff]
    %v2440 = vld [vmem:[#allocation5 + $0x30] sm:$0xff]
    %v2441 = vld [vmem:[#allocation5 + $0x38] sm:$0xff]
    %v2442 = vld [vmem:[#allocation5 + $0x40] sm:$0xff]
    %v2443 = vld [vmem:[#allocation5 + $0x48] sm:$0xff]
    %v2444 = vld [vmem:[#allocation5 + $0x50] sm:$0xff]
    %v2445 = vld [vmem:[#allocation5 + $0x58] sm:$0xff]
    %v2446 = vld [vmem:[#allocation5 + $0x60] sm:$0xff]
    %v2447 = vld [vmem:[#allocation5 + $0x68] sm:$0xff]
    %v2448 = vld [vmem:[#allocation5 + $0x70] sm:$0xff]
    %v2449 = vld [vmem:[#allocation5 + $0x78] sm:$0xff]
    %v2450 = vld [vmem:[#allocation5 + $0x80] sm:$0xff]
    %v2451 = vld [vmem:[#allocation5 + $0x88] sm:$0xff]
    %v2452 = vld [vmem:[#allocation5 + $0x90] sm:$0xff]
    %v2453 = vld [vmem:[#allocation5 + $0x98] sm:$0xff]
    %v2454 = vld [vmem:[#allocation5 + $0xa0] sm:$0xff]
    %v2455 = vld [vmem:[#allocation5 + $0xa8] sm:$0xff]
    %v2456 = vld [vmem:[#allocation5 + $0xb0] sm:$0xff]
    %v2457 = vld [vmem:[#allocation5 + $0xb8] sm:$0xff]
    %v2458 = vld [vmem:[#allocation5 + $0xc0] sm:$0xff]
    %v2459 = vld [vmem:[#allocation5 + $0xc8] sm:$0xff]
    %v2460 = vld [vmem:[#allocation5 + $0xd0] sm:$0xff]
    %v2461 = vld [vmem:[#allocation5 + $0xd8] sm:$0xff]
    %v2462 = vld [vmem:[#allocation5 + $0xe0] sm:$0xff]
    %v2463 = vld [vmem:[#allocation5 + $0xe8] sm:$0xff]
    %v2464 = vld [vmem:[#allocation5 + $0xf0] sm:$0xff]
    %v2465 = vld [vmem:[#allocation5 + $0xf8] sm:$0xff]
    %v2466 = vld [vmem:[#allocation5 + $0x100] sm:$0xff]
    %v2467 = vld [vmem:[#allocation5 + $0x108] sm:$0xff]
    %v2468 = vld [vmem:[#allocation5 + $0x110] sm:$0xff]
    %v2469 = vld [vmem:[#allocation5 + $0x118] sm:$0xff]
    %v2470 = vld [vmem:[#allocation5 + $0x120] sm:$0xff]
    %v2471 = vld [vmem:[#allocation5 + $0x128] sm:$0xff]
    %v2472 = vld [vmem:[#allocation5 + $0x130] sm:$0xff]
    %v2473 = vld [vmem:[#allocation5 + $0x138] sm:$0xff]
    %v2474 = vld [vmem:[#allocation5 + $0x140] sm:$0xff]
    %v2475 = vld [vmem:[#allocation5 + $0x148] sm:$0xff]
    %v2476 = vld [vmem:[#allocation5 + $0x150] sm:$0xff]
    %v2477 = vld [vmem:[#allocation5 + $0x158] sm:$0xff]
    %v2478 = vld [vmem:[#allocation5 + $0x160] sm:$0xff]
    %v2479 = vld [vmem:[#allocation5 + $0x168] sm:$0xff]
    %v2480 = vld [vmem:[#allocation5 + $0x170] sm:$0xff]
    %v2481 = vld [vmem:[#allocation5 + $0x178] sm:$0xff]
    %v2482 = vld [vmem:[#allocation5 + $0x180] sm:$0xff]
    %v2483 = vld [vmem:[#allocation5 + $0x188] sm:$0xff]
    %v2484 = vld [vmem:[#allocation5 + $0x190] sm:$0xff]
    %v2485 = vld [vmem:[#allocation5 + $0x198] sm:$0xff]
    %v2486 = vld [vmem:[#allocation5 + $0x1a0] sm:$0xff]
    %v2487 = vld [vmem:[#allocation5 + $0x1a8] sm:$0xff]
    %v2488 = vld [vmem:[#allocation5 + $0x1b0] sm:$0xff]
    %v2489 = vld [vmem:[#allocation5 + $0x1b8] sm:$0xff]
    %v2490 = vld [vmem:[#allocation5 + $0x1c0] sm:$0xff]
    %v2491 = vld [vmem:[#allocation5 + $0x1c8] sm:$0xff]
    %v2492 = vld [vmem:[#allocation5 + $0x1d0] sm:$0xff]
    %v2493 = vld [vmem:[#allocation5 + $0x1d8] sm:$0xff]
    %v2494 = vld [vmem:[#allocation5 + $0x1e0] sm:$0xff]
    %v2495 = vld [vmem:[#allocation5 + $0x1e8] sm:$0xff]
    %v2496 = vld [vmem:[#allocation5 + $0x1f0] sm:$0xff]
    %v2497 = vld [vmem:[#allocation5 + $0x1f8] sm:$0xff]
    %v2498 = vld [vmem:[#allocation5 + $0x200] sm:$0xff]
    %v2499 = vld [vmem:[#allocation5 + $0x208] sm:$0xff]
    %v2500 = vld [vmem:[#allocation5 + $0x210] sm:$0xff]
    %v2501 = vld [vmem:[#allocation5 + $0x218] sm:$0xff]
    %v2502 = vld [vmem:[#allocation5 + $0x220] sm:$0xff]
    %v2503 = vld [vmem:[#allocation5 + $0x228] sm:$0xff]
    %v2504 = vld [vmem:[#allocation5 + $0x230] sm:$0xff]
    %v2505 = vld [vmem:[#allocation5 + $0x238] sm:$0xff]
    %v2506 = vld [vmem:[#allocation5 + $0x240] sm:$0xff]
    %v2507 = vld [vmem:[#allocation5 + $0x248] sm:$0xff]
    %v2508 = vld [vmem:[#allocation5 + $0x250] sm:$0xff]
    %v2509 = vld [vmem:[#allocation5 + $0x258] sm:$0xff]
    %v2510 = vld [vmem:[#allocation5 + $0x260] sm:$0xff]
    %v2511 = vld [vmem:[#allocation5 + $0x268] sm:$0xff]
    %v2512 = vld [vmem:[#allocation5 + $0x270] sm:$0xff]
    %v2513 = vld [vmem:[#allocation5 + $0x278] sm:$0xff]
    %v2514 = vld [vmem:[#allocation5 + $0x280] sm:$0xff]
    %v2515 = vld [vmem:[#allocation5 + $0x288] sm:$0xff]
    %v2516 = vld [vmem:[#allocation5 + $0x290] sm:$0xff]
    %v2517 = vld [vmem:[#allocation5 + $0x298] sm:$0xff]
    %v2518 = vld [vmem:[#allocation5 + $0x2a0] sm:$0xff]
    %v2519 = vld [vmem:[#allocation5 + $0x2a8] sm:$0xff]
    %v2520 = vld [vmem:[#allocation5 + $0x2b0] sm:$0xff]
    %v2521 = vld [vmem:[#allocation5 + $0x2b8] sm:$0xff]
    %v2522 = vld [vmem:[#allocation5 + $0x2c0] sm:$0xff]
    %v2523 = vld [vmem:[#allocation5 + $0x2c8] sm:$0xff]
    %v2524 = vld [vmem:[#allocation5 + $0x2d0] sm:$0xff]
    %v2525 = vld [vmem:[#allocation5 + $0x2d8] sm:$0xff]
    %v2526 = vld [vmem:[#allocation5 + $0x2e0] sm:$0xff]
    %v2527 = vld [vmem:[#allocation5 + $0x2e8] sm:$0xff]
    %v2528 = vld [vmem:[#allocation5 + $0x2f0] sm:$0xff]
    %v2529 = vld [vmem:[#allocation5 + $0x2f8] sm:$0xff]
    %v2530 = vld [vmem:[#allocation5 + $0x300] sm:$0xff]
    %v2531 = vld [vmem:[#allocation5 + $0x308] sm:$0xff]
    %v2532 = vld [vmem:[#allocation5 + $0x310] sm:$0xff]
    %v2533 = vld [vmem:[#allocation5 + $0x318] sm:$0xff]
    %v2534 = vld [vmem:[#allocation5 + $0x320] sm:$0xff]
    %v2535 = vld [vmem:[#allocation5 + $0x328] sm:$0xff]
    %v2536 = vld [vmem:[#allocation5 + $0x330] sm:$0xff]
    %v2537 = vld [vmem:[#allocation5 + $0x338] sm:$0xff]
    %v2538 = vld [vmem:[#allocation5 + $0x340] sm:$0xff]
    %v2539 = vld [vmem:[#allocation5 + $0x348] sm:$0xff]
    %v2540 = vld [vmem:[#allocation5 + $0x350] sm:$0xff]
    %v2541 = vld [vmem:[#allocation5 + $0x358] sm:$0xff]
    %v2542 = vld [vmem:[#allocation5 + $0x360] sm:$0xff]
    %v2543 = vld [vmem:[#allocation5 + $0x368] sm:$0xff]
    %v2544 = vld [vmem:[#allocation5 + $0x370] sm:$0xff]
    %v2545 = vld [vmem:[#allocation5 + $0x378] sm:$0xff]
    %v2546 = vld [vmem:[#allocation5 + $0x380] sm:$0xff]
    %v2547 = vld [vmem:[#allocation5 + $0x388] sm:$0xff]
    %v2548 = vld [vmem:[#allocation5 + $0x390] sm:$0xff]
    %v2549 = vld [vmem:[#allocation5 + $0x398] sm:$0xff]
    %v2550 = vld [vmem:[#allocation5 + $0x3a0] sm:$0xff]
    %v2551 = vld [vmem:[#allocation5 + $0x3a8] sm:$0xff]
    %v2552 = vld [vmem:[#allocation5 + $0x3b0] sm:$0xff]
    %v2553 = vld [vmem:[#allocation5 + $0x3b8] sm:$0xff]
    %v2554 = vld [vmem:[#allocation5 + $0x3c0] sm:$0xff]
    %v2555 = vld [vmem:[#allocation5 + $0x3c8] sm:$0xff]
    %v2556 = vld [vmem:[#allocation5 + $0x3d0] sm:$0xff]
    %v2557 = vld [vmem:[#allocation5 + $0x3d8] sm:$0xff]
    %v2558 = vld [vmem:[#allocation5 + $0x3e0] sm:$0xff]
    %v2559 = vld [vmem:[#allocation5 + $0x3e8] sm:$0xff]
    %v2560 = vld [vmem:[#allocation5 + $0x3f0] sm:$0xff]
    %v2561 = vld [vmem:[#allocation5 + $0x3f8] sm:$0xff]
    %2562 = vmatprep.subr.mxu0 %v2435
    %2563 = vmatpush1.msra.mxu0 %v2434
    %2564 = vmatprep.subr.mxu0 %v2439
    %2565 = vmatpush1.msra.mxu0 %v2438
    %2566 = vmatprep.subr.mxu0 %v2443
    %2567 = vmatpush1.msra.mxu0 %v2442
    %2568 = vmatprep.subr.mxu0 %v2447
    %2569 = vmatpush1.msra.mxu0 %v2446
    %2570 = vmatprep.subr.mxu0 %v2451
    %2571 = vmatpush1.msra.mxu0 %v2450
    %2572 = vmatprep.subr.mxu0 %v2455
    %2573 = vmatpush1.msra.mxu0 %v2454
    %2574 = vmatprep.subr.mxu0 %v2459
    %2575 = vmatpush1.msra.mxu0 %v2458
    %2576 = vmatprep.subr.mxu0 %v2463
    %2577 = vmatpush1.msra.mxu0 %v2462
    %2578 = vmatprep.subr.mxu0 %v2467
    %2579 = vmatpush1.msra.mxu0 %v2466
    %2580 = vmatprep.subr.mxu0 %v2471
    %2581 = vmatpush1.msra.mxu0 %v2470
    %2582 = vmatprep.subr.mxu0 %v2475
    %2583 = vmatpush1.msra.mxu0 %v2474
    %2584 = vmatprep.subr.mxu0 %v2479
    %2585 = vmatpush1.msra.mxu0 %v2478
    %2586 = vmatprep.subr.mxu0 %v2483
    %2587 = vmatpush1.msra.mxu0 %v2482
    %2588 = vmatprep.subr.mxu0 %v2487
    %2589 = vmatpush1.msra.mxu0 %v2486
    %2590 = vmatprep.subr.mxu0 %v2491
    %2591 = vmatpush1.msra.mxu0 %v2490
    %2592 = vmatprep.subr.mxu0 %v2495
    %2593 = vmatpush1.msra.mxu0 %v2494
    %2594 = vmatprep.subr.mxu0 %v2499
    %2595 = vmatpush1.msra.mxu0 %v2498
    %2596 = vmatprep.subr.mxu0 %v2503
    %2597 = vmatpush1.msra.mxu0 %v2502
    %2598 = vmatprep.subr.mxu0 %v2507
    %2599 = vmatpush1.msra.mxu0 %v2506
    %2600 = vmatprep.subr.mxu0 %v2511
    %2601 = vmatpush1.msra.mxu0 %v2510
    %2602 = vmatprep.subr.mxu0 %v2515
    %2603 = vmatpush1.msra.mxu0 %v2514
    %2604 = vmatprep.subr.mxu0 %v2519
    %2605 = vmatpush1.msra.mxu0 %v2518
    %2606 = vmatprep.subr.mxu0 %v2523
    %2607 = vmatpush1.msra.mxu0 %v2522
    %2608 = vmatprep.subr.mxu0 %v2527
    %2609 = vmatpush1.msra.mxu0 %v2526
    %2610 = vmatprep.subr.mxu0 %v2531
    %2611 = vmatpush1.msra.mxu0 %v2530
    %2612 = vmatprep.subr.mxu0 %v2535
    %2613 = vmatpush1.msra.mxu0 %v2534
    %2614 = vmatprep.subr.mxu0 %v2539
    %2615 = vmatpush1.msra.mxu0 %v2538
    %2616 = vmatprep.subr.mxu0 %v2543
    %2617 = vmatpush1.msra.mxu0 %v2542
    %2618 = vmatprep.subr.mxu0 %v2547
    %2619 = vmatpush1.msra.mxu0 %v2546
    %2620 = vmatprep.subr.mxu0 %v2551
    %2621 = vmatpush1.msra.mxu0 %v2550
    %2622 = vmatprep.subr.mxu0 %v2555
    %2623 = vmatpush1.msra.mxu0 %v2554
    %2624 = vmatprep.subr.mxu0 %v2559
    %2625 = vmatpush1.msra.mxu0 %v2558
    %2626 = vmatprep.mubr.f32.mxu0 %v2144
    %2627 = vmatmul.mubr.f32.gmra.mrb[0].mxu0 %v2432
    %v2628 = vpop.f32.mrb[0].mxu0
    %v2629 = vadd.f32 %v814, %v2628
    %v2630 = vpop.f32.mrb[0].mxu0
    %v2631 = vadd.f32 %v818, %v2630
    %2632 = vdwg.mxu0
    %2633 = vmatprep.subr.mxu0 %v2437
    %2634 = vmatpush1.msra.mxu0 %v2436
    %2635 = vmatprep.subr.mxu0 %v2441
    %2636 = vmatpush1.msra.mxu0 %v2440
    %2637 = vmatprep.subr.mxu0 %v2445
    %2638 = vmatpush1.msra.mxu0 %v2444
    %2639 = vmatprep.subr.mxu0 %v2449
    %2640 = vmatpush1.msra.mxu0 %v2448
    %2641 = vmatprep.subr.mxu0 %v2453
    %2642 = vmatpush1.msra.mxu0 %v2452
    %2643 = vmatprep.subr.mxu0 %v2457
    %2644 = vmatpush1.msra.mxu0 %v2456
    %2645 = vmatprep.subr.mxu0 %v2461
    %2646 = vmatpush1.msra.mxu0 %v2460
    %2647 = vmatprep.subr.mxu0 %v2465
    %2648 = vmatpush1.msra.mxu0 %v2464
    %2649 = vmatprep.subr.mxu0 %v2469
    %2650 = vmatpush1.msra.mxu0 %v2468
    %2651 = vmatprep.subr.mxu0 %v2473
    %2652 = vmatpush1.msra.mxu0 %v2472
    %2653 = vmatprep.subr.mxu0 %v2477
    %2654 = vmatpush1.msra.mxu0 %v2476
    %2655 = vmatprep.subr.mxu0 %v2481
    %2656 = vmatpush1.msra.mxu0 %v2480
    %2657 = vmatprep.subr.mxu0 %v2485
    %2658 = vmatpush1.msra.mxu0 %v2484
    %2659 = vmatprep.subr.mxu0 %v2489
    %2660 = vmatpush1.msra.mxu0 %v2488
    %2661 = vmatprep.subr.mxu0 %v2493
    %2662 = vmatpush1.msra.mxu0 %v2492
    %2663 = vmatprep.subr.mxu0 %v2497
    %2664 = vmatpush1.msra.mxu0 %v2496
    %2665 = vmatprep.subr.mxu0 %v2501
    %2666 = vmatpush1.msra.mxu0 %v2500
    %2667 = vmatprep.subr.mxu0 %v2505
    %2668 = vmatpush1.msra.mxu0 %v2504
    %2669 = vmatprep.subr.mxu0 %v2509
    %2670 = vmatpush1.msra.mxu0 %v2508
    %2671 = vmatprep.subr.mxu0 %v2513
    %2672 = vmatpush1.msra.mxu0 %v2512
    %2673 = vmatprep.subr.mxu0 %v2517
    %2674 = vmatpush1.msra.mxu0 %v2516
    %2675 = vmatprep.subr.mxu0 %v2521
    %2676 = vmatpush1.msra.mxu0 %v2520
    %2677 = vmatprep.subr.mxu0 %v2525
    %2678 = vmatpush1.msra.mxu0 %v2524
    %2679 = vmatprep.subr.mxu0 %v2529
    %2680 = vmatpush1.msra.mxu0 %v2528
    %2681 = vmatprep.subr.mxu0 %v2533
    %2682 = vmatpush1.msra.mxu0 %v2532
    %2683 = vmatprep.subr.mxu0 %v2537
    %2684 = vmatpush1.msra.mxu0 %v2536
    %2685 = vmatprep.subr.mxu0 %v2541
    %2686 = vmatpush1.msra.mxu0 %v2540
    %2687 = vmatprep.subr.mxu0 %v2545
    %2688 = vmatpush1.msra.mxu0 %v2544
    %2689 = vmatprep.subr.mxu0 %v2549
    %2690 = vmatpush1.msra.mxu0 %v2548
    %2691 = vmatprep.subr.mxu0 %v2553
    %2692 = vmatpush1.msra.mxu0 %v2552
    %2693 = vmatprep.subr.mxu0 %v2557
    %2694 = vmatpush1.msra.mxu0 %v2556
    %2695 = vmatprep.subr.mxu0 %v2561
    %2696 = vmatpush1.msra.mxu0 %v2560
    %2697 = vmatprep.mubr.f32.mxu0 %v2144
    %2698 = vmatmul.mubr.f32.gmra.mrb[0].mxu0 %v2432
    %v2699 = vpop.f32.mrb[0].mxu0
    %v2700 = vadd.f32 %v822, %v2699
    %v2701 = vpop.f32.mrb[0].mxu0
    %v2702 = vadd.f32 %v826, %v2701
    %2703 = vdwg.mxu0
    %v2704 = vmul.f32 %v2629, 0.5
    %v2705 = vtanh.pop %v2704
    %v2706 = vmul.f32 %v2705, 0.5
    %v2707 = vadd.f32 %v2706, 0.5
    %v2708 = vmul.f32 %v2631, 0.5
    %v2709 = vtanh.pop %v2708
    %v2710 = vmul.f32 %v2709, 0.5
    %v2711 = vadd.f32 %v2710, 0.5
    %v2712 = vtanh.pop %v2700
    %v2713 = vmul.f32 %v2702, 0.5
    %v2714 = vtanh.pop %v2713
    %v2715 = vmul.f32 %v2714, 0.5
    %v2716 = vadd.f32 %v2715, 0.5
    %v2717 = vmul.f32 %v2711, %v2142
    %v2718 = vmul.f32 %v2707, %v2712
    %v2719 = vadd.f32 %v2717, %v2718
    %v2720 = vtanh.pop %v2719
    %v2721 = vmul.f32 %v2716, %v2720
    %v2722 = vld [vmem:[%s370] sm:$0xff]
    %v2723 = vld [vmem:[%s370 + $0x8] sm:$0xff]
    %v2724 = vld [vmem:[%s370 + $0x10] sm:$0xff]
    %v2725 = vld [vmem:[%s370 + $0x18] sm:$0xff]
    %v2726 = vld [vmem:[%s370 + $0x20] sm:$0xff]
    %v2727 = vld [vmem:[%s370 + $0x28] sm:$0xff]
    %v2728 = vld [vmem:[%s370 + $0x30] sm:$0xff]
    %v2729 = vld [vmem:[%s370 + $0x38] sm:$0xff]
    %v2730 = vld [vmem:[%s370 + $0x40] sm:$0xff]
    %v2731 = vld [vmem:[%s370 + $0x48] sm:$0xff]
    %v2732 = vld [vmem:[%s370 + $0x50] sm:$0xff]
    %v2733 = vld [vmem:[%s370 + $0x58] sm:$0xff]
    %v2734 = vld [vmem:[%s370 + $0x60] sm:$0xff]
    %v2735 = vld [vmem:[%s370 + $0x68] sm:$0xff]
    %v2736 = vld [vmem:[%s370 + $0x70] sm:$0xff]
    %v2737 = vld [vmem:[%s370 + $0x78] sm:$0xff]
    %v2738 = vld [vmem:[%s370 + $0x80] sm:$0xff]
    %v2739 = vld [vmem:[%s370 + $0x88] sm:$0xff]
    %v2740 = vld [vmem:[%s370 + $0x90] sm:$0xff]
    %v2741 = vld [vmem:[%s370 + $0x98] sm:$0xff]
    %v2742 = vld [vmem:[%s370 + $0xa0] sm:$0xff]
    %v2743 = vld [vmem:[%s370 + $0xa8] sm:$0xff]
    %v2744 = vld [vmem:[%s370 + $0xb0] sm:$0xff]
    %v2745 = vld [vmem:[%s370 + $0xb8] sm:$0xff]
    %v2746 = vld [vmem:[%s370 + $0xc0] sm:$0xff]
    %v2747 = vld [vmem:[%s370 + $0xc8] sm:$0xff]
    %v2748 = vld [vmem:[%s370 + $0xd0] sm:$0xff]
    %v2749 = vld [vmem:[%s370 + $0xd8] sm:$0xff]
    %v2750 = vld [vmem:[%s370 + $0xe0] sm:$0xff]
    %v2751 = vld [vmem:[%s370 + $0xe8] sm:$0xff]
    %v2752 = vld [vmem:[%s370 + $0xf0] sm:$0xff]
    %v2753 = vld [vmem:[%s370 + $0xf8] sm:$0xff]
    %v2754 = vld [vmem:[%s370 + $0x100] sm:$0xff]
    %v2755 = vld [vmem:[%s370 + $0x108] sm:$0xff]
    %v2756 = vld [vmem:[%s370 + $0x110] sm:$0xff]
    %v2757 = vld [vmem:[%s370 + $0x118] sm:$0xff]
    %v2758 = vld [vmem:[%s370 + $0x120] sm:$0xff]
    %v2759 = vld [vmem:[%s370 + $0x128] sm:$0xff]
    %v2760 = vld [vmem:[%s370 + $0x130] sm:$0xff]
    %v2761 = vld [vmem:[%s370 + $0x138] sm:$0xff]
    %v2762 = vld [vmem:[%s370 + $0x140] sm:$0xff]
    %v2763 = vld [vmem:[%s370 + $0x148] sm:$0xff]
    %v2764 = vld [vmem:[%s370 + $0x150] sm:$0xff]
    %v2765 = vld [vmem:[%s370 + $0x158] sm:$0xff]
    %v2766 = vld [vmem:[%s370 + $0x160] sm:$0xff]
    %v2767 = vld [vmem:[%s370 + $0x168] sm:$0xff]
    %v2768 = vld [vmem:[%s370 + $0x170] sm:$0xff]
    %v2769 = vld [vmem:[%s370 + $0x178] sm:$0xff]
    %v2770 = vld [vmem:[%s370 + $0x180] sm:$0xff]
    %v2771 = vld [vmem:[%s370 + $0x188] sm:$0xff]
    %v2772 = vld [vmem:[%s370 + $0x190] sm:$0xff]
    %v2773 = vld [vmem:[%s370 + $0x198] sm:$0xff]
    %v2774 = vld [vmem:[%s370 + $0x1a0] sm:$0xff]
    %v2775 = vld [vmem:[%s370 + $0x1a8] sm:$0xff]
    %v2776 = vld [vmem:[%s370 + $0x1b0] sm:$0xff]
    %v2777 = vld [vmem:[%s370 + $0x1b8] sm:$0xff]
    %v2778 = vld [vmem:[%s370 + $0x1c0] sm:$0xff]
    %v2779 = vld [vmem:[%s370 + $0x1c8] sm:$0xff]
    %v2780 = vld [vmem:[%s370 + $0x1d0] sm:$0xff]
    %v2781 = vld [vmem:[%s370 + $0x1d8] sm:$0xff]
    %v2782 = vld [vmem:[%s370 + $0x1e0] sm:$0xff]
    %v2783 = vld [vmem:[%s370 + $0x1e8] sm:$0xff]
    %v2784 = vld [vmem:[%s370 + $0x1f0] sm:$0xff]
    %v2785 = vld [vmem:[%s370 + $0x1f8] sm:$0xff]
    %v2786 = vld [vmem:[%s370 + $0x200] sm:$0xff]
    %v2787 = vld [vmem:[%s370 + $0x208] sm:$0xff]
    %v2788 = vld [vmem:[%s370 + $0x210] sm:$0xff]
    %v2789 = vld [vmem:[%s370 + $0x218] sm:$0xff]
    %v2790 = vld [vmem:[%s370 + $0x220] sm:$0xff]
    %v2791 = vld [vmem:[%s370 + $0x228] sm:$0xff]
    %v2792 = vld [vmem:[%s370 + $0x230] sm:$0xff]
    %v2793 = vld [vmem:[%s370 + $0x238] sm:$0xff]
    %v2794 = vld [vmem:[%s370 + $0x240] sm:$0xff]
    %v2795 = vld [vmem:[%s370 + $0x248] sm:$0xff]
    %v2796 = vld [vmem:[%s370 + $0x250] sm:$0xff]
    %v2797 = vld [vmem:[%s370 + $0x258] sm:$0xff]
    %v2798 = vld [vmem:[%s370 + $0x260] sm:$0xff]
    %v2799 = vld [vmem:[%s370 + $0x268] sm:$0xff]
    %v2800 = vld [vmem:[%s370 + $0x270] sm:$0xff]
    %v2801 = vld [vmem:[%s370 + $0x278] sm:$0xff]
    %v2802 = vld [vmem:[%s370 + $0x280] sm:$0xff]
    %v2803 = vld [vmem:[%s370 + $0x288] sm:$0xff]
    %v2804 = vld [vmem:[%s370 + $0x290] sm:$0xff]
    %v2805 = vld [vmem:[%s370 + $0x298] sm:$0xff]
    %v2806 = vld [vmem:[%s370 + $0x2a0] sm:$0xff]
    %v2807 = vld [vmem:[%s370 + $0x2a8] sm:$0xff]
    %v2808 = vld [vmem:[%s370 + $0x2b0] sm:$0xff]
    %v2809 = vld [vmem:[%s370 + $0x2b8] sm:$0xff]
    %v2810 = vld [vmem:[%s370 + $0x2c0] sm:$0xff]
    %v2811 = vld [vmem:[%s370 + $0x2c8] sm:$0xff]
    %v2812 = vld [vmem:[%s370 + $0x2d0] sm:$0xff]
    %v2813 = vld [vmem:[%s370 + $0x2d8] sm:$0xff]
    %v2814 = vld [vmem:[%s370 + $0x2e0] sm:$0xff]
    %v2815 = vld [vmem:[%s370 + $0x2e8] sm:$0xff]
    %v2816 = vld [vmem:[%s370 + $0x2f0] sm:$0xff]
    %v2817 = vld [vmem:[%s370 + $0x2f8] sm:$0xff]
    %v2818 = vld [vmem:[%s370 + $0x300] sm:$0xff]
    %v2819 = vld [vmem:[%s370 + $0x308] sm:$0xff]
    %v2820 = vld [vmem:[%s370 + $0x310] sm:$0xff]
    %v2821 = vld [vmem:[%s370 + $0x318] sm:$0xff]
    %v2822 = vld [vmem:[%s370 + $0x320] sm:$0xff]
    %v2823 = vld [vmem:[%s370 + $0x328] sm:$0xff]
    %v2824 = vld [vmem:[%s370 + $0x330] sm:$0xff]
    %v2825 = vld [vmem:[%s370 + $0x338] sm:$0xff]
    %v2826 = vld [vmem:[%s370 + $0x340] sm:$0xff]
    %v2827 = vld [vmem:[%s370 + $0x348] sm:$0xff]
    %v2828 = vld [vmem:[%s370 + $0x350] sm:$0xff]
    %v2829 = vld [vmem:[%s370 + $0x358] sm:$0xff]
    %v2830 = vld [vmem:[%s370 + $0x360] sm:$0xff]
    %v2831 = vld [vmem:[%s370 + $0x368] sm:$0xff]
    %v2832 = vld [vmem:[%s370 + $0x370] sm:$0xff]
    %v2833 = vld [vmem:[%s370 + $0x378] sm:$0xff]
    %v2834 = vld [vmem:[%s370 + $0x380] sm:$0xff]
    %v2835 = vld [vmem:[%s370 + $0x388] sm:$0xff]
    %v2836 = vld [vmem:[%s370 + $0x390] sm:$0xff]
    %v2837 = vld [vmem:[%s370 + $0x398] sm:$0xff]
    %v2838 = vld [vmem:[%s370 + $0x3a0] sm:$0xff]
    %v2839 = vld [vmem:[%s370 + $0x3a8] sm:$0xff]
    %v2840 = vld [vmem:[%s370 + $0x3b0] sm:$0xff]
    %v2841 = vld [vmem:[%s370 + $0x3b8] sm:$0xff]
    %v2842 = vld [vmem:[%s370 + $0x3c0] sm:$0xff]
    %v2843 = vld [vmem:[%s370 + $0x3c8] sm:$0xff]
    %v2844 = vld [vmem:[%s370 + $0x3d0] sm:$0xff]
    %v2845 = vld [vmem:[%s370 + $0x3d8] sm:$0xff]
    %v2846 = vld [vmem:[%s370 + $0x3e0] sm:$0xff]
    %v2847 = vld [vmem:[%s370 + $0x3e8] sm:$0xff]
    %v2848 = vld [vmem:[%s370 + $0x3f0] sm:$0xff]
    %v2849 = vld [vmem:[%s370 + $0x3f8] sm:$0xff]
    %2850 = vmatprep.subr.mxu0 %v2723
    %2851 = vmatpush1.msra.mxu0 %v2722
    %2852 = vmatprep.subr.mxu0 %v2727
    %2853 = vmatpush1.msra.mxu0 %v2726
    %2854 = vmatprep.subr.mxu0 %v2731
    %2855 = vmatpush1.msra.mxu0 %v2730
    %2856 = vmatprep.subr.mxu0 %v2735
    %2857 = vmatpush1.msra.mxu0 %v2734
    %2858 = vmatprep.subr.mxu0 %v2739
    %2859 = vmatpush1.msra.mxu0 %v2738
    %2860 = vmatprep.subr.mxu0 %v2743
    %2861 = vmatpush1.msra.mxu0 %v2742
    %2862 = vmatprep.subr.mxu0 %v2747
    %2863 = vmatpush1.msra.mxu0 %v2746
    %2864 = vmatprep.subr.mxu0 %v2751
    %2865 = vmatpush1.msra.mxu0 %v2750
    %2866 = vmatprep.subr.mxu0 %v2755
    %2867 = vmatpush1.msra.mxu0 %v2754
    %2868 = vmatprep.subr.mxu0 %v2759
    %2869 = vmatpush1.msra.mxu0 %v2758
    %2870 = vmatprep.subr.mxu0 %v2763
    %2871 = vmatpush1.msra.mxu0 %v2762
    %2872 = vmatprep.subr.mxu0 %v2767
    %2873 = vmatpush1.msra.mxu0 %v2766
    %2874 = vmatprep.subr.mxu0 %v2771
    %2875 = vmatpush1.msra.mxu0 %v2770
    %2876 = vmatprep.subr.mxu0 %v2775
    %2877 = vmatpush1.msra.mxu0 %v2774
    %2878 = vmatprep.subr.mxu0 %v2779
    %2879 = vmatpush1.msra.mxu0 %v2778
    %2880 = vmatprep.subr.mxu0 %v2783
    %2881 = vmatpush1.msra.mxu0 %v2782
    %2882 = vmatprep.subr.mxu0 %v2787
    %2883 = vmatpush1.msra.mxu0 %v2786
    %2884 = vmatprep.subr.mxu0 %v2791
    %2885 = vmatpush1.msra.mxu0 %v2790
    %2886 = vmatprep.subr.mxu0 %v2795
    %2887 = vmatpush1.msra.mxu0 %v2794
    %2888 = vmatprep.subr.mxu0 %v2799
    %2889 = vmatpush1.msra.mxu0 %v2798
    %2890 = vmatprep.subr.mxu0 %v2803
    %2891 = vmatpush1.msra.mxu0 %v2802
    %2892 = vmatprep.subr.mxu0 %v2807
    %2893 = vmatpush1.msra.mxu0 %v2806
    %2894 = vmatprep.subr.mxu0 %v2811
    %2895 = vmatpush1.msra.mxu0 %v2810
    %2896 = vmatprep.subr.mxu0 %v2815
    %2897 = vmatpush1.msra.mxu0 %v2814
    %2898 = vmatprep.subr.mxu0 %v2819
    %2899 = vmatpush1.msra.mxu0 %v2818
    %2900 = vmatprep.subr.mxu0 %v2823
    %2901 = vmatpush1.msra.mxu0 %v2822
    %2902 = vmatprep.subr.mxu0 %v2827
    %2903 = vmatpush1.msra.mxu0 %v2826
    %2904 = vmatprep.subr.mxu0 %v2831
    %2905 = vmatpush1.msra.mxu0 %v2830
    %2906 = vmatprep.subr.mxu0 %v2835
    %2907 = vmatpush1.msra.mxu0 %v2834
    %2908 = vmatprep.subr.mxu0 %v2839
    %2909 = vmatpush1.msra.mxu0 %v2838
    %2910 = vmatprep.subr.mxu0 %v2843
    %2911 = vmatpush1.msra.mxu0 %v2842
    %2912 = vmatprep.subr.mxu0 %v2847
    %2913 = vmatpush1.msra.mxu0 %v2846
    %2914 = vmatprep.mubr.f32.mxu0 %v2432
    %2915 = vmatmul.mubr.f32.gmra.mrb[0].mxu0 %v2721
    %v2916 = vpop.f32.mrb[0].mxu0
    %v2917 = vadd.f32 %v503, %v2916
    %v2918 = vpop.f32.mrb[0].mxu0
    %v2919 = vadd.f32 %v507, %v2918
    %2920 = vdwg.mxu0
    %2921 = vmatprep.subr.mxu0 %v2725
    %2922 = vmatpush1.msra.mxu0 %v2724
    %2923 = vmatprep.subr.mxu0 %v2729
    %2924 = vmatpush1.msra.mxu0 %v2728
    %2925 = vmatprep.subr.mxu0 %v2733
    %2926 = vmatpush1.msra.mxu0 %v2732
    %2927 = vmatprep.subr.mxu0 %v2737
    %2928 = vmatpush1.msra.mxu0 %v2736
    %2929 = vmatprep.subr.mxu0 %v2741
    %2930 = vmatpush1.msra.mxu0 %v2740
    %2931 = vmatprep.subr.mxu0 %v2745
    %2932 = vmatpush1.msra.mxu0 %v2744
    %2933 = vmatprep.subr.mxu0 %v2749
    %2934 = vmatpush1.msra.mxu0 %v2748
    %2935 = vmatprep.subr.mxu0 %v2753
    %2936 = vmatpush1.msra.mxu0 %v2752
    %2937 = vmatprep.subr.mxu0 %v2757
    %2938 = vmatpush1.msra.mxu0 %v2756
    %2939 = vmatprep.subr.mxu0 %v2761
    %2940 = vmatpush1.msra.mxu0 %v2760
    %2941 = vmatprep.subr.mxu0 %v2765
    %2942 = vmatpush1.msra.mxu0 %v2764
    %2943 = vmatprep.subr.mxu0 %v2769
    %2944 = vmatpush1.msra.mxu0 %v2768
    %2945 = vmatprep.subr.mxu0 %v2773
    %2946 = vmatpush1.msra.mxu0 %v2772
    %2947 = vmatprep.subr.mxu0 %v2777
    %2948 = vmatpush1.msra.mxu0 %v2776
    %2949 = vmatprep.subr.mxu0 %v2781
    %2950 = vmatpush1.msra.mxu0 %v2780
    %2951 = vmatprep.subr.mxu0 %v2785
    %2952 = vmatpush1.msra.mxu0 %v2784
    %2953 = vmatprep.subr.mxu0 %v2789
    %2954 = vmatpush1.msra.mxu0 %v2788
    %2955 = vmatprep.subr.mxu0 %v2793
    %2956 = vmatpush1.msra.mxu0 %v2792
    %2957 = vmatprep.subr.mxu0 %v2797
    %2958 = vmatpush1.msra.mxu0 %v2796
    %2959 = vmatprep.subr.mxu0 %v2801
    %2960 = vmatpush1.msra.mxu0 %v2800
    %2961 = vmatprep.subr.mxu0 %v2805
    %2962 = vmatpush1.msra.mxu0 %v2804
    %2963 = vmatprep.subr.mxu0 %v2809
    %2964 = vmatpush1.msra.mxu0 %v2808
    %2965 = vmatprep.subr.mxu0 %v2813
    %2966 = vmatpush1.msra.mxu0 %v2812
    %2967 = vmatprep.subr.mxu0 %v2817
    %2968 = vmatpush1.msra.mxu0 %v2816
    %2969 = vmatprep.subr.mxu0 %v2821
    %2970 = vmatpush1.msra.mxu0 %v2820
    %2971 = vmatprep.subr.mxu0 %v2825
    %2972 = vmatpush1.msra.mxu0 %v2824
    %2973 = vmatprep.subr.mxu0 %v2829
    %2974 = vmatpush1.msra.mxu0 %v2828
    %2975 = vmatprep.subr.mxu0 %v2833
    %2976 = vmatpush1.msra.mxu0 %v2832
    %2977 = vmatprep.subr.mxu0 %v2837
    %2978 = vmatpush1.msra.mxu0 %v2836
    %2979 = vmatprep.subr.mxu0 %v2841
    %2980 = vmatpush1.msra.mxu0 %v2840
    %2981 = vmatprep.subr.mxu0 %v2845
    %2982 = vmatpush1.msra.mxu0 %v2844
    %2983 = vmatprep.subr.mxu0 %v2849
    %2984 = vmatpush1.msra.mxu0 %v2848
    %2985 = vmatprep.mubr.f32.mxu0 %v2432
    %2986 = vmatmul.mubr.f32.gmra.mrb[0].mxu0 %v2721
    %v2987 = vpop.f32.mrb[0].mxu0
    %v2988 = vadd.f32 %v511, %v2987
    %v2989 = vpop.f32.mrb[0].mxu0
    %v2990 = vadd.f32 %v515, %v2989
    %2991 = vdwg.mxu0
    %v2992 = vmul.f32 %v2917, 0.5
    %v2993 = vtanh.pop %v2992
    %v2994 = vmul.f32 %v2993, 0.5
    %v2995 = vadd.f32 %v2994, 0.5
    %v2996 = vmul.f32 %v2919, 0.5
    %v2997 = vtanh.pop %v2996
    %v2998 = vmul.f32 %v2997, 0.5
    %v2999 = vadd.f32 %v2998, 0.5
    %v3000 = vtanh.pop %v2988
    %v3001 = vmul.f32 %v2990, 0.5
    %v3002 = vtanh.pop %v3001
    %v3003 = vmul.f32 %v3002, 0.5
    %v3004 = vadd.f32 %v3003, 0.5
    %v3005 = vmul.f32 %v2999, %v2430
    %v3006 = vmul.f32 %v2995, %v3000
    %v3007 = vadd.f32 %v3005, %v3006
    %v3008 = vtanh.pop %v3007
    %v3009 = vmul.f32 %v3004, %v3008
    %3010 = vst [vmem:[#allocation7 + $0x4] sm:$0x1] %v3009
    %v3011 = vld [vmem:[#allocation5] sm:$0xff]
    %v3012 = vld [vmem:[#allocation5 + $0x8] sm:$0xff]
    %v3013 = vld [vmem:[#allocation5 + $0x10] sm:$0xff]
    %v3014 = vld [vmem:[#allocation5 + $0x18] sm:$0xff]
    %v3015 = vld [vmem:[#allocation5 + $0x20] sm:$0xff]
    %v3016 = vld [vmem:[#allocation5 + $0x28] sm:$0xff]
    %v3017 = vld [vmem:[#allocation5 + $0x30] sm:$0xff]
    %v3018 = vld [vmem:[#allocation5 + $0x38] sm:$0xff]
    %v3019 = vld [vmem:[#allocation5 + $0x40] sm:$0xff]
    %v3020 = vld [vmem:[#allocation5 + $0x48] sm:$0xff]
    %v3021 = vld [vmem:[#allocation5 + $0x50] sm:$0xff]
    %v3022 = vld [vmem:[#allocation5 + $0x58] sm:$0xff]
    %v3023 = vld [vmem:[#allocation5 + $0x60] sm:$0xff]
    %v3024 = vld [vmem:[#allocation5 + $0x68] sm:$0xff]
    %v3025 = vld [vmem:[#allocation5 + $0x70] sm:$0xff]
    %v3026 = vld [vmem:[#allocation5 + $0x78] sm:$0xff]
    %v3027 = vld [vmem:[#allocation5 + $0x80] sm:$0xff]
    %v3028 = vld [vmem:[#allocation5 + $0x88] sm:$0xff]
    %v3029 = vld [vmem:[#allocation5 + $0x90] sm:$0xff]
    %v3030 = vld [vmem:[#allocation5 + $0x98] sm:$0xff]
    %v3031 = vld [vmem:[#allocation5 + $0xa0] sm:$0xff]
    %v3032 = vld [vmem:[#allocation5 + $0xa8] sm:$0xff]
    %v3033 = vld [vmem:[#allocation5 + $0xb0] sm:$0xff]
    %v3034 = vld [vmem:[#allocation5 + $0xb8] sm:$0xff]
    %v3035 = vld [vmem:[#allocation5 + $0xc0] sm:$0xff]
    %v3036 = vld [vmem:[#allocation5 + $0xc8] sm:$0xff]
    %v3037 = vld [vmem:[#allocation5 + $0xd0] sm:$0xff]
    %v3038 = vld [vmem:[#allocation5 + $0xd8] sm:$0xff]
    %v3039 = vld [vmem:[#allocation5 + $0xe0] sm:$0xff]
    %v3040 = vld [vmem:[#allocation5 + $0xe8] sm:$0xff]
    %v3041 = vld [vmem:[#allocation5 + $0xf0] sm:$0xff]
    %v3042 = vld [vmem:[#allocation5 + $0xf8] sm:$0xff]
    %v3043 = vld [vmem:[#allocation5 + $0x100] sm:$0xff]
    %v3044 = vld [vmem:[#allocation5 + $0x108] sm:$0xff]
    %v3045 = vld [vmem:[#allocation5 + $0x110] sm:$0xff]
    %v3046 = vld [vmem:[#allocation5 + $0x118] sm:$0xff]
    %v3047 = vld [vmem:[#allocation5 + $0x120] sm:$0xff]
    %v3048 = vld [vmem:[#allocation5 + $0x128] sm:$0xff]
    %v3049 = vld [vmem:[#allocation5 + $0x130] sm:$0xff]
    %v3050 = vld [vmem:[#allocation5 + $0x138] sm:$0xff]
    %v3051 = vld [vmem:[#allocation5 + $0x140] sm:$0xff]
    %v3052 = vld [vmem:[#allocation5 + $0x148] sm:$0xff]
    %v3053 = vld [vmem:[#allocation5 + $0x150] sm:$0xff]
    %v3054 = vld [vmem:[#allocation5 + $0x158] sm:$0xff]
    %v3055 = vld [vmem:[#allocation5 + $0x160] sm:$0xff]
    %v3056 = vld [vmem:[#allocation5 + $0x168] sm:$0xff]
    %v3057 = vld [vmem:[#allocation5 + $0x170] sm:$0xff]
    %v3058 = vld [vmem:[#allocation5 + $0x178] sm:$0xff]
    %v3059 = vld [vmem:[#allocation5 + $0x180] sm:$0xff]
    %v3060 = vld [vmem:[#allocation5 + $0x188] sm:$0xff]
    %v3061 = vld [vmem:[#allocation5 + $0x190] sm:$0xff]
    %v3062 = vld [vmem:[#allocation5 + $0x198] sm:$0xff]
    %v3063 = vld [vmem:[#allocation5 + $0x1a0] sm:$0xff]
    %v3064 = vld [vmem:[#allocation5 + $0x1a8] sm:$0xff]
    %v3065 = vld [vmem:[#allocation5 + $0x1b0] sm:$0xff]
    %v3066 = vld [vmem:[#allocation5 + $0x1b8] sm:$0xff]
    %v3067 = vld [vmem:[#allocation5 + $0x1c0] sm:$0xff]
    %v3068 = vld [vmem:[#allocation5 + $0x1c8] sm:$0xff]
    %v3069 = vld [vmem:[#allocation5 + $0x1d0] sm:$0xff]
    %v3070 = vld [vmem:[#allocation5 + $0x1d8] sm:$0xff]
    %v3071 = vld [vmem:[#allocation5 + $0x1e0] sm:$0xff]
    %v3072 = vld [vmem:[#allocation5 + $0x1e8] sm:$0xff]
    %v3073 = vld [vmem:[#allocation5 + $0x1f0] sm:$0xff]
    %v3074 = vld [vmem:[#allocation5 + $0x1f8] sm:$0xff]
    %v3075 = vld [vmem:[#allocation5 + $0x200] sm:$0xff]
    %v3076 = vld [vmem:[#allocation5 + $0x208] sm:$0xff]
    %v3077 = vld [vmem:[#allocation5 + $0x210] sm:$0xff]
    %v3078 = vld [vmem:[#allocation5 + $0x218] sm:$0xff]
    %v3079 = vld [vmem:[#allocation5 + $0x220] sm:$0xff]
    %v3080 = vld [vmem:[#allocation5 + $0x228] sm:$0xff]
    %v3081 = vld [vmem:[#allocation5 + $0x230] sm:$0xff]
    %v3082 = vld [vmem:[#allocation5 + $0x238] sm:$0xff]
    %v3083 = vld [vmem:[#allocation5 + $0x240] sm:$0xff]
    %v3084 = vld [vmem:[#allocation5 + $0x248] sm:$0xff]
    %v3085 = vld [vmem:[#allocation5 + $0x250] sm:$0xff]
    %v3086 = vld [vmem:[#allocation5 + $0x258] sm:$0xff]
    %v3087 = vld [vmem:[#allocation5 + $0x260] sm:$0xff]
    %v3088 = vld [vmem:[#allocation5 + $0x268] sm:$0xff]
    %v3089 = vld [vmem:[#allocation5 + $0x270] sm:$0xff]
    %v3090 = vld [vmem:[#allocation5 + $0x278] sm:$0xff]
    %v3091 = vld [vmem:[#allocation5 + $0x280] sm:$0xff]
    %v3092 = vld [vmem:[#allocation5 + $0x288] sm:$0xff]
    %v3093 = vld [vmem:[#allocation5 + $0x290] sm:$0xff]
    %v3094 = vld [vmem:[#allocation5 + $0x298] sm:$0xff]
    %v3095 = vld [vmem:[#allocation5 + $0x2a0] sm:$0xff]
    %v3096 = vld [vmem:[#allocation5 + $0x2a8] sm:$0xff]
    %v3097 = vld [vmem:[#allocation5 + $0x2b0] sm:$0xff]
    %v3098 = vld [vmem:[#allocation5 + $0x2b8] sm:$0xff]
    %v3099 = vld [vmem:[#allocation5 + $0x2c0] sm:$0xff]
    %v3100 = vld [vmem:[#allocation5 + $0x2c8] sm:$0xff]
    %v3101 = vld [vmem:[#allocation5 + $0x2d0] sm:$0xff]
    %v3102 = vld [vmem:[#allocation5 + $0x2d8] sm:$0xff]
    %v3103 = vld [vmem:[#allocation5 + $0x2e0] sm:$0xff]
    %v3104 = vld [vmem:[#allocation5 + $0x2e8] sm:$0xff]
    %v3105 = vld [vmem:[#allocation5 + $0x2f0] sm:$0xff]
    %v3106 = vld [vmem:[#allocation5 + $0x2f8] sm:$0xff]
    %v3107 = vld [vmem:[#allocation5 + $0x300] sm:$0xff]
    %v3108 = vld [vmem:[#allocation5 + $0x308] sm:$0xff]
    %v3109 = vld [vmem:[#allocation5 + $0x310] sm:$0xff]
    %v3110 = vld [vmem:[#allocation5 + $0x318] sm:$0xff]
    %v3111 = vld [vmem:[#allocation5 + $0x320] sm:$0xff]
    %v3112 = vld [vmem:[#allocation5 + $0x328] sm:$0xff]
    %v3113 = vld [vmem:[#allocation5 + $0x330] sm:$0xff]
    %v3114 = vld [vmem:[#allocation5 + $0x338] sm:$0xff]
    %v3115 = vld [vmem:[#allocation5 + $0x340] sm:$0xff]
    %v3116 = vld [vmem:[#allocation5 + $0x348] sm:$0xff]
    %v3117 = vld [vmem:[#allocation5 + $0x350] sm:$0xff]
    %v3118 = vld [vmem:[#allocation5 + $0x358] sm:$0xff]
    %v3119 = vld [vmem:[#allocation5 + $0x360] sm:$0xff]
    %v3120 = vld [vmem:[#allocation5 + $0x368] sm:$0xff]
    %v3121 = vld [vmem:[#allocation5 + $0x370] sm:$0xff]
    %v3122 = vld [vmem:[#allocation5 + $0x378] sm:$0xff]
    %v3123 = vld [vmem:[#allocation5 + $0x380] sm:$0xff]
    %v3124 = vld [vmem:[#allocation5 + $0x388] sm:$0xff]
    %v3125 = vld [vmem:[#allocation5 + $0x390] sm:$0xff]
    %v3126 = vld [vmem:[#allocation5 + $0x398] sm:$0xff]
    %v3127 = vld [vmem:[#allocation5 + $0x3a0] sm:$0xff]
    %v3128 = vld [vmem:[#allocation5 + $0x3a8] sm:$0xff]
    %v3129 = vld [vmem:[#allocation5 + $0x3b0] sm:$0xff]
    %v3130 = vld [vmem:[#allocation5 + $0x3b8] sm:$0xff]
    %v3131 = vld [vmem:[#allocation5 + $0x3c0] sm:$0xff]
    %v3132 = vld [vmem:[#allocation5 + $0x3c8] sm:$0xff]
    %v3133 = vld [vmem:[#allocation5 + $0x3d0] sm:$0xff]
    %v3134 = vld [vmem:[#allocation5 + $0x3d8] sm:$0xff]
    %v3135 = vld [vmem:[#allocation5 + $0x3e0] sm:$0xff]
    %v3136 = vld [vmem:[#allocation5 + $0x3e8] sm:$0xff]
    %v3137 = vld [vmem:[#allocation5 + $0x3f0] sm:$0xff]
    %v3138 = vld [vmem:[#allocation5 + $0x3f8] sm:$0xff]
    %3139 = vmatprep.subr.mxu0 %v3012
    %3140 = vmatpush1.msra.mxu0 %v3011
    %3141 = vmatprep.subr.mxu0 %v3016
    %3142 = vmatpush1.msra.mxu0 %v3015
    %3143 = vmatprep.subr.mxu0 %v3020
    %3144 = vmatpush1.msra.mxu0 %v3019
    %3145 = vmatprep.subr.mxu0 %v3024
    %3146 = vmatpush1.msra.mxu0 %v3023
    %3147 = vmatprep.subr.mxu0 %v3028
    %3148 = vmatpush1.msra.mxu0 %v3027
    %3149 = vmatprep.subr.mxu0 %v3032
    %3150 = vmatpush1.msra.mxu0 %v3031
    %3151 = vmatprep.subr.mxu0 %v3036
    %3152 = vmatpush1.msra.mxu0 %v3035
    %3153 = vmatprep.subr.mxu0 %v3040
    %3154 = vmatpush1.msra.mxu0 %v3039
    %3155 = vmatprep.subr.mxu0 %v3044
    %3156 = vmatpush1.msra.mxu0 %v3043
    %3157 = vmatprep.subr.mxu0 %v3048
    %3158 = vmatpush1.msra.mxu0 %v3047
    %3159 = vmatprep.subr.mxu0 %v3052
    %3160 = vmatpush1.msra.mxu0 %v3051
    %3161 = vmatprep.subr.mxu0 %v3056
    %3162 = vmatpush1.msra.mxu0 %v3055
    %3163 = vmatprep.subr.mxu0 %v3060
    %3164 = vmatpush1.msra.mxu0 %v3059
    %3165 = vmatprep.subr.mxu0 %v3064
    %3166 = vmatpush1.msra.mxu0 %v3063
    %3167 = vmatprep.subr.mxu0 %v3068
    %3168 = vmatpush1.msra.mxu0 %v3067
    %3169 = vmatprep.subr.mxu0 %v3072
    %3170 = vmatpush1.msra.mxu0 %v3071
    %3171 = vmatprep.subr.mxu0 %v3076
    %3172 = vmatpush1.msra.mxu0 %v3075
    %3173 = vmatprep.subr.mxu0 %v3080
    %3174 = vmatpush1.msra.mxu0 %v3079
    %3175 = vmatprep.subr.mxu0 %v3084
    %3176 = vmatpush1.msra.mxu0 %v3083
    %3177 = vmatprep.subr.mxu0 %v3088
    %3178 = vmatpush1.msra.mxu0 %v3087
    %3179 = vmatprep.subr.mxu0 %v3092
    %3180 = vmatpush1.msra.mxu0 %v3091
    %3181 = vmatprep.subr.mxu0 %v3096
    %3182 = vmatpush1.msra.mxu0 %v3095
    %3183 = vmatprep.subr.mxu0 %v3100
    %3184 = vmatpush1.msra.mxu0 %v3099
    %3185 = vmatprep.subr.mxu0 %v3104
    %3186 = vmatpush1.msra.mxu0 %v3103
    %3187 = vmatprep.subr.mxu0 %v3108
    %3188 = vmatpush1.msra.mxu0 %v3107
    %3189 = vmatprep.subr.mxu0 %v3112
    %3190 = vmatpush1.msra.mxu0 %v3111
    %3191 = vmatprep.subr.mxu0 %v3116
    %3192 = vmatpush1.msra.mxu0 %v3115
    %3193 = vmatprep.subr.mxu0 %v3120
    %3194 = vmatpush1.msra.mxu0 %v3119
    %3195 = vmatprep.subr.mxu0 %v3124
    %3196 = vmatpush1.msra.mxu0 %v3123
    %3197 = vmatprep.subr.mxu0 %v3128
    %3198 = vmatpush1.msra.mxu0 %v3127
    %3199 = vmatprep.subr.mxu0 %v3132
    %3200 = vmatpush1.msra.mxu0 %v3131
    %3201 = vmatprep.subr.mxu0 %v3136
    %3202 = vmatpush1.msra.mxu0 %v3135
    %3203 = vmatprep.mubr.f32.mxu0 %v2721
    %3204 = vmatmul.mubr.f32.gmra.mrb[0].mxu0 %v3009
    %v3205 = vpop.f32.mrb[0].mxu0
    %v3206 = vadd.f32 %v814, %v3205
    %v3207 = vpop.f32.mrb[0].mxu0
    %v3208 = vadd.f32 %v818, %v3207
    %3209 = vdwg.mxu0
    %3210 = vmatprep.subr.mxu0 %v3014
    %3211 = vmatpush1.msra.mxu0 %v3013
    %3212 = vmatprep.subr.mxu0 %v3018
    %3213 = vmatpush1.msra.mxu0 %v3017
    %3214 = vmatprep.subr.mxu0 %v3022
    %3215 = vmatpush1.msra.mxu0 %v3021
    %3216 = vmatprep.subr.mxu0 %v3026
    %3217 = vmatpush1.msra.mxu0 %v3025
    %3218 = vmatprep.subr.mxu0 %v3030
    %3219 = vmatpush1.msra.mxu0 %v3029
    %3220 = vmatprep.subr.mxu0 %v3034
    %3221 = vmatpush1.msra.mxu0 %v3033
    %3222 = vmatprep.subr.mxu0 %v3038
    %3223 = vmatpush1.msra.mxu0 %v3037
    %3224 = vmatprep.subr.mxu0 %v3042
    %3225 = vmatpush1.msra.mxu0 %v3041
    %3226 = vmatprep.subr.mxu0 %v3046
    %3227 = vmatpush1.msra.mxu0 %v3045
    %3228 = vmatprep.subr.mxu0 %v3050
    %3229 = vmatpush1.msra.mxu0 %v3049
    %3230 = vmatprep.subr.mxu0 %v3054
    %3231 = vmatpush1.msra.mxu0 %v3053
    %3232 = vmatprep.subr.mxu0 %v3058
    %3233 = vmatpush1.msra.mxu0 %v3057
    %3234 = vmatprep.subr.mxu0 %v3062
    %3235 = vmatpush1.msra.mxu0 %v3061
    %3236 = vmatprep.subr.mxu0 %v3066
    %3237 = vmatpush1.msra.mxu0 %v3065
    %3238 = vmatprep.subr.mxu0 %v3070
    %3239 = vmatpush1.msra.mxu0 %v3069
    %3240 = vmatprep.subr.mxu0 %v3074
    %3241 = vmatpush1.msra.mxu0 %v3073
    %3242 = vmatprep.subr.mxu0 %v3078
    %3243 = vmatpush1.msra.mxu0 %v3077
    %3244 = vmatprep.subr.mxu0 %v3082
    %3245 = vmatpush1.msra.mxu0 %v3081
    %3246 = vmatprep.subr.mxu0 %v3086
    %3247 = vmatpush1.msra.mxu0 %v3085
    %3248 = vmatprep.subr.mxu0 %v3090
    %3249 = vmatpush1.msra.mxu0 %v3089
    %3250 = vmatprep.subr.mxu0 %v3094
    %3251 = vmatpush1.msra.mxu0 %v3093
    %3252 = vmatprep.subr.mxu0 %v3098
    %3253 = vmatpush1.msra.mxu0 %v3097
    %3254 = vmatprep.subr.mxu0 %v3102
    %3255 = vmatpush1.msra.mxu0 %v3101
    %3256 = vmatprep.subr.mxu0 %v3106
    %3257 = vmatpush1.msra.mxu0 %v3105
    %3258 = vmatprep.subr.mxu0 %v3110
    %3259 = vmatpush1.msra.mxu0 %v3109
    %3260 = vmatprep.subr.mxu0 %v3114
    %3261 = vmatpush1.msra.mxu0 %v3113
    %3262 = vmatprep.subr.mxu0 %v3118
    %3263 = vmatpush1.msra.mxu0 %v3117
    %3264 = vmatprep.subr.mxu0 %v3122
    %3265 = vmatpush1.msra.mxu0 %v3121
    %3266 = vmatprep.subr.mxu0 %v3126
    %3267 = vmatpush1.msra.mxu0 %v3125
    %3268 = vmatprep.subr.mxu0 %v3130
    %3269 = vmatpush1.msra.mxu0 %v3129
    %3270 = vmatprep.subr.mxu0 %v3134
    %3271 = vmatpush1.msra.mxu0 %v3133
    %3272 = vmatprep.subr.mxu0 %v3138
    %3273 = vmatpush1.msra.mxu0 %v3137
    %3274 = vmatprep.mubr.f32.mxu0 %v2721
    %3275 = vmatmul.mubr.f32.gmra.mrb[0].mxu0 %v3009
    %v3276 = vpop.f32.mrb[0].mxu0
    %v3277 = vadd.f32 %v822, %v3276
    %v3278 = vpop.f32.mrb[0].mxu0
    %v3279 = vadd.f32 %v826, %v3278
    %3280 = vdwg.mxu0
    %v3281 = vmul.f32 %v3206, 0.5
    %v3282 = vtanh.pop %v3281
    %v3283 = vmul.f32 %v3282, 0.5
    %v3284 = vadd.f32 %v3283, 0.5
    %v3285 = vmul.f32 %v3208, 0.5
    %v3286 = vtanh.pop %v3285
    %v3287 = vmul.f32 %v3286, 0.5
    %v3288 = vadd.f32 %v3287, 0.5
    %v3289 = vtanh.pop %v3277
    %v3290 = vmul.f32 %v3279, 0.5
    %v3291 = vtanh.pop %v3290
    %v3292 = vmul.f32 %v3291, 0.5
    %v3293 = vadd.f32 %v3292, 0.5
    %v3294 = vmul.f32 %v3288, %v2719
    %v3295 = vmul.f32 %v3284, %v3289
    %v3296 = vadd.f32 %v3294, %v3295
    %v3297 = vtanh.pop %v3296
    %v3298 = vmul.f32 %v3293, %v3297
    %v3299 = vld [vmem:[%s370] sm:$0xff]
    %v3300 = vld [vmem:[%s370 + $0x8] sm:$0xff]
    %v3301 = vld [vmem:[%s370 + $0x10] sm:$0xff]
    %v3302 = vld [vmem:[%s370 + $0x18] sm:$0xff]
    %v3303 = vld [vmem:[%s370 + $0x20] sm:$0xff]
    %v3304 = vld [vmem:[%s370 + $0x28] sm:$0xff]
    %v3305 = vld [vmem:[%s370 + $0x30] sm:$0xff]
    %v3306 = vld [vmem:[%s370 + $0x38] sm:$0xff]
    %v3307 = vld [vmem:[%s370 + $0x40] sm:$0xff]
    %v3308 = vld [vmem:[%s370 + $0x48] sm:$0xff]
    %v3309 = vld [vmem:[%s370 + $0x50] sm:$0xff]
    %v3310 = vld [vmem:[%s370 + $0x58] sm:$0xff]
    %v3311 = vld [vmem:[%s370 + $0x60] sm:$0xff]
    %v3312 = vld [vmem:[%s370 + $0x68] sm:$0xff]
    %v3313 = vld [vmem:[%s370 + $0x70] sm:$0xff]
    %v3314 = vld [vmem:[%s370 + $0x78] sm:$0xff]
    %v3315 = vld [vmem:[%s370 + $0x80] sm:$0xff]
    %v3316 = vld [vmem:[%s370 + $0x88] sm:$0xff]
    %v3317 = vld [vmem:[%s370 + $0x90] sm:$0xff]
    %v3318 = vld [vmem:[%s370 + $0x98] sm:$0xff]
    %v3319 = vld [vmem:[%s370 + $0xa0] sm:$0xff]
    %v3320 = vld [vmem:[%s370 + $0xa8] sm:$0xff]
    %v3321 = vld [vmem:[%s370 + $0xb0] sm:$0xff]
    %v3322 = vld [vmem:[%s370 + $0xb8] sm:$0xff]
    %v3323 = vld [vmem:[%s370 + $0xc0] sm:$0xff]
    %v3324 = vld [vmem:[%s370 + $0xc8] sm:$0xff]
    %v3325 = vld [vmem:[%s370 + $0xd0] sm:$0xff]
    %v3326 = vld [vmem:[%s370 + $0xd8] sm:$0xff]
    %v3327 = vld [vmem:[%s370 + $0xe0] sm:$0xff]
    %v3328 = vld [vmem:[%s370 + $0xe8] sm:$0xff]
    %v3329 = vld [vmem:[%s370 + $0xf0] sm:$0xff]
    %v3330 = vld [vmem:[%s370 + $0xf8] sm:$0xff]
    %v3331 = vld [vmem:[%s370 + $0x100] sm:$0xff]
    %v3332 = vld [vmem:[%s370 + $0x108] sm:$0xff]
    %v3333 = vld [vmem:[%s370 + $0x110] sm:$0xff]
    %v3334 = vld [vmem:[%s370 + $0x118] sm:$0xff]
    %v3335 = vld [vmem:[%s370 + $0x120] sm:$0xff]
    %v3336 = vld [vmem:[%s370 + $0x128] sm:$0xff]
    %v3337 = vld [vmem:[%s370 + $0x130] sm:$0xff]
    %v3338 = vld [vmem:[%s370 + $0x138] sm:$0xff]
    %v3339 = vld [vmem:[%s370 + $0x140] sm:$0xff]
    %v3340 = vld [vmem:[%s370 + $0x148] sm:$0xff]
    %v3341 = vld [vmem:[%s370 + $0x150] sm:$0xff]
    %v3342 = vld [vmem:[%s370 + $0x158] sm:$0xff]
    %v3343 = vld [vmem:[%s370 + $0x160] sm:$0xff]
    %v3344 = vld [vmem:[%s370 + $0x168] sm:$0xff]
    %v3345 = vld [vmem:[%s370 + $0x170] sm:$0xff]
    %v3346 = vld [vmem:[%s370 + $0x178] sm:$0xff]
    %v3347 = vld [vmem:[%s370 + $0x180] sm:$0xff]
    %v3348 = vld [vmem:[%s370 + $0x188] sm:$0xff]
    %v3349 = vld [vmem:[%s370 + $0x190] sm:$0xff]
    %v3350 = vld [vmem:[%s370 + $0x198] sm:$0xff]
    %v3351 = vld [vmem:[%s370 + $0x1a0] sm:$0xff]
    %v3352 = vld [vmem:[%s370 + $0x1a8] sm:$0xff]
    %v3353 = vld [vmem:[%s370 + $0x1b0] sm:$0xff]
    %v3354 = vld [vmem:[%s370 + $0x1b8] sm:$0xff]
    %v3355 = vld [vmem:[%s370 + $0x1c0] sm:$0xff]
    %v3356 = vld [vmem:[%s370 + $0x1c8] sm:$0xff]
    %v3357 = vld [vmem:[%s370 + $0x1d0] sm:$0xff]
    %v3358 = vld [vmem:[%s370 + $0x1d8] sm:$0xff]
    %v3359 = vld [vmem:[%s370 + $0x1e0] sm:$0xff]
    %v3360 = vld [vmem:[%s370 + $0x1e8] sm:$0xff]
    %v3361 = vld [vmem:[%s370 + $0x1f0] sm:$0xff]
    %v3362 = vld [vmem:[%s370 + $0x1f8] sm:$0xff]
    %v3363 = vld [vmem:[%s370 + $0x200] sm:$0xff]
    %v3364 = vld [vmem:[%s370 + $0x208] sm:$0xff]
    %v3365 = vld [vmem:[%s370 + $0x210] sm:$0xff]
    %v3366 = vld [vmem:[%s370 + $0x218] sm:$0xff]
    %v3367 = vld [vmem:[%s370 + $0x220] sm:$0xff]
    %v3368 = vld [vmem:[%s370 + $0x228] sm:$0xff]
    %v3369 = vld [vmem:[%s370 + $0x230] sm:$0xff]
    %v3370 = vld [vmem:[%s370 + $0x238] sm:$0xff]
    %v3371 = vld [vmem:[%s370 + $0x240] sm:$0xff]
    %v3372 = vld [vmem:[%s370 + $0x248] sm:$0xff]
    %v3373 = vld [vmem:[%s370 + $0x250] sm:$0xff]
    %v3374 = vld [vmem:[%s370 + $0x258] sm:$0xff]
    %v3375 = vld [vmem:[%s370 + $0x260] sm:$0xff]
    %v3376 = vld [vmem:[%s370 + $0x268] sm:$0xff]
    %v3377 = vld [vmem:[%s370 + $0x270] sm:$0xff]
    %v3378 = vld [vmem:[%s370 + $0x278] sm:$0xff]
    %v3379 = vld [vmem:[%s370 + $0x280] sm:$0xff]
    %v3380 = vld [vmem:[%s370 + $0x288] sm:$0xff]
    %v3381 = vld [vmem:[%s370 + $0x290] sm:$0xff]
    %v3382 = vld [vmem:[%s370 + $0x298] sm:$0xff]
    %v3383 = vld [vmem:[%s370 + $0x2a0] sm:$0xff]
    %v3384 = vld [vmem:[%s370 + $0x2a8] sm:$0xff]
    %v3385 = vld [vmem:[%s370 + $0x2b0] sm:$0xff]
    %v3386 = vld [vmem:[%s370 + $0x2b8] sm:$0xff]
    %v3387 = vld [vmem:[%s370 + $0x2c0] sm:$0xff]
    %v3388 = vld [vmem:[%s370 + $0x2c8] sm:$0xff]
    %v3389 = vld [vmem:[%s370 + $0x2d0] sm:$0xff]
    %v3390 = vld [vmem:[%s370 + $0x2d8] sm:$0xff]
    %v3391 = vld [vmem:[%s370 + $0x2e0] sm:$0xff]
    %v3392 = vld [vmem:[%s370 + $0x2e8] sm:$0xff]
    %v3393 = vld [vmem:[%s370 + $0x2f0] sm:$0xff]
    %v3394 = vld [vmem:[%s370 + $0x2f8] sm:$0xff]
    %v3395 = vld [vmem:[%s370 + $0x300] sm:$0xff]
    %v3396 = vld [vmem:[%s370 + $0x308] sm:$0xff]
    %v3397 = vld [vmem:[%s370 + $0x310] sm:$0xff]
    %v3398 = vld [vmem:[%s370 + $0x318] sm:$0xff]
    %v3399 = vld [vmem:[%s370 + $0x320] sm:$0xff]
    %v3400 = vld [vmem:[%s370 + $0x328] sm:$0xff]
    %v3401 = vld [vmem:[%s370 + $0x330] sm:$0xff]
    %v3402 = vld [vmem:[%s370 + $0x338] sm:$0xff]
    %v3403 = vld [vmem:[%s370 + $0x340] sm:$0xff]
    %v3404 = vld [vmem:[%s370 + $0x348] sm:$0xff]
    %v3405 = vld [vmem:[%s370 + $0x350] sm:$0xff]
    %v3406 = vld [vmem:[%s370 + $0x358] sm:$0xff]
    %v3407 = vld [vmem:[%s370 + $0x360] sm:$0xff]
    %v3408 = vld [vmem:[%s370 + $0x368] sm:$0xff]
    %v3409 = vld [vmem:[%s370 + $0x370] sm:$0xff]
    %v3410 = vld [vmem:[%s370 + $0x378] sm:$0xff]
    %v3411 = vld [vmem:[%s370 + $0x380] sm:$0xff]
    %v3412 = vld [vmem:[%s370 + $0x388] sm:$0xff]
    %v3413 = vld [vmem:[%s370 + $0x390] sm:$0xff]
    %v3414 = vld [vmem:[%s370 + $0x398] sm:$0xff]
    %v3415 = vld [vmem:[%s370 + $0x3a0] sm:$0xff]
    %v3416 = vld [vmem:[%s370 + $0x3a8] sm:$0xff]
    %v3417 = vld [vmem:[%s370 + $0x3b0] sm:$0xff]
    %v3418 = vld [vmem:[%s370 + $0x3b8] sm:$0xff]
    %v3419 = vld [vmem:[%s370 + $0x3c0] sm:$0xff]
    %v3420 = vld [vmem:[%s370 + $0x3c8] sm:$0xff]
    %v3421 = vld [vmem:[%s370 + $0x3d0] sm:$0xff]
    %v3422 = vld [vmem:[%s370 + $0x3d8] sm:$0xff]
    %v3423 = vld [vmem:[%s370 + $0x3e0] sm:$0xff]
    %v3424 = vld [vmem:[%s370 + $0x3e8] sm:$0xff]
    %v3425 = vld [vmem:[%s370 + $0x3f0] sm:$0xff]
    %v3426 = vld [vmem:[%s370 + $0x3f8] sm:$0xff]
    %3427 = vmatprep.subr.mxu0 %v3300
    %3428 = vmatpush1.msra.mxu0 %v3299
    %3429 = vmatprep.subr.mxu0 %v3304
    %3430 = vmatpush1.msra.mxu0 %v3303
    %3431 = vmatprep.subr.mxu0 %v3308
    %3432 = vmatpush1.msra.mxu0 %v3307
    %3433 = vmatprep.subr.mxu0 %v3312
    %3434 = vmatpush1.msra.mxu0 %v3311
    %3435 = vmatprep.subr.mxu0 %v3316
    %3436 = vmatpush1.msra.mxu0 %v3315
    %3437 = vmatprep.subr.mxu0 %v3320
    %3438 = vmatpush1.msra.mxu0 %v3319
    %3439 = vmatprep.subr.mxu0 %v3324
    %3440 = vmatpush1.msra.mxu0 %v3323
    %3441 = vmatprep.subr.mxu0 %v3328
    %3442 = vmatpush1.msra.mxu0 %v3327
    %3443 = vmatprep.subr.mxu0 %v3332
    %3444 = vmatpush1.msra.mxu0 %v3331
    %3445 = vmatprep.subr.mxu0 %v3336
    %3446 = vmatpush1.msra.mxu0 %v3335
    %3447 = vmatprep.subr.mxu0 %v3340
    %3448 = vmatpush1.msra.mxu0 %v3339
    %3449 = vmatprep.subr.mxu0 %v3344
    %3450 = vmatpush1.msra.mxu0 %v3343
    %3451 = vmatprep.subr.mxu0 %v3348
    %3452 = vmatpush1.msra.mxu0 %v3347
    %3453 = vmatprep.subr.mxu0 %v3352
    %3454 = vmatpush1.msra.mxu0 %v3351
    %3455 = vmatprep.subr.mxu0 %v3356
    %3456 = vmatpush1.msra.mxu0 %v3355
    %3457 = vmatprep.subr.mxu0 %v3360
    %3458 = vmatpush1.msra.mxu0 %v3359
    %3459 = vmatprep.subr.mxu0 %v3364
    %3460 = vmatpush1.msra.mxu0 %v3363
    %3461 = vmatprep.subr.mxu0 %v3368
    %3462 = vmatpush1.msra.mxu0 %v3367
    %3463 = vmatprep.subr.mxu0 %v3372
    %3464 = vmatpush1.msra.mxu0 %v3371
    %3465 = vmatprep.subr.mxu0 %v3376
    %3466 = vmatpush1.msra.mxu0 %v3375
    %3467 = vmatprep.subr.mxu0 %v3380
    %3468 = vmatpush1.msra.mxu0 %v3379
    %3469 = vmatprep.subr.mxu0 %v3384
    %3470 = vmatpush1.msra.mxu0 %v3383
    %3471 = vmatprep.subr.mxu0 %v3388
    %3472 = vmatpush1.msra.mxu0 %v3387
    %3473 = vmatprep.subr.mxu0 %v3392
    %3474 = vmatpush1.msra.mxu0 %v3391
    %3475 = vmatprep.subr.mxu0 %v3396
    %3476 = vmatpush1.msra.mxu0 %v3395
    %3477 = vmatprep.subr.mxu0 %v3400
    %3478 = vmatpush1.msra.mxu0 %v3399
    %3479 = vmatprep.subr.mxu0 %v3404
    %3480 = vmatpush1.msra.mxu0 %v3403
    %3481 = vmatprep.subr.mxu0 %v3408
    %3482 = vmatpush1.msra.mxu0 %v3407
    %3483 = vmatprep.subr.mxu0 %v3412
    %3484 = vmatpush1.msra.mxu0 %v3411
    %3485 = vmatprep.subr.mxu0 %v3416
    %3486 = vmatpush1.msra.mxu0 %v3415
    %3487 = vmatprep.subr.mxu0 %v3420
    %3488 = vmatpush1.msra.mxu0 %v3419
    %3489 = vmatprep.subr.mxu0 %v3424
    %3490 = vmatpush1.msra.mxu0 %v3423
    %3491 = vmatprep.mubr.f32.mxu0 %v3009
    %3492 = vmatmul.mubr.f32.gmra.mrb[0].mxu0 %v3298
    %v3493 = vpop.f32.mrb[0].mxu0
    %v3494 = vadd.f32 %v503, %v3493
    %v3495 = vpop.f32.mrb[0].mxu0
    %v3496 = vadd.f32 %v507, %v3495
    %3497 = vdwg.mxu0
    %3498 = vmatprep.subr.mxu0 %v3302
    %3499 = vmatpush1.msra.mxu0 %v3301
    %3500 = vmatprep.subr.mxu0 %v3306
    %3501 = vmatpush1.msra.mxu0 %v3305
    %3502 = vmatprep.subr.mxu0 %v3310
    %3503 = vmatpush1.msra.mxu0 %v3309
    %3504 = vmatprep.subr.mxu0 %v3314
    %3505 = vmatpush1.msra.mxu0 %v3313
    %3506 = vmatprep.subr.mxu0 %v3318
    %3507 = vmatpush1.msra.mxu0 %v3317
    %3508 = vmatprep.subr.mxu0 %v3322
    %3509 = vmatpush1.msra.mxu0 %v3321
    %3510 = vmatprep.subr.mxu0 %v3326
    %3511 = vmatpush1.msra.mxu0 %v3325
    %3512 = vmatprep.subr.mxu0 %v3330
    %3513 = vmatpush1.msra.mxu0 %v3329
    %3514 = vmatprep.subr.mxu0 %v3334
    %3515 = vmatpush1.msra.mxu0 %v3333
    %3516 = vmatprep.subr.mxu0 %v3338
    %3517 = vmatpush1.msra.mxu0 %v3337
    %3518 = vmatprep.subr.mxu0 %v3342
    %3519 = vmatpush1.msra.mxu0 %v3341
    %3520 = vmatprep.subr.mxu0 %v3346
    %3521 = vmatpush1.msra.mxu0 %v3345
    %3522 = vmatprep.subr.mxu0 %v3350
    %3523 = vmatpush1.msra.mxu0 %v3349
    %3524 = vmatprep.subr.mxu0 %v3354
    %3525 = vmatpush1.msra.mxu0 %v3353
    %3526 = vmatprep.subr.mxu0 %v3358
    %3527 = vmatpush1.msra.mxu0 %v3357
    %3528 = vmatprep.subr.mxu0 %v3362
    %3529 = vmatpush1.msra.mxu0 %v3361
    %3530 = vmatprep.subr.mxu0 %v3366
    %3531 = vmatpush1.msra.mxu0 %v3365
    %3532 = vmatprep.subr.mxu0 %v3370
    %3533 = vmatpush1.msra.mxu0 %v3369
    %3534 = vmatprep.subr.mxu0 %v3374
    %3535 = vmatpush1.msra.mxu0 %v3373
    %3536 = vmatprep.subr.mxu0 %v3378
    %3537 = vmatpush1.msra.mxu0 %v3377
    %3538 = vmatprep.subr.mxu0 %v3382
    %3539 = vmatpush1.msra.mxu0 %v3381
    %3540 = vmatprep.subr.mxu0 %v3386
    %3541 = vmatpush1.msra.mxu0 %v3385
    %3542 = vmatprep.subr.mxu0 %v3390
    %3543 = vmatpush1.msra.mxu0 %v3389
    %3544 = vmatprep.subr.mxu0 %v3394
    %3545 = vmatpush1.msra.mxu0 %v3393
    %3546 = vmatprep.subr.mxu0 %v3398
    %3547 = vmatpush1.msra.mxu0 %v3397
    %3548 = vmatprep.subr.mxu0 %v3402
    %3549 = vmatpush1.msra.mxu0 %v3401
    %3550 = vmatprep.subr.mxu0 %v3406
    %3551 = vmatpush1.msra.mxu0 %v3405
    %3552 = vmatprep.subr.mxu0 %v3410
    %3553 = vmatpush1.msra.mxu0 %v3409
    %3554 = vmatprep.subr.mxu0 %v3414
    %3555 = vmatpush1.msra.mxu0 %v3413
    %3556 = vmatprep.subr.mxu0 %v3418
    %3557 = vmatpush1.msra.mxu0 %v3417
    %3558 = vmatprep.subr.mxu0 %v3422
    %3559 = vmatpush1.msra.mxu0 %v3421
    %3560 = vmatprep.subr.mxu0 %v3426
    %3561 = vmatpush1.msra.mxu0 %v3425
    %3562 = vmatprep.mubr.f32.mxu0 %v3009
    %3563 = vmatmul.mubr.f32.gmra.mrb[0].mxu0 %v3298
    %v3564 = vpop.f32.mrb[0].mxu0
    %v3565 = vadd.f32 %v511, %v3564
    %v3566 = vpop.f32.mrb[0].mxu0
    %v3567 = vadd.f32 %v515, %v3566
    %3568 = vdwg.mxu0
    %v3569 = vmul.f32 %v3494, 0.5
    %v3570 = vtanh.pop %v3569
    %v3571 = vmul.f32 %v3570, 0.5
    %v3572 = vadd.f32 %v3571, 0.5
    %v3573 = vmul.f32 %v3496, 0.5
    %v3574 = vtanh.pop %v3573
    %v3575 = vmul.f32 %v3574, 0.5
    %v3576 = vadd.f32 %v3575, 0.5
    %v3577 = vtanh.pop %v3565
    %v3578 = vmul.f32 %v3567, 0.5
    %v3579 = vtanh.pop %v3578
    %v3580 = vmul.f32 %v3579, 0.5
    %v3581 = vadd.f32 %v3580, 0.5
    %v3582 = vmul.f32 %v3576, %v3007
    %v3583 = vmul.f32 %v3572, %v3577
    %v3584 = vadd.f32 %v3582, %v3583
    %v3585 = vtanh.pop %v3584
    %v3586 = vmul.f32 %v3581, %v3585
    %3587 = vst [vmem:[#allocation7 + $0x5] sm:$0x1] %v3586
    %v3588 = vld [vmem:[#allocation5] sm:$0xff]
    %v3589 = vld [vmem:[#allocation5 + $0x8] sm:$0xff]
    %v3590 = vld [vmem:[#allocation5 + $0x10] sm:$0xff]
    %v3591 = vld [vmem:[#allocation5 + $0x18] sm:$0xff]
    %v3592 = vld [vmem:[#allocation5 + $0x20] sm:$0xff]
    %v3593 = vld [vmem:[#allocation5 + $0x28] sm:$0xff]
    %v3594 = vld [vmem:[#allocation5 + $0x30] sm:$0xff]
    %v3595 = vld [vmem:[#allocation5 + $0x38] sm:$0xff]
    %v3596 = vld [vmem:[#allocation5 + $0x40] sm:$0xff]
    %v3597 = vld [vmem:[#allocation5 + $0x48] sm:$0xff]
    %v3598 = vld [vmem:[#allocation5 + $0x50] sm:$0xff]
    %v3599 = vld [vmem:[#allocation5 + $0x58] sm:$0xff]
    %v3600 = vld [vmem:[#allocation5 + $0x60] sm:$0xff]
    %v3601 = vld [vmem:[#allocation5 + $0x68] sm:$0xff]
    %v3602 = vld [vmem:[#allocation5 + $0x70] sm:$0xff]
    %v3603 = vld [vmem:[#allocation5 + $0x78] sm:$0xff]
    %v3604 = vld [vmem:[#allocation5 + $0x80] sm:$0xff]
    %v3605 = vld [vmem:[#allocation5 + $0x88] sm:$0xff]
    %v3606 = vld [vmem:[#allocation5 + $0x90] sm:$0xff]
    %v3607 = vld [vmem:[#allocation5 + $0x98] sm:$0xff]
    %v3608 = vld [vmem:[#allocation5 + $0xa0] sm:$0xff]
    %v3609 = vld [vmem:[#allocation5 + $0xa8] sm:$0xff]
    %v3610 = vld [vmem:[#allocation5 + $0xb0] sm:$0xff]
    %v3611 = vld [vmem:[#allocation5 + $0xb8] sm:$0xff]
    %v3612 = vld [vmem:[#allocation5 + $0xc0] sm:$0xff]
    %v3613 = vld [vmem:[#allocation5 + $0xc8] sm:$0xff]
    %v3614 = vld [vmem:[#allocation5 + $0xd0] sm:$0xff]
    %v3615 = vld [vmem:[#allocation5 + $0xd8] sm:$0xff]
    %v3616 = vld [vmem:[#allocation5 + $0xe0] sm:$0xff]
    %v3617 = vld [vmem:[#allocation5 + $0xe8] sm:$0xff]
    %v3618 = vld [vmem:[#allocation5 + $0xf0] sm:$0xff]
    %v3619 = vld [vmem:[#allocation5 + $0xf8] sm:$0xff]
    %v3620 = vld [vmem:[#allocation5 + $0x100] sm:$0xff]
    %v3621 = vld [vmem:[#allocation5 + $0x108] sm:$0xff]
    %v3622 = vld [vmem:[#allocation5 + $0x110] sm:$0xff]
    %v3623 = vld [vmem:[#allocation5 + $0x118] sm:$0xff]
    %v3624 = vld [vmem:[#allocation5 + $0x120] sm:$0xff]
    %v3625 = vld [vmem:[#allocation5 + $0x128] sm:$0xff]
    %v3626 = vld [vmem:[#allocation5 + $0x130] sm:$0xff]
    %v3627 = vld [vmem:[#allocation5 + $0x138] sm:$0xff]
    %v3628 = vld [vmem:[#allocation5 + $0x140] sm:$0xff]
    %v3629 = vld [vmem:[#allocation5 + $0x148] sm:$0xff]
    %v3630 = vld [vmem:[#allocation5 + $0x150] sm:$0xff]
    %v3631 = vld [vmem:[#allocation5 + $0x158] sm:$0xff]
    %v3632 = vld [vmem:[#allocation5 + $0x160] sm:$0xff]
    %v3633 = vld [vmem:[#allocation5 + $0x168] sm:$0xff]
    %v3634 = vld [vmem:[#allocation5 + $0x170] sm:$0xff]
    %v3635 = vld [vmem:[#allocation5 + $0x178] sm:$0xff]
    %v3636 = vld [vmem:[#allocation5 + $0x180] sm:$0xff]
    %v3637 = vld [vmem:[#allocation5 + $0x188] sm:$0xff]
    %v3638 = vld [vmem:[#allocation5 + $0x190] sm:$0xff]
    %v3639 = vld [vmem:[#allocation5 + $0x198] sm:$0xff]
    %v3640 = vld [vmem:[#allocation5 + $0x1a0] sm:$0xff]
    %v3641 = vld [vmem:[#allocation5 + $0x1a8] sm:$0xff]
    %v3642 = vld [vmem:[#allocation5 + $0x1b0] sm:$0xff]
    %v3643 = vld [vmem:[#allocation5 + $0x1b8] sm:$0xff]
    %v3644 = vld [vmem:[#allocation5 + $0x1c0] sm:$0xff]
    %v3645 = vld [vmem:[#allocation5 + $0x1c8] sm:$0xff]
    %v3646 = vld [vmem:[#allocation5 + $0x1d0] sm:$0xff]
    %v3647 = vld [vmem:[#allocation5 + $0x1d8] sm:$0xff]
    %v3648 = vld [vmem:[#allocation5 + $0x1e0] sm:$0xff]
    %v3649 = vld [vmem:[#allocation5 + $0x1e8] sm:$0xff]
    %v3650 = vld [vmem:[#allocation5 + $0x1f0] sm:$0xff]
    %v3651 = vld [vmem:[#allocation5 + $0x1f8] sm:$0xff]
    %v3652 = vld [vmem:[#allocation5 + $0x200] sm:$0xff]
    %v3653 = vld [vmem:[#allocation5 + $0x208] sm:$0xff]
    %v3654 = vld [vmem:[#allocation5 + $0x210] sm:$0xff]
    %v3655 = vld [vmem:[#allocation5 + $0x218] sm:$0xff]
    %v3656 = vld [vmem:[#allocation5 + $0x220] sm:$0xff]
    %v3657 = vld [vmem:[#allocation5 + $0x228] sm:$0xff]
    %v3658 = vld [vmem:[#allocation5 + $0x230] sm:$0xff]
    %v3659 = vld [vmem:[#allocation5 + $0x238] sm:$0xff]
    %v3660 = vld [vmem:[#allocation5 + $0x240] sm:$0xff]
    %v3661 = vld [vmem:[#allocation5 + $0x248] sm:$0xff]
    %v3662 = vld [vmem:[#allocation5 + $0x250] sm:$0xff]
    %v3663 = vld [vmem:[#allocation5 + $0x258] sm:$0xff]
    %v3664 = vld [vmem:[#allocation5 + $0x260] sm:$0xff]
    %v3665 = vld [vmem:[#allocation5 + $0x268] sm:$0xff]
    %v3666 = vld [vmem:[#allocation5 + $0x270] sm:$0xff]
    %v3667 = vld [vmem:[#allocation5 + $0x278] sm:$0xff]
    %v3668 = vld [vmem:[#allocation5 + $0x280] sm:$0xff]
    %v3669 = vld [vmem:[#allocation5 + $0x288] sm:$0xff]
    %v3670 = vld [vmem:[#allocation5 + $0x290] sm:$0xff]
    %v3671 = vld [vmem:[#allocation5 + $0x298] sm:$0xff]
    %v3672 = vld [vmem:[#allocation5 + $0x2a0] sm:$0xff]
    %v3673 = vld [vmem:[#allocation5 + $0x2a8] sm:$0xff]
    %v3674 = vld [vmem:[#allocation5 + $0x2b0] sm:$0xff]
    %v3675 = vld [vmem:[#allocation5 + $0x2b8] sm:$0xff]
    %v3676 = vld [vmem:[#allocation5 + $0x2c0] sm:$0xff]
    %v3677 = vld [vmem:[#allocation5 + $0x2c8] sm:$0xff]
    %v3678 = vld [vmem:[#allocation5 + $0x2d0] sm:$0xff]
    %v3679 = vld [vmem:[#allocation5 + $0x2d8] sm:$0xff]
    %v3680 = vld [vmem:[#allocation5 + $0x2e0] sm:$0xff]
    %v3681 = vld [vmem:[#allocation5 + $0x2e8] sm:$0xff]
    %v3682 = vld [vmem:[#allocation5 + $0x2f0] sm:$0xff]
    %v3683 = vld [vmem:[#allocation5 + $0x2f8] sm:$0xff]
    %v3684 = vld [vmem:[#allocation5 + $0x300] sm:$0xff]
    %v3685 = vld [vmem:[#allocation5 + $0x308] sm:$0xff]
    %v3686 = vld [vmem:[#allocation5 + $0x310] sm:$0xff]
    %v3687 = vld [vmem:[#allocation5 + $0x318] sm:$0xff]
    %v3688 = vld [vmem:[#allocation5 + $0x320] sm:$0xff]
    %v3689 = vld [vmem:[#allocation5 + $0x328] sm:$0xff]
    %v3690 = vld [vmem:[#allocation5 + $0x330] sm:$0xff]
    %v3691 = vld [vmem:[#allocation5 + $0x338] sm:$0xff]
    %v3692 = vld [vmem:[#allocation5 + $0x340] sm:$0xff]
    %v3693 = vld [vmem:[#allocation5 + $0x348] sm:$0xff]
    %v3694 = vld [vmem:[#allocation5 + $0x350] sm:$0xff]
    %v3695 = vld [vmem:[#allocation5 + $0x358] sm:$0xff]
    %v3696 = vld [vmem:[#allocation5 + $0x360] sm:$0xff]
    %v3697 = vld [vmem:[#allocation5 + $0x368] sm:$0xff]
    %v3698 = vld [vmem:[#allocation5 + $0x370] sm:$0xff]
    %v3699 = vld [vmem:[#allocation5 + $0x378] sm:$0xff]
    %v3700 = vld [vmem:[#allocation5 + $0x380] sm:$0xff]
    %v3701 = vld [vmem:[#allocation5 + $0x388] sm:$0xff]
    %v3702 = vld [vmem:[#allocation5 + $0x390] sm:$0xff]
    %v3703 = vld [vmem:[#allocation5 + $0x398] sm:$0xff]
    %v3704 = vld [vmem:[#allocation5 + $0x3a0] sm:$0xff]
    %v3705 = vld [vmem:[#allocation5 + $0x3a8] sm:$0xff]
    %v3706 = vld [vmem:[#allocation5 + $0x3b0] sm:$0xff]
    %v3707 = vld [vmem:[#allocation5 + $0x3b8] sm:$0xff]
    %v3708 = vld [vmem:[#allocation5 + $0x3c0] sm:$0xff]
    %v3709 = vld [vmem:[#allocation5 + $0x3c8] sm:$0xff]
    %v3710 = vld [vmem:[#allocation5 + $0x3d0] sm:$0xff]
    %v3711 = vld [vmem:[#allocation5 + $0x3d8] sm:$0xff]
    %v3712 = vld [vmem:[#allocation5 + $0x3e0] sm:$0xff]
    %v3713 = vld [vmem:[#allocation5 + $0x3e8] sm:$0xff]
    %v3714 = vld [vmem:[#allocation5 + $0x3f0] sm:$0xff]
    %v3715 = vld [vmem:[#allocation5 + $0x3f8] sm:$0xff]
    %3716 = vmatprep.subr.mxu0 %v3589
    %3717 = vmatpush1.msra.mxu0 %v3588
    %3718 = vmatprep.subr.mxu0 %v3593
    %3719 = vmatpush1.msra.mxu0 %v3592
    %3720 = vmatprep.subr.mxu0 %v3597
    %3721 = vmatpush1.msra.mxu0 %v3596
    %3722 = vmatprep.subr.mxu0 %v3601
    %3723 = vmatpush1.msra.mxu0 %v3600
    %3724 = vmatprep.subr.mxu0 %v3605
    %3725 = vmatpush1.msra.mxu0 %v3604
    %3726 = vmatprep.subr.mxu0 %v3609
    %3727 = vmatpush1.msra.mxu0 %v3608
    %3728 = vmatprep.subr.mxu0 %v3613
    %3729 = vmatpush1.msra.mxu0 %v3612
    %3730 = vmatprep.subr.mxu0 %v3617
    %3731 = vmatpush1.msra.mxu0 %v3616
    %3732 = vmatprep.subr.mxu0 %v3621
    %3733 = vmatpush1.msra.mxu0 %v3620
    %3734 = vmatprep.subr.mxu0 %v3625
    %3735 = vmatpush1.msra.mxu0 %v3624
    %3736 = vmatprep.subr.mxu0 %v3629
    %3737 = vmatpush1.msra.mxu0 %v3628
    %3738 = vmatprep.subr.mxu0 %v3633
    %3739 = vmatpush1.msra.mxu0 %v3632
    %3740 = vmatprep.subr.mxu0 %v3637
    %3741 = vmatpush1.msra.mxu0 %v3636
    %3742 = vmatprep.subr.mxu0 %v3641
    %3743 = vmatpush1.msra.mxu0 %v3640
    %3744 = vmatprep.subr.mxu0 %v3645
    %3745 = vmatpush1.msra.mxu0 %v3644
    %3746 = vmatprep.subr.mxu0 %v3649
    %3747 = vmatpush1.msra.mxu0 %v3648
    %3748 = vmatprep.subr.mxu0 %v3653
    %3749 = vmatpush1.msra.mxu0 %v3652
    %3750 = vmatprep.subr.mxu0 %v3657
    %3751 = vmatpush1.msra.mxu0 %v3656
    %3752 = vmatprep.subr.mxu0 %v3661
    %3753 = vmatpush1.msra.mxu0 %v3660
    %3754 = vmatprep.subr.mxu0 %v3665
    %3755 = vmatpush1.msra.mxu0 %v3664
    %3756 = vmatprep.subr.mxu0 %v3669
    %3757 = vmatpush1.msra.mxu0 %v3668
    %3758 = vmatprep.subr.mxu0 %v3673
    %3759 = vmatpush1.msra.mxu0 %v3672
    %3760 = vmatprep.subr.mxu0 %v3677
    %3761 = vmatpush1.msra.mxu0 %v3676
    %3762 = vmatprep.subr.mxu0 %v3681
    %3763 = vmatpush1.msra.mxu0 %v3680
    %3764 = vmatprep.subr.mxu0 %v3685
    %3765 = vmatpush1.msra.mxu0 %v3684
    %3766 = vmatprep.subr.mxu0 %v3689
    %3767 = vmatpush1.msra.mxu0 %v3688
    %3768 = vmatprep.subr.mxu0 %v3693
    %3769 = vmatpush1.msra.mxu0 %v3692
    %3770 = vmatprep.subr.mxu0 %v3697
    %3771 = vmatpush1.msra.mxu0 %v3696
    %3772 = vmatprep.subr.mxu0 %v3701
    %3773 = vmatpush1.msra.mxu0 %v3700
    %3774 = vmatprep.subr.mxu0 %v3705
    %3775 = vmatpush1.msra.mxu0 %v3704
    %3776 = vmatprep.subr.mxu0 %v3709
    %3777 = vmatpush1.msra.mxu0 %v3708
    %3778 = vmatprep.subr.mxu0 %v3713
    %3779 = vmatpush1.msra.mxu0 %v3712
    %3780 = vmatprep.mubr.f32.mxu0 %v3298
    %3781 = vmatmul.mubr.f32.gmra.mrb[0].mxu0 %v3586
    %v3782 = vpop.f32.mrb[0].mxu0
    %v3783 = vadd.f32 %v814, %v3782
    %v3784 = vpop.f32.mrb[0].mxu0
    %v3785 = vadd.f32 %v818, %v3784
    %3786 = vdwg.mxu0
    %3787 = vmatprep.subr.mxu0 %v3591
    %3788 = vmatpush1.msra.mxu0 %v3590
    %3789 = vmatprep.subr.mxu0 %v3595
    %3790 = vmatpush1.msra.mxu0 %v3594
    %3791 = vmatprep.subr.mxu0 %v3599
    %3792 = vmatpush1.msra.mxu0 %v3598
    %3793 = vmatprep.subr.mxu0 %v3603
    %3794 = vmatpush1.msra.mxu0 %v3602
    %3795 = vmatprep.subr.mxu0 %v3607
    %3796 = vmatpush1.msra.mxu0 %v3606
    %3797 = vmatprep.subr.mxu0 %v3611
    %3798 = vmatpush1.msra.mxu0 %v3610
    %3799 = vmatprep.subr.mxu0 %v3615
    %3800 = vmatpush1.msra.mxu0 %v3614
    %3801 = vmatprep.subr.mxu0 %v3619
    %3802 = vmatpush1.msra.mxu0 %v3618
    %3803 = vmatprep.subr.mxu0 %v3623
    %3804 = vmatpush1.msra.mxu0 %v3622
    %3805 = vmatprep.subr.mxu0 %v3627
    %3806 = vmatpush1.msra.mxu0 %v3626
    %3807 = vmatprep.subr.mxu0 %v3631
    %3808 = vmatpush1.msra.mxu0 %v3630
    %3809 = vmatprep.subr.mxu0 %v3635
    %3810 = vmatpush1.msra.mxu0 %v3634
    %3811 = vmatprep.subr.mxu0 %v3639
    %3812 = vmatpush1.msra.mxu0 %v3638
    %3813 = vmatprep.subr.mxu0 %v3643
    %3814 = vmatpush1.msra.mxu0 %v3642
    %3815 = vmatprep.subr.mxu0 %v3647
    %3816 = vmatpush1.msra.mxu0 %v3646
    %3817 = vmatprep.subr.mxu0 %v3651
    %3818 = vmatpush1.msra.mxu0 %v3650
    %3819 = vmatprep.subr.mxu0 %v3655
    %3820 = vmatpush1.msra.mxu0 %v3654
    %3821 = vmatprep.subr.mxu0 %v3659
    %3822 = vmatpush1.msra.mxu0 %v3658
    %3823 = vmatprep.subr.mxu0 %v3663
    %3824 = vmatpush1.msra.mxu0 %v3662
    %3825 = vmatprep.subr.mxu0 %v3667
    %3826 = vmatpush1.msra.mxu0 %v3666
    %3827 = vmatprep.subr.mxu0 %v3671
    %3828 = vmatpush1.msra.mxu0 %v3670
    %3829 = vmatprep.subr.mxu0 %v3675
    %3830 = vmatpush1.msra.mxu0 %v3674
    %3831 = vmatprep.subr.mxu0 %v3679
    %3832 = vmatpush1.msra.mxu0 %v3678
    %3833 = vmatprep.subr.mxu0 %v3683
    %3834 = vmatpush1.msra.mxu0 %v3682
    %3835 = vmatprep.subr.mxu0 %v3687
    %3836 = vmatpush1.msra.mxu0 %v3686
    %3837 = vmatprep.subr.mxu0 %v3691
    %3838 = vmatpush1.msra.mxu0 %v3690
    %3839 = vmatprep.subr.mxu0 %v3695
    %3840 = vmatpush1.msra.mxu0 %v3694
    %3841 = vmatprep.subr.mxu0 %v3699
    %3842 = vmatpush1.msra.mxu0 %v3698
    %3843 = vmatprep.subr.mxu0 %v3703
    %3844 = vmatpush1.msra.mxu0 %v3702
    %3845 = vmatprep.subr.mxu0 %v3707
    %3846 = vmatpush1.msra.mxu0 %v3706
    %3847 = vmatprep.subr.mxu0 %v3711
    %3848 = vmatpush1.msra.mxu0 %v3710
    %3849 = vmatprep.subr.mxu0 %v3715
    %3850 = vmatpush1.msra.mxu0 %v3714
    %3851 = vmatprep.mubr.f32.mxu0 %v3298
    %3852 = vmatmul.mubr.f32.gmra.mrb[0].mxu0 %v3586
    %v3853 = vpop.f32.mrb[0].mxu0
    %v3854 = vadd.f32 %v822, %v3853
    %v3855 = vpop.f32.mrb[0].mxu0
    %v3856 = vadd.f32 %v826, %v3855
    %3857 = vdwg.mxu0
    %v3858 = vmul.f32 %v3783, 0.5
    %v3859 = vtanh.pop %v3858
    %v3860 = vmul.f32 %v3859, 0.5
    %v3861 = vadd.f32 %v3860, 0.5
    %v3862 = vmul.f32 %v3785, 0.5
    %v3863 = vtanh.pop %v3862
    %v3864 = vmul.f32 %v3863, 0.5
    %v3865 = vadd.f32 %v3864, 0.5
    %v3866 = vtanh.pop %v3854
    %v3867 = vmul.f32 %v3856, 0.5
    %v3868 = vtanh.pop %v3867
    %v3869 = vmul.f32 %v3868, 0.5
    %v3870 = vadd.f32 %v3869, 0.5
    %v3871 = vmul.f32 %v3865, %v3296
    %v3872 = vmul.f32 %v3861, %v3866
    %v3873 = vadd.f32 %v3871, %v3872
    %v3874 = vtanh.pop %v3873
    %v3875 = vmul.f32 %v3870, %v3874
    %v3876 = vld [vmem:[%s370] sm:$0xff]
    %v3877 = vld [vmem:[%s370 + $0x8] sm:$0xff]
    %v3878 = vld [vmem:[%s370 + $0x10] sm:$0xff]
    %v3879 = vld [vmem:[%s370 + $0x18] sm:$0xff]
    %v3880 = vld [vmem:[%s370 + $0x20] sm:$0xff]
    %v3881 = vld [vmem:[%s370 + $0x28] sm:$0xff]
    %v3882 = vld [vmem:[%s370 + $0x30] sm:$0xff]
    %v3883 = vld [vmem:[%s370 + $0x38] sm:$0xff]
    %v3884 = vld [vmem:[%s370 + $0x40] sm:$0xff]
    %v3885 = vld [vmem:[%s370 + $0x48] sm:$0xff]
    %v3886 = vld [vmem:[%s370 + $0x50] sm:$0xff]
    %v3887 = vld [vmem:[%s370 + $0x58] sm:$0xff]
    %v3888 = vld [vmem:[%s370 + $0x60] sm:$0xff]
    %v3889 = vld [vmem:[%s370 + $0x68] sm:$0xff]
    %v3890 = vld [vmem:[%s370 + $0x70] sm:$0xff]
    %v3891 = vld [vmem:[%s370 + $0x78] sm:$0xff]
    %v3892 = vld [vmem:[%s370 + $0x80] sm:$0xff]
    %v3893 = vld [vmem:[%s370 + $0x88] sm:$0xff]
    %v3894 = vld [vmem:[%s370 + $0x90] sm:$0xff]
    %v3895 = vld [vmem:[%s370 + $0x98] sm:$0xff]
    %v3896 = vld [vmem:[%s370 + $0xa0] sm:$0xff]
    %v3897 = vld [vmem:[%s370 + $0xa8] sm:$0xff]
    %v3898 = vld [vmem:[%s370 + $0xb0] sm:$0xff]
    %v3899 = vld [vmem:[%s370 + $0xb8] sm:$0xff]
    %v3900 = vld [vmem:[%s370 + $0xc0] sm:$0xff]
    %v3901 = vld [vmem:[%s370 + $0xc8] sm:$0xff]
    %v3902 = vld [vmem:[%s370 + $0xd0] sm:$0xff]
    %v3903 = vld [vmem:[%s370 + $0xd8] sm:$0xff]
    %v3904 = vld [vmem:[%s370 + $0xe0] sm:$0xff]
    %v3905 = vld [vmem:[%s370 + $0xe8] sm:$0xff]
    %v3906 = vld [vmem:[%s370 + $0xf0] sm:$0xff]
    %v3907 = vld [vmem:[%s370 + $0xf8] sm:$0xff]
    %v3908 = vld [vmem:[%s370 + $0x100] sm:$0xff]
    %v3909 = vld [vmem:[%s370 + $0x108] sm:$0xff]
    %v3910 = vld [vmem:[%s370 + $0x110] sm:$0xff]
    %v3911 = vld [vmem:[%s370 + $0x118] sm:$0xff]
    %v3912 = vld [vmem:[%s370 + $0x120] sm:$0xff]
    %v3913 = vld [vmem:[%s370 + $0x128] sm:$0xff]
    %v3914 = vld [vmem:[%s370 + $0x130] sm:$0xff]
    %v3915 = vld [vmem:[%s370 + $0x138] sm:$0xff]
    %v3916 = vld [vmem:[%s370 + $0x140] sm:$0xff]
    %v3917 = vld [vmem:[%s370 + $0x148] sm:$0xff]
    %v3918 = vld [vmem:[%s370 + $0x150] sm:$0xff]
    %v3919 = vld [vmem:[%s370 + $0x158] sm:$0xff]
    %v3920 = vld [vmem:[%s370 + $0x160] sm:$0xff]
    %v3921 = vld [vmem:[%s370 + $0x168] sm:$0xff]
    %v3922 = vld [vmem:[%s370 + $0x170] sm:$0xff]
    %v3923 = vld [vmem:[%s370 + $0x178] sm:$0xff]
    %v3924 = vld [vmem:[%s370 + $0x180] sm:$0xff]
    %v3925 = vld [vmem:[%s370 + $0x188] sm:$0xff]
    %v3926 = vld [vmem:[%s370 + $0x190] sm:$0xff]
    %v3927 = vld [vmem:[%s370 + $0x198] sm:$0xff]
    %v3928 = vld [vmem:[%s370 + $0x1a0] sm:$0xff]
    %v3929 = vld [vmem:[%s370 + $0x1a8] sm:$0xff]
    %v3930 = vld [vmem:[%s370 + $0x1b0] sm:$0xff]
    %v3931 = vld [vmem:[%s370 + $0x1b8] sm:$0xff]
    %v3932 = vld [vmem:[%s370 + $0x1c0] sm:$0xff]
    %v3933 = vld [vmem:[%s370 + $0x1c8] sm:$0xff]
    %v3934 = vld [vmem:[%s370 + $0x1d0] sm:$0xff]
    %v3935 = vld [vmem:[%s370 + $0x1d8] sm:$0xff]
    %v3936 = vld [vmem:[%s370 + $0x1e0] sm:$0xff]
    %v3937 = vld [vmem:[%s370 + $0x1e8] sm:$0xff]
    %v3938 = vld [vmem:[%s370 + $0x1f0] sm:$0xff]
    %v3939 = vld [vmem:[%s370 + $0x1f8] sm:$0xff]
    %v3940 = vld [vmem:[%s370 + $0x200] sm:$0xff]
    %v3941 = vld [vmem:[%s370 + $0x208] sm:$0xff]
    %v3942 = vld [vmem:[%s370 + $0x210] sm:$0xff]
    %v3943 = vld [vmem:[%s370 + $0x218] sm:$0xff]
    %v3944 = vld [vmem:[%s370 + $0x220] sm:$0xff]
    %v3945 = vld [vmem:[%s370 + $0x228] sm:$0xff]
    %v3946 = vld [vmem:[%s370 + $0x230] sm:$0xff]
    %v3947 = vld [vmem:[%s370 + $0x238] sm:$0xff]
    %v3948 = vld [vmem:[%s370 + $0x240] sm:$0xff]
    %v3949 = vld [vmem:[%s370 + $0x248] sm:$0xff]
    %v3950 = vld [vmem:[%s370 + $0x250] sm:$0xff]
    %v3951 = vld [vmem:[%s370 + $0x258] sm:$0xff]
    %v3952 = vld [vmem:[%s370 + $0x260] sm:$0xff]
    %v3953 = vld [vmem:[%s370 + $0x268] sm:$0xff]
    %v3954 = vld [vmem:[%s370 + $0x270] sm:$0xff]
    %v3955 = vld [vmem:[%s370 + $0x278] sm:$0xff]
    %v3956 = vld [vmem:[%s370 + $0x280] sm:$0xff]
    %v3957 = vld [vmem:[%s370 + $0x288] sm:$0xff]
    %v3958 = vld [vmem:[%s370 + $0x290] sm:$0xff]
    %v3959 = vld [vmem:[%s370 + $0x298] sm:$0xff]
    %v3960 = vld [vmem:[%s370 + $0x2a0] sm:$0xff]
    %v3961 = vld [vmem:[%s370 + $0x2a8] sm:$0xff]
    %v3962 = vld [vmem:[%s370 + $0x2b0] sm:$0xff]
    %v3963 = vld [vmem:[%s370 + $0x2b8] sm:$0xff]
    %v3964 = vld [vmem:[%s370 + $0x2c0] sm:$0xff]
    %v3965 = vld [vmem:[%s370 + $0x2c8] sm:$0xff]
    %v3966 = vld [vmem:[%s370 + $0x2d0] sm:$0xff]
    %v3967 = vld [vmem:[%s370 + $0x2d8] sm:$0xff]
    %v3968 = vld [vmem:[%s370 + $0x2e0] sm:$0xff]
    %v3969 = vld [vmem:[%s370 + $0x2e8] sm:$0xff]
    %v3970 = vld [vmem:[%s370 + $0x2f0] sm:$0xff]
    %v3971 = vld [vmem:[%s370 + $0x2f8] sm:$0xff]
    %v3972 = vld [vmem:[%s370 + $0x300] sm:$0xff]
    %v3973 = vld [vmem:[%s370 + $0x308] sm:$0xff]
    %v3974 = vld [vmem:[%s370 + $0x310] sm:$0xff]
    %v3975 = vld [vmem:[%s370 + $0x318] sm:$0xff]
    %v3976 = vld [vmem:[%s370 + $0x320] sm:$0xff]
    %v3977 = vld [vmem:[%s370 + $0x328] sm:$0xff]
    %v3978 = vld [vmem:[%s370 + $0x330] sm:$0xff]
    %v3979 = vld [vmem:[%s370 + $0x338] sm:$0xff]
    %v3980 = vld [vmem:[%s370 + $0x340] sm:$0xff]
    %v3981 = vld [vmem:[%s370 + $0x348] sm:$0xff]
    %v3982 = vld [vmem:[%s370 + $0x350] sm:$0xff]
    %v3983 = vld [vmem:[%s370 + $0x358] sm:$0xff]
    %v3984 = vld [vmem:[%s370 + $0x360] sm:$0xff]
    %v3985 = vld [vmem:[%s370 + $0x368] sm:$0xff]
    %v3986 = vld [vmem:[%s370 + $0x370] sm:$0xff]
    %v3987 = vld [vmem:[%s370 + $0x378] sm:$0xff]
    %v3988 = vld [vmem:[%s370 + $0x380] sm:$0xff]
    %v3989 = vld [vmem:[%s370 + $0x388] sm:$0xff]
    %v3990 = vld [vmem:[%s370 + $0x390] sm:$0xff]
    %v3991 = vld [vmem:[%s370 + $0x398] sm:$0xff]
    %v3992 = vld [vmem:[%s370 + $0x3a0] sm:$0xff]
    %v3993 = vld [vmem:[%s370 + $0x3a8] sm:$0xff]
    %v3994 = vld [vmem:[%s370 + $0x3b0] sm:$0xff]
    %v3995 = vld [vmem:[%s370 + $0x3b8] sm:$0xff]
    %v3996 = vld [vmem:[%s370 + $0x3c0] sm:$0xff]
    %v3997 = vld [vmem:[%s370 + $0x3c8] sm:$0xff]
    %v3998 = vld [vmem:[%s370 + $0x3d0] sm:$0xff]
    %v3999 = vld [vmem:[%s370 + $0x3d8] sm:$0xff]
    %v4000 = vld [vmem:[%s370 + $0x3e0] sm:$0xff]
    %v4001 = vld [vmem:[%s370 + $0x3e8] sm:$0xff]
    %v4002 = vld [vmem:[%s370 + $0x3f0] sm:$0xff]
    %v4003 = vld [vmem:[%s370 + $0x3f8] sm:$0xff]
    %4004 = vmatprep.subr.mxu0 %v3877
    %4005 = vmatpush1.msra.mxu0 %v3876
    %4006 = vmatprep.subr.mxu0 %v3881
    %4007 = vmatpush1.msra.mxu0 %v3880
    %4008 = vmatprep.subr.mxu0 %v3885
    %4009 = vmatpush1.msra.mxu0 %v3884
    %4010 = vmatprep.subr.mxu0 %v3889
    %4011 = vmatpush1.msra.mxu0 %v3888
    %4012 = vmatprep.subr.mxu0 %v3893
    %4013 = vmatpush1.msra.mxu0 %v3892
    %4014 = vmatprep.subr.mxu0 %v3897
    %4015 = vmatpush1.msra.mxu0 %v3896
    %4016 = vmatprep.subr.mxu0 %v3901
    %4017 = vmatpush1.msra.mxu0 %v3900
    %4018 = vmatprep.subr.mxu0 %v3905
    %4019 = vmatpush1.msra.mxu0 %v3904
    %4020 = vmatprep.subr.mxu0 %v3909
    %4021 = vmatpush1.msra.mxu0 %v3908
    %4022 = vmatprep.subr.mxu0 %v3913
    %4023 = vmatpush1.msra.mxu0 %v3912
    %4024 = vmatprep.subr.mxu0 %v3917
    %4025 = vmatpush1.msra.mxu0 %v3916
    %4026 = vmatprep.subr.mxu0 %v3921
    %4027 = vmatpush1.msra.mxu0 %v3920
    %4028 = vmatprep.subr.mxu0 %v3925
    %4029 = vmatpush1.msra.mxu0 %v3924
    %4030 = vmatprep.subr.mxu0 %v3929
    %4031 = vmatpush1.msra.mxu0 %v3928
    %4032 = vmatprep.subr.mxu0 %v3933
    %4033 = vmatpush1.msra.mxu0 %v3932
    %4034 = vmatprep.subr.mxu0 %v3937
    %4035 = vmatpush1.msra.mxu0 %v3936
    %4036 = vmatprep.subr.mxu0 %v3941
    %4037 = vmatpush1.msra.mxu0 %v3940
    %4038 = vmatprep.subr.mxu0 %v3945
    %4039 = vmatpush1.msra.mxu0 %v3944
    %4040 = vmatprep.subr.mxu0 %v3949
    %4041 = vmatpush1.msra.mxu0 %v3948
    %4042 = vmatprep.subr.mxu0 %v3953
    %4043 = vmatpush1.msra.mxu0 %v3952
    %4044 = vmatprep.subr.mxu0 %v3957
    %4045 = vmatpush1.msra.mxu0 %v3956
    %4046 = vmatprep.subr.mxu0 %v3961
    %4047 = vmatpush1.msra.mxu0 %v3960
    %4048 = vmatprep.subr.mxu0 %v3965
    %4049 = vmatpush1.msra.mxu0 %v3964
    %4050 = vmatprep.subr.mxu0 %v3969
    %4051 = vmatpush1.msra.mxu0 %v3968
    %4052 = vmatprep.subr.mxu0 %v3973
    %4053 = vmatpush1.msra.mxu0 %v3972
    %4054 = vmatprep.subr.mxu0 %v3977
    %4055 = vmatpush1.msra.mxu0 %v3976
    %4056 = vmatprep.subr.mxu0 %v3981
    %4057 = vmatpush1.msra.mxu0 %v3980
    %4058 = vmatprep.subr.mxu0 %v3985
    %4059 = vmatpush1.msra.mxu0 %v3984
    %4060 = vmatprep.subr.mxu0 %v3989
    %4061 = vmatpush1.msra.mxu0 %v3988
    %4062 = vmatprep.subr.mxu0 %v3993
    %4063 = vmatpush1.msra.mxu0 %v3992
    %4064 = vmatprep.subr.mxu0 %v3997
    %4065 = vmatpush1.msra.mxu0 %v3996
    %4066 = vmatprep.subr.mxu0 %v4001
    %4067 = vmatpush1.msra.mxu0 %v4000
    %4068 = vmatprep.mubr.f32.mxu0 %v3586
    %4069 = vmatmul.mubr.f32.gmra.mrb[0].mxu0 %v3875
    %v4070 = vpop.f32.mrb[0].mxu0
    %v4071 = vadd.f32 %v503, %v4070
    %v4072 = vpop.f32.mrb[0].mxu0
    %v4073 = vadd.f32 %v507, %v4072
    %4074 = vdwg.mxu0
    %4075 = vmatprep.subr.mxu0 %v3879
    %4076 = vmatpush1.msra.mxu0 %v3878
    %4077 = vmatprep.subr.mxu0 %v3883
    %4078 = vmatpush1.msra.mxu0 %v3882
    %4079 = vmatprep.subr.mxu0 %v3887
    %4080 = vmatpush1.msra.mxu0 %v3886
    %4081 = vmatprep.subr.mxu0 %v3891
    %4082 = vmatpush1.msra.mxu0 %v3890
    %4083 = vmatprep.subr.mxu0 %v3895
    %4084 = vmatpush1.msra.mxu0 %v3894
    %4085 = vmatprep.subr.mxu0 %v3899
    %4086 = vmatpush1.msra.mxu0 %v3898
    %4087 = vmatprep.subr.mxu0 %v3903
    %4088 = vmatpush1.msra.mxu0 %v3902
    %4089 = vmatprep.subr.mxu0 %v3907
    %4090 = vmatpush1.msra.mxu0 %v3906
    %4091 = vmatprep.subr.mxu0 %v3911
    %4092 = vmatpush1.msra.mxu0 %v3910
    %4093 = vmatprep.subr.mxu0 %v3915
    %4094 = vmatpush1.msra.mxu0 %v3914
    %4095 = vmatprep.subr.mxu0 %v3919
    %4096 = vmatpush1.msra.mxu0 %v3918
    %4097 = vmatprep.subr.mxu0 %v3923
    %4098 = vmatpush1.msra.mxu0 %v3922
    %4099 = vmatprep.subr.mxu0 %v3927
    %4100 = vmatpush1.msra.mxu0 %v3926
    %4101 = vmatprep.subr.mxu0 %v3931
    %4102 = vmatpush1.msra.mxu0 %v3930
    %4103 = vmatprep.subr.mxu0 %v3935
    %4104 = vmatpush1.msra.mxu0 %v3934
    %4105 = vmatprep.subr.mxu0 %v3939
    %4106 = vmatpush1.msra.mxu0 %v3938
    %4107 = vmatprep.subr.mxu0 %v3943
    %4108 = vmatpush1.msra.mxu0 %v3942
    %4109 = vmatprep.subr.mxu0 %v3947
    %4110 = vmatpush1.msra.mxu0 %v3946
    %4111 = vmatprep.subr.mxu0 %v3951
    %4112 = vmatpush1.msra.mxu0 %v3950
    %4113 = vmatprep.subr.mxu0 %v3955
    %4114 = vmatpush1.msra.mxu0 %v3954
    %4115 = vmatprep.subr.mxu0 %v3959
    %4116 = vmatpush1.msra.mxu0 %v3958
    %4117 = vmatprep.subr.mxu0 %v3963
    %4118 = vmatpush1.msra.mxu0 %v3962
    %4119 = vmatprep.subr.mxu0 %v3967
    %4120 = vmatpush1.msra.mxu0 %v3966
    %4121 = vmatprep.subr.mxu0 %v3971
    %4122 = vmatpush1.msra.mxu0 %v3970
    %4123 = vmatprep.subr.mxu0 %v3975
    %4124 = vmatpush1.msra.mxu0 %v3974
    %4125 = vmatprep.subr.mxu0 %v3979
    %4126 = vmatpush1.msra.mxu0 %v3978
    %4127 = vmatprep.subr.mxu0 %v3983
    %4128 = vmatpush1.msra.mxu0 %v3982
    %4129 = vmatprep.subr.mxu0 %v3987
    %4130 = vmatpush1.msra.mxu0 %v3986
    %4131 = vmatprep.subr.mxu0 %v3991
    %4132 = vmatpush1.msra.mxu0 %v3990
    %4133 = vmatprep.subr.mxu0 %v3995
    %4134 = vmatpush1.msra.mxu0 %v3994
    %4135 = vmatprep.subr.mxu0 %v3999
    %4136 = vmatpush1.msra.mxu0 %v3998
    %4137 = vmatprep.subr.mxu0 %v4003
    %4138 = vmatpush1.msra.mxu0 %v4002
    %4139 = vmatprep.mubr.f32.mxu0 %v3586
    %4140 = vmatmul.mubr.f32.gmra.mrb[0].mxu0 %v3875
    %v4141 = vpop.f32.mrb[0].mxu0
    %v4142 = vadd.f32 %v511, %v4141
    %v4143 = vpop.f32.mrb[0].mxu0
    %v4144 = vadd.f32 %v515, %v4143
    %4145 = vdwg.mxu0
    %v4146 = vmul.f32 %v4071, 0.5
    %v4147 = vtanh.pop %v4146
    %v4148 = vmul.f32 %v4147, 0.5
    %v4149 = vadd.f32 %v4148, 0.5
    %v4150 = vmul.f32 %v4073, 0.5
    %v4151 = vtanh.pop %v4150
    %v4152 = vmul.f32 %v4151, 0.5
    %v4153 = vadd.f32 %v4152, 0.5
    %v4154 = vtanh.pop %v4142
    %v4155 = vmul.f32 %v4144, 0.5
    %v4156 = vtanh.pop %v4155
    %v4157 = vmul.f32 %v4156, 0.5
    %v4158 = vadd.f32 %v4157, 0.5
    %v4159 = vmul.f32 %v4153, %v3584
    %v4160 = vmul.f32 %v4149, %v4154
    %v4161 = vadd.f32 %v4159, %v4160
    %v4162 = vtanh.pop %v4161
    %v4163 = vmul.f32 %v4158, %v4162
    %4164 = vst [vmem:[#allocation7 + $0x6] sm:$0x1] %v4163
    %v4165 = vld [vmem:[#allocation5] sm:$0xff]
    %v4166 = vld [vmem:[#allocation5 + $0x8] sm:$0xff]
    %v4167 = vld [vmem:[#allocation5 + $0x10] sm:$0xff]
    %v4168 = vld [vmem:[#allocation5 + $0x18] sm:$0xff]
    %v4169 = vld [vmem:[#allocation5 + $0x20] sm:$0xff]
    %v4170 = vld [vmem:[#allocation5 + $0x28] sm:$0xff]
    %v4171 = vld [vmem:[#allocation5 + $0x30] sm:$0xff]
    %v4172 = vld [vmem:[#allocation5 + $0x38] sm:$0xff]
    %v4173 = vld [vmem:[#allocation5 + $0x40] sm:$0xff]
    %v4174 = vld [vmem:[#allocation5 + $0x48] sm:$0xff]
    %v4175 = vld [vmem:[#allocation5 + $0x50] sm:$0xff]
    %v4176 = vld [vmem:[#allocation5 + $0x58] sm:$0xff]
    %v4177 = vld [vmem:[#allocation5 + $0x60] sm:$0xff]
    %v4178 = vld [vmem:[#allocation5 + $0x68] sm:$0xff]
    %v4179 = vld [vmem:[#allocation5 + $0x70] sm:$0xff]
    %v4180 = vld [vmem:[#allocation5 + $0x78] sm:$0xff]
    %v4181 = vld [vmem:[#allocation5 + $0x80] sm:$0xff]
    %v4182 = vld [vmem:[#allocation5 + $0x88] sm:$0xff]
    %v4183 = vld [vmem:[#allocation5 + $0x90] sm:$0xff]
    %v4184 = vld [vmem:[#allocation5 + $0x98] sm:$0xff]
    %v4185 = vld [vmem:[#allocation5 + $0xa0] sm:$0xff]
    %v4186 = vld [vmem:[#allocation5 + $0xa8] sm:$0xff]
    %v4187 = vld [vmem:[#allocation5 + $0xb0] sm:$0xff]
    %v4188 = vld [vmem:[#allocation5 + $0xb8] sm:$0xff]
    %v4189 = vld [vmem:[#allocation5 + $0xc0] sm:$0xff]
    %v4190 = vld [vmem:[#allocation5 + $0xc8] sm:$0xff]
    %v4191 = vld [vmem:[#allocation5 + $0xd0] sm:$0xff]
    %v4192 = vld [vmem:[#allocation5 + $0xd8] sm:$0xff]
    %v4193 = vld [vmem:[#allocation5 + $0xe0] sm:$0xff]
    %v4194 = vld [vmem:[#allocation5 + $0xe8] sm:$0xff]
    %v4195 = vld [vmem:[#allocation5 + $0xf0] sm:$0xff]
    %v4196 = vld [vmem:[#allocation5 + $0xf8] sm:$0xff]
    %v4197 = vld [vmem:[#allocation5 + $0x100] sm:$0xff]
    %v4198 = vld [vmem:[#allocation5 + $0x108] sm:$0xff]
    %v4199 = vld [vmem:[#allocation5 + $0x110] sm:$0xff]
    %v4200 = vld [vmem:[#allocation5 + $0x118] sm:$0xff]
    %v4201 = vld [vmem:[#allocation5 + $0x120] sm:$0xff]
    %v4202 = vld [vmem:[#allocation5 + $0x128] sm:$0xff]
    %v4203 = vld [vmem:[#allocation5 + $0x130] sm:$0xff]
    %v4204 = vld [vmem:[#allocation5 + $0x138] sm:$0xff]
    %v4205 = vld [vmem:[#allocation5 + $0x140] sm:$0xff]
    %v4206 = vld [vmem:[#allocation5 + $0x148] sm:$0xff]
    %v4207 = vld [vmem:[#allocation5 + $0x150] sm:$0xff]
    %v4208 = vld [vmem:[#allocation5 + $0x158] sm:$0xff]
    %v4209 = vld [vmem:[#allocation5 + $0x160] sm:$0xff]
    %v4210 = vld [vmem:[#allocation5 + $0x168] sm:$0xff]
    %v4211 = vld [vmem:[#allocation5 + $0x170] sm:$0xff]
    %v4212 = vld [vmem:[#allocation5 + $0x178] sm:$0xff]
    %v4213 = vld [vmem:[#allocation5 + $0x180] sm:$0xff]
    %v4214 = vld [vmem:[#allocation5 + $0x188] sm:$0xff]
    %v4215 = vld [vmem:[#allocation5 + $0x190] sm:$0xff]
    %v4216 = vld [vmem:[#allocation5 + $0x198] sm:$0xff]
    %v4217 = vld [vmem:[#allocation5 + $0x1a0] sm:$0xff]
    %v4218 = vld [vmem:[#allocation5 + $0x1a8] sm:$0xff]
    %v4219 = vld [vmem:[#allocation5 + $0x1b0] sm:$0xff]
    %v4220 = vld [vmem:[#allocation5 + $0x1b8] sm:$0xff]
    %v4221 = vld [vmem:[#allocation5 + $0x1c0] sm:$0xff]
    %v4222 = vld [vmem:[#allocation5 + $0x1c8] sm:$0xff]
    %v4223 = vld [vmem:[#allocation5 + $0x1d0] sm:$0xff]
    %v4224 = vld [vmem:[#allocation5 + $0x1d8] sm:$0xff]
    %v4225 = vld [vmem:[#allocation5 + $0x1e0] sm:$0xff]
    %v4226 = vld [vmem:[#allocation5 + $0x1e8] sm:$0xff]
    %v4227 = vld [vmem:[#allocation5 + $0x1f0] sm:$0xff]
    %v4228 = vld [vmem:[#allocation5 + $0x1f8] sm:$0xff]
    %v4229 = vld [vmem:[#allocation5 + $0x200] sm:$0xff]
    %v4230 = vld [vmem:[#allocation5 + $0x208] sm:$0xff]
    %v4231 = vld [vmem:[#allocation5 + $0x210] sm:$0xff]
    %v4232 = vld [vmem:[#allocation5 + $0x218] sm:$0xff]
    %v4233 = vld [vmem:[#allocation5 + $0x220] sm:$0xff]
    %v4234 = vld [vmem:[#allocation5 + $0x228] sm:$0xff]
    %v4235 = vld [vmem:[#allocation5 + $0x230] sm:$0xff]
    %v4236 = vld [vmem:[#allocation5 + $0x238] sm:$0xff]
    %v4237 = vld [vmem:[#allocation5 + $0x240] sm:$0xff]
    %v4238 = vld [vmem:[#allocation5 + $0x248] sm:$0xff]
    %v4239 = vld [vmem:[#allocation5 + $0x250] sm:$0xff]
    %v4240 = vld [vmem:[#allocation5 + $0x258] sm:$0xff]
    %v4241 = vld [vmem:[#allocation5 + $0x260] sm:$0xff]
    %v4242 = vld [vmem:[#allocation5 + $0x268] sm:$0xff]
    %v4243 = vld [vmem:[#allocation5 + $0x270] sm:$0xff]
    %v4244 = vld [vmem:[#allocation5 + $0x278] sm:$0xff]
    %v4245 = vld [vmem:[#allocation5 + $0x280] sm:$0xff]
    %v4246 = vld [vmem:[#allocation5 + $0x288] sm:$0xff]
    %v4247 = vld [vmem:[#allocation5 + $0x290] sm:$0xff]
    %v4248 = vld [vmem:[#allocation5 + $0x298] sm:$0xff]
    %v4249 = vld [vmem:[#allocation5 + $0x2a0] sm:$0xff]
    %v4250 = vld [vmem:[#allocation5 + $0x2a8] sm:$0xff]
    %v4251 = vld [vmem:[#allocation5 + $0x2b0] sm:$0xff]
    %v4252 = vld [vmem:[#allocation5 + $0x2b8] sm:$0xff]
    %v4253 = vld [vmem:[#allocation5 + $0x2c0] sm:$0xff]
    %v4254 = vld [vmem:[#allocation5 + $0x2c8] sm:$0xff]
    %v4255 = vld [vmem:[#allocation5 + $0x2d0] sm:$0xff]
    %v4256 = vld [vmem:[#allocation5 + $0x2d8] sm:$0xff]
    %v4257 = vld [vmem:[#allocation5 + $0x2e0] sm:$0xff]
    %v4258 = vld [vmem:[#allocation5 + $0x2e8] sm:$0xff]
    %v4259 = vld [vmem:[#allocation5 + $0x2f0] sm:$0xff]
    %v4260 = vld [vmem:[#allocation5 + $0x2f8] sm:$0xff]
    %v4261 = vld [vmem:[#allocation5 + $0x300] sm:$0xff]
    %v4262 = vld [vmem:[#allocation5 + $0x308] sm:$0xff]
    %v4263 = vld [vmem:[#allocation5 + $0x310] sm:$0xff]
    %v4264 = vld [vmem:[#allocation5 + $0x318] sm:$0xff]
    %v4265 = vld [vmem:[#allocation5 + $0x320] sm:$0xff]
    %v4266 = vld [vmem:[#allocation5 + $0x328] sm:$0xff]
    %v4267 = vld [vmem:[#allocation5 + $0x330] sm:$0xff]
    %v4268 = vld [vmem:[#allocation5 + $0x338] sm:$0xff]
    %v4269 = vld [vmem:[#allocation5 + $0x340] sm:$0xff]
    %v4270 = vld [vmem:[#allocation5 + $0x348] sm:$0xff]
    %v4271 = vld [vmem:[#allocation5 + $0x350] sm:$0xff]
    %v4272 = vld [vmem:[#allocation5 + $0x358] sm:$0xff]
    %v4273 = vld [vmem:[#allocation5 + $0x360] sm:$0xff]
    %v4274 = vld [vmem:[#allocation5 + $0x368] sm:$0xff]
    %v4275 = vld [vmem:[#allocation5 + $0x370] sm:$0xff]
    %v4276 = vld [vmem:[#allocation5 + $0x378] sm:$0xff]
    %v4277 = vld [vmem:[#allocation5 + $0x380] sm:$0xff]
    %v4278 = vld [vmem:[#allocation5 + $0x388] sm:$0xff]
    %v4279 = vld [vmem:[#allocation5 + $0x390] sm:$0xff]
    %v4280 = vld [vmem:[#allocation5 + $0x398] sm:$0xff]
    %v4281 = vld [vmem:[#allocation5 + $0x3a0] sm:$0xff]
    %v4282 = vld [vmem:[#allocation5 + $0x3a8] sm:$0xff]
    %v4283 = vld [vmem:[#allocation5 + $0x3b0] sm:$0xff]
    %v4284 = vld [vmem:[#allocation5 + $0x3b8] sm:$0xff]
    %v4285 = vld [vmem:[#allocation5 + $0x3c0] sm:$0xff]
    %v4286 = vld [vmem:[#allocation5 + $0x3c8] sm:$0xff]
    %v4287 = vld [vmem:[#allocation5 + $0x3d0] sm:$0xff]
    %v4288 = vld [vmem:[#allocation5 + $0x3d8] sm:$0xff]
    %v4289 = vld [vmem:[#allocation5 + $0x3e0] sm:$0xff]
    %v4290 = vld [vmem:[#allocation5 + $0x3e8] sm:$0xff]
    %v4291 = vld [vmem:[#allocation5 + $0x3f0] sm:$0xff]
    %v4292 = vld [vmem:[#allocation5 + $0x3f8] sm:$0xff]
    %4293 = vmatprep.subr.mxu0 %v4166
    %4294 = vmatpush1.msra.mxu0 %v4165
    %4295 = vmatprep.subr.mxu0 %v4170
    %4296 = vmatpush1.msra.mxu0 %v4169
    %4297 = vmatprep.subr.mxu0 %v4174
    %4298 = vmatpush1.msra.mxu0 %v4173
    %4299 = vmatprep.subr.mxu0 %v4178
    %4300 = vmatpush1.msra.mxu0 %v4177
    %4301 = vmatprep.subr.mxu0 %v4182
    %4302 = vmatpush1.msra.mxu0 %v4181
    %4303 = vmatprep.subr.mxu0 %v4186
    %4304 = vmatpush1.msra.mxu0 %v4185
    %4305 = vmatprep.subr.mxu0 %v4190
    %4306 = vmatpush1.msra.mxu0 %v4189
    %4307 = vmatprep.subr.mxu0 %v4194
    %4308 = vmatpush1.msra.mxu0 %v4193
    %4309 = vmatprep.subr.mxu0 %v4198
    %4310 = vmatpush1.msra.mxu0 %v4197
    %4311 = vmatprep.subr.mxu0 %v4202
    %4312 = vmatpush1.msra.mxu0 %v4201
    %4313 = vmatprep.subr.mxu0 %v4206
    %4314 = vmatpush1.msra.mxu0 %v4205
    %4315 = vmatprep.subr.mxu0 %v4210
    %4316 = vmatpush1.msra.mxu0 %v4209
    %4317 = vmatprep.subr.mxu0 %v4214
    %4318 = vmatpush1.msra.mxu0 %v4213
    %4319 = vmatprep.subr.mxu0 %v4218
    %4320 = vmatpush1.msra.mxu0 %v4217
    %4321 = vmatprep.subr.mxu0 %v4222
    %4322 = vmatpush1.msra.mxu0 %v4221
    %4323 = vmatprep.subr.mxu0 %v4226
    %4324 = vmatpush1.msra.mxu0 %v4225
    %4325 = vmatprep.subr.mxu0 %v4230
    %4326 = vmatpush1.msra.mxu0 %v4229
    %4327 = vmatprep.subr.mxu0 %v4234
    %4328 = vmatpush1.msra.mxu0 %v4233
    %4329 = vmatprep.subr.mxu0 %v4238
    %4330 = vmatpush1.msra.mxu0 %v4237
    %4331 = vmatprep.subr.mxu0 %v4242
    %4332 = vmatpush1.msra.mxu0 %v4241
    %4333 = vmatprep.subr.mxu0 %v4246
    %4334 = vmatpush1.msra.mxu0 %v4245
    %4335 = vmatprep.subr.mxu0 %v4250
    %4336 = vmatpush1.msra.mxu0 %v4249
    %4337 = vmatprep.subr.mxu0 %v4254
    %4338 = vmatpush1.msra.mxu0 %v4253
    %4339 = vmatprep.subr.mxu0 %v4258
    %4340 = vmatpush1.msra.mxu0 %v4257
    %4341 = vmatprep.subr.mxu0 %v4262
    %4342 = vmatpush1.msra.mxu0 %v4261
    %4343 = vmatprep.subr.mxu0 %v4266
    %4344 = vmatpush1.msra.mxu0 %v4265
    %4345 = vmatprep.subr.mxu0 %v4270
    %4346 = vmatpush1.msra.mxu0 %v4269
    %4347 = vmatprep.subr.mxu0 %v4274
    %4348 = vmatpush1.msra.mxu0 %v4273
    %4349 = vmatprep.subr.mxu0 %v4278
    %4350 = vmatpush1.msra.mxu0 %v4277
    %4351 = vmatprep.subr.mxu0 %v4282
    %4352 = vmatpush1.msra.mxu0 %v4281
    %4353 = vmatprep.subr.mxu0 %v4286
    %4354 = vmatpush1.msra.mxu0 %v4285
    %4355 = vmatprep.subr.mxu0 %v4290
    %4356 = vmatpush1.msra.mxu0 %v4289
    %4357 = vmatprep.mubr.f32.mxu0 %v3875
    %4358 = vmatmul.mubr.f32.gmra.mrb[0].mxu0 %v4163
    %v4359 = vpop.f32.mrb[0].mxu0
    %v4360 = vadd.f32 %v814, %v4359
    %v4361 = vpop.f32.mrb[0].mxu0
    %v4362 = vadd.f32 %v818, %v4361
    %4363 = vdwg.mxu0
    %4364 = vmatprep.subr.mxu0 %v4168
    %4365 = vmatpush1.msra.mxu0 %v4167
    %4366 = vmatprep.subr.mxu0 %v4172
    %4367 = vmatpush1.msra.mxu0 %v4171
    %4368 = vmatprep.subr.mxu0 %v4176
    %4369 = vmatpush1.msra.mxu0 %v4175
    %4370 = vmatprep.subr.mxu0 %v4180
    %4371 = vmatpush1.msra.mxu0 %v4179
    %4372 = vmatprep.subr.mxu0 %v4184
    %4373 = vmatpush1.msra.mxu0 %v4183
    %4374 = vmatprep.subr.mxu0 %v4188
    %4375 = vmatpush1.msra.mxu0 %v4187
    %4376 = vmatprep.subr.mxu0 %v4192
    %4377 = vmatpush1.msra.mxu0 %v4191
    %4378 = vmatprep.subr.mxu0 %v4196
    %4379 = vmatpush1.msra.mxu0 %v4195
    %4380 = vmatprep.subr.mxu0 %v4200
    %4381 = vmatpush1.msra.mxu0 %v4199
    %4382 = vmatprep.subr.mxu0 %v4204
    %4383 = vmatpush1.msra.mxu0 %v4203
    %4384 = vmatprep.subr.mxu0 %v4208
    %4385 = vmatpush1.msra.mxu0 %v4207
    %4386 = vmatprep.subr.mxu0 %v4212
    %4387 = vmatpush1.msra.mxu0 %v4211
    %4388 = vmatprep.subr.mxu0 %v4216
    %4389 = vmatpush1.msra.mxu0 %v4215
    %4390 = vmatprep.subr.mxu0 %v4220
    %4391 = vmatpush1.msra.mxu0 %v4219
    %4392 = vmatprep.subr.mxu0 %v4224
    %4393 = vmatpush1.msra.mxu0 %v4223
    %4394 = vmatprep.subr.mxu0 %v4228
    %4395 = vmatpush1.msra.mxu0 %v4227
    %4396 = vmatprep.subr.mxu0 %v4232
    %4397 = vmatpush1.msra.mxu0 %v4231
    %4398 = vmatprep.subr.mxu0 %v4236
    %4399 = vmatpush1.msra.mxu0 %v4235
    %4400 = vmatprep.subr.mxu0 %v4240
    %4401 = vmatpush1.msra.mxu0 %v4239
    %4402 = vmatprep.subr.mxu0 %v4244
    %4403 = vmatpush1.msra.mxu0 %v4243
    %4404 = vmatprep.subr.mxu0 %v4248
    %4405 = vmatpush1.msra.mxu0 %v4247
    %4406 = vmatprep.subr.mxu0 %v4252
    %4407 = vmatpush1.msra.mxu0 %v4251
    %4408 = vmatprep.subr.mxu0 %v4256
    %4409 = vmatpush1.msra.mxu0 %v4255
    %4410 = vmatprep.subr.mxu0 %v4260
    %4411 = vmatpush1.msra.mxu0 %v4259
    %4412 = vmatprep.subr.mxu0 %v4264
    %4413 = vmatpush1.msra.mxu0 %v4263
    %4414 = vmatprep.subr.mxu0 %v4268
    %4415 = vmatpush1.msra.mxu0 %v4267
    %4416 = vmatprep.subr.mxu0 %v4272
    %4417 = vmatpush1.msra.mxu0 %v4271
    %4418 = vmatprep.subr.mxu0 %v4276
    %4419 = vmatpush1.msra.mxu0 %v4275
    %4420 = vmatprep.subr.mxu0 %v4280
    %4421 = vmatpush1.msra.mxu0 %v4279
    %4422 = vmatprep.subr.mxu0 %v4284
    %4423 = vmatpush1.msra.mxu0 %v4283
    %4424 = vmatprep.subr.mxu0 %v4288
    %4425 = vmatpush1.msra.mxu0 %v4287
    %4426 = vmatprep.subr.mxu0 %v4292
    %4427 = vmatpush1.msra.mxu0 %v4291
    %4428 = vmatprep.mubr.f32.mxu0 %v3875
    %4429 = vmatmul.mubr.f32.gmra.mrb[0].mxu0 %v4163
    %v4430 = vpop.f32.mrb[0].mxu0
    %v4431 = vadd.f32 %v822, %v4430
    %v4432 = vpop.f32.mrb[0].mxu0
    %v4433 = vadd.f32 %v826, %v4432
    %4434 = vdwg.mxu0
    %v4435 = vmul.f32 %v4360, 0.5
    %v4436 = vtanh.pop %v4435
    %v4437 = vmul.f32 %v4436, 0.5
    %v4438 = vadd.f32 %v4437, 0.5
    %v4439 = vmul.f32 %v4362, 0.5
    %v4440 = vtanh.pop %v4439
    %v4441 = vmul.f32 %v4440, 0.5
    %v4442 = vadd.f32 %v4441, 0.5
    %v4443 = vtanh.pop %v4431
    %v4444 = vmul.f32 %v4433, 0.5
    %v4445 = vtanh.pop %v4444
    %v4446 = vmul.f32 %v4445, 0.5
    %v4447 = vadd.f32 %v4446, 0.5
    %v4448 = vmul.f32 %v4442, %v3873
    %v4449 = vmul.f32 %v4438, %v4443
    %v4450 = vadd.f32 %v4448, %v4449
    %v4451 = vtanh.pop %v4450
    %v4452 = vmul.f32 %v4447, %v4451
    %v4453 = vld [vmem:[%s370] sm:$0xff]
    %v4454 = vld [vmem:[%s370 + $0x8] sm:$0xff]
    %v4455 = vld [vmem:[%s370 + $0x10] sm:$0xff]
    %v4456 = vld [vmem:[%s370 + $0x18] sm:$0xff]
    %v4457 = vld [vmem:[%s370 + $0x20] sm:$0xff]
    %v4458 = vld [vmem:[%s370 + $0x28] sm:$0xff]
    %v4459 = vld [vmem:[%s370 + $0x30] sm:$0xff]
    %v4460 = vld [vmem:[%s370 + $0x38] sm:$0xff]
    %v4461 = vld [vmem:[%s370 + $0x40] sm:$0xff]
    %v4462 = vld [vmem:[%s370 + $0x48] sm:$0xff]
    %v4463 = vld [vmem:[%s370 + $0x50] sm:$0xff]
    %v4464 = vld [vmem:[%s370 + $0x58] sm:$0xff]
    %v4465 = vld [vmem:[%s370 + $0x60] sm:$0xff]
    %v4466 = vld [vmem:[%s370 + $0x68] sm:$0xff]
    %v4467 = vld [vmem:[%s370 + $0x70] sm:$0xff]
    %v4468 = vld [vmem:[%s370 + $0x78] sm:$0xff]
    %v4469 = vld [vmem:[%s370 + $0x80] sm:$0xff]
    %v4470 = vld [vmem:[%s370 + $0x88] sm:$0xff]
    %v4471 = vld [vmem:[%s370 + $0x90] sm:$0xff]
    %v4472 = vld [vmem:[%s370 + $0x98] sm:$0xff]
    %v4473 = vld [vmem:[%s370 + $0xa0] sm:$0xff]
    %v4474 = vld [vmem:[%s370 + $0xa8] sm:$0xff]
    %v4475 = vld [vmem:[%s370 + $0xb0] sm:$0xff]
    %v4476 = vld [vmem:[%s370 + $0xb8] sm:$0xff]
    %v4477 = vld [vmem:[%s370 + $0xc0] sm:$0xff]
    %v4478 = vld [vmem:[%s370 + $0xc8] sm:$0xff]
    %v4479 = vld [vmem:[%s370 + $0xd0] sm:$0xff]
    %v4480 = vld [vmem:[%s370 + $0xd8] sm:$0xff]
    %v4481 = vld [vmem:[%s370 + $0xe0] sm:$0xff]
    %v4482 = vld [vmem:[%s370 + $0xe8] sm:$0xff]
    %v4483 = vld [vmem:[%s370 + $0xf0] sm:$0xff]
    %v4484 = vld [vmem:[%s370 + $0xf8] sm:$0xff]
    %v4485 = vld [vmem:[%s370 + $0x100] sm:$0xff]
    %v4486 = vld [vmem:[%s370 + $0x108] sm:$0xff]
    %v4487 = vld [vmem:[%s370 + $0x110] sm:$0xff]
    %v4488 = vld [vmem:[%s370 + $0x118] sm:$0xff]
    %v4489 = vld [vmem:[%s370 + $0x120] sm:$0xff]
    %v4490 = vld [vmem:[%s370 + $0x128] sm:$0xff]
    %v4491 = vld [vmem:[%s370 + $0x130] sm:$0xff]
    %v4492 = vld [vmem:[%s370 + $0x138] sm:$0xff]
    %v4493 = vld [vmem:[%s370 + $0x140] sm:$0xff]
    %v4494 = vld [vmem:[%s370 + $0x148] sm:$0xff]
    %v4495 = vld [vmem:[%s370 + $0x150] sm:$0xff]
    %v4496 = vld [vmem:[%s370 + $0x158] sm:$0xff]
    %v4497 = vld [vmem:[%s370 + $0x160] sm:$0xff]
    %v4498 = vld [vmem:[%s370 + $0x168] sm:$0xff]
    %v4499 = vld [vmem:[%s370 + $0x170] sm:$0xff]
    %v4500 = vld [vmem:[%s370 + $0x178] sm:$0xff]
    %v4501 = vld [vmem:[%s370 + $0x180] sm:$0xff]
    %v4502 = vld [vmem:[%s370 + $0x188] sm:$0xff]
    %v4503 = vld [vmem:[%s370 + $0x190] sm:$0xff]
    %v4504 = vld [vmem:[%s370 + $0x198] sm:$0xff]
    %v4505 = vld [vmem:[%s370 + $0x1a0] sm:$0xff]
    %v4506 = vld [vmem:[%s370 + $0x1a8] sm:$0xff]
    %v4507 = vld [vmem:[%s370 + $0x1b0] sm:$0xff]
    %v4508 = vld [vmem:[%s370 + $0x1b8] sm:$0xff]
    %v4509 = vld [vmem:[%s370 + $0x1c0] sm:$0xff]
    %v4510 = vld [vmem:[%s370 + $0x1c8] sm:$0xff]
    %v4511 = vld [vmem:[%s370 + $0x1d0] sm:$0xff]
    %v4512 = vld [vmem:[%s370 + $0x1d8] sm:$0xff]
    %v4513 = vld [vmem:[%s370 + $0x1e0] sm:$0xff]
    %v4514 = vld [vmem:[%s370 + $0x1e8] sm:$0xff]
    %v4515 = vld [vmem:[%s370 + $0x1f0] sm:$0xff]
    %v4516 = vld [vmem:[%s370 + $0x1f8] sm:$0xff]
    %v4517 = vld [vmem:[%s370 + $0x200] sm:$0xff]
    %v4518 = vld [vmem:[%s370 + $0x208] sm:$0xff]
    %v4519 = vld [vmem:[%s370 + $0x210] sm:$0xff]
    %v4520 = vld [vmem:[%s370 + $0x218] sm:$0xff]
    %v4521 = vld [vmem:[%s370 + $0x220] sm:$0xff]
    %v4522 = vld [vmem:[%s370 + $0x228] sm:$0xff]
    %v4523 = vld [vmem:[%s370 + $0x230] sm:$0xff]
    %v4524 = vld [vmem:[%s370 + $0x238] sm:$0xff]
    %v4525 = vld [vmem:[%s370 + $0x240] sm:$0xff]
    %v4526 = vld [vmem:[%s370 + $0x248] sm:$0xff]
    %v4527 = vld [vmem:[%s370 + $0x250] sm:$0xff]
    %v4528 = vld [vmem:[%s370 + $0x258] sm:$0xff]
    %v4529 = vld [vmem:[%s370 + $0x260] sm:$0xff]
    %v4530 = vld [vmem:[%s370 + $0x268] sm:$0xff]
    %v4531 = vld [vmem:[%s370 + $0x270] sm:$0xff]
    %v4532 = vld [vmem:[%s370 + $0x278] sm:$0xff]
    %v4533 = vld [vmem:[%s370 + $0x280] sm:$0xff]
    %v4534 = vld [vmem:[%s370 + $0x288] sm:$0xff]
    %v4535 = vld [vmem:[%s370 + $0x290] sm:$0xff]
    %v4536 = vld [vmem:[%s370 + $0x298] sm:$0xff]
    %v4537 = vld [vmem:[%s370 + $0x2a0] sm:$0xff]
    %v4538 = vld [vmem:[%s370 + $0x2a8] sm:$0xff]
    %v4539 = vld [vmem:[%s370 + $0x2b0] sm:$0xff]
    %v4540 = vld [vmem:[%s370 + $0x2b8] sm:$0xff]
    %v4541 = vld [vmem:[%s370 + $0x2c0] sm:$0xff]
    %v4542 = vld [vmem:[%s370 + $0x2c8] sm:$0xff]
    %v4543 = vld [vmem:[%s370 + $0x2d0] sm:$0xff]
    %v4544 = vld [vmem:[%s370 + $0x2d8] sm:$0xff]
    %v4545 = vld [vmem:[%s370 + $0x2e0] sm:$0xff]
    %v4546 = vld [vmem:[%s370 + $0x2e8] sm:$0xff]
    %v4547 = vld [vmem:[%s370 + $0x2f0] sm:$0xff]
    %v4548 = vld [vmem:[%s370 + $0x2f8] sm:$0xff]
    %v4549 = vld [vmem:[%s370 + $0x300] sm:$0xff]
    %v4550 = vld [vmem:[%s370 + $0x308] sm:$0xff]
    %v4551 = vld [vmem:[%s370 + $0x310] sm:$0xff]
    %v4552 = vld [vmem:[%s370 + $0x318] sm:$0xff]
    %v4553 = vld [vmem:[%s370 + $0x320] sm:$0xff]
    %v4554 = vld [vmem:[%s370 + $0x328] sm:$0xff]
    %v4555 = vld [vmem:[%s370 + $0x330] sm:$0xff]
    %v4556 = vld [vmem:[%s370 + $0x338] sm:$0xff]
    %v4557 = vld [vmem:[%s370 + $0x340] sm:$0xff]
    %v4558 = vld [vmem:[%s370 + $0x348] sm:$0xff]
    %v4559 = vld [vmem:[%s370 + $0x350] sm:$0xff]
    %v4560 = vld [vmem:[%s370 + $0x358] sm:$0xff]
    %v4561 = vld [vmem:[%s370 + $0x360] sm:$0xff]
    %v4562 = vld [vmem:[%s370 + $0x368] sm:$0xff]
    %v4563 = vld [vmem:[%s370 + $0x370] sm:$0xff]
    %v4564 = vld [vmem:[%s370 + $0x378] sm:$0xff]
    %v4565 = vld [vmem:[%s370 + $0x380] sm:$0xff]
    %v4566 = vld [vmem:[%s370 + $0x388] sm:$0xff]
    %v4567 = vld [vmem:[%s370 + $0x390] sm:$0xff]
    %v4568 = vld [vmem:[%s370 + $0x398] sm:$0xff]
    %v4569 = vld [vmem:[%s370 + $0x3a0] sm:$0xff]
    %v4570 = vld [vmem:[%s370 + $0x3a8] sm:$0xff]
    %v4571 = vld [vmem:[%s370 + $0x3b0] sm:$0xff]
    %v4572 = vld [vmem:[%s370 + $0x3b8] sm:$0xff]
    %v4573 = vld [vmem:[%s370 + $0x3c0] sm:$0xff]
    %v4574 = vld [vmem:[%s370 + $0x3c8] sm:$0xff]
    %v4575 = vld [vmem:[%s370 + $0x3d0] sm:$0xff]
    %v4576 = vld [vmem:[%s370 + $0x3d8] sm:$0xff]
    %v4577 = vld [vmem:[%s370 + $0x3e0] sm:$0xff]
    %v4578 = vld [vmem:[%s370 + $0x3e8] sm:$0xff]
    %v4579 = vld [vmem:[%s370 + $0x3f0] sm:$0xff]
    %v4580 = vld [vmem:[%s370 + $0x3f8] sm:$0xff]
    %4581 = vmatprep.subr.mxu0 %v4454
    %4582 = vmatpush1.msra.mxu0 %v4453
    %4583 = vmatprep.subr.mxu0 %v4458
    %4584 = vmatpush1.msra.mxu0 %v4457
    %4585 = vmatprep.subr.mxu0 %v4462
    %4586 = vmatpush1.msra.mxu0 %v4461
    %4587 = vmatprep.subr.mxu0 %v4466
    %4588 = vmatpush1.msra.mxu0 %v4465
    %4589 = vmatprep.subr.mxu0 %v4470
    %4590 = vmatpush1.msra.mxu0 %v4469
    %4591 = vmatprep.subr.mxu0 %v4474
    %4592 = vmatpush1.msra.mxu0 %v4473
    %4593 = vmatprep.subr.mxu0 %v4478
    %4594 = vmatpush1.msra.mxu0 %v4477
    %4595 = vmatprep.subr.mxu0 %v4482
    %4596 = vmatpush1.msra.mxu0 %v4481
    %4597 = vmatprep.subr.mxu0 %v4486
    %4598 = vmatpush1.msra.mxu0 %v4485
    %4599 = vmatprep.subr.mxu0 %v4490
    %4600 = vmatpush1.msra.mxu0 %v4489
    %4601 = vmatprep.subr.mxu0 %v4494
    %4602 = vmatpush1.msra.mxu0 %v4493
    %4603 = vmatprep.subr.mxu0 %v4498
    %4604 = vmatpush1.msra.mxu0 %v4497
    %4605 = vmatprep.subr.mxu0 %v4502
    %4606 = vmatpush1.msra.mxu0 %v4501
    %4607 = vmatprep.subr.mxu0 %v4506
    %4608 = vmatpush1.msra.mxu0 %v4505
    %4609 = vmatprep.subr.mxu0 %v4510
    %4610 = vmatpush1.msra.mxu0 %v4509
    %4611 = vmatprep.subr.mxu0 %v4514
    %4612 = vmatpush1.msra.mxu0 %v4513
    %4613 = vmatprep.subr.mxu0 %v4518
    %4614 = vmatpush1.msra.mxu0 %v4517
    %4615 = vmatprep.subr.mxu0 %v4522
    %4616 = vmatpush1.msra.mxu0 %v4521
    %4617 = vmatprep.subr.mxu0 %v4526
    %4618 = vmatpush1.msra.mxu0 %v4525
    %4619 = vmatprep.subr.mxu0 %v4530
    %4620 = vmatpush1.msra.mxu0 %v4529
    %4621 = vmatprep.subr.mxu0 %v4534
    %4622 = vmatpush1.msra.mxu0 %v4533
    %4623 = vmatprep.subr.mxu0 %v4538
    %4624 = vmatpush1.msra.mxu0 %v4537
    %4625 = vmatprep.subr.mxu0 %v4542
    %4626 = vmatpush1.msra.mxu0 %v4541
    %4627 = vmatprep.subr.mxu0 %v4546
    %4628 = vmatpush1.msra.mxu0 %v4545
    %4629 = vmatprep.subr.mxu0 %v4550
    %4630 = vmatpush1.msra.mxu0 %v4549
    %4631 = vmatprep.subr.mxu0 %v4554
    %4632 = vmatpush1.msra.mxu0 %v4553
    %4633 = vmatprep.subr.mxu0 %v4558
    %4634 = vmatpush1.msra.mxu0 %v4557
    %4635 = vmatprep.subr.mxu0 %v4562
    %4636 = vmatpush1.msra.mxu0 %v4561
    %4637 = vmatprep.subr.mxu0 %v4566
    %4638 = vmatpush1.msra.mxu0 %v4565
    %4639 = vmatprep.subr.mxu0 %v4570
    %4640 = vmatpush1.msra.mxu0 %v4569
    %4641 = vmatprep.subr.mxu0 %v4574
    %4642 = vmatpush1.msra.mxu0 %v4573
    %4643 = vmatprep.subr.mxu0 %v4578
    %4644 = vmatpush1.msra.mxu0 %v4577
    %4645 = vmatprep.mubr.f32.mxu0 %v4163
    %4646 = vmatmul.mubr.f32.gmra.mrb[0].mxu0 %v4452
    %v4647 = vpop.f32.mrb[0].mxu0
    %v4648 = vadd.f32 %v503, %v4647
    %v4649 = vpop.f32.mrb[0].mxu0
    %v4650 = vadd.f32 %v507, %v4649
    %4651 = vdwg.mxu0
    %4652 = vmatprep.subr.mxu0 %v4456
    %4653 = vmatpush1.msra.mxu0 %v4455
    %4654 = vmatprep.subr.mxu0 %v4460
    %4655 = vmatpush1.msra.mxu0 %v4459
    %4656 = vmatprep.subr.mxu0 %v4464
    %4657 = vmatpush1.msra.mxu0 %v4463
    %4658 = vmatprep.subr.mxu0 %v4468
    %4659 = vmatpush1.msra.mxu0 %v4467
    %4660 = vmatprep.subr.mxu0 %v4472
    %4661 = vmatpush1.msra.mxu0 %v4471
    %4662 = vmatprep.subr.mxu0 %v4476
    %4663 = vmatpush1.msra.mxu0 %v4475
    %4664 = vmatprep.subr.mxu0 %v4480
    %4665 = vmatpush1.msra.mxu0 %v4479
    %4666 = vmatprep.subr.mxu0 %v4484
    %4667 = vmatpush1.msra.mxu0 %v4483
    %4668 = vmatprep.subr.mxu0 %v4488
    %4669 = vmatpush1.msra.mxu0 %v4487
    %4670 = vmatprep.subr.mxu0 %v4492
    %4671 = vmatpush1.msra.mxu0 %v4491
    %4672 = vmatprep.subr.mxu0 %v4496
    %4673 = vmatpush1.msra.mxu0 %v4495
    %4674 = vmatprep.subr.mxu0 %v4500
    %4675 = vmatpush1.msra.mxu0 %v4499
    %4676 = vmatprep.subr.mxu0 %v4504
    %4677 = vmatpush1.msra.mxu0 %v4503
    %4678 = vmatprep.subr.mxu0 %v4508
    %4679 = vmatpush1.msra.mxu0 %v4507
    %4680 = vmatprep.subr.mxu0 %v4512
    %4681 = vmatpush1.msra.mxu0 %v4511
    %4682 = vmatprep.subr.mxu0 %v4516
    %4683 = vmatpush1.msra.mxu0 %v4515
    %4684 = vmatprep.subr.mxu0 %v4520
    %4685 = vmatpush1.msra.mxu0 %v4519
    %4686 = vmatprep.subr.mxu0 %v4524
    %4687 = vmatpush1.msra.mxu0 %v4523
    %4688 = vmatprep.subr.mxu0 %v4528
    %4689 = vmatpush1.msra.mxu0 %v4527
    %4690 = vmatprep.subr.mxu0 %v4532
    %4691 = vmatpush1.msra.mxu0 %v4531
    %4692 = vmatprep.subr.mxu0 %v4536
    %4693 = vmatpush1.msra.mxu0 %v4535
    %4694 = vmatprep.subr.mxu0 %v4540
    %4695 = vmatpush1.msra.mxu0 %v4539
    %4696 = vmatprep.subr.mxu0 %v4544
    %4697 = vmatpush1.msra.mxu0 %v4543
    %4698 = vmatprep.subr.mxu0 %v4548
    %4699 = vmatpush1.msra.mxu0 %v4547
    %4700 = vmatprep.subr.mxu0 %v4552
    %4701 = vmatpush1.msra.mxu0 %v4551
    %4702 = vmatprep.subr.mxu0 %v4556
    %4703 = vmatpush1.msra.mxu0 %v4555
    %4704 = vmatprep.subr.mxu0 %v4560
    %4705 = vmatpush1.msra.mxu0 %v4559
    %4706 = vmatprep.subr.mxu0 %v4564
    %4707 = vmatpush1.msra.mxu0 %v4563
    %4708 = vmatprep.subr.mxu0 %v4568
    %4709 = vmatpush1.msra.mxu0 %v4567
    %4710 = vmatprep.subr.mxu0 %v4572
    %4711 = vmatpush1.msra.mxu0 %v4571
    %4712 = vmatprep.subr.mxu0 %v4576
    %4713 = vmatpush1.msra.mxu0 %v4575
    %4714 = vmatprep.subr.mxu0 %v4580
    %4715 = vmatpush1.msra.mxu0 %v4579
    %4716 = vmatprep.mubr.f32.mxu0 %v4163
    %4717 = vmatmul.mubr.f32.gmra.mrb[0].mxu0 %v4452
    %v4718 = vpop.f32.mrb[0].mxu0
    %v4719 = vadd.f32 %v511, %v4718
    %v4720 = vpop.f32.mrb[0].mxu0
    %v4721 = vadd.f32 %v515, %v4720
    %4722 = vdwg.mxu0
    %v4723 = vmul.f32 %v4648, 0.5
    %v4724 = vtanh.pop %v4723
    %v4725 = vmul.f32 %v4724, 0.5
    %v4726 = vadd.f32 %v4725, 0.5
    %v4727 = vmul.f32 %v4650, 0.5
    %v4728 = vtanh.pop %v4727
    %v4729 = vmul.f32 %v4728, 0.5
    %v4730 = vadd.f32 %v4729, 0.5
    %v4731 = vtanh.pop %v4719
    %v4732 = vmul.f32 %v4721, 0.5
    %v4733 = vtanh.pop %v4732
    %v4734 = vmul.f32 %v4733, 0.5
    %v4735 = vadd.f32 %v4734, 0.5
    %v4736 = vmul.f32 %v4730, %v4161
    %v4737 = vmul.f32 %v4726, %v4731
    %v4738 = vadd.f32 %v4736, %v4737
    %v4739 = vtanh.pop %v4738
    %v4740 = vmul.f32 %v4735, %v4739
    %4741 = vst [vmem:[#allocation7 + $0x7] sm:$0x1] %v4740
    // Predicated region
    $region30: #{tpu_custom_call.1} parent=1 // pred_check
      _
    $region31: #{tpu_custom_call.1} parent=1 // pred_check_branch
      %4743 = sbr.rel (0) target = $region33
    $region32: #{tpu_custom_call.1} parent=1 // pred_region
      %s4745 = ssub.s32 128, 128
      %4746 = vsyncadd [#allocation4], %s4745
      %s4748 = sshll.u32 [#allocation7], 4
      %s4749 = int_to_ptr.vmem [resolvable:$true] %s4748
      %4751 = dma.vmem_to_hbm [thread:$0]  %s4749, 128, %s5, [#allocation4]
    $region33: #{tpu_custom_call.1} parent=1 // pred_fallthru
      _
    // Predicated region
    $region34: #{tpu_custom_call.1} parent=1 // pred_check
      _
    $region35: #{tpu_custom_call.1} parent=1 // pred_check_branch
      %4753 = sbr.rel (0) target = $region37
    $region36: #{tpu_custom_call.1} parent=1 // pred_region
      %4754 = dma.done [#allocation4], 128
    $region37: #{tpu_custom_call.1} parent=1 // pred_fallthru
      _
    %4755 = vsyncpa [#allocation3], 1
    %4756 = vsyncpa [#allocation6], 1
    %4757 = vsyncpa [#allocation4], 1

</llo_original>
